<compile_context>
chip_gen: v5e
topology: v5e:2x2
jax: 0.10.0
libtpu: 0.0.40
codegen_flags: <defaults>
</compile_context>

<pallas_src>
import jax
import jax.numpy as jnp
from jax.experimental import pallas as pl
from jax.experimental.pallas import tpu as pltpu


_LANE = 128  # channel padding target; 256 can help further on v6e/v7x MXUs.


def _round_up(n, m):
    return ((n + m - 1) // m) * m


# ----------------------------------------------------------------------------
# Fused OSA kernel (one batch element per grid step)
# ----------------------------------------------------------------------------
def _make_osa_kernel(L, H, W, in_p, st_p, cc_p):
    HW = H * W
    WP = W + 16          # halo cols at 7 and 8+W; interior at cols 8..8+W-1
    HP = H + 2

    def kernel(*refs):
        # inputs : x, cw_seg0, [wpk_i, b_i, cw_seg_{i+1}] * L, cb, fw, fb
        # outputs: o_ref
        # scratch: pad0 (+ pad1 if L > 1), big, acc
        x_ref = refs[0]
        cw0_ref = refs[1]
        layer_refs = refs[2:2 + 3 * L]
        cb_ref, fw_ref, fb_ref = refs[2 + 3 * L:5 + 3 * L]
        o_ref = refs[5 + 3 * L]
        scratch = refs[6 + 3 * L:]
        pad_bufs = scratch[:-2]
        big_ref = scratch[-2]
        acc_ref = scratch[-1]

        # Input feature map for this batch element (bf16, channel padded);
        # stays on-chip for the whole fused block.
        x = x_ref[0]                                            # (H, W, in_p)

        # Running 1x1 "concat" conv accumulator (replaces torch.cat) kept in
        # an explicit f32 VMEM scratch to bound vreg pressure.
        acc_ref[...] = jnp.dot(x.reshape(HW, in_p), cw0_ref[...],
                               preferred_element_type=jnp.float32)

        feat = x                                                # bf16
        cin = in_p
        for i in range(L):
            wpk_ref, b_ref, seg_ref = layer_refs[3 * i:3 * i + 3]
            pad_ref = pad_bufs[0] if i == 0 else pad_bufs[-1]

            # Zero ONLY the halo border strips the first time each pad buffer
            # is used in this grid step.  (Not guarded by program_id == 0:
            # with the batch axis "parallel" each core may own its own scratch
            # and a once-per-call init would leave other cores' halo garbage.)
            if i < len(pad_bufs):
                zrow = jnp.zeros((1, WP, cin), jnp.bfloat16)
                pad_ref[0:1, :, :] = zrow
                pad_ref[H + 1:H + 2, :, :] = zrow
                zcol = jnp.zeros((H, 8, cin), jnp.bfloat16)
                pad_ref[1:H + 1, 0:8, :] = zcol
                pad_ref[1:H + 1, 8 + W:WP, :] = zcol

            # Interior write starts at column 8 -> sublane-aligned store.
            pad_ref[1:H + 1, 8:8 + W, :] = feat

            # Stage the three dx-shifted columns once each into a lane-packed
            # ((H+2)*W, 3*cin) slab; every dy tap is then just a row slice.
            for dx in range(3):
                col = pad_ref[:, 7 + dx:7 + dx + W, :]          # (H+2, W, cin)
                big_ref[:, dx * cin:(dx + 1) * cin] = col.reshape(HP * W, cin)

            # 3x3 conv == 3 MXU matmuls with K = 3*cin (dx fused into K).
            acc = jnp.dot(big_ref[0:HW, 0:3 * cin], wpk_ref[0],
                          preferred_element_type=jnp.float32)
            acc = acc + jnp.dot(big_ref[W:W + HW, 0:3 * cin], wpk_ref[1],
                                preferred_element_type=jnp.float32)
            acc = acc + jnp.dot(big_ref[2 * W:2 * W + HW, 0:3 * cin], wpk_ref[2],
                                preferred_element_type=jnp.float32)

            # BN (scale pre-folded into the weights) + ReLU, in f32.
            feat_f32 = jnp.maximum(acc + b_ref[...], 0.0)       # (HW, st_p)
            feat_bf = feat_f32.astype(jnp.bfloat16)

            # Fold this layer's output into the concat 1x1 conv on the fly.
            acc_ref[...] += jnp.dot(feat_bf, seg_ref[...],
                                    preferred_element_type=jnp.float32)

            feat = feat_bf.reshape(H, W, st_p)
            cin = st_p

        # Concat-conv bias + ReLU (scale already folded into the segments).
        y = jnp.maximum(acc_ref[...] + cb_ref[...], 0.0)        # (HW, cc_p) f32

        # eSE: global average pool -> fc -> hard sigmoid -> channel re-weight.
        # Exact because one grid step holds the whole spatial extent; spatial
        # tiling would need a cross-tile pooled accumulator + finalize pass.
        pooled = jnp.mean(y, axis=0, keepdims=True)             # (1, cc_p)
        gate = jnp.dot(pooled, fw_ref[...],
                       preferred_element_type=jnp.float32) + fb_ref[...]
        gate = jnp.clip(gate + 3.0, 0.0, 6.0) * (1.0 / 6.0)     # Hsigmoid
        o_ref[0] = (y * gate).reshape(H, W, cc_p).astype(o_ref.dtype)

    return kernel


# ----------------------------------------------------------------------------
# One-time parameter preprocessing: BN fold, channel pad, dy-pack, bf16 cast.
# ----------------------------------------------------------------------------
def _prepare_fused_params(params, in_ch):
    layers = params["layers"]
    L = len(layers)
    stage_ch = layers[0][0].shape[-1]
    concat_w = params["concat_w"]                      # (Ccat, Cout)
    concat_ch = concat_w.shape[-1]

    in_p = _round_up(in_ch, _LANE)
    st_p = _round_up(stage_ch, _LANE)
    cc_p = _round_up(concat_ch, _LANE)

    cs = params["concat_s"][0]                         # (Cout,)

    # Concat-conv segments (replace torch.cat): fold the concat BN scale in,
    # zero-pad to lane multiples, cast to bf16.
    seg_sizes = [in_ch] + [stage_ch] * L
    seg_pads = [in_p] + [st_p] * L
    segs = []
    off = 0
    for sz, szp in zip(seg_sizes, seg_pads):
        seg = concat_w[off:off + sz] * cs[None, :]
        seg_p = jnp.zeros((szp, cc_p), jnp.float32).at[:sz, :concat_ch].set(seg)
        segs.append(seg_p.astype(jnp.bfloat16))
        off += sz

    fused_layers = []
    cin, cin_p = in_ch, in_p
    for i, (w, s, b) in enumerate(layers):
        wf = w * s[0][None, None, None, :]             # fold BN scale (HWIO)
        wp = jnp.zeros((3, 3, cin_p, st_p), jnp.float32)
        wp = wp.at[:, :, :cin, :stage_ch].set(wf)
        wpk = wp.reshape(3, 3 * cin_p, st_p).astype(jnp.bfloat16)  # dx -> K
        bp = jnp.zeros((1, st_p), jnp.float32).at[:, :stage_ch].set(b)
        fused_layers.append((wpk, bp, segs[i + 1]))
        cin, cin_p = stage_ch, st_p

    cbp = jnp.zeros((1, cc_p), jnp.float32).at[:, :concat_ch].set(params["concat_b"])
    fwp = jnp.zeros((cc_p, cc_p), jnp.float32).at[:concat_ch, :concat_ch].set(params["fc_w"])
    fbp = jnp.zeros((1, cc_p), jnp.float32).at[:, :concat_ch].set(params["fc_b"])

    return dict(L=L, in_p=in_p, st_p=st_p, cc_p=cc_p, concat_ch=concat_ch,
                cw0=segs[0], layers=fused_layers, cb=cbp, fw=fwp, fb=fbp)


# ----------------------------------------------------------------------------
# Pallas wrapper
# ----------------------------------------------------------------------------
def _osa_pallas(x_nhwc_p, fp, out_dtype):
    N, H, W, in_p = x_nhwc_p.shape
    L, st_p, cc_p = fp["L"], fp["st_p"], fp["cc_p"]
    HW = H * W
    WP = W + 16

    # Constant-index inputs never change across the batch grid -> single
    # buffer them (default double-buffering would 2x the weight VMEM).
    def const_spec(shape):
        if len(shape) == 2:
            return pl.BlockSpec(shape, lambda n: (0, 0),
                                pipeline_mode=pl.Buffered(1))
        return pl.BlockSpec(shape, lambda n: (0, 0, 0),
                            pipeline_mode=pl.Buffered(1))

    inputs = [x_nhwc_p, fp["cw0"]]
    in_specs = [
        pl.BlockSpec((1, H, W, in_p), lambda n: (n, 0, 0, 0)),
        const_spec((in_p, cc_p)),
    ]
    for (wpk, bp, seg) in fp["layers"]:
        inputs += [wpk, bp, seg]
        in_specs += [const_spec(tuple(wpk.shape)),
                     const_spec(tuple(bp.shape)),
                     const_spec(tuple(seg.shape))]
    inputs += [fp["cb"], fp["fw"], fp["fb"]]
    in_specs += [const_spec(tuple(fp["cb"].shape)),
                 const_spec(tuple(fp["fw"].shape)),
                 const_spec(tuple(fp["fb"].shape))]

    # Scratch: halo-padded plane(s) + lane-packed tap slab + concat accumulator.
    scratch_shapes = [pltpu.VMEM((H + 2, WP, in_p), jnp.bfloat16)]
    if L > 1:
        scratch_shapes.append(pltpu.VMEM((H + 2, WP, st_p), jnp.bfloat16))
    scratch_shapes.append(
        pltpu.VMEM(((H + 2) * W, 3 * max(in_p, st_p)), jnp.bfloat16))
    scratch_shapes.append(pltpu.VMEM((HW, cc_p), jnp.float32))

    # Scoped-VMEM budget sized from the actual working set, with headroom,
    # clipped to v7x's 64 MiB physical VMEM per TensorCore.
    out_itemsize = jnp.dtype(out_dtype).itemsize
    weight_bytes = sum(int(a.size) * a.dtype.itemsize for a in inputs[1:])
    io_bytes = 2 * H * W * in_p * 2 + 2 * H * W * cc_p * out_itemsize
    scratch_bytes = ((H + 2) * WP * in_p * 2
                     + (1 if L > 1 else 0) * (H + 2) * WP * st_p * 2
                     + (H + 2) * W * 3 * max(in_p, st_p) * 2
                     + HW * cc_p * 4)
    est = weight_bytes + io_bytes + scratch_bytes
    vmem_limit = int(min(max(est + (8 << 20), 32 << 20), 64 << 20))

    kernel = _make_osa_kernel(L, H, W, in_p, st_p, cc_p)
    return pl.pallas_call(
        kernel,
        out_shape=jax.ShapeDtypeStruct((N, H, W, cc_p), out_dtype),
        grid=(N,),
        in_specs=in_specs,
        out_specs=pl.BlockSpec((1, H, W, cc_p), lambda n: (n, 0, 0, 0)),
        scratch_shapes=scratch_shapes,
        compiler_params=pltpu.CompilerParams(
            dimension_semantics=("parallel",),   # batch across cores (v7x)
            vmem_limit_bytes=vmem_limit),
    )(*inputs)


def osa_forward(x_nchw, params):
    """_OSA_module.forward (SE=False, identity=False, depthwise=False), NCHW I/O."""
    in_ch = x_nchw.shape[1]
    concat_ch = params["concat_w"].shape[-1]

    # One-time preprocessing (in a real network this is done once at load).
    fp = _prepare_fused_params(params, in_ch)

    x = jnp.transpose(x_nchw, (0, 2, 3, 1))                  # NCHW -> NHWC
    N, H, W, _ = x.shape
    xp = jnp.zeros((N, H, W, fp["in_p"]), jnp.bfloat16)
    xp = xp.at[..., :in_ch].set(x.astype(jnp.bfloat16))      # lane pad + bf16

    y = _osa_pallas(xp, fp, out_dtype=x_nchw.dtype)          # f32 out (parity)
    y = y[..., :concat_ch]                                   # drop channel pad
    # TODO(synk): identity / depthwise / conv_reduction branches (constructor
    # defaults are False) are not implemented.
    return jnp.transpose(y, (0, 3, 1, 2))                    # NHWC -> NCHW


# ----------------------------------------------------------------------------
# Deterministic parameter construction (conv + folded BN, PyTorch layout)
# ----------------------------------------------------------------------------
def _bn_fold(key, c):
    k1, k2, k3, k4 = jax.random.split(key, 4)
    gamma = 1.0 + 0.1 * jax.random.normal(k1, (c,), jnp.float32)
    beta = 0.1 * jax.random.normal(k2, (c,), jnp.float32)
    mean = 0.1 * jax.random.normal(k3, (c,), jnp.float32)
    var = jnp.abs(jax.random.normal(k4, (c,), jnp.float32)) + 0.5
    scale = gamma / jnp.sqrt(var + 1e-5)
    bias = beta - mean * scale
    return scale.reshape(1, c), bias.reshape(1, c)


def make_params(key, in_ch, stage_ch, concat_ch, layer_per_block):
    keys = jax.random.split(key, layer_per_block + 2)
    layers = []
    cin = in_ch
    for i in range(layer_per_block):
        kw, kbn = jax.random.split(keys[i])
        w_oihw = 0.1 * jax.random.normal(kw, (stage_ch, cin, 3, 3), jnp.float32)
        w = jnp.transpose(w_oihw, (2, 3, 1, 0))                 # OIHW -> HWIO
        s, b = _bn_fold(kbn, stage_ch)
        layers.append((w, s, b))
        cin = stage_ch

    kw, kbn = jax.random.split(keys[-2])
    ccat = in_ch + layer_per_block * stage_ch
    wc_oihw = 0.1 * jax.random.normal(kw, (concat_ch, ccat, 1, 1), jnp.float32)
    concat_w = jnp.transpose(wc_oihw[:, :, 0, 0], (1, 0))       # (Ccat, Cout)
    concat_s, concat_b = _bn_fold(kbn, concat_ch)

    kfw, kfb = jax.random.split(keys[-1])
    fc_oihw = 0.1 * jax.random.normal(kfw, (concat_ch, concat_ch, 1, 1), jnp.float32)
    fc_w = jnp.transpose(fc_oihw[:, :, 0, 0], (1, 0))           # (Cin, Cout)
    fc_b = 0.1 * jax.random.normal(kfb, (1, concat_ch), jnp.float32)

    return dict(layers=layers, concat_w=concat_w, concat_s=concat_s,
                concat_b=concat_b, fc_w=fc_w, fc_b=fc_b)


# ----------------------------------------------------------------------------
# Pure-JAX f32 reference (same math, NHWC, unpadded)
# ----------------------------------------------------------------------------
def _ref_forward(x_nhwc, params):
    def conv3(x, w, s, b):
        y = jax.lax.conv_general_dilated(
            x, w, (1, 1), "SAME",
            dimension_numbers=("NHWC", "HWIO", "NHWC"))
        return jnp.maximum(y * s[0] + b[0], 0.0)

    outs = [x_nhwc]
    feat = x_nhwc
    for (w, s, b) in params["layers"]:
        feat = conv3(feat, w, s, b)
        outs.append(feat)
    xc = jnp.concatenate(outs, axis=-1)
    y = jnp.einsum("nhwc,co->nhwo", xc, params["concat_w"])
    y = jnp.maximum(y * params["concat_s"][0] + params["concat_b"][0], 0.0)
    pooled = jnp.mean(y, axis=(1, 2))                           # (N, Cout)
    gate = pooled @ params["fc_w"] + params["fc_b"][0]
    gate = jnp.clip(gate + 3.0, 0.0, 6.0) / 6.0
    return y * gate[:, None, None, :]


# ----------------------------------------------------------------------------
if __name__ == "__main__":
    key = jax.random.PRNGKey(0)
    kx, kp = jax.random.split(key)

    # Small shapes consistent with the module.
    N, in_ch, H, W = 2, 4, 16, 16
    stage_ch, concat_ch, layer_per_block = 8, 16, 3

    x_nchw = jax.random.normal(kx, (N, in_ch, H, W), jnp.float32)
    params = make_params(kp, in_ch, stage_ch, concat_ch, layer_per_block)

    osa_jit = jax.jit(osa_forward)
    out = jax.block_until_ready(osa_jit(x_nchw, params))

    ref = _ref_forward(jnp.transpose(x_nchw, (0, 2, 3, 1)), params)
    ref = jnp.transpose(ref, (0, 3, 1, 2))

    assert out.shape == (N, concat_ch, H, W), out.shape
    err = float(jnp.max(jnp.abs(out - ref)))
    # bf16 MXU staging -> slightly looser tolerance than the f32 reference.
    assert jnp.allclose(out, ref, rtol=5e-2, atol=5e-2), err

    print("KERNEL_OK")
</pallas_src>

<mosaic_0001>
module attributes {stable_mosaic.version = 11 : i64} {
  func.func @kernel(%arg0: i32, %arg1: memref<1x16x16x128xbf16, #tpu.memory_space<vmem>>, %arg2: memref<128x128xbf16, #tpu.memory_space<vmem>>, %arg3: memref<3x384x128xbf16, #tpu.memory_space<vmem>>, %arg4: memref<1x128xf32, #tpu.memory_space<vmem>>, %arg5: memref<128x128xbf16, #tpu.memory_space<vmem>>, %arg6: memref<3x384x128xbf16, #tpu.memory_space<vmem>>, %arg7: memref<1x128xf32, #tpu.memory_space<vmem>>, %arg8: memref<128x128xbf16, #tpu.memory_space<vmem>>, %arg9: memref<3x384x128xbf16, #tpu.memory_space<vmem>>, %arg10: memref<1x128xf32, #tpu.memory_space<vmem>>, %arg11: memref<128x128xbf16, #tpu.memory_space<vmem>>, %arg12: memref<1x128xf32, #tpu.memory_space<vmem>>, %arg13: memref<128x128xf32, #tpu.memory_space<vmem>>, %arg14: memref<1x128xf32, #tpu.memory_space<vmem>>, %arg15: memref<1x16x16x128xf32, #tpu.memory_space<vmem>>, %arg16: memref<18x32x128xbf16, #tpu.memory_space<vmem>>, %arg17: memref<18x32x128xbf16, #tpu.memory_space<vmem>>, %arg18: memref<288x384xbf16, #tpu.memory_space<vmem>>, %arg19: memref<256x128xf32, #tpu.memory_space<vmem>>) attributes {dimension_semantics = [#tpu.dimension_semantics<parallel>], iteration_bounds = array<i64: 2>, scalar_prefetch = 0 : i64, scratch_operands = 4 : i64, tpu.core_type = #tpu.core_type<tc>, window_params = [{transform_indices = @transform_0, window_bounds = array<i64: 1, 16, 16, 128>}, {pipeline_mode = #tpu.pipeline_mode<synchronous>, transform_indices = @transform_1, window_bounds = array<i64: 128, 128>}, {pipeline_mode = #tpu.pipeline_mode<synchronous>, transform_indices = @transform_2, window_bounds = array<i64: 3, 384, 128>}, {pipeline_mode = #tpu.pipeline_mode<synchronous>, transform_indices = @transform_3, window_bounds = array<i64: 1, 128>}, {pipeline_mode = #tpu.pipeline_mode<synchronous>, transform_indices = @transform_4, window_bounds = array<i64: 128, 128>}, {pipeline_mode = #tpu.pipeline_mode<synchronous>, transform_indices = @transform_5, window_bounds = array<i64: 3, 384, 128>}, {pipeline_mode = #tpu.pipeline_mode<synchronous>, transform_indices = @transform_6, window_bounds = array<i64: 1, 128>}, {pipeline_mode = #tpu.pipeline_mode<synchronous>, transform_indices = @transform_7, window_bounds = array<i64: 128, 128>}, {pipeline_mode = #tpu.pipeline_mode<synchronous>, transform_indices = @transform_8, window_bounds = array<i64: 3, 384, 128>}, {pipeline_mode = #tpu.pipeline_mode<synchronous>, transform_indices = @transform_9, window_bounds = array<i64: 1, 128>}, {pipeline_mode = #tpu.pipeline_mode<synchronous>, transform_indices = @transform_10, window_bounds = array<i64: 128, 128>}, {pipeline_mode = #tpu.pipeline_mode<synchronous>, transform_indices = @transform_11, window_bounds = array<i64: 1, 128>}, {pipeline_mode = #tpu.pipeline_mode<synchronous>, transform_indices = @transform_12, window_bounds = array<i64: 128, 128>}, {pipeline_mode = #tpu.pipeline_mode<synchronous>, transform_indices = @transform_13, window_bounds = array<i64: 1, 128>}, {transform_indices = @transform_14, window_bounds = array<i64: 1, 16, 16, 128>}]} {
    %c0 = arith.constant 0 : index
    %c0_0 = arith.constant 0 : index
    %c0_1 = arith.constant 0 : index
    %c0_2 = arith.constant 0 : index
    %0 = vector.load %arg1[%c0, %c0_0, %c0_1, %c0_2] : memref<1x16x16x128xbf16, #tpu.memory_space<vmem>>, vector<1x16x16x128xbf16>
    %1 = vector.shape_cast %0 : vector<1x16x16x128xbf16> to vector<16x16x128xbf16>
    %2 = vector.shape_cast %1 : vector<16x16x128xbf16> to vector<256x128xbf16>
    %c0_3 = arith.constant 0 : index
    %c0_4 = arith.constant 0 : index
    %3 = vector.load %arg2[%c0_3, %c0_4] : memref<128x128xbf16, #tpu.memory_space<vmem>>, vector<128x128xbf16>
    %cst = arith.constant dense<0.000000e+00> : vector<256x128xf32>
    %4 = tpu.matmul %2, %3, %cst {dimension_numbers = #tpu.dot_dimension_numbers<[1], [0], [0], [1], [0, 0, 1, 1], [], []>} : vector<256x128xbf16>, vector<128x128xbf16>, vector<256x128xf32> -> vector<256x128xf32>
    %c0_5 = arith.constant 0 : index
    %c0_6 = arith.constant 0 : index
    %5 = vector.load %arg19[%c0_5, %c0_6] : memref<256x128xf32, #tpu.memory_space<vmem>>, vector<256x128xf32>
    tpu.vector_store %arg19[%c0_5, %c0_6], %4 {strides = array<i32>} : memref<256x128xf32, #tpu.memory_space<vmem>>, vector<256x128xf32>,
    %cst_7 = arith.constant 0.000000e+00 : bf16
    %6 = vector.broadcast %cst_7 : bf16 to vector<1x32x128xbf16>
    %c0_8 = arith.constant 0 : index
    %c0_9 = arith.constant 0 : index
    %c0_10 = arith.constant 0 : index
    %7 = vector.load %arg16[%c0_8, %c0_9, %c0_10] : memref<18x32x128xbf16, #tpu.memory_space<vmem>>, vector<1x32x128xbf16>
    tpu.vector_store %arg16[%c0_8, %c0_9, %c0_10], %6 {strides = array<i32>} : memref<18x32x128xbf16, #tpu.memory_space<vmem>>, vector<1x32x128xbf16>,
    %c17 = arith.constant 17 : index
    %c0_11 = arith.constant 0 : index
    %c0_12 = arith.constant 0 : index
    %8 = vector.load %arg16[%c17, %c0_11, %c0_12] : memref<18x32x128xbf16, #tpu.memory_space<vmem>>, vector<1x32x128xbf16>
    tpu.vector_store %arg16[%c17, %c0_11, %c0_12], %6 {strides = array<i32>} : memref<18x32x128xbf16, #tpu.memory_space<vmem>>, vector<1x32x128xbf16>,
    %cst_13 = arith.constant 0.000000e+00 : bf16
    %9 = vector.broadcast %cst_13 : bf16 to vector<16x8x128xbf16>
    %c1 = arith.constant 1 : index
    %c0_14 = arith.constant 0 : index
    %c0_15 = arith.constant 0 : index
    %10 = vector.load %arg16[%c1, %c0_14, %c0_15] : memref<18x32x128xbf16, #tpu.memory_space<vmem>>, vector<16x8x128xbf16>
    tpu.vector_store %arg16[%c1, %c0_14, %c0_15], %9 {strides = array<i32>} : memref<18x32x128xbf16, #tpu.memory_space<vmem>>, vector<16x8x128xbf16>,
    %c1_16 = arith.constant 1 : index
    %c24 = arith.constant 24 : index
    %c0_17 = arith.constant 0 : index
    %11 = vector.load %arg16[%c1_16, %c24, %c0_17] : memref<18x32x128xbf16, #tpu.memory_space<vmem>>, vector<16x8x128xbf16>
    tpu.vector_store %arg16[%c1_16, %c24, %c0_17], %9 {strides = array<i32>} : memref<18x32x128xbf16, #tpu.memory_space<vmem>>, vector<16x8x128xbf16>,
    %c1_18 = arith.constant 1 : index
    %c8 = arith.constant 8 : index
    %c0_19 = arith.constant 0 : index
    %12 = vector.load %arg16[%c1_18, %c8, %c0_19] : memref<18x32x128xbf16, #tpu.memory_space<vmem>>, vector<16x16x128xbf16>
    tpu.vector_store %arg16[%c1_18, %c8, %c0_19], %1 {strides = array<i32>} : memref<18x32x128xbf16, #tpu.memory_space<vmem>>, vector<16x16x128xbf16>,
    %c0_20 = arith.constant 0 : index
    %c7 = arith.constant 7 : index
    %c0_21 = arith.constant 0 : index
    %13 = vector.load %arg16[%c0_20, %c7, %c0_21] : memref<18x32x128xbf16, #tpu.memory_space<vmem>>, vector<18x16x128xbf16>
    %14 = vector.shape_cast %13 : vector<18x16x128xbf16> to vector<288x128xbf16>
    %c0_22 = arith.constant 0 : index
    %c0_23 = arith.constant 0 : index
    %15 = vector.load %arg18[%c0_22, %c0_23] : memref<288x384xbf16, #tpu.memory_space<vmem>>, vector<288x128xbf16>
    tpu.vector_store %arg18[%c0_22, %c0_23], %14 {strides = array<i32>} : memref<288x384xbf16, #tpu.memory_space<vmem>>, vector<288x128xbf16>,
    %c0_24 = arith.constant 0 : index
    %c8_25 = arith.constant 8 : index
    %c0_26 = arith.constant 0 : index
    %16 = vector.load %arg16[%c0_24, %c8_25, %c0_26] : memref<18x32x128xbf16, #tpu.memory_space<vmem>>, vector<18x16x128xbf16>
    %17 = vector.shape_cast %16 : vector<18x16x128xbf16> to vector<288x128xbf16>
    %c0_27 = arith.constant 0 : index
    %c128 = arith.constant 128 : index
    %18 = vector.load %arg18[%c0_27, %c128] : memref<288x384xbf16, #tpu.memory_space<vmem>>, vector<288x128xbf16>
    tpu.vector_store %arg18[%c0_27, %c128], %17 {strides = array<i32>} : memref<288x384xbf16, #tpu.memory_space<vmem>>, vector<288x128xbf16>,
    %c0_28 = arith.constant 0 : index
    %c9 = arith.constant 9 : index
    %c0_29 = arith.constant 0 : index
    %19 = vector.load %arg16[%c0_28, %c9, %c0_29] : memref<18x32x128xbf16, #tpu.memory_space<vmem>>, vector<18x16x128xbf16>
    %20 = vector.shape_cast %19 : vector<18x16x128xbf16> to vector<288x128xbf16>
    %c0_30 = arith.constant 0 : index
    %c256 = arith.constant 256 : index
    %21 = vector.load %arg18[%c0_30, %c256] : memref<288x384xbf16, #tpu.memory_space<vmem>>, vector<288x128xbf16>
    tpu.vector_store %arg18[%c0_30, %c256], %20 {strides = array<i32>} : memref<288x384xbf16, #tpu.memory_space<vmem>>, vector<288x128xbf16>,
    %c0_31 = arith.constant 0 : index
    %c0_32 = arith.constant 0 : index
    %22 = vector.load %arg18[%c0_31, %c0_32] : memref<288x384xbf16, #tpu.memory_space<vmem>>, vector<256x384xbf16>
    %c0_33 = arith.constant 0 : index
    %c0_34 = arith.constant 0 : index
    %c0_35 = arith.constant 0 : index
    %23 = vector.load %arg3[%c0_33, %c0_34, %c0_35] : memref<3x384x128xbf16, #tpu.memory_space<vmem>>, vector<1x384x128xbf16>
    %24 = vector.shape_cast %23 : vector<1x384x128xbf16> to vector<384x128xbf16>
    %cst_36 = arith.constant dense<0.000000e+00> : vector<256x128xf32>
    %25 = tpu.matmul %22, %24, %cst_36 {dimension_numbers = #tpu.dot_dimension_numbers<[1], [0], [0], [1], [0, 0, 1, 1], [], []>} : vector<256x384xbf16>, vector<384x128xbf16>, vector<256x128xf32> -> vector<256x128xf32>
    %c16 = arith.constant 16 : index
    %c0_37 = arith.constant 0 : index
    %26 = vector.load %arg18[%c16, %c0_37] : memref<288x384xbf16, #tpu.memory_space<vmem>>, vector<256x384xbf16>
    %c1_38 = arith.constant 1 : index
    %c0_39 = arith.constant 0 : index
    %c0_40 = arith.constant 0 : index
    %27 = vector.load %arg3[%c1_38, %c0_39, %c0_40] : memref<3x384x128xbf16, #tpu.memory_space<vmem>>, vector<1x384x128xbf16>
    %28 = vector.shape_cast %27 : vector<1x384x128xbf16> to vector<384x128xbf16>
    %cst_41 = arith.constant dense<0.000000e+00> : vector<256x128xf32>
    %29 = tpu.matmul %26, %28, %cst_41 {dimension_numbers = #tpu.dot_dimension_numbers<[1], [0], [0], [1], [0, 0, 1, 1], [], []>} : vector<256x384xbf16>, vector<384x128xbf16>, vector<256x128xf32> -> vector<256x128xf32>
    %30 = arith.addf %25, %29 : vector<256x128xf32>
    %c32 = arith.constant 32 : index
    %c0_42 = arith.constant 0 : index
    %31 = vector.load %arg18[%c32, %c0_42] : memref<288x384xbf16, #tpu.memory_space<vmem>>, vector<256x384xbf16>
    %c2 = arith.constant 2 : index
    %c0_43 = arith.constant 0 : index
    %c0_44 = arith.constant 0 : index
    %32 = vector.load %arg3[%c2, %c0_43, %c0_44] : memref<3x384x128xbf16, #tpu.memory_space<vmem>>, vector<1x384x128xbf16>
    %33 = vector.shape_cast %32 : vector<1x384x128xbf16> to vector<384x128xbf16>
    %cst_45 = arith.constant dense<0.000000e+00> : vector<256x128xf32>
    %34 = tpu.matmul %31, %33, %cst_45 {dimension_numbers = #tpu.dot_dimension_numbers<[1], [0], [0], [1], [0, 0, 1, 1], [], []>} : vector<256x384xbf16>, vector<384x128xbf16>, vector<256x128xf32> -> vector<256x128xf32>
    %35 = arith.addf %30, %34 : vector<256x128xf32>
    %c0_46 = arith.constant 0 : index
    %c0_47 = arith.constant 0 : index
    %36 = vector.load %arg4[%c0_46, %c0_47] : memref<1x128xf32, #tpu.memory_space<vmem>>, vector<1x128xf32>
    %37 = vector.broadcast %36 : vector<1x128xf32> to vector<256x128xf32>
    %38 = arith.addf %35, %37 : vector<256x128xf32>
    %cst_48 = arith.constant 0.000000e+00 : f32
    %39 = vector.broadcast %cst_48 : f32 to vector<256x128xf32>
    %40 = arith.maximumf %38, %39 : vector<256x128xf32>
    %41 = arith.truncf %40 : vector<256x128xf32> to vector<256x128xbf16>
    %c0_49 = arith.constant 0 : index
    %c0_50 = arith.constant 0 : index
    %42 = vector.load %arg19[%c0_49, %c0_50] : memref<256x128xf32, #tpu.memory_space<vmem>>, vector<256x128xf32>
    %c0_51 = arith.constant 0 : index
    %c0_52 = arith.constant 0 : index
    %43 = vector.load %arg5[%c0_51, %c0_52] : memref<128x128xbf16, #tpu.memory_space<vmem>>, vector<128x128xbf16>
    %cst_53 = arith.constant dense<0.000000e+00> : vector<256x128xf32>
    %44 = tpu.matmul %41, %43, %cst_53 {dimension_numbers = #tpu.dot_dimension_numbers<[1], [0], [0], [1], [0, 0, 1, 1], [], []>} : vector<256x128xbf16>, vector<128x128xbf16>, vector<256x128xf32> -> vector<256x128xf32>
    %45 = arith.addf %42, %44 : vector<256x128xf32>
    %c0_54 = arith.constant 0 : index
    %c0_55 = arith.constant 0 : index
    %46 = vector.load %arg19[%c0_54, %c0_55] : memref<256x128xf32, #tpu.memory_space<vmem>>, vector<256x128xf32>
    tpu.vector_store %arg19[%c0_54, %c0_55], %45 {strides = array<i32>} : memref<256x128xf32, #tpu.memory_space<vmem>>, vector<256x128xf32>,
    %47 = vector.shape_cast %41 : vector<256x128xbf16> to vector<16x16x128xbf16>
    %cst_56 = arith.constant 0.000000e+00 : bf16
    %48 = vector.broadcast %cst_56 : bf16 to vector<1x32x128xbf16>
    %c0_57 = arith.constant 0 : index
    %c0_58 = arith.constant 0 : index
    %c0_59 = arith.constant 0 : index
    %49 = vector.load %arg17[%c0_57, %c0_58, %c0_59] : memref<18x32x128xbf16, #tpu.memory_space<vmem>>, vector<1x32x128xbf16>
    tpu.vector_store %arg17[%c0_57, %c0_58, %c0_59], %48 {strides = array<i32>} : memref<18x32x128xbf16, #tpu.memory_space<vmem>>, vector<1x32x128xbf16>,
    %c17_60 = arith.constant 17 : index
    %c0_61 = arith.constant 0 : index
    %c0_62 = arith.constant 0 : index
    %50 = vector.load %arg17[%c17_60, %c0_61, %c0_62] : memref<18x32x128xbf16, #tpu.memory_space<vmem>>, vector<1x32x128xbf16>
    tpu.vector_store %arg17[%c17_60, %c0_61, %c0_62], %48 {strides = array<i32>} : memref<18x32x128xbf16, #tpu.memory_space<vmem>>, vector<1x32x128xbf16>,
    %cst_63 = arith.constant 0.000000e+00 : bf16
    %51 = vector.broadcast %cst_63 : bf16 to vector<16x8x128xbf16>
    %c1_64 = arith.constant 1 : index
    %c0_65 = arith.constant 0 : index
    %c0_66 = arith.constant 0 : index
    %52 = vector.load %arg17[%c1_64, %c0_65, %c0_66] : memref<18x32x128xbf16, #tpu.memory_space<vmem>>, vector<16x8x128xbf16>
    tpu.vector_store %arg17[%c1_64, %c0_65, %c0_66], %51 {strides = array<i32>} : memref<18x32x128xbf16, #tpu.memory_space<vmem>>, vector<16x8x128xbf16>,
    %c1_67 = arith.constant 1 : index
    %c24_68 = arith.constant 24 : index
    %c0_69 = arith.constant 0 : index
    %53 = vector.load %arg17[%c1_67, %c24_68, %c0_69] : memref<18x32x128xbf16, #tpu.memory_space<vmem>>, vector<16x8x128xbf16>
    tpu.vector_store %arg17[%c1_67, %c24_68, %c0_69], %51 {strides = array<i32>} : memref<18x32x128xbf16, #tpu.memory_space<vmem>>, vector<16x8x128xbf16>,
    %c1_70 = arith.constant 1 : index
    %c8_71 = arith.constant 8 : index
    %c0_72 = arith.constant 0 : index
    %54 = vector.load %arg17[%c1_70, %c8_71, %c0_72] : memref<18x32x128xbf16, #tpu.memory_space<vmem>>, vector<16x16x128xbf16>
    tpu.vector_store %arg17[%c1_70, %c8_71, %c0_72], %47 {strides = array<i32>} : memref<18x32x128xbf16, #tpu.memory_space<vmem>>, vector<16x16x128xbf16>,
    %c0_73 = arith.constant 0 : index
    %c7_74 = arith.constant 7 : index
    %c0_75 = arith.constant 0 : index
    %55 = vector.load %arg17[%c0_73, %c7_74, %c0_75] : memref<18x32x128xbf16, #tpu.memory_space<vmem>>, vector<18x16x128xbf16>
    %56 = vector.shape_cast %55 : vector<18x16x128xbf16> to vector<288x128xbf16>
    %c0_76 = arith.constant 0 : index
    %c0_77 = arith.constant 0 : index
    %57 = vector.load %arg18[%c0_76, %c0_77] : memref<288x384xbf16, #tpu.memory_space<vmem>>, vector<288x128xbf16>
    tpu.vector_store %arg18[%c0_76, %c0_77], %56 {strides = array<i32>} : memref<288x384xbf16, #tpu.memory_space<vmem>>, vector<288x128xbf16>,
    %c0_78 = arith.constant 0 : index
    %c8_79 = arith.constant 8 : index
    %c0_80 = arith.constant 0 : index
    %58 = vector.load %arg17[%c0_78, %c8_79, %c0_80] : memref<18x32x128xbf16, #tpu.memory_space<vmem>>, vector<18x16x128xbf16>
    %59 = vector.shape_cast %58 : vector<18x16x128xbf16> to vector<288x128xbf16>
    %c0_81 = arith.constant 0 : index
    %c128_82 = arith.constant 128 : index
    %60 = vector.load %arg18[%c0_81, %c128_82] : memref<288x384xbf16, #tpu.memory_space<vmem>>, vector<288x128xbf16>
    tpu.vector_store %arg18[%c0_81, %c128_82], %59 {strides = array<i32>} : memref<288x384xbf16, #tpu.memory_space<vmem>>, vector<288x128xbf16>,
    %c0_83 = arith.constant 0 : index
    %c9_84 = arith.constant 9 : index
    %c0_85 = arith.constant 0 : index
    %61 = vector.load %arg17[%c0_83, %c9_84, %c0_85] : memref<18x32x128xbf16, #tpu.memory_space<vmem>>, vector<18x16x128xbf16>
    %62 = vector.shape_cast %61 : vector<18x16x128xbf16> to vector<288x128xbf16>
    %c0_86 = arith.constant 0 : index
    %c256_87 = arith.constant 256 : index
    %63 = vector.load %arg18[%c0_86, %c256_87] : memref<288x384xbf16, #tpu.memory_space<vmem>>, vector<288x128xbf16>
    tpu.vector_store %arg18[%c0_86, %c256_87], %62 {strides = array<i32>} : memref<288x384xbf16, #tpu.memory_space<vmem>>, vector<288x128xbf16>,
    %c0_88 = arith.constant 0 : index
    %c0_89 = arith.constant 0 : index
    %64 = vector.load %arg18[%c0_88, %c0_89] : memref<288x384xbf16, #tpu.memory_space<vmem>>, vector<256x384xbf16>
    %c0_90 = arith.constant 0 : index
    %c0_91 = arith.constant 0 : index
    %c0_92 = arith.constant 0 : index
    %65 = vector.load %arg6[%c0_90, %c0_91, %c0_92] : memref<3x384x128xbf16, #tpu.memory_space<vmem>>, vector<1x384x128xbf16>
    %66 = vector.shape_cast %65 : vector<1x384x128xbf16> to vector<384x128xbf16>
    %cst_93 = arith.constant dense<0.000000e+00> : vector<256x128xf32>
    %67 = tpu.matmul %64, %66, %cst_93 {dimension_numbers = #tpu.dot_dimension_numbers<[1], [0], [0], [1], [0, 0, 1, 1], [], []>} : vector<256x384xbf16>, vector<384x128xbf16>, vector<256x128xf32> -> vector<256x128xf32>
    %c16_94 = arith.constant 16 : index
    %c0_95 = arith.constant 0 : index
    %68 = vector.load %arg18[%c16_94, %c0_95] : memref<288x384xbf16, #tpu.memory_space<vmem>>, vector<256x384xbf16>
    %c1_96 = arith.constant 1 : index
    %c0_97 = arith.constant 0 : index
    %c0_98 = arith.constant 0 : index
    %69 = vector.load %arg6[%c1_96, %c0_97, %c0_98] : memref<3x384x128xbf16, #tpu.memory_space<vmem>>, vector<1x384x128xbf16>
    %70 = vector.shape_cast %69 : vector<1x384x128xbf16> to vector<384x128xbf16>
    %cst_99 = arith.constant dense<0.000000e+00> : vector<256x128xf32>
    %71 = tpu.matmul %68, %70, %cst_99 {dimension_numbers = #tpu.dot_dimension_numbers<[1], [0], [0], [1], [0, 0, 1, 1], [], []>} : vector<256x384xbf16>, vector<384x128xbf16>, vector<256x128xf32> -> vector<256x128xf32>
    %72 = arith.addf %67, %71 : vector<256x128xf32>
    %c32_100 = arith.constant 32 : index
    %c0_101 = arith.constant 0 : index
    %73 = vector.load %arg18[%c32_100, %c0_101] : memref<288x384xbf16, #tpu.memory_space<vmem>>, vector<256x384xbf16>
    %c2_102 = arith.constant 2 : index
    %c0_103 = arith.constant 0 : index
    %c0_104 = arith.constant 0 : index
    %74 = vector.load %arg6[%c2_102, %c0_103, %c0_104] : memref<3x384x128xbf16, #tpu.memory_space<vmem>>, vector<1x384x128xbf16>
    %75 = vector.shape_cast %74 : vector<1x384x128xbf16> to vector<384x128xbf16>
    %cst_105 = arith.constant dense<0.000000e+00> : vector<256x128xf32>
    %76 = tpu.matmul %73, %75, %cst_105 {dimension_numbers = #tpu.dot_dimension_numbers<[1], [0], [0], [1], [0, 0, 1, 1], [], []>} : vector<256x384xbf16>, vector<384x128xbf16>, vector<256x128xf32> -> vector<256x128xf32>
    %77 = arith.addf %72, %76 : vector<256x128xf32>
    %c0_106 = arith.constant 0 : index
    %c0_107 = arith.constant 0 : index
    %78 = vector.load %arg7[%c0_106, %c0_107] : memref<1x128xf32, #tpu.memory_space<vmem>>, vector<1x128xf32>
    %79 = vector.broadcast %78 : vector<1x128xf32> to vector<256x128xf32>
    %80 = arith.addf %77, %79 : vector<256x128xf32>
    %cst_108 = arith.constant 0.000000e+00 : f32
    %81 = vector.broadcast %cst_108 : f32 to vector<256x128xf32>
    %82 = arith.maximumf %80, %81 : vector<256x128xf32>
    %83 = arith.truncf %82 : vector<256x128xf32> to vector<256x128xbf16>
    %c0_109 = arith.constant 0 : index
    %c0_110 = arith.constant 0 : index
    %84 = vector.load %arg19[%c0_109, %c0_110] : memref<256x128xf32, #tpu.memory_space<vmem>>, vector<256x128xf32>
    %c0_111 = arith.constant 0 : index
    %c0_112 = arith.constant 0 : index
    %85 = vector.load %arg8[%c0_111, %c0_112] : memref<128x128xbf16, #tpu.memory_space<vmem>>, vector<128x128xbf16>
    %cst_113 = arith.constant dense<0.000000e+00> : vector<256x128xf32>
    %86 = tpu.matmul %83, %85, %cst_113 {dimension_numbers = #tpu.dot_dimension_numbers<[1], [0], [0], [1], [0, 0, 1, 1], [], []>} : vector<256x128xbf16>, vector<128x128xbf16>, vector<256x128xf32> -> vector<256x128xf32>
    %87 = arith.addf %84, %86 : vector<256x128xf32>
    %c0_114 = arith.constant 0 : index
    %c0_115 = arith.constant 0 : index
    %88 = vector.load %arg19[%c0_114, %c0_115] : memref<256x128xf32, #tpu.memory_space<vmem>>, vector<256x128xf32>
    tpu.vector_store %arg19[%c0_114, %c0_115], %87 {strides = array<i32>} : memref<256x128xf32, #tpu.memory_space<vmem>>, vector<256x128xf32>,
    %89 = vector.shape_cast %83 : vector<256x128xbf16> to vector<16x16x128xbf16>
    %c1_116 = arith.constant 1 : index
    %c8_117 = arith.constant 8 : index
    %c0_118 = arith.constant 0 : index
    %90 = vector.load %arg17[%c1_116, %c8_117, %c0_118] : memref<18x32x128xbf16, #tpu.memory_space<vmem>>, vector<16x16x128xbf16>
    tpu.vector_store %arg17[%c1_116, %c8_117, %c0_118], %89 {strides = array<i32>} : memref<18x32x128xbf16, #tpu.memory_space<vmem>>, vector<16x16x128xbf16>,
    %c0_119 = arith.constant 0 : index
    %c7_120 = arith.constant 7 : index
    %c0_121 = arith.constant 0 : index
    %91 = vector.load %arg17[%c0_119, %c7_120, %c0_121] : memref<18x32x128xbf16, #tpu.memory_space<vmem>>, vector<18x16x128xbf16>
    %92 = vector.shape_cast %91 : vector<18x16x128xbf16> to vector<288x128xbf16>
    %c0_122 = arith.constant 0 : index
    %c0_123 = arith.constant 0 : index
    %93 = vector.load %arg18[%c0_122, %c0_123] : memref<288x384xbf16, #tpu.memory_space<vmem>>, vector<288x128xbf16>
    tpu.vector_store %arg18[%c0_122, %c0_123], %92 {strides = array<i32>} : memref<288x384xbf16, #tpu.memory_space<vmem>>, vector<288x128xbf16>,
    %c0_124 = arith.constant 0 : index
    %c8_125 = arith.constant 8 : index
    %c0_126 = arith.constant 0 : index
    %94 = vector.load %arg17[%c0_124, %c8_125, %c0_126] : memref<18x32x128xbf16, #tpu.memory_space<vmem>>, vector<18x16x128xbf16>
    %95 = vector.shape_cast %94 : vector<18x16x128xbf16> to vector<288x128xbf16>
    %c0_127 = arith.constant 0 : index
    %c128_128 = arith.constant 128 : index
    %96 = vector.load %arg18[%c0_127, %c128_128] : memref<288x384xbf16, #tpu.memory_space<vmem>>, vector<288x128xbf16>
    tpu.vector_store %arg18[%c0_127, %c128_128], %95 {strides = array<i32>} : memref<288x384xbf16, #tpu.memory_space<vmem>>, vector<288x128xbf16>,
    %c0_129 = arith.constant 0 : index
    %c9_130 = arith.constant 9 : index
    %c0_131 = arith.constant 0 : index
    %97 = vector.load %arg17[%c0_129, %c9_130, %c0_131] : memref<18x32x128xbf16, #tpu.memory_space<vmem>>, vector<18x16x128xbf16>
    %98 = vector.shape_cast %97 : vector<18x16x128xbf16> to vector<288x128xbf16>
    %c0_132 = arith.constant 0 : index
    %c256_133 = arith.constant 256 : index
    %99 = vector.load %arg18[%c0_132, %c256_133] : memref<288x384xbf16, #tpu.memory_space<vmem>>, vector<288x128xbf16>
    tpu.vector_store %arg18[%c0_132, %c256_133], %98 {strides = array<i32>} : memref<288x384xbf16, #tpu.memory_space<vmem>>, vector<288x128xbf16>,
    %c0_134 = arith.constant 0 : index
    %c0_135 = arith.constant 0 : index
    %100 = vector.load %arg18[%c0_134, %c0_135] : memref<288x384xbf16, #tpu.memory_space<vmem>>, vector<256x384xbf16>
    %c0_136 = arith.constant 0 : index
    %c0_137 = arith.constant 0 : index
    %c0_138 = arith.constant 0 : index
    %101 = vector.load %arg9[%c0_136, %c0_137, %c0_138] : memref<3x384x128xbf16, #tpu.memory_space<vmem>>, vector<1x384x128xbf16>
    %102 = vector.shape_cast %101 : vector<1x384x128xbf16> to vector<384x128xbf16>
    %cst_139 = arith.constant dense<0.000000e+00> : vector<256x128xf32>
    %103 = tpu.matmul %100, %102, %cst_139 {dimension_numbers = #tpu.dot_dimension_numbers<[1], [0], [0], [1], [0, 0, 1, 1], [], []>} : vector<256x384xbf16>, vector<384x128xbf16>, vector<256x128xf32> -> vector<256x128xf32>
    %c16_140 = arith.constant 16 : index
    %c0_141 = arith.constant 0 : index
    %104 = vector.load %arg18[%c16_140, %c0_141] : memref<288x384xbf16, #tpu.memory_space<vmem>>, vector<256x384xbf16>
    %c1_142 = arith.constant 1 : index
    %c0_143 = arith.constant 0 : index
    %c0_144 = arith.constant 0 : index
    %105 = vector.load %arg9[%c1_142, %c0_143, %c0_144] : memref<3x384x128xbf16, #tpu.memory_space<vmem>>, vector<1x384x128xbf16>
    %106 = vector.shape_cast %105 : vector<1x384x128xbf16> to vector<384x128xbf16>
    %cst_145 = arith.constant dense<0.000000e+00> : vector<256x128xf32>
    %107 = tpu.matmul %104, %106, %cst_145 {dimension_numbers = #tpu.dot_dimension_numbers<[1], [0], [0], [1], [0, 0, 1, 1], [], []>} : vector<256x384xbf16>, vector<384x128xbf16>, vector<256x128xf32> -> vector<256x128xf32>
    %108 = arith.addf %103, %107 : vector<256x128xf32>
    %c32_146 = arith.constant 32 : index
    %c0_147 = arith.constant 0 : index
    %109 = vector.load %arg18[%c32_146, %c0_147] : memref<288x384xbf16, #tpu.memory_space<vmem>>, vector<256x384xbf16>
    %c2_148 = arith.constant 2 : index
    %c0_149 = arith.constant 0 : index
    %c0_150 = arith.constant 0 : index
    %110 = vector.load %arg9[%c2_148, %c0_149, %c0_150] : memref<3x384x128xbf16, #tpu.memory_space<vmem>>, vector<1x384x128xbf16>
    %111 = vector.shape_cast %110 : vector<1x384x128xbf16> to vector<384x128xbf16>
    %cst_151 = arith.constant dense<0.000000e+00> : vector<256x128xf32>
    %112 = tpu.matmul %109, %111, %cst_151 {dimension_numbers = #tpu.dot_dimension_numbers<[1], [0], [0], [1], [0, 0, 1, 1], [], []>} : vector<256x384xbf16>, vector<384x128xbf16>, vector<256x128xf32> -> vector<256x128xf32>
    %113 = arith.addf %108, %112 : vector<256x128xf32>
    %c0_152 = arith.constant 0 : index
    %c0_153 = arith.constant 0 : index
    %114 = vector.load %arg10[%c0_152, %c0_153] : memref<1x128xf32, #tpu.memory_space<vmem>>, vector<1x128xf32>
    %115 = vector.broadcast %114 : vector<1x128xf32> to vector<256x128xf32>
    %116 = arith.addf %113, %115 : vector<256x128xf32>
    %cst_154 = arith.constant 0.000000e+00 : f32
    %117 = vector.broadcast %cst_154 : f32 to vector<256x128xf32>
    %118 = arith.maximumf %116, %117 : vector<256x128xf32>
    %119 = arith.truncf %118 : vector<256x128xf32> to vector<256x128xbf16>
    %c0_155 = arith.constant 0 : index
    %c0_156 = arith.constant 0 : index
    %120 = vector.load %arg19[%c0_155, %c0_156] : memref<256x128xf32, #tpu.memory_space<vmem>>, vector<256x128xf32>
    %c0_157 = arith.constant 0 : index
    %c0_158 = arith.constant 0 : index
    %121 = vector.load %arg11[%c0_157, %c0_158] : memref<128x128xbf16, #tpu.memory_space<vmem>>, vector<128x128xbf16>
    %cst_159 = arith.constant dense<0.000000e+00> : vector<256x128xf32>
    %122 = tpu.matmul %119, %121, %cst_159 {dimension_numbers = #tpu.dot_dimension_numbers<[1], [0], [0], [1], [0, 0, 1, 1], [], []>} : vector<256x128xbf16>, vector<128x128xbf16>, vector<256x128xf32> -> vector<256x128xf32>
    %123 = arith.addf %120, %122 : vector<256x128xf32>
    %c0_160 = arith.constant 0 : index
    %c0_161 = arith.constant 0 : index
    %124 = vector.load %arg19[%c0_160, %c0_161] : memref<256x128xf32, #tpu.memory_space<vmem>>, vector<256x128xf32>
    tpu.vector_store %arg19[%c0_160, %c0_161], %123 {strides = array<i32>} : memref<256x128xf32, #tpu.memory_space<vmem>>, vector<256x128xf32>,
    %c0_162 = arith.constant 0 : index
    %c0_163 = arith.constant 0 : index
    %125 = vector.load %arg19[%c0_162, %c0_163] : memref<256x128xf32, #tpu.memory_space<vmem>>, vector<256x128xf32>
    %c0_164 = arith.constant 0 : index
    %c0_165 = arith.constant 0 : index
    %126 = vector.load %arg12[%c0_164, %c0_165] : memref<1x128xf32, #tpu.memory_space<vmem>>, vector<1x128xf32>
    %127 = vector.broadcast %126 : vector<1x128xf32> to vector<256x128xf32>
    %128 = arith.addf %125, %127 : vector<256x128xf32>
    %cst_166 = arith.constant 0.000000e+00 : f32
    %129 = vector.broadcast %cst_166 : f32 to vector<256x128xf32>
    %130 = arith.maximumf %128, %129 : vector<256x128xf32>
    %cst_167 = arith.constant dense<0.000000e+00> : vector<128xf32>
    %131 = vector.multi_reduction <add>, %130, %cst_167 [0] : vector<256x128xf32> to vector<128xf32>
    %132 = vector.shape_cast %131 : vector<128xf32> to vector<1x128xf32>
    %cst_168 = arith.constant 2.560000e+02 : f32
    %133 = vector.broadcast %cst_168 : f32 to vector<1x128xf32>
    %134 = arith.divf %132, %133 : vector<1x128xf32>
    %c0_169 = arith.constant 0 : index
    %c0_170 = arith.constant 0 : index
    %135 = vector.load %arg13[%c0_169, %c0_170] : memref<128x128xf32, #tpu.memory_space<vmem>>, vector<128x128xf32>
    %cst_171 = arith.constant dense<0.000000e+00> : vector<1x128xf32>
    %136 = tpu.matmul %134, %135, %cst_171 {dimension_numbers = #tpu.dot_dimension_numbers<[1], [0], [0], [1], [0, 0, 1, 1], [], []>} : vector<1x128xf32>, vector<128x128xf32>, vector<1x128xf32> -> vector<1x128xf32>
    %c0_172 = arith.constant 0 : index
    %c0_173 = arith.constant 0 : index
    %137 = vector.load %arg14[%c0_172, %c0_173] : memref<1x128xf32, #tpu.memory_space<vmem>>, vector<1x128xf32>
    %138 = arith.addf %136, %137 : vector<1x128xf32>
    %cst_174 = arith.constant 3.000000e+00 : f32
    %139 = vector.broadcast %cst_174 : f32 to vector<1x128xf32>
    %140 = arith.addf %138, %139 : vector<1x128xf32>
    %cst_175 = arith.constant 0.000000e+00 : f32
    %cst_176 = arith.constant 6.000000e+00 : f32
    %141 = vector.broadcast %cst_175 : f32 to vector<1x128xf32>
    %142 = arith.maximumf %141, %140 : vector<1x128xf32>
    %143 = vector.broadcast %cst_176 : f32 to vector<1x128xf32>
    %144 = arith.minimumf %143, %142 : vector<1x128xf32>
    %cst_177 = arith.constant 0.166666672 : f32
    %145 = vector.broadcast %cst_177 : f32 to vector<1x128xf32>
    %146 = arith.mulf %144, %145 : vector<1x128xf32>
    %147 = vector.broadcast %146 : vector<1x128xf32> to vector<256x128xf32>
    %148 = arith.mulf %130, %147 : vector<256x128xf32>
    %149 = vector.shape_cast %148 : vector<256x128xf32> to vector<16x16x128xf32>
    %c0_178 = arith.constant 0 : index
    %c0_179 = arith.constant 0 : index
    %c0_180 = arith.constant 0 : index
    %c0_181 = arith.constant 0 : index
    %150 = vector.load %arg15[%c0_178, %c0_179, %c0_180, %c0_181] : memref<1x16x16x128xf32, #tpu.memory_space<vmem>>, vector<1x16x16x128xf32>
    %151 = vector.shape_cast %150 : vector<1x16x16x128xf32> to vector<16x16x128xf32>
    %152 = vector.shape_cast %149 : vector<16x16x128xf32> to vector<1x16x16x128xf32>
    tpu.vector_store %arg15[%c0_178, %c0_179, %c0_180, %c0_181], %152 {strides = array<i32>} : memref<1x16x16x128xf32, #tpu.memory_space<vmem>>, vector<1x16x16x128xf32>,
    return
  }
  func.func @transform_0(%arg0: i32) -> (i32, i32, i32, i32) {
    %c0_i32 = arith.constant 0 : i32
    %c0_i32_0 = arith.constant 0 : i32
    %c0_i32_1 = arith.constant 0 : i32
    %c0_i32_2 = arith.constant 0 : i32
    return %arg0, %c0_i32, %c0_i32_0, %c0_i32_1 : i32, i32, i32, i32
  }
  func.func @transform_1(%arg0: i32) -> (i32, i32) {
    %c0_i32 = arith.constant 0 : i32
    %c0_i32_0 = arith.constant 0 : i32
    %c0_i32_1 = arith.constant 0 : i32
    return %c0_i32, %c0_i32_0 : i32, i32
  }
  func.func @transform_2(%arg0: i32) -> (i32, i32, i32) {
    %c0_i32 = arith.constant 0 : i32
    %c0_i32_0 = arith.constant 0 : i32
    %c0_i32_1 = arith.constant 0 : i32
    %c0_i32_2 = arith.constant 0 : i32
    return %c0_i32, %c0_i32_0, %c0_i32_1 : i32, i32, i32
  }
  func.func @transform_3(%arg0: i32) -> (i32, i32) {
    %c0_i32 = arith.constant 0 : i32
    %c0_i32_0 = arith.constant 0 : i32
    %c0_i32_1 = arith.constant 0 : i32
    return %c0_i32, %c0_i32_0 : i32, i32
  }
  func.func @transform_4(%arg0: i32) -> (i32, i32) {
    %c0_i32 = arith.constant 0 : i32
    %c0_i32_0 = arith.constant 0 : i32
    %c0_i32_1 = arith.constant 0 : i32
    return %c0_i32, %c0_i32_0 : i32, i32
  }
  func.func @transform_5(%arg0: i32) -> (i32, i32, i32) {
    %c0_i32 = arith.constant 0 : i32
    %c0_i32_0 = arith.constant 0 : i32
    %c0_i32_1 = arith.constant 0 : i32
    %c0_i32_2 = arith.constant 0 : i32
    return %c0_i32, %c0_i32_0, %c0_i32_1 : i32, i32, i32
  }
  func.func @transform_6(%arg0: i32) -> (i32, i32) {
    %c0_i32 = arith.constant 0 : i32
    %c0_i32_0 = arith.constant 0 : i32
    %c0_i32_1 = arith.constant 0 : i32
    return %c0_i32, %c0_i32_0 : i32, i32
  }
  func.func @transform_7(%arg0: i32) -> (i32, i32) {
    %c0_i32 = arith.constant 0 : i32
    %c0_i32_0 = arith.constant 0 : i32
    %c0_i32_1 = arith.constant 0 : i32
    return %c0_i32, %c0_i32_0 : i32, i32
  }
  func.func @transform_8(%arg0: i32) -> (i32, i32, i32) {
    %c0_i32 = arith.constant 0 : i32
    %c0_i32_0 = arith.constant 0 : i32
    %c0_i32_1 = arith.constant 0 : i32
    %c0_i32_2 = arith.constant 0 : i32
    return %c0_i32, %c0_i32_0, %c0_i32_1 : i32, i32, i32
  }
  func.func @transform_9(%arg0: i32) -> (i32, i32) {
    %c0_i32 = arith.constant 0 : i32
    %c0_i32_0 = arith.constant 0 : i32
    %c0_i32_1 = arith.constant 0 : i32
    return %c0_i32, %c0_i32_0 : i32, i32
  }
  func.func @transform_10(%arg0: i32) -> (i32, i32) {
    %c0_i32 = arith.constant 0 : i32
    %c0_i32_0 = arith.constant 0 : i32
    %c0_i32_1 = arith.constant 0 : i32
    return %c0_i32, %c0_i32_0 : i32, i32
  }
  func.func @transform_11(%arg0: i32) -> (i32, i32) {
    %c0_i32 = arith.constant 0 : i32
    %c0_i32_0 = arith.constant 0 : i32
    %c0_i32_1 = arith.constant 0 : i32
    return %c0_i32, %c0_i32_0 : i32, i32
  }
  func.func @transform_12(%arg0: i32) -> (i32, i32) {
    %c0_i32 = arith.constant 0 : i32
    %c0_i32_0 = arith.constant 0 : i32
    %c0_i32_1 = arith.constant 0 : i32
    return %c0_i32, %c0_i32_0 : i32, i32
  }
  func.func @transform_13(%arg0: i32) -> (i32, i32) {
    %c0_i32 = arith.constant 0 : i32
    %c0_i32_0 = arith.constant 0 : i32
    %c0_i32_1 = arith.constant 0 : i32
    return %c0_i32, %c0_i32_0 : i32, i32
  }
  func.func @transform_14(%arg0: i32) -> (i32, i32, i32, i32) {
    %c0_i32 = arith.constant 0 : i32
    %c0_i32_0 = arith.constant 0 : i32
    %c0_i32_1 = arith.constant 0 : i32
    %c0_i32_2 = arith.constant 0 : i32
    return %arg0, %c0_i32, %c0_i32_0, %c0_i32_1 : i32, i32, i32, i32
  }
}

</mosaic_0001>

<llo_original>
// kernel: osa_forward.1
$region0: #{osa_forward.1}
  #allocation0 [shape = 'u32[]', space=smem, size = 0x4, offset = 0x4, fixed_abs, tag = 'smem constant byte address 0x4 - core index']
  #allocation1 [shape = 'u32[72,128]{1,0:T(1,128)}', space=vmem, size = 0x9000, scoped, tag = 'internal scratch']
  #allocation2 [shape = 'bf16[18,32,128]{2,1,0:T(8,128)(2,1)}', space=vmem, size = 0x24000, scoped, tag = 'scratch operand']
  #allocation3 [shape = 'bf16[18,32,128]{2,1,0:T(8,128)(2,1)}', space=vmem, size = 0x24000, scoped, tag = 'scratch operand']
  #allocation4 [shape = 'bf16[288,384]{1,0:T(8,128)(2,1)}', space=vmem, size = 0x36000, scoped, tag = 'scratch operand']
  #allocation5 [shape = 'f32[256,128]{1,0:T(8,128)}', space=vmem, size = 0x20000, scoped, tag = 'scratch operand']
  %s0 = inlined_call_operand.vmem [shape: bf16[2,16,16,128], index: 0, kind: input, shape index: {}]
  %s1 = inlined_call_operand.vmem [shape: bf16[128,128], index: 1, kind: input, shape index: {}]
  %s2 = inlined_call_operand.vmem [shape: bf16[3,384,128], index: 2, kind: input, shape index: {}]
  %s3 = inlined_call_operand.vmem [shape: f32[1,128], index: 3, kind: input, shape index: {}]
  %s4 = inlined_call_operand.vmem [shape: bf16[128,128], index: 4, kind: input, shape index: {}]
  %s5 = inlined_call_operand.vmem [shape: bf16[3,384,128], index: 5, kind: input, shape index: {}]
  %s6 = inlined_call_operand.vmem [shape: f32[1,128], index: 6, kind: input, shape index: {}]
  %s7 = inlined_call_operand.vmem [shape: bf16[128,128], index: 7, kind: input, shape index: {}]
  %s8 = inlined_call_operand.vmem [shape: bf16[3,384,128], index: 8, kind: input, shape index: {}]
  %s9 = inlined_call_operand.vmem [shape: f32[1,128], index: 9, kind: input, shape index: {}]
  %s10 = inlined_call_operand.vmem [shape: bf16[128,128], index: 10, kind: input, shape index: {}]
  %s11 = inlined_call_operand.vmem [shape: f32[1,128], index: 11, kind: input, shape index: {}]
  %s12 = inlined_call_operand.vmem [shape: f32[128,128], index: 12, kind: input, shape index: {}]
  %s13 = inlined_call_operand.vmem [shape: f32[1,128], index: 13, kind: input, shape index: {}]
  %s14 = inlined_call_operand.vmem [shape: f32[2,16,16,128], index: 14, kind: output, shape index: {}]
  %s15 = sld [smem:[#allocation0]]
  $region89: #{osa_forward.1} parent=0
    _
  %s17 = ssub.s32 1, %s15
  %s18 = scalar_select 0, %s17, %s15
  loop: start=0, step=1, limit=4
  $region2: #{osa_forward.1} parent=0 // loop_pre_header
    _
  $region3: #{osa_forward.1} parent=0 // loop_header
    %s20 = sphi 0, %s24
    %p21 = scmp.ge.s32.totalorder %s20, 4
    %s30 = sphi 0, %s32
    %s33 = sphi 0, %s30
    %s34 = sphi 0, %s33
    %s50 = sphi 0, %s34
    %s54 = sphi 0, %s54
    %s56 = sphi 0, %s54
    %s57 = sphi 0, %s56
    %s71 = sphi 0, %s57
    %s75 = sphi 0, %s75
    %s77 = sphi 0, %s75
    %s78 = sphi 0, %s77
    %s92 = sphi 0, %s78
    %s96 = sphi 0, %s96
    %s98 = sphi 0, %s96
    %s99 = sphi 0, %s98
    %s113 = sphi 0, %s99
    %s117 = sphi 0, %s117
    %s119 = sphi 0, %s117
    %s120 = sphi 0, %s119
    %s134 = sphi 0, %s120
    %s138 = sphi 0, %s138
    %s140 = sphi 0, %s138
    %s141 = sphi 0, %s140
    %s155 = sphi 0, %s141
    %s159 = sphi 0, %s159
    %s161 = sphi 0, %s159
    %s162 = sphi 0, %s161
    %s176 = sphi 0, %s162
    %s180 = sphi 0, %s180
    %s182 = sphi 0, %s180
    %s183 = sphi 0, %s182
    %s197 = sphi 0, %s183
    %s201 = sphi 0, %s201
    %s203 = sphi 0, %s201
    %s204 = sphi 0, %s203
    %s218 = sphi 0, %s204
    %s222 = sphi 0, %s222
    %s224 = sphi 0, %s222
    %s225 = sphi 0, %s224
    %s239 = sphi 0, %s225
    %s243 = sphi 0, %s243
    %s245 = sphi 0, %s243
    %s246 = sphi 0, %s245
    %s260 = sphi 0, %s246
    %s264 = sphi 0, %s264
    %s266 = sphi 0, %s264
    %s267 = sphi 0, %s266
    %s281 = sphi 0, %s267
    %s285 = sphi 0, %s285
    %s287 = sphi 0, %s285
    %s288 = sphi 0, %s287
    %s302 = sphi 0, %s288
    %s306 = sphi 0, %s306
    %s308 = sphi 0, %s306
    %s309 = sphi 0, %s308
    %s323 = sphi 0, %s309
    %s329 = sphi 0, %s331
    %s332 = sphi 0, %s329
    %s333 = sphi 0, %s332
    %s349 = sphi 0, %s333
  $region4: #{osa_forward.1} parent=0 // loop_header_branch
    %23 = sbr.rel (%p21) target = $region8
  $region5: #{osa_forward.1} parent=0 // loop_body
    %s25 = ssub.s32 %s20, 1
    %s26 = ssub.s32 %s20, 2
    %s27 = sadd.s32 %s20, 1
    %s28 = ssub.s32 %s20, %s27
    %p29 = scmp.eq.s32.totalorder %s28, 0
    %s31 = sadd.s32 %s30, 1
    %s32 = scalar_select %p29, %s30, %s31
    %p35 = pneg %p29
    %p36 = scmp.eq.s32.totalorder %s20, 1
    %p37 = por %p35, %p36
    %p38 = scmp.ne.s32.totalorder %s30, %s33
    %p39 = scmp.eq.s32.totalorder %s20, 0
    %p40 = por %p38, %p39
    %p41 = scmp.ne.s32.totalorder %s30, %s33
    %p42 = scmp.eq.s32.totalorder %s25, 1
    %p43 = por %p41, %p42
    %p44 = scmp.ne.s32.totalorder %s33, %s34
    %p45 = scmp.eq.s32.totalorder %s25, 0
    %p46 = por %p44, %p45
    %p47 = scmp.ne.s32.totalorder %s33, %s34
    %p48 = scmp.eq.s32.totalorder %s26, 1
    %p49 = por %p47, %p48
    %p51 = scmp.ne.s32.totalorder %s34, %s50
    %p52 = scmp.eq.s32.totalorder %s26, 0
    %p53 = por %p51, %p52
    %s55 = sadd.s32 %s54, 1
    %p58 = scmp.eq.s32.totalorder %s20, 1
    %p59 = scmp.ne.s32.totalorder %s54, %s56
    %p60 = scmp.eq.s32.totalorder %s20, 0
    %p61 = por %p59, %p60
    %p62 = scmp.ne.s32.totalorder %s54, %s56
    %p63 = scmp.eq.s32.totalorder %s25, 1
    %p64 = por %p62, %p63
    %p65 = scmp.ne.s32.totalorder %s56, %s57
    %p66 = scmp.eq.s32.totalorder %s25, 0
    %p67 = por %p65, %p66
    %p68 = scmp.ne.s32.totalorder %s56, %s57
    %p69 = scmp.eq.s32.totalorder %s26, 1
    %p70 = por %p68, %p69
    %p72 = scmp.ne.s32.totalorder %s57, %s71
    %p73 = scmp.eq.s32.totalorder %s26, 0
    %p74 = por %p72, %p73
    %s76 = sadd.s32 %s75, 1
    %p79 = scmp.eq.s32.totalorder %s20, 1
    %p80 = scmp.ne.s32.totalorder %s75, %s77
    %p81 = scmp.eq.s32.totalorder %s20, 0
    %p82 = por %p80, %p81
    %p83 = scmp.ne.s32.totalorder %s75, %s77
    %p84 = scmp.eq.s32.totalorder %s25, 1
    %p85 = por %p83, %p84
    %p86 = scmp.ne.s32.totalorder %s77, %s78
    %p87 = scmp.eq.s32.totalorder %s25, 0
    %p88 = por %p86, %p87
    %p89 = scmp.ne.s32.totalorder %s77, %s78
    %p90 = scmp.eq.s32.totalorder %s26, 1
    %p91 = por %p89, %p90
    %p93 = scmp.ne.s32.totalorder %s78, %s92
    %p94 = scmp.eq.s32.totalorder %s26, 0
    %p95 = por %p93, %p94
    %s97 = sadd.s32 %s96, 1
    %p100 = scmp.eq.s32.totalorder %s20, 1
    %p101 = scmp.ne.s32.totalorder %s96, %s98
    %p102 = scmp.eq.s32.totalorder %s20, 0
    %p103 = por %p101, %p102
    %p104 = scmp.ne.s32.totalorder %s96, %s98
    %p105 = scmp.eq.s32.totalorder %s25, 1
    %p106 = por %p104, %p105
    %p107 = scmp.ne.s32.totalorder %s98, %s99
    %p108 = scmp.eq.s32.totalorder %s25, 0
    %p109 = por %p107, %p108
    %p110 = scmp.ne.s32.totalorder %s98, %s99
    %p111 = scmp.eq.s32.totalorder %s26, 1
    %p112 = por %p110, %p111
    %p114 = scmp.ne.s32.totalorder %s99, %s113
    %p115 = scmp.eq.s32.totalorder %s26, 0
    %p116 = por %p114, %p115
    %s118 = sadd.s32 %s117, 1
    %p121 = scmp.eq.s32.totalorder %s20, 1
    %p122 = scmp.ne.s32.totalorder %s117, %s119
    %p123 = scmp.eq.s32.totalorder %s20, 0
    %p124 = por %p122, %p123
    %p125 = scmp.ne.s32.totalorder %s117, %s119
    %p126 = scmp.eq.s32.totalorder %s25, 1
    %p127 = por %p125, %p126
    %p128 = scmp.ne.s32.totalorder %s119, %s120
    %p129 = scmp.eq.s32.totalorder %s25, 0
    %p130 = por %p128, %p129
    %p131 = scmp.ne.s32.totalorder %s119, %s120
    %p132 = scmp.eq.s32.totalorder %s26, 1
    %p133 = por %p131, %p132
    %p135 = scmp.ne.s32.totalorder %s120, %s134
    %p136 = scmp.eq.s32.totalorder %s26, 0
    %p137 = por %p135, %p136
    %s139 = sadd.s32 %s138, 1
    %p142 = scmp.eq.s32.totalorder %s20, 1
    %p143 = scmp.ne.s32.totalorder %s138, %s140
    %p144 = scmp.eq.s32.totalorder %s20, 0
    %p145 = por %p143, %p144
    %p146 = scmp.ne.s32.totalorder %s138, %s140
    %p147 = scmp.eq.s32.totalorder %s25, 1
    %p148 = por %p146, %p147
    %p149 = scmp.ne.s32.totalorder %s140, %s141
    %p150 = scmp.eq.s32.totalorder %s25, 0
    %p151 = por %p149, %p150
    %p152 = scmp.ne.s32.totalorder %s140, %s141
    %p153 = scmp.eq.s32.totalorder %s26, 1
    %p154 = por %p152, %p153
    %p156 = scmp.ne.s32.totalorder %s141, %s155
    %p157 = scmp.eq.s32.totalorder %s26, 0
    %p158 = por %p156, %p157
    %s160 = sadd.s32 %s159, 1
    %p163 = scmp.eq.s32.totalorder %s20, 1
    %p164 = scmp.ne.s32.totalorder %s159, %s161
    %p165 = scmp.eq.s32.totalorder %s20, 0
    %p166 = por %p164, %p165
    %p167 = scmp.ne.s32.totalorder %s159, %s161
    %p168 = scmp.eq.s32.totalorder %s25, 1
    %p169 = por %p167, %p168
    %p170 = scmp.ne.s32.totalorder %s161, %s162
    %p171 = scmp.eq.s32.totalorder %s25, 0
    %p172 = por %p170, %p171
    %p173 = scmp.ne.s32.totalorder %s161, %s162
    %p174 = scmp.eq.s32.totalorder %s26, 1
    %p175 = por %p173, %p174
    %p177 = scmp.ne.s32.totalorder %s162, %s176
    %p178 = scmp.eq.s32.totalorder %s26, 0
    %p179 = por %p177, %p178
    %s181 = sadd.s32 %s180, 1
    %p184 = scmp.eq.s32.totalorder %s20, 1
    %p185 = scmp.ne.s32.totalorder %s180, %s182
    %p186 = scmp.eq.s32.totalorder %s20, 0
    %p187 = por %p185, %p186
    %p188 = scmp.ne.s32.totalorder %s180, %s182
    %p189 = scmp.eq.s32.totalorder %s25, 1
    %p190 = por %p188, %p189
    %p191 = scmp.ne.s32.totalorder %s182, %s183
    %p192 = scmp.eq.s32.totalorder %s25, 0
    %p193 = por %p191, %p192
    %p194 = scmp.ne.s32.totalorder %s182, %s183
    %p195 = scmp.eq.s32.totalorder %s26, 1
    %p196 = por %p194, %p195
    %p198 = scmp.ne.s32.totalorder %s183, %s197
    %p199 = scmp.eq.s32.totalorder %s26, 0
    %p200 = por %p198, %p199
    %s202 = sadd.s32 %s201, 1
    %p205 = scmp.eq.s32.totalorder %s20, 1
    %p206 = scmp.ne.s32.totalorder %s201, %s203
    %p207 = scmp.eq.s32.totalorder %s20, 0
    %p208 = por %p206, %p207
    %p209 = scmp.ne.s32.totalorder %s201, %s203
    %p210 = scmp.eq.s32.totalorder %s25, 1
    %p211 = por %p209, %p210
    %p212 = scmp.ne.s32.totalorder %s203, %s204
    %p213 = scmp.eq.s32.totalorder %s25, 0
    %p214 = por %p212, %p213
    %p215 = scmp.ne.s32.totalorder %s203, %s204
    %p216 = scmp.eq.s32.totalorder %s26, 1
    %p217 = por %p215, %p216
    %p219 = scmp.ne.s32.totalorder %s204, %s218
    %p220 = scmp.eq.s32.totalorder %s26, 0
    %p221 = por %p219, %p220
    %s223 = sadd.s32 %s222, 1
    %p226 = scmp.eq.s32.totalorder %s20, 1
    %p227 = scmp.ne.s32.totalorder %s222, %s224
    %p228 = scmp.eq.s32.totalorder %s20, 0
    %p229 = por %p227, %p228
    %p230 = scmp.ne.s32.totalorder %s222, %s224
    %p231 = scmp.eq.s32.totalorder %s25, 1
    %p232 = por %p230, %p231
    %p233 = scmp.ne.s32.totalorder %s224, %s225
    %p234 = scmp.eq.s32.totalorder %s25, 0
    %p235 = por %p233, %p234
    %p236 = scmp.ne.s32.totalorder %s224, %s225
    %p237 = scmp.eq.s32.totalorder %s26, 1
    %p238 = por %p236, %p237
    %p240 = scmp.ne.s32.totalorder %s225, %s239
    %p241 = scmp.eq.s32.totalorder %s26, 0
    %p242 = por %p240, %p241
    %s244 = sadd.s32 %s243, 1
    %p247 = scmp.eq.s32.totalorder %s20, 1
    %p248 = scmp.ne.s32.totalorder %s243, %s245
    %p249 = scmp.eq.s32.totalorder %s20, 0
    %p250 = por %p248, %p249
    %p251 = scmp.ne.s32.totalorder %s243, %s245
    %p252 = scmp.eq.s32.totalorder %s25, 1
    %p253 = por %p251, %p252
    %p254 = scmp.ne.s32.totalorder %s245, %s246
    %p255 = scmp.eq.s32.totalorder %s25, 0
    %p256 = por %p254, %p255
    %p257 = scmp.ne.s32.totalorder %s245, %s246
    %p258 = scmp.eq.s32.totalorder %s26, 1
    %p259 = por %p257, %p258
    %p261 = scmp.ne.s32.totalorder %s246, %s260
    %p262 = scmp.eq.s32.totalorder %s26, 0
    %p263 = por %p261, %p262
    %s265 = sadd.s32 %s264, 1
    %p268 = scmp.eq.s32.totalorder %s20, 1
    %p269 = scmp.ne.s32.totalorder %s264, %s266
    %p270 = scmp.eq.s32.totalorder %s20, 0
    %p271 = por %p269, %p270
    %p272 = scmp.ne.s32.totalorder %s264, %s266
    %p273 = scmp.eq.s32.totalorder %s25, 1
    %p274 = por %p272, %p273
    %p275 = scmp.ne.s32.totalorder %s266, %s267
    %p276 = scmp.eq.s32.totalorder %s25, 0
    %p277 = por %p275, %p276
    %p278 = scmp.ne.s32.totalorder %s266, %s267
    %p279 = scmp.eq.s32.totalorder %s26, 1
    %p280 = por %p278, %p279
    %p282 = scmp.ne.s32.totalorder %s267, %s281
    %p283 = scmp.eq.s32.totalorder %s26, 0
    %p284 = por %p282, %p283
    %s286 = sadd.s32 %s285, 1
    %p289 = scmp.eq.s32.totalorder %s20, 1
    %p290 = scmp.ne.s32.totalorder %s285, %s287
    %p291 = scmp.eq.s32.totalorder %s20, 0
    %p292 = por %p290, %p291
    %p293 = scmp.ne.s32.totalorder %s285, %s287
    %p294 = scmp.eq.s32.totalorder %s25, 1
    %p295 = por %p293, %p294
    %p296 = scmp.ne.s32.totalorder %s287, %s288
    %p297 = scmp.eq.s32.totalorder %s25, 0
    %p298 = por %p296, %p297
    %p299 = scmp.ne.s32.totalorder %s287, %s288
    %p300 = scmp.eq.s32.totalorder %s26, 1
    %p301 = por %p299, %p300
    %p303 = scmp.ne.s32.totalorder %s288, %s302
    %p304 = scmp.eq.s32.totalorder %s26, 0
    %p305 = por %p303, %p304
    %s307 = sadd.s32 %s306, 1
    %p310 = scmp.eq.s32.totalorder %s20, 1
    %p311 = scmp.ne.s32.totalorder %s306, %s308
    %p312 = scmp.eq.s32.totalorder %s20, 0
    %p313 = por %p311, %p312
    %p314 = scmp.ne.s32.totalorder %s306, %s308
    %p315 = scmp.eq.s32.totalorder %s25, 1
    %p316 = por %p314, %p315
    %p317 = scmp.ne.s32.totalorder %s308, %s309
    %p318 = scmp.eq.s32.totalorder %s25, 0
    %p319 = por %p317, %p318
    %p320 = scmp.ne.s32.totalorder %s308, %s309
    %p321 = scmp.eq.s32.totalorder %s26, 1
    %p322 = por %p320, %p321
    %p324 = scmp.ne.s32.totalorder %s309, %s323
    %p325 = scmp.eq.s32.totalorder %s26, 0
    %p326 = por %p324, %p325
    %s327 = ssub.s32 %s20, %s27
    %p328 = scmp.eq.s32.totalorder %s327, 0
    %s330 = sadd.s32 %s329, 1
    %s331 = scalar_select %p328, %s329, %s330
    %p334 = pneg %p328
    %p335 = scmp.eq.s32.totalorder %s20, 1
    %p336 = por %p334, %p335
    %p337 = scmp.ne.s32.totalorder %s329, %s332
    %p338 = scmp.eq.s32.totalorder %s20, 0
    %p339 = por %p337, %p338
    %p340 = scmp.ne.s32.totalorder %s329, %s332
    %p341 = scmp.eq.s32.totalorder %s25, 1
    %p342 = por %p340, %p341
    %p343 = scmp.ne.s32.totalorder %s332, %s333
    %p344 = scmp.eq.s32.totalorder %s25, 0
    %p345 = por %p343, %p344
    %p346 = scmp.ne.s32.totalorder %s332, %s333
    %p347 = scmp.eq.s32.totalorder %s26, 1
    %p348 = por %p346, %p347
    %p350 = scmp.ne.s32.totalorder %s333, %s349
    %p351 = scmp.eq.s32.totalorder %s26, 0
    %p352 = por %p350, %p351
    %p353 = scmp.le.s32.totalorder 1, %s20
    %p354 = scmp.lt.s32.totalorder %s20, 3
    %p355 = pnand %p353, %p354
    %p356 = pneg %p355
    // Predicated region
    $region9: #{osa_forward.1} parent=5 // pred_check
      _
    $region10: #{osa_forward.1} parent=5 // pred_check_branch
      %358 = sbr.rel (%p355) target = $region12
    $region11: #{osa_forward.1} parent=5 // pred_region
      %s359 = ssub.s32 %s20, 1
      // Predicated region
      $region13: #{osa_forward.1} parent=11 // pred_check
        %p360 = pneg %p67
      $region14: #{osa_forward.1} parent=11 // pred_check_branch
        %362 = sbr.rel (%p360) target = $region16
      $region15: #{osa_forward.1} parent=11 // pred_region
        _
      $region16: #{osa_forward.1} parent=11 // pred_fallthru
        _
      // Predicated region
      $region17: #{osa_forward.1} parent=11 // pred_check
        %p363 = pneg %p88
      $region18: #{osa_forward.1} parent=11 // pred_check_branch
        %365 = sbr.rel (%p363) target = $region20
      $region19: #{osa_forward.1} parent=11 // pred_region
        _
      $region20: #{osa_forward.1} parent=11 // pred_fallthru
        _
      // Predicated region
      $region21: #{osa_forward.1} parent=11 // pred_check
        %p366 = pneg %p109
      $region22: #{osa_forward.1} parent=11 // pred_check_branch
        %368 = sbr.rel (%p366) target = $region24
      $region23: #{osa_forward.1} parent=11 // pred_region
        _
      $region24: #{osa_forward.1} parent=11 // pred_fallthru
        _
      // Predicated region
      $region25: #{osa_forward.1} parent=11 // pred_check
        %p369 = pneg %p130
      $region26: #{osa_forward.1} parent=11 // pred_check_branch
        %371 = sbr.rel (%p369) target = $region28
      $region27: #{osa_forward.1} parent=11 // pred_region
        _
      $region28: #{osa_forward.1} parent=11 // pred_fallthru
        _
      // Predicated region
      $region29: #{osa_forward.1} parent=11 // pred_check
        %p372 = pneg %p151
      $region30: #{osa_forward.1} parent=11 // pred_check_branch
        %374 = sbr.rel (%p372) target = $region32
      $region31: #{osa_forward.1} parent=11 // pred_region
        _
      $region32: #{osa_forward.1} parent=11 // pred_fallthru
        _
      // Predicated region
      $region33: #{osa_forward.1} parent=11 // pred_check
        %p375 = pneg %p172
      $region34: #{osa_forward.1} parent=11 // pred_check_branch
        %377 = sbr.rel (%p375) target = $region36
      $region35: #{osa_forward.1} parent=11 // pred_region
        _
      $region36: #{osa_forward.1} parent=11 // pred_fallthru
        _
      // Predicated region
      $region37: #{osa_forward.1} parent=11 // pred_check
        %p378 = pneg %p193
      $region38: #{osa_forward.1} parent=11 // pred_check_branch
        %380 = sbr.rel (%p378) target = $region40
      $region39: #{osa_forward.1} parent=11 // pred_region
        _
      $region40: #{osa_forward.1} parent=11 // pred_fallthru
        _
      // Predicated region
      $region41: #{osa_forward.1} parent=11 // pred_check
        %p381 = pneg %p214
      $region42: #{osa_forward.1} parent=11 // pred_check_branch
        %383 = sbr.rel (%p381) target = $region44
      $region43: #{osa_forward.1} parent=11 // pred_region
        _
      $region44: #{osa_forward.1} parent=11 // pred_fallthru
        _
      // Predicated region
      $region45: #{osa_forward.1} parent=11 // pred_check
        %p384 = pneg %p235
      $region46: #{osa_forward.1} parent=11 // pred_check_branch
        %386 = sbr.rel (%p384) target = $region48
      $region47: #{osa_forward.1} parent=11 // pred_region
        _
      $region48: #{osa_forward.1} parent=11 // pred_fallthru
        _
      // Predicated region
      $region49: #{osa_forward.1} parent=11 // pred_check
        %p387 = pneg %p256
      $region50: #{osa_forward.1} parent=11 // pred_check_branch
        %389 = sbr.rel (%p387) target = $region52
      $region51: #{osa_forward.1} parent=11 // pred_region
        _
      $region52: #{osa_forward.1} parent=11 // pred_fallthru
        _
      // Predicated region
      $region53: #{osa_forward.1} parent=11 // pred_check
        %p390 = pneg %p277
      $region54: #{osa_forward.1} parent=11 // pred_check_branch
        %392 = sbr.rel (%p390) target = $region56
      $region55: #{osa_forward.1} parent=11 // pred_region
        _
      $region56: #{osa_forward.1} parent=11 // pred_fallthru
        _
      // Predicated region
      $region57: #{osa_forward.1} parent=11 // pred_check
        %p393 = pneg %p298
      $region58: #{osa_forward.1} parent=11 // pred_check_branch
        %395 = sbr.rel (%p393) target = $region60
      $region59: #{osa_forward.1} parent=11 // pred_region
        _
      $region60: #{osa_forward.1} parent=11 // pred_fallthru
        _
      // Predicated region
      $region61: #{osa_forward.1} parent=11 // pred_check
        %p396 = pneg %p319
      $region62: #{osa_forward.1} parent=11 // pred_check_branch
        %398 = sbr.rel (%p396) target = $region64
      $region63: #{osa_forward.1} parent=11 // pred_region
        _
      $region64: #{osa_forward.1} parent=11 // pred_fallthru
        _
    $region12: #{osa_forward.1} parent=5 // pred_fallthru
      _
    %p399 = scmp.lt.s32.totalorder %s20, 2
    // Predicated region
    $region65: #{osa_forward.1} parent=5 // pred_check
      %p400 = pneg %p399
    $region66: #{osa_forward.1} parent=5 // pred_check_branch
      %402 = sbr.rel (%p400) target = $region68
    $region67: #{osa_forward.1} parent=5 // pred_region
      // Predicated region
      $region69: #{osa_forward.1} parent=67 // pred_check
        %p403 = pneg %p40
      $region70: #{osa_forward.1} parent=67 // pred_check_branch
        %405 = sbr.rel (%p403) target = $region72
      $region71: #{osa_forward.1} parent=67 // pred_region
        %p406 = scmp.lt.s32.totalorder %s20, 1
        %s407 = scalar_select %p406, %s20, 1
        %s408 = smul.addr %s407, 32
        %s409 = smul.addr %s408, 4
        %s410 = scalar_lea.vmem %s0, %s409
      $region72: #{osa_forward.1} parent=67 // pred_fallthru
        _
    $region68: #{osa_forward.1} parent=5 // pred_fallthru
      _
    %p411 = scmp.le.s32.totalorder 1, %s20
    %p412 = scmp.lt.s32.totalorder %s20, 3
    %p413 = pnand %p411, %p412
    %p414 = pneg %p413
    // Predicated region
    $region73: #{osa_forward.1} parent=5 // pred_check
      _
    $region74: #{osa_forward.1} parent=5 // pred_check_branch
      %416 = sbr.rel (%p413) target = $region76
    $region75: #{osa_forward.1} parent=5 // pred_region
      %s417 = ssub.s32 %s20, 1
      %p418 = scmp.lt.s32.totalorder %s25, 1
      %s419 = scalar_select %p418, %s25, 1
      %s420 = smul.addr %s419, 32
      %s421 = smul.addr %s420, 4
      %s422 = scalar_lea.vmem %s0, %s421
      %p423 = pneg %p46
      %p424 = pneg %p43
      %p425 = pneg %p67
      %p426 = pneg %p64
      %p427 = pneg %p88
      %p428 = pneg %p85
      %p429 = pneg %p109
      %p430 = pneg %p106
      %p431 = pneg %p130
      %p432 = pneg %p127
      %p433 = pneg %p151
      %p434 = pneg %p148
      %p435 = pneg %p172
      %p436 = pneg %p169
      %p437 = pneg %p193
      %p438 = pneg %p190
      %p439 = pneg %p214
      %p440 = pneg %p211
      %p441 = pneg %p235
      %p442 = pneg %p232
      %p443 = pneg %p256
      %p444 = pneg %p253
      %p445 = pneg %p277
      %p446 = pneg %p274
      %p447 = pneg %p298
      %p448 = pneg %p295
      %p449 = pneg %p319
      %p450 = pneg %p316
      %p451 = pneg %p345
      %p452 = pneg %p342
      %p453 = scmp.lt.s32.totalorder %s25, 1
      %s454 = scalar_select %p453, %s25, 1
      %s455 = smul.addr %s454, 32
      %s456 = smul.addr %s455, 8
      %s457 = scalar_lea.vmem %s14, %s456
      %p458 = scmp.lt.s32.totalorder %s25, 1
      %s459 = scalar_select %p458, %s25, 1
      %s460 = smul.addr %s459, 32
      %s461 = smul.addr %s460, 4
      %s462 = scalar_lea.vmem %s0, %s461
      %p463 = scmp.lt.s32.totalorder %s25, 1
      %s464 = scalar_select %p463, %s25, 1
      %s465 = smul.addr %s464, 32
      %s466 = smul.addr %s465, 8
      %s467 = scalar_lea.vmem %s14, %s466
      %v469 = vld [vmem:[%s462] sm:$0xf]
      %v470 = vld [vmem:[%s462 + $0x4] sm:$0xf]
      %v471 = vld [vmem:[%s462 + $0x8] sm:$0xf]
      %v472 = vld [vmem:[%s462 + $0xc] sm:$0xf]
      %v473 = vld [vmem:[%s462 + $0x10] sm:$0xf]
      %v474 = vld [vmem:[%s462 + $0x14] sm:$0xf]
      %v475 = vld [vmem:[%s462 + $0x18] sm:$0xf]
      %v476 = vld [vmem:[%s462 + $0x1c] sm:$0xf]
      %v477 = vld [vmem:[%s462 + $0x20] sm:$0xf]
      %v478 = vld [vmem:[%s462 + $0x24] sm:$0xf]
      %v479 = vld [vmem:[%s462 + $0x28] sm:$0xf]
      %v480 = vld [vmem:[%s462 + $0x2c] sm:$0xf]
      %v481 = vld [vmem:[%s462 + $0x30] sm:$0xf]
      %v482 = vld [vmem:[%s462 + $0x34] sm:$0xf]
      %v483 = vld [vmem:[%s462 + $0x38] sm:$0xf]
      %v484 = vld [vmem:[%s462 + $0x3c] sm:$0xf]
      %v485 = vld [vmem:[%s462 + $0x40] sm:$0xf]
      %v486 = vld [vmem:[%s462 + $0x44] sm:$0xf]
      %v487 = vld [vmem:[%s462 + $0x48] sm:$0xf]
      %v488 = vld [vmem:[%s462 + $0x4c] sm:$0xf]
      %v489 = vld [vmem:[%s462 + $0x50] sm:$0xf]
      %v490 = vld [vmem:[%s462 + $0x54] sm:$0xf]
      %v491 = vld [vmem:[%s462 + $0x58] sm:$0xf]
      %v492 = vld [vmem:[%s462 + $0x5c] sm:$0xf]
      %v493 = vld [vmem:[%s462 + $0x60] sm:$0xf]
      %v494 = vld [vmem:[%s462 + $0x64] sm:$0xf]
      %v495 = vld [vmem:[%s462 + $0x68] sm:$0xf]
      %v496 = vld [vmem:[%s462 + $0x6c] sm:$0xf]
      %v497 = vld [vmem:[%s462 + $0x70] sm:$0xf]
      %v498 = vld [vmem:[%s462 + $0x74] sm:$0xf]
      %v499 = vld [vmem:[%s462 + $0x78] sm:$0xf]
      %v500 = vld [vmem:[%s462 + $0x7c] sm:$0xf]
      %v501 = vld [vmem:[%s1] sm:$0xf]
      %v502 = vld [vmem:[%s1 + $0x4] sm:$0xf]
      %v503 = vld [vmem:[%s1 + $0x8] sm:$0xf]
      %v504 = vld [vmem:[%s1 + $0xc] sm:$0xf]
      %v505 = vld [vmem:[%s1 + $0x10] sm:$0xf]
      %v506 = vld [vmem:[%s1 + $0x14] sm:$0xf]
      %v507 = vld [vmem:[%s1 + $0x18] sm:$0xf]
      %v508 = vld [vmem:[%s1 + $0x1c] sm:$0xf]
      %v509 = vld [vmem:[%s1 + $0x20] sm:$0xf]
      %v510 = vld [vmem:[%s1 + $0x24] sm:$0xf]
      %v511 = vld [vmem:[%s1 + $0x28] sm:$0xf]
      %v512 = vld [vmem:[%s1 + $0x2c] sm:$0xf]
      %v513 = vld [vmem:[%s1 + $0x30] sm:$0xf]
      %v514 = vld [vmem:[%s1 + $0x34] sm:$0xf]
      %v515 = vld [vmem:[%s1 + $0x38] sm:$0xf]
      %v516 = vld [vmem:[%s1 + $0x3c] sm:$0xf]
      %v549 = vunpack.c.l.b16 %v469
      %v550 = vunpack.c.l.b16 %v470
      %v551 = vunpack.c.l.b16 %v471
      %v552 = vunpack.c.l.b16 %v472
      %v553 = vunpack.c.l.b16 %v473
      %v554 = vunpack.c.l.b16 %v474
      %v555 = vunpack.c.l.b16 %v475
      %v556 = vunpack.c.l.b16 %v476
      %v557 = vunpack.c.l.b16 %v477
      %v558 = vunpack.c.l.b16 %v478
      %v559 = vunpack.c.l.b16 %v479
      %v560 = vunpack.c.l.b16 %v480
      %v561 = vunpack.c.l.b16 %v481
      %v562 = vunpack.c.l.b16 %v482
      %v563 = vunpack.c.l.b16 %v483
      %v564 = vunpack.c.l.b16 %v484
      %v565 = vunpack.c.l.b16 %v485
      %v566 = vunpack.c.l.b16 %v486
      %v567 = vunpack.c.l.b16 %v487
      %v568 = vunpack.c.l.b16 %v488
      %v569 = vunpack.c.l.b16 %v489
      %v570 = vunpack.c.l.b16 %v490
      %v571 = vunpack.c.l.b16 %v491
      %v572 = vunpack.c.l.b16 %v492
      %v573 = vunpack.c.l.b16 %v493
      %v574 = vunpack.c.l.b16 %v494
      %v575 = vunpack.c.l.b16 %v495
      %v576 = vunpack.c.l.b16 %v496
      %v577 = vunpack.c.l.b16 %v497
      %v578 = vunpack.c.l.b16 %v498
      %v579 = vunpack.c.l.b16 %v499
      %v580 = vunpack.c.l.b16 %v500
      %v581 = vpack.c.b16 %v550, %v549
      %v582 = vpack.c.b16 %v552, %v551
      %v583 = vpack.c.b16 %v554, %v553
      %v584 = vpack.c.b16 %v556, %v555
      %v585 = vpack.c.b16 %v558, %v557
      %v586 = vpack.c.b16 %v560, %v559
      %v587 = vpack.c.b16 %v562, %v561
      %v588 = vpack.c.b16 %v564, %v563
      %v589 = vpack.c.b16 %v566, %v565
      %v590 = vpack.c.b16 %v568, %v567
      %v591 = vpack.c.b16 %v570, %v569
      %v592 = vpack.c.b16 %v572, %v571
      %v593 = vpack.c.b16 %v574, %v573
      %v594 = vpack.c.b16 %v576, %v575
      %v595 = vpack.c.b16 %v578, %v577
      %v596 = vpack.c.b16 %v580, %v579
      %v629 = vunpack.c.l.b16 %v501
      %v630 = vunpack.c.l.b16 %v502
      %v631 = vunpack.c.l.b16 %v503
      %v632 = vunpack.c.l.b16 %v504
      %v633 = vunpack.c.l.b16 %v505
      %v634 = vunpack.c.l.b16 %v506
      %v635 = vunpack.c.l.b16 %v507
      %v636 = vunpack.c.l.b16 %v508
      %v637 = vunpack.c.l.b16 %v509
      %v638 = vunpack.c.l.b16 %v510
      %v639 = vunpack.c.l.b16 %v511
      %v640 = vunpack.c.l.b16 %v512
      %v641 = vunpack.c.l.b16 %v513
      %v642 = vunpack.c.l.b16 %v514
      %v643 = vunpack.c.l.b16 %v515
      %v644 = vunpack.c.l.b16 %v516
      %v645 = vpack.c.b16 %v630, %v629
      %v646 = vpack.c.b16 %v632, %v631
      %v647 = vpack.c.b16 %v634, %v633
      %v648 = vpack.c.b16 %v636, %v635
      %v649 = vpack.c.b16 %v638, %v637
      %v650 = vpack.c.b16 %v640, %v639
      %v651 = vpack.c.b16 %v642, %v641
      %v652 = vpack.c.b16 %v644, %v643
      %661 = vmatpush.bf16.msra.mxu0 %v652
      %662 = vmatpush.bf16.msra.mxu0 %v651
      %663 = vmatpush.bf16.msra.mxu0 %v650
      %664 = vmatpush.bf16.msra.mxu0 %v649
      %665 = vmatpush.bf16.msra.mxu0 %v648
      %666 = vmatpush.bf16.msra.mxu0 %v647
      %667 = vmatpush.bf16.msra.mxu0 %v646
      %668 = vmatpush.bf16.msra.mxu0 %v645
      %669 = vmatmul.bf16.gmra.mxu0 %v581
      %v670 = vpop.f32.mrf.mxu0
      %v671 = vadd.f32 0.0, %v670
      %v672 = vpop.f32.mrf.mxu0
      %v673 = vadd.f32 0.0, %v672
      %674 = vmatmul.bf16.gmra.mxu0 %v582
      %v675 = vpop.f32.mrf.mxu0
      %v676 = vadd.f32 0.0, %v675
      %v677 = vpop.f32.mrf.mxu0
      %v678 = vadd.f32 0.0, %v677
      %679 = vmatmul.bf16.gmra.mxu0 %v583
      %v680 = vpop.f32.mrf.mxu0
      %v681 = vadd.f32 0.0, %v680
      %v682 = vpop.f32.mrf.mxu0
      %v683 = vadd.f32 0.0, %v682
      %684 = vmatmul.bf16.gmra.mxu0 %v584
      %v685 = vpop.f32.mrf.mxu0
      %v686 = vadd.f32 0.0, %v685
      %v687 = vpop.f32.mrf.mxu0
      %v688 = vadd.f32 0.0, %v687
      %689 = vmatmul.bf16.gmra.mxu0 %v585
      %v690 = vpop.f32.mrf.mxu0
      %v691 = vadd.f32 0.0, %v690
      %v692 = vpop.f32.mrf.mxu0
      %v693 = vadd.f32 0.0, %v692
      %694 = vmatmul.bf16.gmra.mxu0 %v586
      %v695 = vpop.f32.mrf.mxu0
      %v696 = vadd.f32 0.0, %v695
      %v697 = vpop.f32.mrf.mxu0
      %v698 = vadd.f32 0.0, %v697
      %699 = vmatmul.bf16.gmra.mxu0 %v587
      %v700 = vpop.f32.mrf.mxu0
      %v701 = vadd.f32 0.0, %v700
      %v702 = vpop.f32.mrf.mxu0
      %v703 = vadd.f32 0.0, %v702
      %704 = vmatmul.bf16.gmra.mxu0 %v588
      %v705 = vpop.f32.mrf.mxu0
      %v706 = vadd.f32 0.0, %v705
      %v707 = vpop.f32.mrf.mxu0
      %v708 = vadd.f32 0.0, %v707
      %709 = vmatmul.bf16.gmra.mxu0 %v589
      %v710 = vpop.f32.mrf.mxu0
      %v711 = vadd.f32 0.0, %v710
      %v712 = vpop.f32.mrf.mxu0
      %v713 = vadd.f32 0.0, %v712
      %714 = vmatmul.bf16.gmra.mxu0 %v590
      %v715 = vpop.f32.mrf.mxu0
      %v716 = vadd.f32 0.0, %v715
      %v717 = vpop.f32.mrf.mxu0
      %v718 = vadd.f32 0.0, %v717
      %719 = vmatmul.bf16.gmra.mxu0 %v591
      %v720 = vpop.f32.mrf.mxu0
      %v721 = vadd.f32 0.0, %v720
      %v722 = vpop.f32.mrf.mxu0
      %v723 = vadd.f32 0.0, %v722
      %724 = vmatmul.bf16.gmra.mxu0 %v592
      %v725 = vpop.f32.mrf.mxu0
      %v726 = vadd.f32 0.0, %v725
      %v727 = vpop.f32.mrf.mxu0
      %v728 = vadd.f32 0.0, %v727
      %729 = vmatmul.bf16.gmra.mxu0 %v593
      %v730 = vpop.f32.mrf.mxu0
      %v731 = vadd.f32 0.0, %v730
      %v732 = vpop.f32.mrf.mxu0
      %v733 = vadd.f32 0.0, %v732
      %734 = vmatmul.bf16.gmra.mxu0 %v594
      %v735 = vpop.f32.mrf.mxu0
      %v736 = vadd.f32 0.0, %v735
      %v737 = vpop.f32.mrf.mxu0
      %v738 = vadd.f32 0.0, %v737
      %739 = vmatmul.bf16.gmra.mxu0 %v595
      %v740 = vpop.f32.mrf.mxu0
      %v741 = vadd.f32 0.0, %v740
      %v742 = vpop.f32.mrf.mxu0
      %v743 = vadd.f32 0.0, %v742
      %744 = vmatmul.bf16.gmra.mxu0 %v596
      %v745 = vpop.f32.mrf.mxu0
      %v746 = vadd.f32 0.0, %v745
      %v747 = vpop.f32.mrf.mxu0
      %v748 = vadd.f32 0.0, %v747
      %749 = vdwg.mxu0
      %750 = vst [vmem:[#allocation5] sm:$0xff] %v671
      %751 = vst [vmem:[#allocation5 + $0x8] sm:$0xff] %v673
      %752 = vst [vmem:[#allocation5 + $0x10] sm:$0xff] %v676
      %753 = vst [vmem:[#allocation5 + $0x18] sm:$0xff] %v678
      %754 = vst [vmem:[#allocation5 + $0x20] sm:$0xff] %v681
      %755 = vst [vmem:[#allocation5 + $0x28] sm:$0xff] %v683
      %756 = vst [vmem:[#allocation5 + $0x30] sm:$0xff] %v686
      %757 = vst [vmem:[#allocation5 + $0x38] sm:$0xff] %v688
      %758 = vst [vmem:[#allocation5 + $0x40] sm:$0xff] %v691
      %759 = vst [vmem:[#allocation5 + $0x48] sm:$0xff] %v693
      %760 = vst [vmem:[#allocation5 + $0x50] sm:$0xff] %v696
      %761 = vst [vmem:[#allocation5 + $0x58] sm:$0xff] %v698
      %762 = vst [vmem:[#allocation5 + $0x60] sm:$0xff] %v701
      %763 = vst [vmem:[#allocation5 + $0x68] sm:$0xff] %v703
      %764 = vst [vmem:[#allocation5 + $0x70] sm:$0xff] %v706
      %765 = vst [vmem:[#allocation5 + $0x78] sm:$0xff] %v708
      %766 = vst [vmem:[#allocation5 + $0x80] sm:$0xff] %v711
      %767 = vst [vmem:[#allocation5 + $0x88] sm:$0xff] %v713
      %768 = vst [vmem:[#allocation5 + $0x90] sm:$0xff] %v716
      %769 = vst [vmem:[#allocation5 + $0x98] sm:$0xff] %v718
      %770 = vst [vmem:[#allocation5 + $0xa0] sm:$0xff] %v721
      %771 = vst [vmem:[#allocation5 + $0xa8] sm:$0xff] %v723
      %772 = vst [vmem:[#allocation5 + $0xb0] sm:$0xff] %v726
      %773 = vst [vmem:[#allocation5 + $0xb8] sm:$0xff] %v728
      %774 = vst [vmem:[#allocation5 + $0xc0] sm:$0xff] %v731
      %775 = vst [vmem:[#allocation5 + $0xc8] sm:$0xff] %v733
      %776 = vst [vmem:[#allocation5 + $0xd0] sm:$0xff] %v736
      %777 = vst [vmem:[#allocation5 + $0xd8] sm:$0xff] %v738
      %778 = vst [vmem:[#allocation5 + $0xe0] sm:$0xff] %v741
      %779 = vst [vmem:[#allocation5 + $0xe8] sm:$0xff] %v743
      %780 = vst [vmem:[#allocation5 + $0xf0] sm:$0xff] %v746
      %781 = vst [vmem:[#allocation5 + $0xf8] sm:$0xff] %v748
      %782 = vst [vmem:[#allocation2] sm:$0xf] 0
      %783 = vst [vmem:[#allocation2 + $0x4] sm:$0xf] 0
      %784 = vst [vmem:[#allocation2 + $0x8] sm:$0xf] 0
      %785 = vst [vmem:[#allocation2 + $0xc] sm:$0xf] 0
      %s786 = scalar_lea.vmem [#allocation2], 272
      %787 = vst [vmem:[%s786] sm:$0xf] 0
      %788 = vst [vmem:[%s786 + $0x4] sm:$0xf] 0
      %789 = vst [vmem:[%s786 + $0x8] sm:$0xf] 0
      %790 = vst [vmem:[%s786 + $0xc] sm:$0xf] 0
      %s791 = scalar_lea.vmem [#allocation2], 16
      %792 = vst [vmem:[%s791] sm:$0xf] 0
      %793 = vst [vmem:[%s791 + $0x10] sm:$0xf] 0
      %794 = vst [vmem:[%s791 + $0x20] sm:$0xf] 0
      %795 = vst [vmem:[%s791 + $0x30] sm:$0xf] 0
      %796 = vst [vmem:[%s791 + $0x40] sm:$0xf] 0
      %797 = vst [vmem:[%s791 + $0x50] sm:$0xf] 0
      %798 = vst [vmem:[%s791 + $0x60] sm:$0xf] 0
      %799 = vst [vmem:[%s791 + $0x70] sm:$0xf] 0
      %800 = vst [vmem:[%s791 + $0x80] sm:$0xf] 0
      %801 = vst [vmem:[%s791 + $0x90] sm:$0xf] 0
      %802 = vst [vmem:[%s791 + $0xa0] sm:$0xf] 0
      %803 = vst [vmem:[%s791 + $0xb0] sm:$0xf] 0
      %804 = vst [vmem:[%s791 + $0xc0] sm:$0xf] 0
      %805 = vst [vmem:[%s791 + $0xd0] sm:$0xf] 0
      %806 = vst [vmem:[%s791 + $0xe0] sm:$0xf] 0
      %807 = vst [vmem:[%s791 + $0xf0] sm:$0xf] 0
      %808 = vst [vmem:[%s791 + $0xc] sm:$0xf] 0
      %809 = vst [vmem:[%s791 + $0x1c] sm:$0xf] 0
      %810 = vst [vmem:[%s791 + $0x2c] sm:$0xf] 0
      %811 = vst [vmem:[%s791 + $0x3c] sm:$0xf] 0
      %812 = vst [vmem:[%s791 + $0x4c] sm:$0xf] 0
      %813 = vst [vmem:[%s791 + $0x5c] sm:$0xf] 0
      %814 = vst [vmem:[%s791 + $0x6c] sm:$0xf] 0
      %815 = vst [vmem:[%s791 + $0x7c] sm:$0xf] 0
      %816 = vst [vmem:[%s791 + $0x8c] sm:$0xf] 0
      %817 = vst [vmem:[%s791 + $0x9c] sm:$0xf] 0
      %818 = vst [vmem:[%s791 + $0xac] sm:$0xf] 0
      %819 = vst [vmem:[%s791 + $0xbc] sm:$0xf] 0
      %820 = vst [vmem:[%s791 + $0xcc] sm:$0xf] 0
      %821 = vst [vmem:[%s791 + $0xdc] sm:$0xf] 0
      %822 = vst [vmem:[%s791 + $0xec] sm:$0xf] 0
      %823 = vst [vmem:[%s791 + $0xfc] sm:$0xf] 0
      %824 = vst [vmem:[%s791 + $0x4] sm:$0xf] %v469
      %825 = vst [vmem:[%s791 + $0x8] sm:$0xf] %v470
      %826 = vst [vmem:[%s791 + $0x14] sm:$0xf] %v471
      %827 = vst [vmem:[%s791 + $0x18] sm:$0xf] %v472
      %828 = vst [vmem:[%s791 + $0x24] sm:$0xf] %v473
      %829 = vst [vmem:[%s791 + $0x28] sm:$0xf] %v474
      %830 = vst [vmem:[%s791 + $0x34] sm:$0xf] %v475
      %831 = vst [vmem:[%s791 + $0x38] sm:$0xf] %v476
      %832 = vst [vmem:[%s791 + $0x44] sm:$0xf] %v477
      %833 = vst [vmem:[%s791 + $0x48] sm:$0xf] %v478
      %834 = vst [vmem:[%s791 + $0x54] sm:$0xf] %v479
      %835 = vst [vmem:[%s791 + $0x58] sm:$0xf] %v480
      %836 = vst [vmem:[%s791 + $0x64] sm:$0xf] %v481
      %837 = vst [vmem:[%s791 + $0x68] sm:$0xf] %v482
      %838 = vst [vmem:[%s791 + $0x74] sm:$0xf] %v483
      %839 = vst [vmem:[%s791 + $0x78] sm:$0xf] %v484
      %840 = vst [vmem:[%s791 + $0x84] sm:$0xf] %v485
      %841 = vst [vmem:[%s791 + $0x88] sm:$0xf] %v486
      %842 = vst [vmem:[%s791 + $0x94] sm:$0xf] %v487
      %843 = vst [vmem:[%s791 + $0x98] sm:$0xf] %v488
      %844 = vst [vmem:[%s791 + $0xa4] sm:$0xf] %v489
      %845 = vst [vmem:[%s791 + $0xa8] sm:$0xf] %v490
      %846 = vst [vmem:[%s791 + $0xb4] sm:$0xf] %v491
      %847 = vst [vmem:[%s791 + $0xb8] sm:$0xf] %v492
      %848 = vst [vmem:[%s791 + $0xc4] sm:$0xf] %v493
      %849 = vst [vmem:[%s791 + $0xc8] sm:$0xf] %v494
      %850 = vst [vmem:[%s791 + $0xd4] sm:$0xf] %v495
      %851 = vst [vmem:[%s791 + $0xd8] sm:$0xf] %v496
      %852 = vst [vmem:[%s791 + $0xe4] sm:$0xf] %v497
      %853 = vst [vmem:[%s791 + $0xe8] sm:$0xf] %v498
      %854 = vst [vmem:[%s791 + $0xf4] sm:$0xf] %v499
      %855 = vst [vmem:[%s791 + $0xf8] sm:$0xf] %v500
      %v856 = vld [vmem:[#allocation2] sm:$0x8]
      %v857 = vld [vmem:[#allocation2 + $0x4] sm:$0xf]
      %v858 = vld [vmem:[#allocation2 + $0x8] sm:$0xf]
      %v859 = vld [vmem:[#allocation2 + $0x10] sm:$0x8]
      %v860 = vld [vmem:[#allocation2 + $0x14] sm:$0xf]
      %v861 = vld [vmem:[#allocation2 + $0x18] sm:$0xf]
      %v862 = vld [vmem:[#allocation2 + $0x20] sm:$0x8]
      %v863 = vld [vmem:[#allocation2 + $0x24] sm:$0xf]
      %v864 = vld [vmem:[#allocation2 + $0x28] sm:$0xf]
      %v865 = vld [vmem:[#allocation2 + $0x30] sm:$0x8]
      %v866 = vld [vmem:[#allocation2 + $0x34] sm:$0xf]
      %v867 = vld [vmem:[#allocation2 + $0x38] sm:$0xf]
      %v868 = vld [vmem:[#allocation2 + $0x40] sm:$0x8]
      %v869 = vld [vmem:[#allocation2 + $0x44] sm:$0xf]
      %v870 = vld [vmem:[#allocation2 + $0x48] sm:$0xf]
      %v871 = vld [vmem:[#allocation2 + $0x50] sm:$0x8]
      %v872 = vld [vmem:[#allocation2 + $0x54] sm:$0xf]
      %v873 = vld [vmem:[#allocation2 + $0x58] sm:$0xf]
      %v874 = vld [vmem:[#allocation2 + $0x60] sm:$0x8]
      %v875 = vld [vmem:[#allocation2 + $0x64] sm:$0xf]
      %v876 = vld [vmem:[#allocation2 + $0x68] sm:$0xf]
      %v877 = vld [vmem:[#allocation2 + $0x70] sm:$0x8]
      %v878 = vld [vmem:[#allocation2 + $0x74] sm:$0xf]
      %v879 = vld [vmem:[#allocation2 + $0x78] sm:$0xf]
      %v880 = vld [vmem:[#allocation2 + $0x80] sm:$0x8]
      %v881 = vld [vmem:[#allocation2 + $0x84] sm:$0xf]
      %v882 = vld [vmem:[#allocation2 + $0x88] sm:$0xf]
      %v883 = vld [vmem:[#allocation2 + $0x90] sm:$0x8]
      %v884 = vld [vmem:[#allocation2 + $0x94] sm:$0xf]
      %v885 = vld [vmem:[#allocation2 + $0x98] sm:$0xf]
      %v886 = vld [vmem:[#allocation2 + $0xa0] sm:$0x8]
      %v887 = vld [vmem:[#allocation2 + $0xa4] sm:$0xf]
      %v888 = vld [vmem:[#allocation2 + $0xa8] sm:$0xf]
      %v889 = vld [vmem:[#allocation2 + $0xb0] sm:$0x8]
      %v890 = vld [vmem:[#allocation2 + $0xb4] sm:$0xf]
      %v891 = vld [vmem:[#allocation2 + $0xb8] sm:$0xf]
      %v892 = vld [vmem:[#allocation2 + $0xc0] sm:$0x8]
      %v893 = vld [vmem:[#allocation2 + $0xc4] sm:$0xf]
      %v894 = vld [vmem:[#allocation2 + $0xc8] sm:$0xf]
      %v895 = vld [vmem:[#allocation2 + $0xd0] sm:$0x8]
      %v896 = vld [vmem:[#allocation2 + $0xd4] sm:$0xf]
      %v897 = vld [vmem:[#allocation2 + $0xd8] sm:$0xf]
      %v898 = vld [vmem:[#allocation2 + $0xe0] sm:$0x8]
      %v899 = vld [vmem:[#allocation2 + $0xe4] sm:$0xf]
      %v900 = vld [vmem:[#allocation2 + $0xe8] sm:$0xf]
      %v901 = vld [vmem:[#allocation2 + $0xf0] sm:$0x8]
      %v902 = vld [vmem:[#allocation2 + $0xf4] sm:$0xf]
      %v903 = vld [vmem:[#allocation2 + $0xf8] sm:$0xf]
      %v904 = vld [vmem:[#allocation2 + $0x100] sm:$0x8]
      %v905 = vld [vmem:[#allocation2 + $0x104] sm:$0xf]
      %v906 = vld [vmem:[#allocation2 + $0x108] sm:$0xf]
      %v907 = vld [vmem:[#allocation2 + $0x110] sm:$0x8]
      %v908 = vld [vmem:[#allocation2 + $0x114] sm:$0xf]
      %v909 = vld [vmem:[#allocation2 + $0x118] sm:$0xf]
      %vm910 = vsmask.f32 256
      %vm911 = vsmask.f32 4368
      %vm912 = vmor %vm910, %vm911
      %v914 = vshrl.u32 %v856, 16
      %v916 = vrot.slane %v914, 7
      %v917 = vrot.slane %v916, 4
      %v919 = vshrl.u32 %v857, 16
      %v921 = vrot.slane %v919, 7
      %v922 = vshll.u32 %v857, 16
      %v924 = vor.u32 %v921, %v922
      %v925 = vsel %vm912, %v917, %v924
      %v926 = vrot.slane %v921, 4
      %v928 = vshrl.u32 %v858, 16
      %v930 = vrot.slane %v928, 7
      %v931 = vshll.u32 %v858, 16
      %v933 = vor.u32 %v930, %v931
      %v934 = vsel %vm912, %v926, %v933
      %v936 = vshrl.u32 %v859, 16
      %v938 = vrot.slane %v936, 7
      %v939 = vrot.slane %v938, 4
      %v941 = vshrl.u32 %v860, 16
      %v943 = vrot.slane %v941, 7
      %v944 = vshll.u32 %v860, 16
      %v946 = vor.u32 %v943, %v944
      %v947 = vsel %vm912, %v939, %v946
      %v948 = vrot.slane %v943, 4
      %v950 = vshrl.u32 %v861, 16
      %v952 = vrot.slane %v950, 7
      %v953 = vshll.u32 %v861, 16
      %v955 = vor.u32 %v952, %v953
      %v956 = vsel %vm912, %v948, %v955
      %v958 = vshrl.u32 %v862, 16
      %v960 = vrot.slane %v958, 7
      %v961 = vrot.slane %v960, 4
      %v963 = vshrl.u32 %v863, 16
      %v965 = vrot.slane %v963, 7
      %v966 = vshll.u32 %v863, 16
      %v968 = vor.u32 %v965, %v966
      %v969 = vsel %vm912, %v961, %v968
      %v970 = vrot.slane %v965, 4
      %v972 = vshrl.u32 %v864, 16
      %v974 = vrot.slane %v972, 7
      %v975 = vshll.u32 %v864, 16
      %v977 = vor.u32 %v974, %v975
      %v978 = vsel %vm912, %v970, %v977
      %v980 = vshrl.u32 %v865, 16
      %v982 = vrot.slane %v980, 7
      %v983 = vrot.slane %v982, 4
      %v985 = vshrl.u32 %v866, 16
      %v987 = vrot.slane %v985, 7
      %v988 = vshll.u32 %v866, 16
      %v990 = vor.u32 %v987, %v988
      %v991 = vsel %vm912, %v983, %v990
      %v992 = vrot.slane %v987, 4
      %v994 = vshrl.u32 %v867, 16
      %v996 = vrot.slane %v994, 7
      %v997 = vshll.u32 %v867, 16
      %v999 = vor.u32 %v996, %v997
      %v1000 = vsel %vm912, %v992, %v999
      %v1002 = vshrl.u32 %v868, 16
      %v1004 = vrot.slane %v1002, 7
      %v1005 = vrot.slane %v1004, 4
      %v1007 = vshrl.u32 %v869, 16
      %v1009 = vrot.slane %v1007, 7
      %v1010 = vshll.u32 %v869, 16
      %v1012 = vor.u32 %v1009, %v1010
      %v1013 = vsel %vm912, %v1005, %v1012
      %v1014 = vrot.slane %v1009, 4
      %v1016 = vshrl.u32 %v870, 16
      %v1018 = vrot.slane %v1016, 7
      %v1019 = vshll.u32 %v870, 16
      %v1021 = vor.u32 %v1018, %v1019
      %v1022 = vsel %vm912, %v1014, %v1021
      %v1024 = vshrl.u32 %v871, 16
      %v1026 = vrot.slane %v1024, 7
      %v1027 = vrot.slane %v1026, 4
      %v1029 = vshrl.u32 %v872, 16
      %v1031 = vrot.slane %v1029, 7
      %v1032 = vshll.u32 %v872, 16
      %v1034 = vor.u32 %v1031, %v1032
      %v1035 = vsel %vm912, %v1027, %v1034
      %v1036 = vrot.slane %v1031, 4
      %v1038 = vshrl.u32 %v873, 16
      %v1040 = vrot.slane %v1038, 7
      %v1041 = vshll.u32 %v873, 16
      %v1043 = vor.u32 %v1040, %v1041
      %v1044 = vsel %vm912, %v1036, %v1043
      %v1046 = vshrl.u32 %v874, 16
      %v1048 = vrot.slane %v1046, 7
      %v1049 = vrot.slane %v1048, 4
      %v1051 = vshrl.u32 %v875, 16
      %v1053 = vrot.slane %v1051, 7
      %v1054 = vshll.u32 %v875, 16
      %v1056 = vor.u32 %v1053, %v1054
      %v1057 = vsel %vm912, %v1049, %v1056
      %v1058 = vrot.slane %v1053, 4
      %v1060 = vshrl.u32 %v876, 16
      %v1062 = vrot.slane %v1060, 7
      %v1063 = vshll.u32 %v876, 16
      %v1065 = vor.u32 %v1062, %v1063
      %v1066 = vsel %vm912, %v1058, %v1065
      %v1068 = vshrl.u32 %v877, 16
      %v1070 = vrot.slane %v1068, 7
      %v1071 = vrot.slane %v1070, 4
      %v1073 = vshrl.u32 %v878, 16
      %v1075 = vrot.slane %v1073, 7
      %v1076 = vshll.u32 %v878, 16
      %v1078 = vor.u32 %v1075, %v1076
      %v1079 = vsel %vm912, %v1071, %v1078
      %v1080 = vrot.slane %v1075, 4
      %v1082 = vshrl.u32 %v879, 16
      %v1084 = vrot.slane %v1082, 7
      %v1085 = vshll.u32 %v879, 16
      %v1087 = vor.u32 %v1084, %v1085
      %v1088 = vsel %vm912, %v1080, %v1087
      %v1090 = vshrl.u32 %v880, 16
      %v1092 = vrot.slane %v1090, 7
      %v1093 = vrot.slane %v1092, 4
      %v1095 = vshrl.u32 %v881, 16
      %v1097 = vrot.slane %v1095, 7
      %v1098 = vshll.u32 %v881, 16
      %v1100 = vor.u32 %v1097, %v1098
      %v1101 = vsel %vm912, %v1093, %v1100
      %v1102 = vrot.slane %v1097, 4
      %v1104 = vshrl.u32 %v882, 16
      %v1106 = vrot.slane %v1104, 7
      %v1107 = vshll.u32 %v882, 16
      %v1109 = vor.u32 %v1106, %v1107
      %v1110 = vsel %vm912, %v1102, %v1109
      %v1112 = vshrl.u32 %v883, 16
      %v1114 = vrot.slane %v1112, 7
      %v1115 = vrot.slane %v1114, 4
      %v1117 = vshrl.u32 %v884, 16
      %v1119 = vrot.slane %v1117, 7
      %v1120 = vshll.u32 %v884, 16
      %v1122 = vor.u32 %v1119, %v1120
      %v1123 = vsel %vm912, %v1115, %v1122
      %v1124 = vrot.slane %v1119, 4
      %v1126 = vshrl.u32 %v885, 16
      %v1128 = vrot.slane %v1126, 7
      %v1129 = vshll.u32 %v885, 16
      %v1131 = vor.u32 %v1128, %v1129
      %v1132 = vsel %vm912, %v1124, %v1131
      %v1134 = vshrl.u32 %v886, 16
      %v1136 = vrot.slane %v1134, 7
      %v1137 = vrot.slane %v1136, 4
      %v1139 = vshrl.u32 %v887, 16
      %v1141 = vrot.slane %v1139, 7
      %v1142 = vshll.u32 %v887, 16
      %v1144 = vor.u32 %v1141, %v1142
      %v1145 = vsel %vm912, %v1137, %v1144
      %v1146 = vrot.slane %v1141, 4
      %v1148 = vshrl.u32 %v888, 16
      %v1150 = vrot.slane %v1148, 7
      %v1151 = vshll.u32 %v888, 16
      %v1153 = vor.u32 %v1150, %v1151
      %v1154 = vsel %vm912, %v1146, %v1153
      %v1156 = vshrl.u32 %v889, 16
      %v1158 = vrot.slane %v1156, 7
      %v1159 = vrot.slane %v1158, 4
      %v1161 = vshrl.u32 %v890, 16
      %v1163 = vrot.slane %v1161, 7
      %v1164 = vshll.u32 %v890, 16
      %v1166 = vor.u32 %v1163, %v1164
      %v1167 = vsel %vm912, %v1159, %v1166
      %v1168 = vrot.slane %v1163, 4
      %v1170 = vshrl.u32 %v891, 16
      %v1172 = vrot.slane %v1170, 7
      %v1173 = vshll.u32 %v891, 16
      %v1175 = vor.u32 %v1172, %v1173
      %v1176 = vsel %vm912, %v1168, %v1175
      %v1178 = vshrl.u32 %v892, 16
      %v1180 = vrot.slane %v1178, 7
      %v1181 = vrot.slane %v1180, 4
      %v1183 = vshrl.u32 %v893, 16
      %v1185 = vrot.slane %v1183, 7
      %v1186 = vshll.u32 %v893, 16
      %v1188 = vor.u32 %v1185, %v1186
      %v1189 = vsel %vm912, %v1181, %v1188
      %v1190 = vrot.slane %v1185, 4
      %v1192 = vshrl.u32 %v894, 16
      %v1194 = vrot.slane %v1192, 7
      %v1195 = vshll.u32 %v894, 16
      %v1197 = vor.u32 %v1194, %v1195
      %v1198 = vsel %vm912, %v1190, %v1197
      %v1200 = vshrl.u32 %v895, 16
      %v1202 = vrot.slane %v1200, 7
      %v1203 = vrot.slane %v1202, 4
      %v1205 = vshrl.u32 %v896, 16
      %v1207 = vrot.slane %v1205, 7
      %v1208 = vshll.u32 %v896, 16
      %v1210 = vor.u32 %v1207, %v1208
      %v1211 = vsel %vm912, %v1203, %v1210
      %v1212 = vrot.slane %v1207, 4
      %v1214 = vshrl.u32 %v897, 16
      %v1216 = vrot.slane %v1214, 7
      %v1217 = vshll.u32 %v897, 16
      %v1219 = vor.u32 %v1216, %v1217
      %v1220 = vsel %vm912, %v1212, %v1219
      %v1222 = vshrl.u32 %v898, 16
      %v1224 = vrot.slane %v1222, 7
      %v1225 = vrot.slane %v1224, 4
      %v1227 = vshrl.u32 %v899, 16
      %v1229 = vrot.slane %v1227, 7
      %v1230 = vshll.u32 %v899, 16
      %v1232 = vor.u32 %v1229, %v1230
      %v1233 = vsel %vm912, %v1225, %v1232
      %v1234 = vrot.slane %v1229, 4
      %v1236 = vshrl.u32 %v900, 16
      %v1238 = vrot.slane %v1236, 7
      %v1239 = vshll.u32 %v900, 16
      %v1241 = vor.u32 %v1238, %v1239
      %v1242 = vsel %vm912, %v1234, %v1241
      %v1244 = vshrl.u32 %v901, 16
      %v1246 = vrot.slane %v1244, 7
      %v1247 = vrot.slane %v1246, 4
      %v1249 = vshrl.u32 %v902, 16
      %v1251 = vrot.slane %v1249, 7
      %v1252 = vshll.u32 %v902, 16
      %v1254 = vor.u32 %v1251, %v1252
      %v1255 = vsel %vm912, %v1247, %v1254
      %v1256 = vrot.slane %v1251, 4
      %v1258 = vshrl.u32 %v903, 16
      %v1260 = vrot.slane %v1258, 7
      %v1261 = vshll.u32 %v903, 16
      %v1263 = vor.u32 %v1260, %v1261
      %v1264 = vsel %vm912, %v1256, %v1263
      %v1266 = vshrl.u32 %v904, 16
      %v1268 = vrot.slane %v1266, 7
      %v1269 = vrot.slane %v1268, 4
      %v1271 = vshrl.u32 %v905, 16
      %v1273 = vrot.slane %v1271, 7
      %v1274 = vshll.u32 %v905, 16
      %v1276 = vor.u32 %v1273, %v1274
      %v1277 = vsel %vm912, %v1269, %v1276
      %v1278 = vrot.slane %v1273, 4
      %v1280 = vshrl.u32 %v906, 16
      %v1282 = vrot.slane %v1280, 7
      %v1283 = vshll.u32 %v906, 16
      %v1285 = vor.u32 %v1282, %v1283
      %v1286 = vsel %vm912, %v1278, %v1285
      %v1288 = vshrl.u32 %v907, 16
      %v1290 = vrot.slane %v1288, 7
      %v1291 = vrot.slane %v1290, 4
      %v1293 = vshrl.u32 %v908, 16
      %v1295 = vrot.slane %v1293, 7
      %v1296 = vshll.u32 %v908, 16
      %v1298 = vor.u32 %v1295, %v1296
      %v1299 = vsel %vm912, %v1291, %v1298
      %v1300 = vrot.slane %v1295, 4
      %v1302 = vshrl.u32 %v909, 16
      %v1304 = vrot.slane %v1302, 7
      %v1305 = vshll.u32 %v909, 16
      %v1307 = vor.u32 %v1304, %v1305
      %v1308 = vsel %vm912, %v1300, %v1307
      %1345 = vst [vmem:[#allocation4] sm:$0xf] %v925
      %1346 = vst [vmem:[#allocation4 + $0xc] sm:$0xf] %v934
      %1347 = vst [vmem:[#allocation4 + $0x18] sm:$0xf] %v947
      %1348 = vst [vmem:[#allocation4 + $0x24] sm:$0xf] %v956
      %1349 = vst [vmem:[#allocation4 + $0x30] sm:$0xf] %v969
      %1350 = vst [vmem:[#allocation4 + $0x3c] sm:$0xf] %v978
      %1351 = vst [vmem:[#allocation4 + $0x48] sm:$0xf] %v991
      %1352 = vst [vmem:[#allocation4 + $0x54] sm:$0xf] %v1000
      %1353 = vst [vmem:[#allocation4 + $0x60] sm:$0xf] %v1013
      %1354 = vst [vmem:[#allocation4 + $0x6c] sm:$0xf] %v1022
      %1355 = vst [vmem:[#allocation4 + $0x78] sm:$0xf] %v1035
      %1356 = vst [vmem:[#allocation4 + $0x84] sm:$0xf] %v1044
      %1357 = vst [vmem:[#allocation4 + $0x90] sm:$0xf] %v1057
      %1358 = vst [vmem:[#allocation4 + $0x9c] sm:$0xf] %v1066
      %1359 = vst [vmem:[#allocation4 + $0xa8] sm:$0xf] %v1079
      %1360 = vst [vmem:[#allocation4 + $0xb4] sm:$0xf] %v1088
      %1361 = vst [vmem:[#allocation4 + $0xc0] sm:$0xf] %v1101
      %1362 = vst [vmem:[#allocation4 + $0xcc] sm:$0xf] %v1110
      %1363 = vst [vmem:[#allocation4 + $0xd8] sm:$0xf] %v1123
      %1364 = vst [vmem:[#allocation4 + $0xe4] sm:$0xf] %v1132
      %1365 = vst [vmem:[#allocation4 + $0xf0] sm:$0xf] %v1145
      %1366 = vst [vmem:[#allocation4 + $0xfc] sm:$0xf] %v1154
      %1367 = vst [vmem:[#allocation4 + $0x108] sm:$0xf] %v1167
      %1368 = vst [vmem:[#allocation4 + $0x114] sm:$0xf] %v1176
      %1369 = vst [vmem:[#allocation4 + $0x120] sm:$0xf] %v1189
      %1370 = vst [vmem:[#allocation4 + $0x12c] sm:$0xf] %v1198
      %1371 = vst [vmem:[#allocation4 + $0x138] sm:$0xf] %v1211
      %1372 = vst [vmem:[#allocation4 + $0x144] sm:$0xf] %v1220
      %1373 = vst [vmem:[#allocation4 + $0x150] sm:$0xf] %v1233
      %1374 = vst [vmem:[#allocation4 + $0x15c] sm:$0xf] %v1242
      %1375 = vst [vmem:[#allocation4 + $0x168] sm:$0xf] %v1255
      %1376 = vst [vmem:[#allocation4 + $0x174] sm:$0xf] %v1264
      %1377 = vst [vmem:[#allocation4 + $0x180] sm:$0xf] %v1277
      %1378 = vst [vmem:[#allocation4 + $0x18c] sm:$0xf] %v1286
      %1379 = vst [vmem:[#allocation4 + $0x198] sm:$0xf] %v1299
      %1380 = vst [vmem:[#allocation4 + $0x1a4] sm:$0xf] %v1308
      %v1381 = vld [vmem:[#allocation2 + $0x4] sm:$0xf]
      %v1382 = vld [vmem:[#allocation2 + $0x8] sm:$0xf]
      %v1383 = vld [vmem:[#allocation2 + $0x14] sm:$0xf]
      %v1384 = vld [vmem:[#allocation2 + $0x18] sm:$0xf]
      %v1385 = vld [vmem:[#allocation2 + $0x24] sm:$0xf]
      %v1386 = vld [vmem:[#allocation2 + $0x28] sm:$0xf]
      %v1387 = vld [vmem:[#allocation2 + $0x34] sm:$0xf]
      %v1388 = vld [vmem:[#allocation2 + $0x38] sm:$0xf]
      %v1389 = vld [vmem:[#allocation2 + $0x44] sm:$0xf]
      %v1390 = vld [vmem:[#allocation2 + $0x48] sm:$0xf]
      %v1391 = vld [vmem:[#allocation2 + $0x54] sm:$0xf]
      %v1392 = vld [vmem:[#allocation2 + $0x58] sm:$0xf]
      %v1393 = vld [vmem:[#allocation2 + $0x64] sm:$0xf]
      %v1394 = vld [vmem:[#allocation2 + $0x68] sm:$0xf]
      %v1395 = vld [vmem:[#allocation2 + $0x74] sm:$0xf]
      %v1396 = vld [vmem:[#allocation2 + $0x78] sm:$0xf]
      %v1397 = vld [vmem:[#allocation2 + $0x84] sm:$0xf]
      %v1398 = vld [vmem:[#allocation2 + $0x88] sm:$0xf]
      %v1399 = vld [vmem:[#allocation2 + $0x94] sm:$0xf]
      %v1400 = vld [vmem:[#allocation2 + $0x98] sm:$0xf]
      %v1401 = vld [vmem:[#allocation2 + $0xa4] sm:$0xf]
      %v1402 = vld [vmem:[#allocation2 + $0xa8] sm:$0xf]
      %v1403 = vld [vmem:[#allocation2 + $0xb4] sm:$0xf]
      %v1404 = vld [vmem:[#allocation2 + $0xb8] sm:$0xf]
      %v1405 = vld [vmem:[#allocation2 + $0xc4] sm:$0xf]
      %v1406 = vld [vmem:[#allocation2 + $0xc8] sm:$0xf]
      %v1407 = vld [vmem:[#allocation2 + $0xd4] sm:$0xf]
      %v1408 = vld [vmem:[#allocation2 + $0xd8] sm:$0xf]
      %v1409 = vld [vmem:[#allocation2 + $0xe4] sm:$0xf]
      %v1410 = vld [vmem:[#allocation2 + $0xe8] sm:$0xf]
      %v1411 = vld [vmem:[#allocation2 + $0xf4] sm:$0xf]
      %v1412 = vld [vmem:[#allocation2 + $0xf8] sm:$0xf]
      %v1413 = vld [vmem:[#allocation2 + $0x104] sm:$0xf]
      %v1414 = vld [vmem:[#allocation2 + $0x108] sm:$0xf]
      %v1415 = vld [vmem:[#allocation2 + $0x114] sm:$0xf]
      %v1416 = vld [vmem:[#allocation2 + $0x118] sm:$0xf]
      %1417 = vst [vmem:[#allocation4 + $0x4] sm:$0xf] %v1381
      %1418 = vst [vmem:[#allocation4 + $0x10] sm:$0xf] %v1382
      %1419 = vst [vmem:[#allocation4 + $0x1c] sm:$0xf] %v1383
      %1420 = vst [vmem:[#allocation4 + $0x28] sm:$0xf] %v1384
      %1421 = vst [vmem:[#allocation4 + $0x34] sm:$0xf] %v1385
      %1422 = vst [vmem:[#allocation4 + $0x40] sm:$0xf] %v1386
      %1423 = vst [vmem:[#allocation4 + $0x4c] sm:$0xf] %v1387
      %1424 = vst [vmem:[#allocation4 + $0x58] sm:$0xf] %v1388
      %1425 = vst [vmem:[#allocation4 + $0x64] sm:$0xf] %v1389
      %1426 = vst [vmem:[#allocation4 + $0x70] sm:$0xf] %v1390
      %1427 = vst [vmem:[#allocation4 + $0x7c] sm:$0xf] %v1391
      %1428 = vst [vmem:[#allocation4 + $0x88] sm:$0xf] %v1392
      %1429 = vst [vmem:[#allocation4 + $0x94] sm:$0xf] %v1393
      %1430 = vst [vmem:[#allocation4 + $0xa0] sm:$0xf] %v1394
      %1431 = vst [vmem:[#allocation4 + $0xac] sm:$0xf] %v1395
      %1432 = vst [vmem:[#allocation4 + $0xb8] sm:$0xf] %v1396
      %1433 = vst [vmem:[#allocation4 + $0xc4] sm:$0xf] %v1397
      %1434 = vst [vmem:[#allocation4 + $0xd0] sm:$0xf] %v1398
      %1435 = vst [vmem:[#allocation4 + $0xdc] sm:$0xf] %v1399
      %1436 = vst [vmem:[#allocation4 + $0xe8] sm:$0xf] %v1400
      %1437 = vst [vmem:[#allocation4 + $0xf4] sm:$0xf] %v1401
      %1438 = vst [vmem:[#allocation4 + $0x100] sm:$0xf] %v1402
      %1439 = vst [vmem:[#allocation4 + $0x10c] sm:$0xf] %v1403
      %1440 = vst [vmem:[#allocation4 + $0x118] sm:$0xf] %v1404
      %1441 = vst [vmem:[#allocation4 + $0x124] sm:$0xf] %v1405
      %1442 = vst [vmem:[#allocation4 + $0x130] sm:$0xf] %v1406
      %1443 = vst [vmem:[#allocation4 + $0x13c] sm:$0xf] %v1407
      %1444 = vst [vmem:[#allocation4 + $0x148] sm:$0xf] %v1408
      %1445 = vst [vmem:[#allocation4 + $0x154] sm:$0xf] %v1409
      %1446 = vst [vmem:[#allocation4 + $0x160] sm:$0xf] %v1410
      %1447 = vst [vmem:[#allocation4 + $0x16c] sm:$0xf] %v1411
      %1448 = vst [vmem:[#allocation4 + $0x178] sm:$0xf] %v1412
      %1449 = vst [vmem:[#allocation4 + $0x184] sm:$0xf] %v1413
      %1450 = vst [vmem:[#allocation4 + $0x190] sm:$0xf] %v1414
      %1451 = vst [vmem:[#allocation4 + $0x19c] sm:$0xf] %v1415
      %1452 = vst [vmem:[#allocation4 + $0x1a8] sm:$0xf] %v1416
      %v1453 = vld [vmem:[#allocation2 + $0x4] sm:$0xf]
      %v1454 = vld [vmem:[#allocation2 + $0x8] sm:$0xf]
      %v1455 = vld [vmem:[#allocation2 + $0xc] sm:$0x1]
      %v1456 = vld [vmem:[#allocation2 + $0x14] sm:$0xf]
      %v1457 = vld [vmem:[#allocation2 + $0x18] sm:$0xf]
      %v1458 = vld [vmem:[#allocation2 + $0x1c] sm:$0x1]
      %v1459 = vld [vmem:[#allocation2 + $0x24] sm:$0xf]
      %v1460 = vld [vmem:[#allocation2 + $0x28] sm:$0xf]
      %v1461 = vld [vmem:[#allocation2 + $0x2c] sm:$0x1]
      %v1462 = vld [vmem:[#allocation2 + $0x34] sm:$0xf]
      %v1463 = vld [vmem:[#allocation2 + $0x38] sm:$0xf]
      %v1464 = vld [vmem:[#allocation2 + $0x3c] sm:$0x1]
      %v1465 = vld [vmem:[#allocation2 + $0x44] sm:$0xf]
      %v1466 = vld [vmem:[#allocation2 + $0x48] sm:$0xf]
      %v1467 = vld [vmem:[#allocation2 + $0x4c] sm:$0x1]
      %v1468 = vld [vmem:[#allocation2 + $0x54] sm:$0xf]
      %v1469 = vld [vmem:[#allocation2 + $0x58] sm:$0xf]
      %v1470 = vld [vmem:[#allocation2 + $0x5c] sm:$0x1]
      %v1471 = vld [vmem:[#allocation2 + $0x64] sm:$0xf]
      %v1472 = vld [vmem:[#allocation2 + $0x68] sm:$0xf]
      %v1473 = vld [vmem:[#allocation2 + $0x6c] sm:$0x1]
      %v1474 = vld [vmem:[#allocation2 + $0x74] sm:$0xf]
      %v1475 = vld [vmem:[#allocation2 + $0x78] sm:$0xf]
      %v1476 = vld [vmem:[#allocation2 + $0x7c] sm:$0x1]
      %v1477 = vld [vmem:[#allocation2 + $0x84] sm:$0xf]
      %v1478 = vld [vmem:[#allocation2 + $0x88] sm:$0xf]
      %v1479 = vld [vmem:[#allocation2 + $0x8c] sm:$0x1]
      %v1480 = vld [vmem:[#allocation2 + $0x94] sm:$0xf]
      %v1481 = vld [vmem:[#allocation2 + $0x98] sm:$0xf]
      %v1482 = vld [vmem:[#allocation2 + $0x9c] sm:$0x1]
      %v1483 = vld [vmem:[#allocation2 + $0xa4] sm:$0xf]
      %v1484 = vld [vmem:[#allocation2 + $0xa8] sm:$0xf]
      %v1485 = vld [vmem:[#allocation2 + $0xac] sm:$0x1]
      %v1486 = vld [vmem:[#allocation2 + $0xb4] sm:$0xf]
      %v1487 = vld [vmem:[#allocation2 + $0xb8] sm:$0xf]
      %v1488 = vld [vmem:[#allocation2 + $0xbc] sm:$0x1]
      %v1489 = vld [vmem:[#allocation2 + $0xc4] sm:$0xf]
      %v1490 = vld [vmem:[#allocation2 + $0xc8] sm:$0xf]
      %v1491 = vld [vmem:[#allocation2 + $0xcc] sm:$0x1]
      %v1492 = vld [vmem:[#allocation2 + $0xd4] sm:$0xf]
      %v1493 = vld [vmem:[#allocation2 + $0xd8] sm:$0xf]
      %v1494 = vld [vmem:[#allocation2 + $0xdc] sm:$0x1]
      %v1495 = vld [vmem:[#allocation2 + $0xe4] sm:$0xf]
      %v1496 = vld [vmem:[#allocation2 + $0xe8] sm:$0xf]
      %v1497 = vld [vmem:[#allocation2 + $0xec] sm:$0x1]
      %v1498 = vld [vmem:[#allocation2 + $0xf4] sm:$0xf]
      %v1499 = vld [vmem:[#allocation2 + $0xf8] sm:$0xf]
      %v1500 = vld [vmem:[#allocation2 + $0xfc] sm:$0x1]
      %v1501 = vld [vmem:[#allocation2 + $0x104] sm:$0xf]
      %v1502 = vld [vmem:[#allocation2 + $0x108] sm:$0xf]
      %v1503 = vld [vmem:[#allocation2 + $0x10c] sm:$0x1]
      %v1504 = vld [vmem:[#allocation2 + $0x114] sm:$0xf]
      %v1505 = vld [vmem:[#allocation2 + $0x118] sm:$0xf]
      %v1506 = vld [vmem:[#allocation2 + $0x11c] sm:$0x1]
      %vm1507 = vsmask.f32 3328
      %vm1508 = vsmask.f32 7440
      %vm1509 = vmor %vm1507, %vm1508
      %v1511 = vshrl.u32 %v1453, 16
      %v1513 = vrot.slane %v1511, 4
      %v1514 = vshll.u32 %v1453, 16
      %v1516 = vrot.slane %v1514, 5
      %v1517 = vor.u32 %v1513, %v1516
      %v1518 = vrot.slane %v1517, 4
      %v1520 = vshll.u32 %v1454, 16
      %v1522 = vrot.slane %v1520, 5
      %v1523 = vsel %vm1509, %v1518, %v1522
      %v1524 = vshrl.u32 %v1454, 16
      %v1526 = vrot.slane %v1524, 4
      %v1527 = vor.u32 %v1526, %v1522
      %v1528 = vrot.slane %v1527, 4
      %v1530 = vshll.u32 %v1455, 16
      %v1532 = vrot.slane %v1530, 5
      %v1533 = vsel %vm1509, %v1528, %v1532
      %v1535 = vshrl.u32 %v1456, 16
      %v1537 = vrot.slane %v1535, 4
      %v1538 = vshll.u32 %v1456, 16
      %v1540 = vrot.slane %v1538, 5
      %v1541 = vor.u32 %v1537, %v1540
      %v1542 = vrot.slane %v1541, 4
      %v1544 = vshll.u32 %v1457, 16
      %v1546 = vrot.slane %v1544, 5
      %v1547 = vsel %vm1509, %v1542, %v1546
      %v1548 = vshrl.u32 %v1457, 16
      %v1550 = vrot.slane %v1548, 4
      %v1551 = vor.u32 %v1550, %v1546
      %v1552 = vrot.slane %v1551, 4
      %v1554 = vshll.u32 %v1458, 16
      %v1556 = vrot.slane %v1554, 5
      %v1557 = vsel %vm1509, %v1552, %v1556
      %v1559 = vshrl.u32 %v1459, 16
      %v1561 = vrot.slane %v1559, 4
      %v1562 = vshll.u32 %v1459, 16
      %v1564 = vrot.slane %v1562, 5
      %v1565 = vor.u32 %v1561, %v1564
      %v1566 = vrot.slane %v1565, 4
      %v1568 = vshll.u32 %v1460, 16
      %v1570 = vrot.slane %v1568, 5
      %v1571 = vsel %vm1509, %v1566, %v1570
      %v1572 = vshrl.u32 %v1460, 16
      %v1574 = vrot.slane %v1572, 4
      %v1575 = vor.u32 %v1574, %v1570
      %v1576 = vrot.slane %v1575, 4
      %v1578 = vshll.u32 %v1461, 16
      %v1580 = vrot.slane %v1578, 5
      %v1581 = vsel %vm1509, %v1576, %v1580
      %v1583 = vshrl.u32 %v1462, 16
      %v1585 = vrot.slane %v1583, 4
      %v1586 = vshll.u32 %v1462, 16
      %v1588 = vrot.slane %v1586, 5
      %v1589 = vor.u32 %v1585, %v1588
      %v1590 = vrot.slane %v1589, 4
      %v1592 = vshll.u32 %v1463, 16
      %v1594 = vrot.slane %v1592, 5
      %v1595 = vsel %vm1509, %v1590, %v1594
      %v1596 = vshrl.u32 %v1463, 16
      %v1598 = vrot.slane %v1596, 4
      %v1599 = vor.u32 %v1598, %v1594
      %v1600 = vrot.slane %v1599, 4
      %v1602 = vshll.u32 %v1464, 16
      %v1604 = vrot.slane %v1602, 5
      %v1605 = vsel %vm1509, %v1600, %v1604
      %v1607 = vshrl.u32 %v1465, 16
      %v1609 = vrot.slane %v1607, 4
      %v1610 = vshll.u32 %v1465, 16
      %v1612 = vrot.slane %v1610, 5
      %v1613 = vor.u32 %v1609, %v1612
      %v1614 = vrot.slane %v1613, 4
      %v1616 = vshll.u32 %v1466, 16
      %v1618 = vrot.slane %v1616, 5
      %v1619 = vsel %vm1509, %v1614, %v1618
      %v1620 = vshrl.u32 %v1466, 16
      %v1622 = vrot.slane %v1620, 4
      %v1623 = vor.u32 %v1622, %v1618
      %v1624 = vrot.slane %v1623, 4
      %v1626 = vshll.u32 %v1467, 16
      %v1628 = vrot.slane %v1626, 5
      %v1629 = vsel %vm1509, %v1624, %v1628
      %v1631 = vshrl.u32 %v1468, 16
      %v1633 = vrot.slane %v1631, 4
      %v1634 = vshll.u32 %v1468, 16
      %v1636 = vrot.slane %v1634, 5
      %v1637 = vor.u32 %v1633, %v1636
      %v1638 = vrot.slane %v1637, 4
      %v1640 = vshll.u32 %v1469, 16
      %v1642 = vrot.slane %v1640, 5
      %v1643 = vsel %vm1509, %v1638, %v1642
      %v1644 = vshrl.u32 %v1469, 16
      %v1646 = vrot.slane %v1644, 4
      %v1647 = vor.u32 %v1646, %v1642
      %v1648 = vrot.slane %v1647, 4
      %v1650 = vshll.u32 %v1470, 16
      %v1652 = vrot.slane %v1650, 5
      %v1653 = vsel %vm1509, %v1648, %v1652
      %v1655 = vshrl.u32 %v1471, 16
      %v1657 = vrot.slane %v1655, 4
      %v1658 = vshll.u32 %v1471, 16
      %v1660 = vrot.slane %v1658, 5
      %v1661 = vor.u32 %v1657, %v1660
      %v1662 = vrot.slane %v1661, 4
      %v1664 = vshll.u32 %v1472, 16
      %v1666 = vrot.slane %v1664, 5
      %v1667 = vsel %vm1509, %v1662, %v1666
      %v1668 = vshrl.u32 %v1472, 16
      %v1670 = vrot.slane %v1668, 4
      %v1671 = vor.u32 %v1670, %v1666
      %v1672 = vrot.slane %v1671, 4
      %v1674 = vshll.u32 %v1473, 16
      %v1676 = vrot.slane %v1674, 5
      %v1677 = vsel %vm1509, %v1672, %v1676
      %v1679 = vshrl.u32 %v1474, 16
      %v1681 = vrot.slane %v1679, 4
      %v1682 = vshll.u32 %v1474, 16
      %v1684 = vrot.slane %v1682, 5
      %v1685 = vor.u32 %v1681, %v1684
      %v1686 = vrot.slane %v1685, 4
      %v1688 = vshll.u32 %v1475, 16
      %v1690 = vrot.slane %v1688, 5
      %v1691 = vsel %vm1509, %v1686, %v1690
      %v1692 = vshrl.u32 %v1475, 16
      %v1694 = vrot.slane %v1692, 4
      %v1695 = vor.u32 %v1694, %v1690
      %v1696 = vrot.slane %v1695, 4
      %v1698 = vshll.u32 %v1476, 16
      %v1700 = vrot.slane %v1698, 5
      %v1701 = vsel %vm1509, %v1696, %v1700
      %v1703 = vshrl.u32 %v1477, 16
      %v1705 = vrot.slane %v1703, 4
      %v1706 = vshll.u32 %v1477, 16
      %v1708 = vrot.slane %v1706, 5
      %v1709 = vor.u32 %v1705, %v1708
      %v1710 = vrot.slane %v1709, 4
      %v1712 = vshll.u32 %v1478, 16
      %v1714 = vrot.slane %v1712, 5
      %v1715 = vsel %vm1509, %v1710, %v1714
      %v1716 = vshrl.u32 %v1478, 16
      %v1718 = vrot.slane %v1716, 4
      %v1719 = vor.u32 %v1718, %v1714
      %v1720 = vrot.slane %v1719, 4
      %v1722 = vshll.u32 %v1479, 16
      %v1724 = vrot.slane %v1722, 5
      %v1725 = vsel %vm1509, %v1720, %v1724
      %v1727 = vshrl.u32 %v1480, 16
      %v1729 = vrot.slane %v1727, 4
      %v1730 = vshll.u32 %v1480, 16
      %v1732 = vrot.slane %v1730, 5
      %v1733 = vor.u32 %v1729, %v1732
      %v1734 = vrot.slane %v1733, 4
      %v1736 = vshll.u32 %v1481, 16
      %v1738 = vrot.slane %v1736, 5
      %v1739 = vsel %vm1509, %v1734, %v1738
      %v1740 = vshrl.u32 %v1481, 16
      %v1742 = vrot.slane %v1740, 4
      %v1743 = vor.u32 %v1742, %v1738
      %v1744 = vrot.slane %v1743, 4
      %v1746 = vshll.u32 %v1482, 16
      %v1748 = vrot.slane %v1746, 5
      %v1749 = vsel %vm1509, %v1744, %v1748
      %v1751 = vshrl.u32 %v1483, 16
      %v1753 = vrot.slane %v1751, 4
      %v1754 = vshll.u32 %v1483, 16
      %v1756 = vrot.slane %v1754, 5
      %v1757 = vor.u32 %v1753, %v1756
      %v1758 = vrot.slane %v1757, 4
      %v1760 = vshll.u32 %v1484, 16
      %v1762 = vrot.slane %v1760, 5
      %v1763 = vsel %vm1509, %v1758, %v1762
      %v1764 = vshrl.u32 %v1484, 16
      %v1766 = vrot.slane %v1764, 4
      %v1767 = vor.u32 %v1766, %v1762
      %v1768 = vrot.slane %v1767, 4
      %v1770 = vshll.u32 %v1485, 16
      %v1772 = vrot.slane %v1770, 5
      %v1773 = vsel %vm1509, %v1768, %v1772
      %v1775 = vshrl.u32 %v1486, 16
      %v1777 = vrot.slane %v1775, 4
      %v1778 = vshll.u32 %v1486, 16
      %v1780 = vrot.slane %v1778, 5
      %v1781 = vor.u32 %v1777, %v1780
      %v1782 = vrot.slane %v1781, 4
      %v1784 = vshll.u32 %v1487, 16
      %v1786 = vrot.slane %v1784, 5
      %v1787 = vsel %vm1509, %v1782, %v1786
      %v1788 = vshrl.u32 %v1487, 16
      %v1790 = vrot.slane %v1788, 4
      %v1791 = vor.u32 %v1790, %v1786
      %v1792 = vrot.slane %v1791, 4
      %v1794 = vshll.u32 %v1488, 16
      %v1796 = vrot.slane %v1794, 5
      %v1797 = vsel %vm1509, %v1792, %v1796
      %v1799 = vshrl.u32 %v1489, 16
      %v1801 = vrot.slane %v1799, 4
      %v1802 = vshll.u32 %v1489, 16
      %v1804 = vrot.slane %v1802, 5
      %v1805 = vor.u32 %v1801, %v1804
      %v1806 = vrot.slane %v1805, 4
      %v1808 = vshll.u32 %v1490, 16
      %v1810 = vrot.slane %v1808, 5
      %v1811 = vsel %vm1509, %v1806, %v1810
      %v1812 = vshrl.u32 %v1490, 16
      %v1814 = vrot.slane %v1812, 4
      %v1815 = vor.u32 %v1814, %v1810
      %v1816 = vrot.slane %v1815, 4
      %v1818 = vshll.u32 %v1491, 16
      %v1820 = vrot.slane %v1818, 5
      %v1821 = vsel %vm1509, %v1816, %v1820
      %v1823 = vshrl.u32 %v1492, 16
      %v1825 = vrot.slane %v1823, 4
      %v1826 = vshll.u32 %v1492, 16
      %v1828 = vrot.slane %v1826, 5
      %v1829 = vor.u32 %v1825, %v1828
      %v1830 = vrot.slane %v1829, 4
      %v1832 = vshll.u32 %v1493, 16
      %v1834 = vrot.slane %v1832, 5
      %v1835 = vsel %vm1509, %v1830, %v1834
      %v1836 = vshrl.u32 %v1493, 16
      %v1838 = vrot.slane %v1836, 4
      %v1839 = vor.u32 %v1838, %v1834
      %v1840 = vrot.slane %v1839, 4
      %v1842 = vshll.u32 %v1494, 16
      %v1844 = vrot.slane %v1842, 5
      %v1845 = vsel %vm1509, %v1840, %v1844
      %v1847 = vshrl.u32 %v1495, 16
      %v1849 = vrot.slane %v1847, 4
      %v1850 = vshll.u32 %v1495, 16
      %v1852 = vrot.slane %v1850, 5
      %v1853 = vor.u32 %v1849, %v1852
      %v1854 = vrot.slane %v1853, 4
      %v1856 = vshll.u32 %v1496, 16
      %v1858 = vrot.slane %v1856, 5
      %v1859 = vsel %vm1509, %v1854, %v1858
      %v1860 = vshrl.u32 %v1496, 16
      %v1862 = vrot.slane %v1860, 4
      %v1863 = vor.u32 %v1862, %v1858
      %v1864 = vrot.slane %v1863, 4
      %v1866 = vshll.u32 %v1497, 16
      %v1868 = vrot.slane %v1866, 5
      %v1869 = vsel %vm1509, %v1864, %v1868
      %v1871 = vshrl.u32 %v1498, 16
      %v1873 = vrot.slane %v1871, 4
      %v1874 = vshll.u32 %v1498, 16
      %v1876 = vrot.slane %v1874, 5
      %v1877 = vor.u32 %v1873, %v1876
      %v1878 = vrot.slane %v1877, 4
      %v1880 = vshll.u32 %v1499, 16
      %v1882 = vrot.slane %v1880, 5
      %v1883 = vsel %vm1509, %v1878, %v1882
      %v1884 = vshrl.u32 %v1499, 16
      %v1886 = vrot.slane %v1884, 4
      %v1887 = vor.u32 %v1886, %v1882
      %v1888 = vrot.slane %v1887, 4
      %v1890 = vshll.u32 %v1500, 16
      %v1892 = vrot.slane %v1890, 5
      %v1893 = vsel %vm1509, %v1888, %v1892
      %v1895 = vshrl.u32 %v1501, 16
      %v1897 = vrot.slane %v1895, 4
      %v1898 = vshll.u32 %v1501, 16
      %v1900 = vrot.slane %v1898, 5
      %v1901 = vor.u32 %v1897, %v1900
      %v1902 = vrot.slane %v1901, 4
      %v1904 = vshll.u32 %v1502, 16
      %v1906 = vrot.slane %v1904, 5
      %v1907 = vsel %vm1509, %v1902, %v1906
      %v1908 = vshrl.u32 %v1502, 16
      %v1910 = vrot.slane %v1908, 4
      %v1911 = vor.u32 %v1910, %v1906
      %v1912 = vrot.slane %v1911, 4
      %v1914 = vshll.u32 %v1503, 16
      %v1916 = vrot.slane %v1914, 5
      %v1917 = vsel %vm1509, %v1912, %v1916
      %v1919 = vshrl.u32 %v1504, 16
      %v1921 = vrot.slane %v1919, 4
      %v1922 = vshll.u32 %v1504, 16
      %v1924 = vrot.slane %v1922, 5
      %v1925 = vor.u32 %v1921, %v1924
      %v1926 = vrot.slane %v1925, 4
      %v1928 = vshll.u32 %v1505, 16
      %v1930 = vrot.slane %v1928, 5
      %v1931 = vsel %vm1509, %v1926, %v1930
      %v1932 = vshrl.u32 %v1505, 16
      %v1934 = vrot.slane %v1932, 4
      %v1935 = vor.u32 %v1934, %v1930
      %v1936 = vrot.slane %v1935, 4
      %v1938 = vshll.u32 %v1506, 16
      %v1940 = vrot.slane %v1938, 5
      %v1941 = vsel %vm1509, %v1936, %v1940
      %1978 = vst [vmem:[#allocation4 + $0x8] sm:$0xf] %v1523
      %1979 = vst [vmem:[#allocation4 + $0x14] sm:$0xf] %v1533
      %1980 = vst [vmem:[#allocation4 + $0x20] sm:$0xf] %v1547
      %1981 = vst [vmem:[#allocation4 + $0x2c] sm:$0xf] %v1557
      %1982 = vst [vmem:[#allocation4 + $0x38] sm:$0xf] %v1571
      %1983 = vst [vmem:[#allocation4 + $0x44] sm:$0xf] %v1581
      %1984 = vst [vmem:[#allocation4 + $0x50] sm:$0xf] %v1595
      %1985 = vst [vmem:[#allocation4 + $0x5c] sm:$0xf] %v1605
      %1986 = vst [vmem:[#allocation4 + $0x68] sm:$0xf] %v1619
      %1987 = vst [vmem:[#allocation4 + $0x74] sm:$0xf] %v1629
      %1988 = vst [vmem:[#allocation4 + $0x80] sm:$0xf] %v1643
      %1989 = vst [vmem:[#allocation4 + $0x8c] sm:$0xf] %v1653
      %1990 = vst [vmem:[#allocation4 + $0x98] sm:$0xf] %v1667
      %1991 = vst [vmem:[#allocation4 + $0xa4] sm:$0xf] %v1677
      %1992 = vst [vmem:[#allocation4 + $0xb0] sm:$0xf] %v1691
      %1993 = vst [vmem:[#allocation4 + $0xbc] sm:$0xf] %v1701
      %1994 = vst [vmem:[#allocation4 + $0xc8] sm:$0xf] %v1715
      %1995 = vst [vmem:[#allocation4 + $0xd4] sm:$0xf] %v1725
      %1996 = vst [vmem:[#allocation4 + $0xe0] sm:$0xf] %v1739
      %1997 = vst [vmem:[#allocation4 + $0xec] sm:$0xf] %v1749
      %1998 = vst [vmem:[#allocation4 + $0xf8] sm:$0xf] %v1763
      %1999 = vst [vmem:[#allocation4 + $0x104] sm:$0xf] %v1773
      %2000 = vst [vmem:[#allocation4 + $0x110] sm:$0xf] %v1787
      %2001 = vst [vmem:[#allocation4 + $0x11c] sm:$0xf] %v1797
      %2002 = vst [vmem:[#allocation4 + $0x128] sm:$0xf] %v1811
      %2003 = vst [vmem:[#allocation4 + $0x134] sm:$0xf] %v1821
      %2004 = vst [vmem:[#allocation4 + $0x140] sm:$0xf] %v1835
      %2005 = vst [vmem:[#allocation4 + $0x14c] sm:$0xf] %v1845
      %2006 = vst [vmem:[#allocation4 + $0x158] sm:$0xf] %v1859
      %2007 = vst [vmem:[#allocation4 + $0x164] sm:$0xf] %v1869
      %2008 = vst [vmem:[#allocation4 + $0x170] sm:$0xf] %v1883
      %2009 = vst [vmem:[#allocation4 + $0x17c] sm:$0xf] %v1893
      %2010 = vst [vmem:[#allocation4 + $0x188] sm:$0xf] %v1907
      %2011 = vst [vmem:[#allocation4 + $0x194] sm:$0xf] %v1917
      %2012 = vst [vmem:[#allocation4 + $0x1a0] sm:$0xf] %v1931
      %2013 = vst [vmem:[#allocation4 + $0x1ac] sm:$0xf] %v1941
      %v2014 = vld [vmem:[#allocation4] sm:$0xff]
      %v2015 = vld [vmem:[#allocation4 + $0x8] sm:$0xf]
      %v2016 = vld [vmem:[#allocation4 + $0xc] sm:$0xff]
      %v2017 = vld [vmem:[#allocation4 + $0x14] sm:$0xf]
      %v2018 = vld [vmem:[#allocation4 + $0x18] sm:$0xff]
      %v2019 = vld [vmem:[#allocation4 + $0x20] sm:$0xf]
      %v2020 = vld [vmem:[#allocation4 + $0x24] sm:$0xff]
      %v2021 = vld [vmem:[#allocation4 + $0x2c] sm:$0xf]
      %v2022 = vld [vmem:[#allocation4 + $0x30] sm:$0xff]
      %v2023 = vld [vmem:[#allocation4 + $0x38] sm:$0xf]
      %v2024 = vld [vmem:[#allocation4 + $0x3c] sm:$0xff]
      %v2025 = vld [vmem:[#allocation4 + $0x44] sm:$0xf]
      %v2026 = vld [vmem:[#allocation4 + $0x48] sm:$0xff]
      %v2027 = vld [vmem:[#allocation4 + $0x50] sm:$0xf]
      %v2028 = vld [vmem:[#allocation4 + $0x54] sm:$0xff]
      %v2029 = vld [vmem:[#allocation4 + $0x5c] sm:$0xf]
      %v2030 = vld [vmem:[#allocation4 + $0x60] sm:$0xff]
      %v2031 = vld [vmem:[#allocation4 + $0x68] sm:$0xf]
      %v2032 = vld [vmem:[#allocation4 + $0x6c] sm:$0xff]
      %v2033 = vld [vmem:[#allocation4 + $0x74] sm:$0xf]
      %v2034 = vld [vmem:[#allocation4 + $0x78] sm:$0xff]
      %v2035 = vld [vmem:[#allocation4 + $0x80] sm:$0xf]
      %v2036 = vld [vmem:[#allocation4 + $0x84] sm:$0xff]
      %v2037 = vld [vmem:[#allocation4 + $0x8c] sm:$0xf]
      %v2038 = vld [vmem:[#allocation4 + $0x90] sm:$0xff]
      %v2039 = vld [vmem:[#allocation4 + $0x98] sm:$0xf]
      %v2040 = vld [vmem:[#allocation4 + $0x9c] sm:$0xff]
      %v2041 = vld [vmem:[#allocation4 + $0xa4] sm:$0xf]
      %v2042 = vld [vmem:[#allocation4 + $0xa8] sm:$0xff]
      %v2043 = vld [vmem:[#allocation4 + $0xb0] sm:$0xf]
      %v2044 = vld [vmem:[#allocation4 + $0xb4] sm:$0xff]
      %v2045 = vld [vmem:[#allocation4 + $0xbc] sm:$0xf]
      %v2046 = vld [vmem:[#allocation4 + $0xc0] sm:$0xff]
      %v2047 = vld [vmem:[#allocation4 + $0xc8] sm:$0xf]
      %v2048 = vld [vmem:[#allocation4 + $0xcc] sm:$0xff]
      %v2049 = vld [vmem:[#allocation4 + $0xd4] sm:$0xf]
      %v2050 = vld [vmem:[#allocation4 + $0xd8] sm:$0xff]
      %v2051 = vld [vmem:[#allocation4 + $0xe0] sm:$0xf]
      %v2052 = vld [vmem:[#allocation4 + $0xe4] sm:$0xff]
      %v2053 = vld [vmem:[#allocation4 + $0xec] sm:$0xf]
      %v2054 = vld [vmem:[#allocation4 + $0xf0] sm:$0xff]
      %v2055 = vld [vmem:[#allocation4 + $0xf8] sm:$0xf]
      %v2056 = vld [vmem:[#allocation4 + $0xfc] sm:$0xff]
      %v2057 = vld [vmem:[#allocation4 + $0x104] sm:$0xf]
      %v2058 = vld [vmem:[#allocation4 + $0x108] sm:$0xff]
      %v2059 = vld [vmem:[#allocation4 + $0x110] sm:$0xf]
      %v2060 = vld [vmem:[#allocation4 + $0x114] sm:$0xff]
      %v2061 = vld [vmem:[#allocation4 + $0x11c] sm:$0xf]
      %v2062 = vld [vmem:[#allocation4 + $0x120] sm:$0xff]
      %v2063 = vld [vmem:[#allocation4 + $0x128] sm:$0xf]
      %v2064 = vld [vmem:[#allocation4 + $0x12c] sm:$0xff]
      %v2065 = vld [vmem:[#allocation4 + $0x134] sm:$0xf]
      %v2066 = vld [vmem:[#allocation4 + $0x138] sm:$0xff]
      %v2067 = vld [vmem:[#allocation4 + $0x140] sm:$0xf]
      %v2068 = vld [vmem:[#allocation4 + $0x144] sm:$0xff]
      %v2069 = vld [vmem:[#allocation4 + $0x14c] sm:$0xf]
      %v2070 = vld [vmem:[#allocation4 + $0x150] sm:$0xff]
      %v2071 = vld [vmem:[#allocation4 + $0x158] sm:$0xf]
      %v2072 = vld [vmem:[#allocation4 + $0x15c] sm:$0xff]
      %v2073 = vld [vmem:[#allocation4 + $0x164] sm:$0xf]
      %v2074 = vld [vmem:[#allocation4 + $0x168] sm:$0xff]
      %v2075 = vld [vmem:[#allocation4 + $0x170] sm:$0xf]
      %v2076 = vld [vmem:[#allocation4 + $0x174] sm:$0xff]
      %v2077 = vld [vmem:[#allocation4 + $0x17c] sm:$0xf]
      %v2078 = vld [vmem:[%s2] sm:$0xf]
      %v2079 = vld [vmem:[%s2 + $0x4] sm:$0xf]
      %v2080 = vld [vmem:[%s2 + $0x8] sm:$0xf]
      %v2081 = vld [vmem:[%s2 + $0xc] sm:$0xf]
      %v2082 = vld [vmem:[%s2 + $0x10] sm:$0xf]
      %v2083 = vld [vmem:[%s2 + $0x14] sm:$0xf]
      %v2084 = vld [vmem:[%s2 + $0x18] sm:$0xf]
      %v2085 = vld [vmem:[%s2 + $0x1c] sm:$0xf]
      %v2086 = vld [vmem:[%s2 + $0x20] sm:$0xf]
      %v2087 = vld [vmem:[%s2 + $0x24] sm:$0xf]
      %v2088 = vld [vmem:[%s2 + $0x28] sm:$0xf]
      %v2089 = vld [vmem:[%s2 + $0x2c] sm:$0xf]
      %v2090 = vld [vmem:[%s2 + $0x30] sm:$0xf]
      %v2091 = vld [vmem:[%s2 + $0x34] sm:$0xf]
      %v2092 = vld [vmem:[%s2 + $0x38] sm:$0xf]
      %v2093 = vld [vmem:[%s2 + $0x3c] sm:$0xf]
      %v2094 = vld [vmem:[%s2 + $0x40] sm:$0xf]
      %v2095 = vld [vmem:[%s2 + $0x44] sm:$0xf]
      %v2096 = vld [vmem:[%s2 + $0x48] sm:$0xf]
      %v2097 = vld [vmem:[%s2 + $0x4c] sm:$0xf]
      %v2098 = vld [vmem:[%s2 + $0x50] sm:$0xf]
      %v2099 = vld [vmem:[%s2 + $0x54] sm:$0xf]
      %v2100 = vld [vmem:[%s2 + $0x58] sm:$0xf]
      %v2101 = vld [vmem:[%s2 + $0x5c] sm:$0xf]
      %v2102 = vld [vmem:[%s2 + $0x60] sm:$0xf]
      %v2103 = vld [vmem:[%s2 + $0x64] sm:$0xf]
      %v2104 = vld [vmem:[%s2 + $0x68] sm:$0xf]
      %v2105 = vld [vmem:[%s2 + $0x6c] sm:$0xf]
      %v2106 = vld [vmem:[%s2 + $0x70] sm:$0xf]
      %v2107 = vld [vmem:[%s2 + $0x74] sm:$0xf]
      %v2108 = vld [vmem:[%s2 + $0x78] sm:$0xf]
      %v2109 = vld [vmem:[%s2 + $0x7c] sm:$0xf]
      %v2110 = vld [vmem:[%s2 + $0x80] sm:$0xf]
      %v2111 = vld [vmem:[%s2 + $0x84] sm:$0xf]
      %v2112 = vld [vmem:[%s2 + $0x88] sm:$0xf]
      %v2113 = vld [vmem:[%s2 + $0x8c] sm:$0xf]
      %v2114 = vld [vmem:[%s2 + $0x90] sm:$0xf]
      %v2115 = vld [vmem:[%s2 + $0x94] sm:$0xf]
      %v2116 = vld [vmem:[%s2 + $0x98] sm:$0xf]
      %v2117 = vld [vmem:[%s2 + $0x9c] sm:$0xf]
      %v2118 = vld [vmem:[%s2 + $0xa0] sm:$0xf]
      %v2119 = vld [vmem:[%s2 + $0xa4] sm:$0xf]
      %v2120 = vld [vmem:[%s2 + $0xa8] sm:$0xf]
      %v2121 = vld [vmem:[%s2 + $0xac] sm:$0xf]
      %v2122 = vld [vmem:[%s2 + $0xb0] sm:$0xf]
      %v2123 = vld [vmem:[%s2 + $0xb4] sm:$0xf]
      %v2124 = vld [vmem:[%s2 + $0xb8] sm:$0xf]
      %v2125 = vld [vmem:[%s2 + $0xbc] sm:$0xf]
      %v2126 = vld [vmem:[#allocation4 + $0x180] sm:$0xff]
      %v2127 = vld [vmem:[#allocation4 + $0x188] sm:$0xf]
      %v2128 = vld [vmem:[#allocation4 + $0x18c] sm:$0xff]
      %v2129 = vld [vmem:[#allocation4 + $0x194] sm:$0xf]
      %s2130 = scalar_lea.vmem %s2, 192
      %v2131 = vld [vmem:[%s2130] sm:$0xf]
      %v2132 = vld [vmem:[%s2130 + $0x4] sm:$0xf]
      %v2133 = vld [vmem:[%s2130 + $0x8] sm:$0xf]
      %v2134 = vld [vmem:[%s2130 + $0xc] sm:$0xf]
      %v2135 = vld [vmem:[%s2130 + $0x10] sm:$0xf]
      %v2136 = vld [vmem:[%s2130 + $0x14] sm:$0xf]
      %v2137 = vld [vmem:[%s2130 + $0x18] sm:$0xf]
      %v2138 = vld [vmem:[%s2130 + $0x1c] sm:$0xf]
      %v2139 = vld [vmem:[%s2130 + $0x20] sm:$0xf]
      %v2140 = vld [vmem:[%s2130 + $0x24] sm:$0xf]
      %v2141 = vld [vmem:[%s2130 + $0x28] sm:$0xf]
      %v2142 = vld [vmem:[%s2130 + $0x2c] sm:$0xf]
      %v2143 = vld [vmem:[%s2130 + $0x30] sm:$0xf]
      %v2144 = vld [vmem:[%s2130 + $0x34] sm:$0xf]
      %v2145 = vld [vmem:[%s2130 + $0x38] sm:$0xf]
      %v2146 = vld [vmem:[%s2130 + $0x3c] sm:$0xf]
      %v2147 = vld [vmem:[%s2130 + $0x40] sm:$0xf]
      %v2148 = vld [vmem:[%s2130 + $0x44] sm:$0xf]
      %v2149 = vld [vmem:[%s2130 + $0x48] sm:$0xf]
      %v2150 = vld [vmem:[%s2130 + $0x4c] sm:$0xf]
      %v2151 = vld [vmem:[%s2130 + $0x50] sm:$0xf]
      %v2152 = vld [vmem:[%s2130 + $0x54] sm:$0xf]
      %v2153 = vld [vmem:[%s2130 + $0x58] sm:$0xf]
      %v2154 = vld [vmem:[%s2130 + $0x5c] sm:$0xf]
      %v2155 = vld [vmem:[%s2130 + $0x60] sm:$0xf]
      %v2156 = vld [vmem:[%s2130 + $0x64] sm:$0xf]
      %v2157 = vld [vmem:[%s2130 + $0x68] sm:$0xf]
      %v2158 = vld [vmem:[%s2130 + $0x6c] sm:$0xf]
      %v2159 = vld [vmem:[%s2130 + $0x70] sm:$0xf]
      %v2160 = vld [vmem:[%s2130 + $0x74] sm:$0xf]
      %v2161 = vld [vmem:[%s2130 + $0x78] sm:$0xf]
      %v2162 = vld [vmem:[%s2130 + $0x7c] sm:$0xf]
      %v2163 = vld [vmem:[%s2130 + $0x80] sm:$0xf]
      %v2164 = vld [vmem:[%s2130 + $0x84] sm:$0xf]
      %v2165 = vld [vmem:[%s2130 + $0x88] sm:$0xf]
      %v2166 = vld [vmem:[%s2130 + $0x8c] sm:$0xf]
      %v2167 = vld [vmem:[%s2130 + $0x90] sm:$0xf]
      %v2168 = vld [vmem:[%s2130 + $0x94] sm:$0xf]
      %v2169 = vld [vmem:[%s2130 + $0x98] sm:$0xf]
      %v2170 = vld [vmem:[%s2130 + $0x9c] sm:$0xf]
      %v2171 = vld [vmem:[%s2130 + $0xa0] sm:$0xf]
      %v2172 = vld [vmem:[%s2130 + $0xa4] sm:$0xf]
      %v2173 = vld [vmem:[%s2130 + $0xa8] sm:$0xf]
      %v2174 = vld [vmem:[%s2130 + $0xac] sm:$0xf]
      %v2175 = vld [vmem:[%s2130 + $0xb0] sm:$0xf]
      %v2176 = vld [vmem:[%s2130 + $0xb4] sm:$0xf]
      %v2177 = vld [vmem:[%s2130 + $0xb8] sm:$0xf]
      %v2178 = vld [vmem:[%s2130 + $0xbc] sm:$0xf]
      %v2243 = vunpack.c.l.b16 %v2018
      %v2244 = vunpack.c.h.b16 %v2018
      %v2245 = vunpack.c.l.b16 %v2019
      %v2246 = vunpack.c.l.b16 %v2020
      %v2247 = vunpack.c.h.b16 %v2020
      %v2248 = vunpack.c.l.b16 %v2021
      %v2249 = vunpack.c.l.b16 %v2022
      %v2250 = vunpack.c.h.b16 %v2022
      %v2251 = vunpack.c.l.b16 %v2023
      %v2252 = vunpack.c.l.b16 %v2024
      %v2253 = vunpack.c.h.b16 %v2024
      %v2254 = vunpack.c.l.b16 %v2025
      %v2255 = vunpack.c.l.b16 %v2026
      %v2256 = vunpack.c.h.b16 %v2026
      %v2257 = vunpack.c.l.b16 %v2027
      %v2258 = vunpack.c.l.b16 %v2028
      %v2259 = vunpack.c.h.b16 %v2028
      %v2260 = vunpack.c.l.b16 %v2029
      %v2261 = vunpack.c.l.b16 %v2030
      %v2262 = vunpack.c.h.b16 %v2030
      %v2263 = vunpack.c.l.b16 %v2031
      %v2264 = vunpack.c.l.b16 %v2032
      %v2265 = vunpack.c.h.b16 %v2032
      %v2266 = vunpack.c.l.b16 %v2033
      %v2267 = vunpack.c.l.b16 %v2034
      %v2268 = vunpack.c.h.b16 %v2034
      %v2269 = vunpack.c.l.b16 %v2035
      %v2270 = vunpack.c.l.b16 %v2036
      %v2271 = vunpack.c.h.b16 %v2036
      %v2272 = vunpack.c.l.b16 %v2037
      %v2273 = vunpack.c.l.b16 %v2038
      %v2274 = vunpack.c.h.b16 %v2038
      %v2275 = vunpack.c.l.b16 %v2039
      %v2276 = vunpack.c.l.b16 %v2040
      %v2277 = vunpack.c.h.b16 %v2040
      %v2278 = vunpack.c.l.b16 %v2041
      %v2279 = vunpack.c.l.b16 %v2042
      %v2280 = vunpack.c.h.b16 %v2042
      %v2281 = vunpack.c.l.b16 %v2043
      %v2282 = vunpack.c.l.b16 %v2044
      %v2283 = vunpack.c.h.b16 %v2044
      %v2284 = vunpack.c.l.b16 %v2045
      %v2285 = vunpack.c.l.b16 %v2046
      %v2286 = vunpack.c.h.b16 %v2046
      %v2287 = vunpack.c.l.b16 %v2047
      %v2288 = vunpack.c.l.b16 %v2048
      %v2289 = vunpack.c.h.b16 %v2048
      %v2290 = vunpack.c.l.b16 %v2049
      %v2291 = vunpack.c.l.b16 %v2050
      %v2292 = vunpack.c.h.b16 %v2050
      %v2293 = vunpack.c.l.b16 %v2051
      %v2294 = vunpack.c.l.b16 %v2052
      %v2295 = vunpack.c.h.b16 %v2052
      %v2296 = vunpack.c.l.b16 %v2053
      %v2297 = vunpack.c.l.b16 %v2054
      %v2298 = vunpack.c.h.b16 %v2054
      %v2299 = vunpack.c.l.b16 %v2055
      %v2300 = vunpack.c.l.b16 %v2056
      %v2301 = vunpack.c.h.b16 %v2056
      %v2302 = vunpack.c.l.b16 %v2057
      %v2303 = vunpack.c.l.b16 %v2058
      %v2304 = vunpack.c.h.b16 %v2058
      %v2305 = vunpack.c.l.b16 %v2059
      %v2306 = vunpack.c.l.b16 %v2060
      %v2307 = vunpack.c.h.b16 %v2060
      %v2308 = vunpack.c.l.b16 %v2061
      %v2309 = vunpack.c.l.b16 %v2062
      %v2310 = vunpack.c.h.b16 %v2062
      %v2311 = vunpack.c.l.b16 %v2063
      %v2312 = vunpack.c.l.b16 %v2064
      %v2313 = vunpack.c.h.b16 %v2064
      %v2314 = vunpack.c.l.b16 %v2065
      %v2315 = vunpack.c.l.b16 %v2066
      %v2316 = vunpack.c.h.b16 %v2066
      %v2317 = vunpack.c.l.b16 %v2067
      %v2318 = vunpack.c.l.b16 %v2068
      %v2319 = vunpack.c.h.b16 %v2068
      %v2320 = vunpack.c.l.b16 %v2069
      %v2321 = vunpack.c.l.b16 %v2070
      %v2322 = vunpack.c.h.b16 %v2070
      %v2323 = vunpack.c.l.b16 %v2071
      %v2324 = vunpack.c.l.b16 %v2072
      %v2325 = vunpack.c.h.b16 %v2072
      %v2326 = vunpack.c.l.b16 %v2073
      %v2327 = vunpack.c.l.b16 %v2074
      %v2328 = vunpack.c.h.b16 %v2074
      %v2329 = vunpack.c.l.b16 %v2075
      %v2330 = vunpack.c.l.b16 %v2076
      %v2331 = vunpack.c.h.b16 %v2076
      %v2332 = vunpack.c.l.b16 %v2077
      %v2333 = vunpack.c.l.b16 %v2126
      %v2334 = vunpack.c.h.b16 %v2126
      %v2335 = vunpack.c.l.b16 %v2127
      %v2336 = vunpack.c.l.b16 %v2128
      %v2337 = vunpack.c.h.b16 %v2128
      %v2338 = vunpack.c.l.b16 %v2129
      %v2339 = vpack.c.b16 %v2246, %v2243
      %v2340 = vpack.c.b16 %v2247, %v2244
      %v2341 = vpack.c.b16 %v2248, %v2245
      %v2342 = vpack.c.b16 %v2252, %v2249
      %v2343 = vpack.c.b16 %v2253, %v2250
      %v2344 = vpack.c.b16 %v2254, %v2251
      %v2345 = vpack.c.b16 %v2258, %v2255
      %v2346 = vpack.c.b16 %v2259, %v2256
      %v2347 = vpack.c.b16 %v2260, %v2257
      %v2348 = vpack.c.b16 %v2264, %v2261
      %v2349 = vpack.c.b16 %v2265, %v2262
      %v2350 = vpack.c.b16 %v2266, %v2263
      %v2351 = vpack.c.b16 %v2270, %v2267
      %v2352 = vpack.c.b16 %v2271, %v2268
      %v2353 = vpack.c.b16 %v2272, %v2269
      %v2354 = vpack.c.b16 %v2276, %v2273
      %v2355 = vpack.c.b16 %v2277, %v2274
      %v2356 = vpack.c.b16 %v2278, %v2275
      %v2357 = vpack.c.b16 %v2282, %v2279
      %v2358 = vpack.c.b16 %v2283, %v2280
      %v2359 = vpack.c.b16 %v2284, %v2281
      %v2360 = vpack.c.b16 %v2288, %v2285
      %v2361 = vpack.c.b16 %v2289, %v2286
      %v2362 = vpack.c.b16 %v2290, %v2287
      %v2363 = vpack.c.b16 %v2294, %v2291
      %v2364 = vpack.c.b16 %v2295, %v2292
      %v2365 = vpack.c.b16 %v2296, %v2293
      %v2366 = vpack.c.b16 %v2300, %v2297
      %v2367 = vpack.c.b16 %v2301, %v2298
      %v2368 = vpack.c.b16 %v2302, %v2299
      %v2369 = vpack.c.b16 %v2306, %v2303
      %v2370 = vpack.c.b16 %v2307, %v2304
      %v2371 = vpack.c.b16 %v2308, %v2305
      %v2372 = vpack.c.b16 %v2312, %v2309
      %v2373 = vpack.c.b16 %v2313, %v2310
      %v2374 = vpack.c.b16 %v2314, %v2311
      %v2375 = vpack.c.b16 %v2318, %v2315
      %v2376 = vpack.c.b16 %v2319, %v2316
      %v2377 = vpack.c.b16 %v2320, %v2317
      %v2378 = vpack.c.b16 %v2324, %v2321
      %v2379 = vpack.c.b16 %v2325, %v2322
      %v2380 = vpack.c.b16 %v2326, %v2323
      %v2381 = vpack.c.b16 %v2330, %v2327
      %v2382 = vpack.c.b16 %v2331, %v2328
      %v2383 = vpack.c.b16 %v2332, %v2329
      %v2384 = vpack.c.b16 %v2336, %v2333
      %v2385 = vpack.c.b16 %v2337, %v2334
      %v2386 = vpack.c.b16 %v2338, %v2335
      %v2483 = vunpack.c.l.b16 %v2131
      %v2484 = vunpack.c.l.b16 %v2132
      %v2485 = vunpack.c.l.b16 %v2133
      %v2486 = vunpack.c.l.b16 %v2134
      %v2487 = vunpack.c.l.b16 %v2135
      %v2488 = vunpack.c.l.b16 %v2136
      %v2489 = vunpack.c.l.b16 %v2137
      %v2490 = vunpack.c.l.b16 %v2138
      %v2491 = vunpack.c.l.b16 %v2139
      %v2492 = vunpack.c.l.b16 %v2140
      %v2493 = vunpack.c.l.b16 %v2141
      %v2494 = vunpack.c.l.b16 %v2142
      %v2495 = vunpack.c.l.b16 %v2143
      %v2496 = vunpack.c.l.b16 %v2144
      %v2497 = vunpack.c.l.b16 %v2145
      %v2498 = vunpack.c.l.b16 %v2146
      %v2499 = vunpack.c.l.b16 %v2147
      %v2500 = vunpack.c.l.b16 %v2148
      %v2501 = vunpack.c.l.b16 %v2149
      %v2502 = vunpack.c.l.b16 %v2150
      %v2503 = vunpack.c.l.b16 %v2151
      %v2504 = vunpack.c.l.b16 %v2152
      %v2505 = vunpack.c.l.b16 %v2153
      %v2506 = vunpack.c.l.b16 %v2154
      %v2507 = vunpack.c.l.b16 %v2155
      %v2508 = vunpack.c.l.b16 %v2156
      %v2509 = vunpack.c.l.b16 %v2157
      %v2510 = vunpack.c.l.b16 %v2158
      %v2511 = vunpack.c.l.b16 %v2159
      %v2512 = vunpack.c.l.b16 %v2160
      %v2513 = vunpack.c.l.b16 %v2161
      %v2514 = vunpack.c.l.b16 %v2162
      %v2515 = vunpack.c.l.b16 %v2163
      %v2516 = vunpack.c.l.b16 %v2164
      %v2517 = vunpack.c.l.b16 %v2165
      %v2518 = vunpack.c.l.b16 %v2166
      %v2519 = vunpack.c.l.b16 %v2167
      %v2520 = vunpack.c.l.b16 %v2168
      %v2521 = vunpack.c.l.b16 %v2169
      %v2522 = vunpack.c.l.b16 %v2170
      %v2523 = vunpack.c.l.b16 %v2171
      %v2524 = vunpack.c.l.b16 %v2172
      %v2525 = vunpack.c.l.b16 %v2173
      %v2526 = vunpack.c.l.b16 %v2174
      %v2527 = vunpack.c.l.b16 %v2175
      %v2528 = vunpack.c.l.b16 %v2176
      %v2529 = vunpack.c.l.b16 %v2177
      %v2530 = vunpack.c.l.b16 %v2178
      %v2531 = vpack.c.b16 %v2484, %v2483
      %v2532 = vpack.c.b16 %v2486, %v2485
      %v2533 = vpack.c.b16 %v2488, %v2487
      %v2534 = vpack.c.b16 %v2490, %v2489
      %v2535 = vpack.c.b16 %v2492, %v2491
      %v2536 = vpack.c.b16 %v2494, %v2493
      %v2537 = vpack.c.b16 %v2496, %v2495
      %v2538 = vpack.c.b16 %v2498, %v2497
      %v2539 = vpack.c.b16 %v2500, %v2499
      %v2540 = vpack.c.b16 %v2502, %v2501
      %v2541 = vpack.c.b16 %v2504, %v2503
      %v2542 = vpack.c.b16 %v2506, %v2505
      %v2543 = vpack.c.b16 %v2508, %v2507
      %v2544 = vpack.c.b16 %v2510, %v2509
      %v2545 = vpack.c.b16 %v2512, %v2511
      %v2546 = vpack.c.b16 %v2514, %v2513
      %v2547 = vpack.c.b16 %v2516, %v2515
      %v2548 = vpack.c.b16 %v2518, %v2517
      %v2549 = vpack.c.b16 %v2520, %v2519
      %v2550 = vpack.c.b16 %v2522, %v2521
      %v2551 = vpack.c.b16 %v2524, %v2523
      %v2552 = vpack.c.b16 %v2526, %v2525
      %v2553 = vpack.c.b16 %v2528, %v2527
      %v2554 = vpack.c.b16 %v2530, %v2529
      %2579 = vmatpush.bf16.msra.mxu0 %v2538
      %2580 = vmatpush.bf16.msra.mxu0 %v2537
      %2581 = vmatpush.bf16.msra.mxu0 %v2536
      %2582 = vmatpush.bf16.msra.mxu0 %v2535
      %2583 = vmatpush.bf16.msra.mxu0 %v2534
      %2584 = vmatpush.bf16.msra.mxu0 %v2533
      %2585 = vmatpush.bf16.msra.mxu0 %v2532
      %2586 = vmatpush.bf16.msra.mxu0 %v2531
      %2587 = vmatmul.bf16.gmra.mxu0 %v2339
      %v2588 = vpop.f32.mrf.mxu0
      %v2589 = vadd.f32 0.0, %v2588
      %v2590 = vpop.f32.mrf.mxu0
      %v2591 = vadd.f32 0.0, %v2590
      %2592 = vmatmul.bf16.gmra.mxu0 %v2342
      %v2593 = vpop.f32.mrf.mxu0
      %v2594 = vadd.f32 0.0, %v2593
      %v2595 = vpop.f32.mrf.mxu0
      %v2596 = vadd.f32 0.0, %v2595
      %2597 = vmatmul.bf16.gmra.mxu0 %v2345
      %v2598 = vpop.f32.mrf.mxu0
      %v2599 = vadd.f32 0.0, %v2598
      %v2600 = vpop.f32.mrf.mxu0
      %v2601 = vadd.f32 0.0, %v2600
      %2602 = vmatmul.bf16.gmra.mxu0 %v2348
      %v2603 = vpop.f32.mrf.mxu0
      %v2604 = vadd.f32 0.0, %v2603
      %v2605 = vpop.f32.mrf.mxu0
      %v2606 = vadd.f32 0.0, %v2605
      %2607 = vmatmul.bf16.gmra.mxu0 %v2351
      %v2608 = vpop.f32.mrf.mxu0
      %v2609 = vadd.f32 0.0, %v2608
      %v2610 = vpop.f32.mrf.mxu0
      %v2611 = vadd.f32 0.0, %v2610
      %2612 = vmatmul.bf16.gmra.mxu0 %v2354
      %v2613 = vpop.f32.mrf.mxu0
      %v2614 = vadd.f32 0.0, %v2613
      %v2615 = vpop.f32.mrf.mxu0
      %v2616 = vadd.f32 0.0, %v2615
      %2617 = vmatmul.bf16.gmra.mxu0 %v2357
      %v2618 = vpop.f32.mrf.mxu0
      %v2619 = vadd.f32 0.0, %v2618
      %v2620 = vpop.f32.mrf.mxu0
      %v2621 = vadd.f32 0.0, %v2620
      %2622 = vmatmul.bf16.gmra.mxu0 %v2360
      %v2623 = vpop.f32.mrf.mxu0
      %v2624 = vadd.f32 0.0, %v2623
      %v2625 = vpop.f32.mrf.mxu0
      %v2626 = vadd.f32 0.0, %v2625
      %2627 = vmatmul.bf16.gmra.mxu0 %v2363
      %v2628 = vpop.f32.mrf.mxu0
      %v2629 = vadd.f32 0.0, %v2628
      %v2630 = vpop.f32.mrf.mxu0
      %v2631 = vadd.f32 0.0, %v2630
      %2632 = vmatmul.bf16.gmra.mxu0 %v2366
      %v2633 = vpop.f32.mrf.mxu0
      %v2634 = vadd.f32 0.0, %v2633
      %v2635 = vpop.f32.mrf.mxu0
      %v2636 = vadd.f32 0.0, %v2635
      %2637 = vmatmul.bf16.gmra.mxu0 %v2369
      %v2638 = vpop.f32.mrf.mxu0
      %v2639 = vadd.f32 0.0, %v2638
      %v2640 = vpop.f32.mrf.mxu0
      %v2641 = vadd.f32 0.0, %v2640
      %2642 = vmatmul.bf16.gmra.mxu0 %v2372
      %v2643 = vpop.f32.mrf.mxu0
      %v2644 = vadd.f32 0.0, %v2643
      %v2645 = vpop.f32.mrf.mxu0
      %v2646 = vadd.f32 0.0, %v2645
      %2647 = vmatmul.bf16.gmra.mxu0 %v2375
      %v2648 = vpop.f32.mrf.mxu0
      %v2649 = vadd.f32 0.0, %v2648
      %v2650 = vpop.f32.mrf.mxu0
      %v2651 = vadd.f32 0.0, %v2650
      %2652 = vmatmul.bf16.gmra.mxu0 %v2378
      %v2653 = vpop.f32.mrf.mxu0
      %v2654 = vadd.f32 0.0, %v2653
      %v2655 = vpop.f32.mrf.mxu0
      %v2656 = vadd.f32 0.0, %v2655
      %2657 = vmatmul.bf16.gmra.mxu0 %v2381
      %v2658 = vpop.f32.mrf.mxu0
      %v2659 = vadd.f32 0.0, %v2658
      %v2660 = vpop.f32.mrf.mxu0
      %v2661 = vadd.f32 0.0, %v2660
      %2662 = vmatmul.bf16.gmra.mxu0 %v2384
      %v2663 = vpop.f32.mrf.mxu0
      %v2664 = vadd.f32 0.0, %v2663
      %v2665 = vpop.f32.mrf.mxu0
      %v2666 = vadd.f32 0.0, %v2665
      %2667 = vdwg.mxu0
      %2668 = vmatpush.bf16.msra.mxu0 %v2546
      %2669 = vmatpush.bf16.msra.mxu0 %v2545
      %2670 = vmatpush.bf16.msra.mxu0 %v2544
      %2671 = vmatpush.bf16.msra.mxu0 %v2543
      %2672 = vmatpush.bf16.msra.mxu0 %v2542
      %2673 = vmatpush.bf16.msra.mxu0 %v2541
      %2674 = vmatpush.bf16.msra.mxu0 %v2540
      %2675 = vmatpush.bf16.msra.mxu0 %v2539
      %2676 = vmatmul.bf16.gmra.mxu0 %v2340
      %v2677 = vpop.f32.mrf.mxu0
      %v2678 = vadd.f32 %v2589, %v2677
      %v2679 = vpop.f32.mrf.mxu0
      %v2680 = vadd.f32 %v2591, %v2679
      %2681 = vmatmul.bf16.gmra.mxu0 %v2343
      %v2682 = vpop.f32.mrf.mxu0
      %v2683 = vadd.f32 %v2594, %v2682
      %v2684 = vpop.f32.mrf.mxu0
      %v2685 = vadd.f32 %v2596, %v2684
      %2686 = vmatmul.bf16.gmra.mxu0 %v2346
      %v2687 = vpop.f32.mrf.mxu0
      %v2688 = vadd.f32 %v2599, %v2687
      %v2689 = vpop.f32.mrf.mxu0
      %v2690 = vadd.f32 %v2601, %v2689
      %2691 = vmatmul.bf16.gmra.mxu0 %v2349
      %v2692 = vpop.f32.mrf.mxu0
      %v2693 = vadd.f32 %v2604, %v2692
      %v2694 = vpop.f32.mrf.mxu0
      %v2695 = vadd.f32 %v2606, %v2694
      %2696 = vmatmul.bf16.gmra.mxu0 %v2352
      %v2697 = vpop.f32.mrf.mxu0
      %v2698 = vadd.f32 %v2609, %v2697
      %v2699 = vpop.f32.mrf.mxu0
      %v2700 = vadd.f32 %v2611, %v2699
      %2701 = vmatmul.bf16.gmra.mxu0 %v2355
      %v2702 = vpop.f32.mrf.mxu0
      %v2703 = vadd.f32 %v2614, %v2702
      %v2704 = vpop.f32.mrf.mxu0
      %v2705 = vadd.f32 %v2616, %v2704
      %2706 = vmatmul.bf16.gmra.mxu0 %v2358
      %v2707 = vpop.f32.mrf.mxu0
      %v2708 = vadd.f32 %v2619, %v2707
      %v2709 = vpop.f32.mrf.mxu0
      %v2710 = vadd.f32 %v2621, %v2709
      %2711 = vmatmul.bf16.gmra.mxu0 %v2361
      %v2712 = vpop.f32.mrf.mxu0
      %v2713 = vadd.f32 %v2624, %v2712
      %v2714 = vpop.f32.mrf.mxu0
      %v2715 = vadd.f32 %v2626, %v2714
      %2716 = vmatmul.bf16.gmra.mxu0 %v2364
      %v2717 = vpop.f32.mrf.mxu0
      %v2718 = vadd.f32 %v2629, %v2717
      %v2719 = vpop.f32.mrf.mxu0
      %v2720 = vadd.f32 %v2631, %v2719
      %2721 = vmatmul.bf16.gmra.mxu0 %v2367
      %v2722 = vpop.f32.mrf.mxu0
      %v2723 = vadd.f32 %v2634, %v2722
      %v2724 = vpop.f32.mrf.mxu0
      %v2725 = vadd.f32 %v2636, %v2724
      %2726 = vmatmul.bf16.gmra.mxu0 %v2370
      %v2727 = vpop.f32.mrf.mxu0
      %v2728 = vadd.f32 %v2639, %v2727
      %v2729 = vpop.f32.mrf.mxu0
      %v2730 = vadd.f32 %v2641, %v2729
      %2731 = vmatmul.bf16.gmra.mxu0 %v2373
      %v2732 = vpop.f32.mrf.mxu0
      %v2733 = vadd.f32 %v2644, %v2732
      %v2734 = vpop.f32.mrf.mxu0
      %v2735 = vadd.f32 %v2646, %v2734
      %2736 = vmatmul.bf16.gmra.mxu0 %v2376
      %v2737 = vpop.f32.mrf.mxu0
      %v2738 = vadd.f32 %v2649, %v2737
      %v2739 = vpop.f32.mrf.mxu0
      %v2740 = vadd.f32 %v2651, %v2739
      %2741 = vmatmul.bf16.gmra.mxu0 %v2379
      %v2742 = vpop.f32.mrf.mxu0
      %v2743 = vadd.f32 %v2654, %v2742
      %v2744 = vpop.f32.mrf.mxu0
      %v2745 = vadd.f32 %v2656, %v2744
      %2746 = vmatmul.bf16.gmra.mxu0 %v2382
      %v2747 = vpop.f32.mrf.mxu0
      %v2748 = vadd.f32 %v2659, %v2747
      %v2749 = vpop.f32.mrf.mxu0
      %v2750 = vadd.f32 %v2661, %v2749
      %2751 = vmatmul.bf16.gmra.mxu0 %v2385
      %v2752 = vpop.f32.mrf.mxu0
      %v2753 = vadd.f32 %v2664, %v2752
      %v2754 = vpop.f32.mrf.mxu0
      %v2755 = vadd.f32 %v2666, %v2754
      %2756 = vdwg.mxu0
      %2757 = vmatpush.bf16.msra.mxu0 %v2554
      %2758 = vmatpush.bf16.msra.mxu0 %v2553
      %2759 = vmatpush.bf16.msra.mxu0 %v2552
      %2760 = vmatpush.bf16.msra.mxu0 %v2551
      %2761 = vmatpush.bf16.msra.mxu0 %v2550
      %2762 = vmatpush.bf16.msra.mxu0 %v2549
      %2763 = vmatpush.bf16.msra.mxu0 %v2548
      %2764 = vmatpush.bf16.msra.mxu0 %v2547
      %2765 = vmatmul.bf16.gmra.mxu0 %v2341
      %v2766 = vpop.f32.mrf.mxu0
      %v2767 = vadd.f32 %v2678, %v2766
      %v2768 = vpop.f32.mrf.mxu0
      %v2769 = vadd.f32 %v2680, %v2768
      %2770 = vmatmul.bf16.gmra.mxu0 %v2344
      %v2771 = vpop.f32.mrf.mxu0
      %v2772 = vadd.f32 %v2683, %v2771
      %v2773 = vpop.f32.mrf.mxu0
      %v2774 = vadd.f32 %v2685, %v2773
      %2775 = vmatmul.bf16.gmra.mxu0 %v2347
      %v2776 = vpop.f32.mrf.mxu0
      %v2777 = vadd.f32 %v2688, %v2776
      %v2778 = vpop.f32.mrf.mxu0
      %v2779 = vadd.f32 %v2690, %v2778
      %2780 = vmatmul.bf16.gmra.mxu0 %v2350
      %v2781 = vpop.f32.mrf.mxu0
      %v2782 = vadd.f32 %v2693, %v2781
      %v2783 = vpop.f32.mrf.mxu0
      %v2784 = vadd.f32 %v2695, %v2783
      %2785 = vmatmul.bf16.gmra.mxu0 %v2353
      %v2786 = vpop.f32.mrf.mxu0
      %v2787 = vadd.f32 %v2698, %v2786
      %v2788 = vpop.f32.mrf.mxu0
      %v2789 = vadd.f32 %v2700, %v2788
      %2790 = vmatmul.bf16.gmra.mxu0 %v2356
      %v2791 = vpop.f32.mrf.mxu0
      %v2792 = vadd.f32 %v2703, %v2791
      %v2793 = vpop.f32.mrf.mxu0
      %v2794 = vadd.f32 %v2705, %v2793
      %2795 = vmatmul.bf16.gmra.mxu0 %v2359
      %v2796 = vpop.f32.mrf.mxu0
      %v2797 = vadd.f32 %v2708, %v2796
      %v2798 = vpop.f32.mrf.mxu0
      %v2799 = vadd.f32 %v2710, %v2798
      %2800 = vmatmul.bf16.gmra.mxu0 %v2362
      %v2801 = vpop.f32.mrf.mxu0
      %v2802 = vadd.f32 %v2713, %v2801
      %v2803 = vpop.f32.mrf.mxu0
      %v2804 = vadd.f32 %v2715, %v2803
      %2805 = vmatmul.bf16.gmra.mxu0 %v2365
      %v2806 = vpop.f32.mrf.mxu0
      %v2807 = vadd.f32 %v2718, %v2806
      %v2808 = vpop.f32.mrf.mxu0
      %v2809 = vadd.f32 %v2720, %v2808
      %2810 = vmatmul.bf16.gmra.mxu0 %v2368
      %v2811 = vpop.f32.mrf.mxu0
      %v2812 = vadd.f32 %v2723, %v2811
      %v2813 = vpop.f32.mrf.mxu0
      %v2814 = vadd.f32 %v2725, %v2813
      %2815 = vmatmul.bf16.gmra.mxu0 %v2371
      %v2816 = vpop.f32.mrf.mxu0
      %v2817 = vadd.f32 %v2728, %v2816
      %v2818 = vpop.f32.mrf.mxu0
      %v2819 = vadd.f32 %v2730, %v2818
      %2820 = vmatmul.bf16.gmra.mxu0 %v2374
      %v2821 = vpop.f32.mrf.mxu0
      %v2822 = vadd.f32 %v2733, %v2821
      %v2823 = vpop.f32.mrf.mxu0
      %v2824 = vadd.f32 %v2735, %v2823
      %2825 = vmatmul.bf16.gmra.mxu0 %v2377
      %v2826 = vpop.f32.mrf.mxu0
      %v2827 = vadd.f32 %v2738, %v2826
      %v2828 = vpop.f32.mrf.mxu0
      %v2829 = vadd.f32 %v2740, %v2828
      %2830 = vmatmul.bf16.gmra.mxu0 %v2380
      %v2831 = vpop.f32.mrf.mxu0
      %v2832 = vadd.f32 %v2743, %v2831
      %v2833 = vpop.f32.mrf.mxu0
      %v2834 = vadd.f32 %v2745, %v2833
      %2835 = vmatmul.bf16.gmra.mxu0 %v2383
      %v2836 = vpop.f32.mrf.mxu0
      %v2837 = vadd.f32 %v2748, %v2836
      %v2838 = vpop.f32.mrf.mxu0
      %v2839 = vadd.f32 %v2750, %v2838
      %2840 = vmatmul.bf16.gmra.mxu0 %v2386
      %v2841 = vpop.f32.mrf.mxu0
      %v2842 = vadd.f32 %v2753, %v2841
      %v2843 = vpop.f32.mrf.mxu0
      %v2844 = vadd.f32 %v2755, %v2843
      %2845 = vdwg.mxu0
      %v2850 = vunpack.c.l.b16 %v2014
      %v2851 = vunpack.c.h.b16 %v2014
      %v2852 = vunpack.c.l.b16 %v2015
      %v2853 = vunpack.c.l.b16 %v2016
      %v2854 = vunpack.c.h.b16 %v2016
      %v2855 = vunpack.c.l.b16 %v2017
      %v2856 = vpack.c.b16 %v2853, %v2850
      %v2857 = vpack.c.b16 %v2854, %v2851
      %v2858 = vpack.c.b16 %v2855, %v2852
      %v2910 = vunpack.c.l.b16 %v2078
      %v2911 = vunpack.c.l.b16 %v2079
      %v2912 = vunpack.c.l.b16 %v2080
      %v2913 = vunpack.c.l.b16 %v2081
      %v2914 = vunpack.c.l.b16 %v2082
      %v2915 = vunpack.c.l.b16 %v2083
      %v2916 = vunpack.c.l.b16 %v2084
      %v2917 = vunpack.c.l.b16 %v2085
      %v2918 = vunpack.c.l.b16 %v2086
      %v2919 = vunpack.c.l.b16 %v2087
      %v2920 = vunpack.c.l.b16 %v2088
      %v2921 = vunpack.c.l.b16 %v2089
      %v2922 = vunpack.c.l.b16 %v2090
      %v2923 = vunpack.c.l.b16 %v2091
      %v2924 = vunpack.c.l.b16 %v2092
      %v2925 = vunpack.c.l.b16 %v2093
      %v2926 = vunpack.c.l.b16 %v2094
      %v2927 = vunpack.c.l.b16 %v2095
      %v2928 = vunpack.c.l.b16 %v2096
      %v2929 = vunpack.c.l.b16 %v2097
      %v2930 = vunpack.c.l.b16 %v2098
      %v2931 = vunpack.c.l.b16 %v2099
      %v2932 = vunpack.c.l.b16 %v2100
      %v2933 = vunpack.c.l.b16 %v2101
      %v2934 = vunpack.c.l.b16 %v2102
      %v2935 = vunpack.c.l.b16 %v2103
      %v2936 = vunpack.c.l.b16 %v2104
      %v2937 = vunpack.c.l.b16 %v2105
      %v2938 = vunpack.c.l.b16 %v2106
      %v2939 = vunpack.c.l.b16 %v2107
      %v2940 = vunpack.c.l.b16 %v2108
      %v2941 = vunpack.c.l.b16 %v2109
      %v2942 = vunpack.c.l.b16 %v2110
      %v2943 = vunpack.c.l.b16 %v2111
      %v2944 = vunpack.c.l.b16 %v2112
      %v2945 = vunpack.c.l.b16 %v2113
      %v2946 = vunpack.c.l.b16 %v2114
      %v2947 = vunpack.c.l.b16 %v2115
      %v2948 = vunpack.c.l.b16 %v2116
      %v2949 = vunpack.c.l.b16 %v2117
      %v2950 = vunpack.c.l.b16 %v2118
      %v2951 = vunpack.c.l.b16 %v2119
      %v2952 = vunpack.c.l.b16 %v2120
      %v2953 = vunpack.c.l.b16 %v2121
      %v2954 = vunpack.c.l.b16 %v2122
      %v2955 = vunpack.c.l.b16 %v2123
      %v2956 = vunpack.c.l.b16 %v2124
      %v2957 = vunpack.c.l.b16 %v2125
      %v2958 = vpack.c.b16 %v2911, %v2910
      %v2959 = vpack.c.b16 %v2913, %v2912
      %v2960 = vpack.c.b16 %v2915, %v2914
      %v2961 = vpack.c.b16 %v2917, %v2916
      %v2962 = vpack.c.b16 %v2919, %v2918
      %v2963 = vpack.c.b16 %v2921, %v2920
      %v2964 = vpack.c.b16 %v2923, %v2922
      %v2965 = vpack.c.b16 %v2925, %v2924
      %v2966 = vpack.c.b16 %v2927, %v2926
      %v2967 = vpack.c.b16 %v2929, %v2928
      %v2968 = vpack.c.b16 %v2931, %v2930
      %v2969 = vpack.c.b16 %v2933, %v2932
      %v2970 = vpack.c.b16 %v2935, %v2934
      %v2971 = vpack.c.b16 %v2937, %v2936
      %v2972 = vpack.c.b16 %v2939, %v2938
      %v2973 = vpack.c.b16 %v2941, %v2940
      %v2974 = vpack.c.b16 %v2943, %v2942
      %v2975 = vpack.c.b16 %v2945, %v2944
      %v2976 = vpack.c.b16 %v2947, %v2946
      %v2977 = vpack.c.b16 %v2949, %v2948
      %v2978 = vpack.c.b16 %v2951, %v2950
      %v2979 = vpack.c.b16 %v2953, %v2952
      %v2980 = vpack.c.b16 %v2955, %v2954
      %v2981 = vpack.c.b16 %v2957, %v2956
      %3006 = vmatpush.bf16.msra.mxu0 %v2965
      %3007 = vmatpush.bf16.msra.mxu0 %v2964
      %3008 = vmatpush.bf16.msra.mxu0 %v2963
      %3009 = vmatpush.bf16.msra.mxu0 %v2962
      %3010 = vmatpush.bf16.msra.mxu0 %v2961
      %3011 = vmatpush.bf16.msra.mxu0 %v2960
      %3012 = vmatpush.bf16.msra.mxu0 %v2959
      %3013 = vmatpush.bf16.msra.mxu0 %v2958
      %3014 = vmatmul.bf16.gmra.mxu0 %v2856
      %v3015 = vpop.f32.mrf.mxu0
      %v3016 = vadd.f32 %v2767, %v3015
      %v3017 = vpop.f32.mrf.mxu0
      %v3018 = vadd.f32 %v2769, %v3017
      %3019 = vmatmul.bf16.gmra.mxu0 %v2339
      %v3020 = vpop.f32.mrf.mxu0
      %v3021 = vadd.f32 %v2772, %v3020
      %v3022 = vpop.f32.mrf.mxu0
      %v3023 = vadd.f32 %v2774, %v3022
      %3024 = vmatmul.bf16.gmra.mxu0 %v2342
      %v3025 = vpop.f32.mrf.mxu0
      %v3026 = vadd.f32 %v2777, %v3025
      %v3027 = vpop.f32.mrf.mxu0
      %v3028 = vadd.f32 %v2779, %v3027
      %3029 = vmatmul.bf16.gmra.mxu0 %v2345
      %v3030 = vpop.f32.mrf.mxu0
      %v3031 = vadd.f32 %v2782, %v3030
      %v3032 = vpop.f32.mrf.mxu0
      %v3033 = vadd.f32 %v2784, %v3032
      %3034 = vmatmul.bf16.gmra.mxu0 %v2348
      %v3035 = vpop.f32.mrf.mxu0
      %v3036 = vadd.f32 %v2787, %v3035
      %v3037 = vpop.f32.mrf.mxu0
      %v3038 = vadd.f32 %v2789, %v3037
      %3039 = vmatmul.bf16.gmra.mxu0 %v2351
      %v3040 = vpop.f32.mrf.mxu0
      %v3041 = vadd.f32 %v2792, %v3040
      %v3042 = vpop.f32.mrf.mxu0
      %v3043 = vadd.f32 %v2794, %v3042
      %3044 = vmatmul.bf16.gmra.mxu0 %v2354
      %v3045 = vpop.f32.mrf.mxu0
      %v3046 = vadd.f32 %v2797, %v3045
      %v3047 = vpop.f32.mrf.mxu0
      %v3048 = vadd.f32 %v2799, %v3047
      %3049 = vmatmul.bf16.gmra.mxu0 %v2357
      %v3050 = vpop.f32.mrf.mxu0
      %v3051 = vadd.f32 %v2802, %v3050
      %v3052 = vpop.f32.mrf.mxu0
      %v3053 = vadd.f32 %v2804, %v3052
      %3054 = vmatmul.bf16.gmra.mxu0 %v2360
      %v3055 = vpop.f32.mrf.mxu0
      %v3056 = vadd.f32 %v2807, %v3055
      %v3057 = vpop.f32.mrf.mxu0
      %v3058 = vadd.f32 %v2809, %v3057
      %3059 = vmatmul.bf16.gmra.mxu0 %v2363
      %v3060 = vpop.f32.mrf.mxu0
      %v3061 = vadd.f32 %v2812, %v3060
      %v3062 = vpop.f32.mrf.mxu0
      %v3063 = vadd.f32 %v2814, %v3062
      %3064 = vmatmul.bf16.gmra.mxu0 %v2366
      %v3065 = vpop.f32.mrf.mxu0
      %v3066 = vadd.f32 %v2817, %v3065
      %v3067 = vpop.f32.mrf.mxu0
      %v3068 = vadd.f32 %v2819, %v3067
      %3069 = vmatmul.bf16.gmra.mxu0 %v2369
      %v3070 = vpop.f32.mrf.mxu0
      %v3071 = vadd.f32 %v2822, %v3070
      %v3072 = vpop.f32.mrf.mxu0
      %v3073 = vadd.f32 %v2824, %v3072
      %3074 = vmatmul.bf16.gmra.mxu0 %v2372
      %v3075 = vpop.f32.mrf.mxu0
      %v3076 = vadd.f32 %v2827, %v3075
      %v3077 = vpop.f32.mrf.mxu0
      %v3078 = vadd.f32 %v2829, %v3077
      %3079 = vmatmul.bf16.gmra.mxu0 %v2375
      %v3080 = vpop.f32.mrf.mxu0
      %v3081 = vadd.f32 %v2832, %v3080
      %v3082 = vpop.f32.mrf.mxu0
      %v3083 = vadd.f32 %v2834, %v3082
      %3084 = vmatmul.bf16.gmra.mxu0 %v2378
      %v3085 = vpop.f32.mrf.mxu0
      %v3086 = vadd.f32 %v2837, %v3085
      %v3087 = vpop.f32.mrf.mxu0
      %v3088 = vadd.f32 %v2839, %v3087
      %3089 = vmatmul.bf16.gmra.mxu0 %v2381
      %v3090 = vpop.f32.mrf.mxu0
      %v3091 = vadd.f32 %v2842, %v3090
      %v3092 = vpop.f32.mrf.mxu0
      %v3093 = vadd.f32 %v2844, %v3092
      %3094 = vdwg.mxu0
      %3095 = vmatpush.bf16.msra.mxu0 %v2973
      %3096 = vmatpush.bf16.msra.mxu0 %v2972
      %3097 = vmatpush.bf16.msra.mxu0 %v2971
      %3098 = vmatpush.bf16.msra.mxu0 %v2970
      %3099 = vmatpush.bf16.msra.mxu0 %v2969
      %3100 = vmatpush.bf16.msra.mxu0 %v2968
      %3101 = vmatpush.bf16.msra.mxu0 %v2967
      %3102 = vmatpush.bf16.msra.mxu0 %v2966
      %3103 = vmatmul.bf16.gmra.mxu0 %v2857
      %v3104 = vpop.f32.mrf.mxu0
      %v3105 = vadd.f32 %v3016, %v3104
      %v3106 = vpop.f32.mrf.mxu0
      %v3107 = vadd.f32 %v3018, %v3106
      %3108 = vmatmul.bf16.gmra.mxu0 %v2340
      %v3109 = vpop.f32.mrf.mxu0
      %v3110 = vadd.f32 %v3021, %v3109
      %v3111 = vpop.f32.mrf.mxu0
      %v3112 = vadd.f32 %v3023, %v3111
      %3113 = vmatmul.bf16.gmra.mxu0 %v2343
      %v3114 = vpop.f32.mrf.mxu0
      %v3115 = vadd.f32 %v3026, %v3114
      %v3116 = vpop.f32.mrf.mxu0
      %v3117 = vadd.f32 %v3028, %v3116
      %3118 = vmatmul.bf16.gmra.mxu0 %v2346
      %v3119 = vpop.f32.mrf.mxu0
      %v3120 = vadd.f32 %v3031, %v3119
      %v3121 = vpop.f32.mrf.mxu0
      %v3122 = vadd.f32 %v3033, %v3121
      %3123 = vmatmul.bf16.gmra.mxu0 %v2349
      %v3124 = vpop.f32.mrf.mxu0
      %v3125 = vadd.f32 %v3036, %v3124
      %v3126 = vpop.f32.mrf.mxu0
      %v3127 = vadd.f32 %v3038, %v3126
      %3128 = vmatmul.bf16.gmra.mxu0 %v2352
      %v3129 = vpop.f32.mrf.mxu0
      %v3130 = vadd.f32 %v3041, %v3129
      %v3131 = vpop.f32.mrf.mxu0
      %v3132 = vadd.f32 %v3043, %v3131
      %3133 = vmatmul.bf16.gmra.mxu0 %v2355
      %v3134 = vpop.f32.mrf.mxu0
      %v3135 = vadd.f32 %v3046, %v3134
      %v3136 = vpop.f32.mrf.mxu0
      %v3137 = vadd.f32 %v3048, %v3136
      %3138 = vmatmul.bf16.gmra.mxu0 %v2358
      %v3139 = vpop.f32.mrf.mxu0
      %v3140 = vadd.f32 %v3051, %v3139
      %v3141 = vpop.f32.mrf.mxu0
      %v3142 = vadd.f32 %v3053, %v3141
      %3143 = vmatmul.bf16.gmra.mxu0 %v2361
      %v3144 = vpop.f32.mrf.mxu0
      %v3145 = vadd.f32 %v3056, %v3144
      %v3146 = vpop.f32.mrf.mxu0
      %v3147 = vadd.f32 %v3058, %v3146
      %3148 = vmatmul.bf16.gmra.mxu0 %v2364
      %v3149 = vpop.f32.mrf.mxu0
      %v3150 = vadd.f32 %v3061, %v3149
      %v3151 = vpop.f32.mrf.mxu0
      %v3152 = vadd.f32 %v3063, %v3151
      %3153 = vmatmul.bf16.gmra.mxu0 %v2367
      %v3154 = vpop.f32.mrf.mxu0
      %v3155 = vadd.f32 %v3066, %v3154
      %v3156 = vpop.f32.mrf.mxu0
      %v3157 = vadd.f32 %v3068, %v3156
      %3158 = vmatmul.bf16.gmra.mxu0 %v2370
      %v3159 = vpop.f32.mrf.mxu0
      %v3160 = vadd.f32 %v3071, %v3159
      %v3161 = vpop.f32.mrf.mxu0
      %v3162 = vadd.f32 %v3073, %v3161
      %3163 = vmatmul.bf16.gmra.mxu0 %v2373
      %v3164 = vpop.f32.mrf.mxu0
      %v3165 = vadd.f32 %v3076, %v3164
      %v3166 = vpop.f32.mrf.mxu0
      %v3167 = vadd.f32 %v3078, %v3166
      %3168 = vmatmul.bf16.gmra.mxu0 %v2376
      %v3169 = vpop.f32.mrf.mxu0
      %v3170 = vadd.f32 %v3081, %v3169
      %v3171 = vpop.f32.mrf.mxu0
      %v3172 = vadd.f32 %v3083, %v3171
      %3173 = vmatmul.bf16.gmra.mxu0 %v2379
      %v3174 = vpop.f32.mrf.mxu0
      %v3175 = vadd.f32 %v3086, %v3174
      %v3176 = vpop.f32.mrf.mxu0
      %v3177 = vadd.f32 %v3088, %v3176
      %3178 = vmatmul.bf16.gmra.mxu0 %v2382
      %v3179 = vpop.f32.mrf.mxu0
      %v3180 = vadd.f32 %v3091, %v3179
      %v3181 = vpop.f32.mrf.mxu0
      %v3182 = vadd.f32 %v3093, %v3181
      %3183 = vdwg.mxu0
      %3184 = vmatpush.bf16.msra.mxu0 %v2981
      %3185 = vmatpush.bf16.msra.mxu0 %v2980
      %3186 = vmatpush.bf16.msra.mxu0 %v2979
      %3187 = vmatpush.bf16.msra.mxu0 %v2978
      %3188 = vmatpush.bf16.msra.mxu0 %v2977
      %3189 = vmatpush.bf16.msra.mxu0 %v2976
      %3190 = vmatpush.bf16.msra.mxu0 %v2975
      %3191 = vmatpush.bf16.msra.mxu0 %v2974
      %3192 = vmatmul.bf16.gmra.mxu0 %v2858
      %v3193 = vpop.f32.mrf.mxu0
      %v3194 = vadd.f32 %v3105, %v3193
      %v3195 = vpop.f32.mrf.mxu0
      %v3196 = vadd.f32 %v3107, %v3195
      %3197 = vmatmul.bf16.gmra.mxu0 %v2341
      %v3198 = vpop.f32.mrf.mxu0
      %v3199 = vadd.f32 %v3110, %v3198
      %v3200 = vpop.f32.mrf.mxu0
      %v3201 = vadd.f32 %v3112, %v3200
      %3202 = vmatmul.bf16.gmra.mxu0 %v2344
      %v3203 = vpop.f32.mrf.mxu0
      %v3204 = vadd.f32 %v3115, %v3203
      %v3205 = vpop.f32.mrf.mxu0
      %v3206 = vadd.f32 %v3117, %v3205
      %3207 = vmatmul.bf16.gmra.mxu0 %v2347
      %v3208 = vpop.f32.mrf.mxu0
      %v3209 = vadd.f32 %v3120, %v3208
      %v3210 = vpop.f32.mrf.mxu0
      %v3211 = vadd.f32 %v3122, %v3210
      %3212 = vmatmul.bf16.gmra.mxu0 %v2350
      %v3213 = vpop.f32.mrf.mxu0
      %v3214 = vadd.f32 %v3125, %v3213
      %v3215 = vpop.f32.mrf.mxu0
      %v3216 = vadd.f32 %v3127, %v3215
      %3217 = vmatmul.bf16.gmra.mxu0 %v2353
      %v3218 = vpop.f32.mrf.mxu0
      %v3219 = vadd.f32 %v3130, %v3218
      %v3220 = vpop.f32.mrf.mxu0
      %v3221 = vadd.f32 %v3132, %v3220
      %3222 = vmatmul.bf16.gmra.mxu0 %v2356
      %v3223 = vpop.f32.mrf.mxu0
      %v3224 = vadd.f32 %v3135, %v3223
      %v3225 = vpop.f32.mrf.mxu0
      %v3226 = vadd.f32 %v3137, %v3225
      %3227 = vmatmul.bf16.gmra.mxu0 %v2359
      %v3228 = vpop.f32.mrf.mxu0
      %v3229 = vadd.f32 %v3140, %v3228
      %v3230 = vpop.f32.mrf.mxu0
      %v3231 = vadd.f32 %v3142, %v3230
      %3232 = vmatmul.bf16.gmra.mxu0 %v2362
      %v3233 = vpop.f32.mrf.mxu0
      %v3234 = vadd.f32 %v3145, %v3233
      %v3235 = vpop.f32.mrf.mxu0
      %v3236 = vadd.f32 %v3147, %v3235
      %3237 = vmatmul.bf16.gmra.mxu0 %v2365
      %v3238 = vpop.f32.mrf.mxu0
      %v3239 = vadd.f32 %v3150, %v3238
      %v3240 = vpop.f32.mrf.mxu0
      %v3241 = vadd.f32 %v3152, %v3240
      %3242 = vmatmul.bf16.gmra.mxu0 %v2368
      %v3243 = vpop.f32.mrf.mxu0
      %v3244 = vadd.f32 %v3155, %v3243
      %v3245 = vpop.f32.mrf.mxu0
      %v3246 = vadd.f32 %v3157, %v3245
      %3247 = vmatmul.bf16.gmra.mxu0 %v2371
      %v3248 = vpop.f32.mrf.mxu0
      %v3249 = vadd.f32 %v3160, %v3248
      %v3250 = vpop.f32.mrf.mxu0
      %v3251 = vadd.f32 %v3162, %v3250
      %3252 = vmatmul.bf16.gmra.mxu0 %v2374
      %v3253 = vpop.f32.mrf.mxu0
      %v3254 = vadd.f32 %v3165, %v3253
      %v3255 = vpop.f32.mrf.mxu0
      %v3256 = vadd.f32 %v3167, %v3255
      %3257 = vmatmul.bf16.gmra.mxu0 %v2377
      %v3258 = vpop.f32.mrf.mxu0
      %v3259 = vadd.f32 %v3170, %v3258
      %v3260 = vpop.f32.mrf.mxu0
      %v3261 = vadd.f32 %v3172, %v3260
      %3262 = vmatmul.bf16.gmra.mxu0 %v2380
      %v3263 = vpop.f32.mrf.mxu0
      %v3264 = vadd.f32 %v3175, %v3263
      %v3265 = vpop.f32.mrf.mxu0
      %v3266 = vadd.f32 %v3177, %v3265
      %3267 = vmatmul.bf16.gmra.mxu0 %v2383
      %v3268 = vpop.f32.mrf.mxu0
      %v3269 = vadd.f32 %v3180, %v3268
      %v3270 = vpop.f32.mrf.mxu0
      %v3271 = vadd.f32 %v3182, %v3270
      %3272 = vdwg.mxu0
      %v3273 = vld [vmem:[#allocation4 + $0x30] sm:$0xff]
      %v3274 = vld [vmem:[#allocation4 + $0x38] sm:$0xf]
      %v3275 = vld [vmem:[#allocation4 + $0x3c] sm:$0xff]
      %v3276 = vld [vmem:[#allocation4 + $0x44] sm:$0xf]
      %v3277 = vld [vmem:[#allocation4 + $0x48] sm:$0xff]
      %v3278 = vld [vmem:[#allocation4 + $0x50] sm:$0xf]
      %v3279 = vld [vmem:[#allocation4 + $0x54] sm:$0xff]
      %v3280 = vld [vmem:[#allocation4 + $0x5c] sm:$0xf]
      %v3281 = vld [vmem:[#allocation4 + $0x60] sm:$0xff]
      %v3282 = vld [vmem:[#allocation4 + $0x68] sm:$0xf]
      %v3283 = vld [vmem:[#allocation4 + $0x6c] sm:$0xff]
      %v3284 = vld [vmem:[#allocation4 + $0x74] sm:$0xf]
      %v3285 = vld [vmem:[#allocation4 + $0x78] sm:$0xff]
      %v3286 = vld [vmem:[#allocation4 + $0x80] sm:$0xf]
      %v3287 = vld [vmem:[#allocation4 + $0x84] sm:$0xff]
      %v3288 = vld [vmem:[#allocation4 + $0x8c] sm:$0xf]
      %v3289 = vld [vmem:[#allocation4 + $0x90] sm:$0xff]
      %v3290 = vld [vmem:[#allocation4 + $0x98] sm:$0xf]
      %v3291 = vld [vmem:[#allocation4 + $0x9c] sm:$0xff]
      %v3292 = vld [vmem:[#allocation4 + $0xa4] sm:$0xf]
      %v3293 = vld [vmem:[#allocation4 + $0xa8] sm:$0xff]
      %v3294 = vld [vmem:[#allocation4 + $0xb0] sm:$0xf]
      %v3295 = vld [vmem:[#allocation4 + $0xb4] sm:$0xff]
      %v3296 = vld [vmem:[#allocation4 + $0xbc] sm:$0xf]
      %v3297 = vld [vmem:[#allocation4 + $0xc0] sm:$0xff]
      %v3298 = vld [vmem:[#allocation4 + $0xc8] sm:$0xf]
      %v3299 = vld [vmem:[#allocation4 + $0xcc] sm:$0xff]
      %v3300 = vld [vmem:[#allocation4 + $0xd4] sm:$0xf]
      %v3301 = vld [vmem:[#allocation4 + $0xd8] sm:$0xff]
      %v3302 = vld [vmem:[#allocation4 + $0xe0] sm:$0xf]
      %v3303 = vld [vmem:[#allocation4 + $0xe4] sm:$0xff]
      %v3304 = vld [vmem:[#allocation4 + $0xec] sm:$0xf]
      %v3305 = vld [vmem:[#allocation4 + $0xf0] sm:$0xff]
      %v3306 = vld [vmem:[#allocation4 + $0xf8] sm:$0xf]
      %v3307 = vld [vmem:[#allocation4 + $0xfc] sm:$0xff]
      %v3308 = vld [vmem:[#allocation4 + $0x104] sm:$0xf]
      %v3309 = vld [vmem:[#allocation4 + $0x108] sm:$0xff]
      %v3310 = vld [vmem:[#allocation4 + $0x110] sm:$0xf]
      %v3311 = vld [vmem:[#allocation4 + $0x114] sm:$0xff]
      %v3312 = vld [vmem:[#allocation4 + $0x11c] sm:$0xf]
      %v3313 = vld [vmem:[#allocation4 + $0x120] sm:$0xff]
      %v3314 = vld [vmem:[#allocation4 + $0x128] sm:$0xf]
      %v3315 = vld [vmem:[#allocation4 + $0x12c] sm:$0xff]
      %v3316 = vld [vmem:[#allocation4 + $0x134] sm:$0xf]
      %v3317 = vld [vmem:[#allocation4 + $0x138] sm:$0xff]
      %v3318 = vld [vmem:[#allocation4 + $0x140] sm:$0xf]
      %v3319 = vld [vmem:[#allocation4 + $0x144] sm:$0xff]
      %v3320 = vld [vmem:[#allocation4 + $0x14c] sm:$0xf]
      %v3321 = vld [vmem:[#allocation4 + $0x150] sm:$0xff]
      %v3322 = vld [vmem:[#allocation4 + $0x158] sm:$0xf]
      %v3323 = vld [vmem:[#allocation4 + $0x15c] sm:$0xff]
      %v3324 = vld [vmem:[#allocation4 + $0x164] sm:$0xf]
      %v3325 = vld [vmem:[#allocation4 + $0x168] sm:$0xff]
      %v3326 = vld [vmem:[#allocation4 + $0x170] sm:$0xf]
      %v3327 = vld [vmem:[#allocation4 + $0x174] sm:$0xff]
      %v3328 = vld [vmem:[#allocation4 + $0x17c] sm:$0xf]
      %v3329 = vld [vmem:[#allocation4 + $0x180] sm:$0xff]
      %v3330 = vld [vmem:[#allocation4 + $0x188] sm:$0xf]
      %v3331 = vld [vmem:[#allocation4 + $0x18c] sm:$0xff]
      %v3332 = vld [vmem:[#allocation4 + $0x194] sm:$0xf]
      %v3333 = vld [vmem:[#allocation4 + $0x198] sm:$0xff]
      %v3334 = vld [vmem:[#allocation4 + $0x1a0] sm:$0xf]
      %v3335 = vld [vmem:[#allocation4 + $0x1a4] sm:$0xff]
      %v3336 = vld [vmem:[#allocation4 + $0x1ac] sm:$0xf]
      %s3337 = scalar_lea.vmem %s2, 384
      %v3338 = vld [vmem:[%s3337] sm:$0xf]
      %v3339 = vld [vmem:[%s3337 + $0x4] sm:$0xf]
      %v3340 = vld [vmem:[%s3337 + $0x8] sm:$0xf]
      %v3341 = vld [vmem:[%s3337 + $0xc] sm:$0xf]
      %v3342 = vld [vmem:[%s3337 + $0x10] sm:$0xf]
      %v3343 = vld [vmem:[%s3337 + $0x14] sm:$0xf]
      %v3344 = vld [vmem:[%s3337 + $0x18] sm:$0xf]
      %v3345 = vld [vmem:[%s3337 + $0x1c] sm:$0xf]
      %v3346 = vld [vmem:[%s3337 + $0x20] sm:$0xf]
      %v3347 = vld [vmem:[%s3337 + $0x24] sm:$0xf]
      %v3348 = vld [vmem:[%s3337 + $0x28] sm:$0xf]
      %v3349 = vld [vmem:[%s3337 + $0x2c] sm:$0xf]
      %v3350 = vld [vmem:[%s3337 + $0x30] sm:$0xf]
      %v3351 = vld [vmem:[%s3337 + $0x34] sm:$0xf]
      %v3352 = vld [vmem:[%s3337 + $0x38] sm:$0xf]
      %v3353 = vld [vmem:[%s3337 + $0x3c] sm:$0xf]
      %v3354 = vld [vmem:[%s3337 + $0x40] sm:$0xf]
      %v3355 = vld [vmem:[%s3337 + $0x44] sm:$0xf]
      %v3356 = vld [vmem:[%s3337 + $0x48] sm:$0xf]
      %v3357 = vld [vmem:[%s3337 + $0x4c] sm:$0xf]
      %v3358 = vld [vmem:[%s3337 + $0x50] sm:$0xf]
      %v3359 = vld [vmem:[%s3337 + $0x54] sm:$0xf]
      %v3360 = vld [vmem:[%s3337 + $0x58] sm:$0xf]
      %v3361 = vld [vmem:[%s3337 + $0x5c] sm:$0xf]
      %v3362 = vld [vmem:[%s3337 + $0x60] sm:$0xf]
      %v3363 = vld [vmem:[%s3337 + $0x64] sm:$0xf]
      %v3364 = vld [vmem:[%s3337 + $0x68] sm:$0xf]
      %v3365 = vld [vmem:[%s3337 + $0x6c] sm:$0xf]
      %v3366 = vld [vmem:[%s3337 + $0x70] sm:$0xf]
      %v3367 = vld [vmem:[%s3337 + $0x74] sm:$0xf]
      %v3368 = vld [vmem:[%s3337 + $0x78] sm:$0xf]
      %v3369 = vld [vmem:[%s3337 + $0x7c] sm:$0xf]
      %v3370 = vld [vmem:[%s3337 + $0x80] sm:$0xf]
      %v3371 = vld [vmem:[%s3337 + $0x84] sm:$0xf]
      %v3372 = vld [vmem:[%s3337 + $0x88] sm:$0xf]
      %v3373 = vld [vmem:[%s3337 + $0x8c] sm:$0xf]
      %v3374 = vld [vmem:[%s3337 + $0x90] sm:$0xf]
      %v3375 = vld [vmem:[%s3337 + $0x94] sm:$0xf]
      %v3376 = vld [vmem:[%s3337 + $0x98] sm:$0xf]
      %v3377 = vld [vmem:[%s3337 + $0x9c] sm:$0xf]
      %v3378 = vld [vmem:[%s3337 + $0xa0] sm:$0xf]
      %v3379 = vld [vmem:[%s3337 + $0xa4] sm:$0xf]
      %v3380 = vld [vmem:[%s3337 + $0xa8] sm:$0xf]
      %v3381 = vld [vmem:[%s3337 + $0xac] sm:$0xf]
      %v3382 = vld [vmem:[%s3337 + $0xb0] sm:$0xf]
      %v3383 = vld [vmem:[%s3337 + $0xb4] sm:$0xf]
      %v3384 = vld [vmem:[%s3337 + $0xb8] sm:$0xf]
      %v3385 = vld [vmem:[%s3337 + $0xbc] sm:$0xf]
      %v3450 = vunpack.c.l.b16 %v3273
      %v3451 = vunpack.c.h.b16 %v3273
      %v3452 = vunpack.c.l.b16 %v3274
      %v3453 = vunpack.c.l.b16 %v3275
      %v3454 = vunpack.c.h.b16 %v3275
      %v3455 = vunpack.c.l.b16 %v3276
      %v3456 = vunpack.c.l.b16 %v3277
      %v3457 = vunpack.c.h.b16 %v3277
      %v3458 = vunpack.c.l.b16 %v3278
      %v3459 = vunpack.c.l.b16 %v3279
      %v3460 = vunpack.c.h.b16 %v3279
      %v3461 = vunpack.c.l.b16 %v3280
      %v3462 = vunpack.c.l.b16 %v3281
      %v3463 = vunpack.c.h.b16 %v3281
      %v3464 = vunpack.c.l.b16 %v3282
      %v3465 = vunpack.c.l.b16 %v3283
      %v3466 = vunpack.c.h.b16 %v3283
      %v3467 = vunpack.c.l.b16 %v3284
      %v3468 = vunpack.c.l.b16 %v3285
      %v3469 = vunpack.c.h.b16 %v3285
      %v3470 = vunpack.c.l.b16 %v3286
      %v3471 = vunpack.c.l.b16 %v3287
      %v3472 = vunpack.c.h.b16 %v3287
      %v3473 = vunpack.c.l.b16 %v3288
      %v3474 = vunpack.c.l.b16 %v3289
      %v3475 = vunpack.c.h.b16 %v3289
      %v3476 = vunpack.c.l.b16 %v3290
      %v3477 = vunpack.c.l.b16 %v3291
      %v3478 = vunpack.c.h.b16 %v3291
      %v3479 = vunpack.c.l.b16 %v3292
      %v3480 = vunpack.c.l.b16 %v3293
      %v3481 = vunpack.c.h.b16 %v3293
      %v3482 = vunpack.c.l.b16 %v3294
      %v3483 = vunpack.c.l.b16 %v3295
      %v3484 = vunpack.c.h.b16 %v3295
      %v3485 = vunpack.c.l.b16 %v3296
      %v3486 = vunpack.c.l.b16 %v3297
      %v3487 = vunpack.c.h.b16 %v3297
      %v3488 = vunpack.c.l.b16 %v3298
      %v3489 = vunpack.c.l.b16 %v3299
      %v3490 = vunpack.c.h.b16 %v3299
      %v3491 = vunpack.c.l.b16 %v3300
      %v3492 = vunpack.c.l.b16 %v3301
      %v3493 = vunpack.c.h.b16 %v3301
      %v3494 = vunpack.c.l.b16 %v3302
      %v3495 = vunpack.c.l.b16 %v3303
      %v3496 = vunpack.c.h.b16 %v3303
      %v3497 = vunpack.c.l.b16 %v3304
      %v3498 = vunpack.c.l.b16 %v3305
      %v3499 = vunpack.c.h.b16 %v3305
      %v3500 = vunpack.c.l.b16 %v3306
      %v3501 = vunpack.c.l.b16 %v3307
      %v3502 = vunpack.c.h.b16 %v3307
      %v3503 = vunpack.c.l.b16 %v3308
      %v3504 = vunpack.c.l.b16 %v3309
      %v3505 = vunpack.c.h.b16 %v3309
      %v3506 = vunpack.c.l.b16 %v3310
      %v3507 = vunpack.c.l.b16 %v3311
      %v3508 = vunpack.c.h.b16 %v3311
      %v3509 = vunpack.c.l.b16 %v3312
      %v3510 = vunpack.c.l.b16 %v3313
      %v3511 = vunpack.c.h.b16 %v3313
      %v3512 = vunpack.c.l.b16 %v3314
      %v3513 = vunpack.c.l.b16 %v3315
      %v3514 = vunpack.c.h.b16 %v3315
      %v3515 = vunpack.c.l.b16 %v3316
      %v3516 = vunpack.c.l.b16 %v3317
      %v3517 = vunpack.c.h.b16 %v3317
      %v3518 = vunpack.c.l.b16 %v3318
      %v3519 = vunpack.c.l.b16 %v3319
      %v3520 = vunpack.c.h.b16 %v3319
      %v3521 = vunpack.c.l.b16 %v3320
      %v3522 = vunpack.c.l.b16 %v3321
      %v3523 = vunpack.c.h.b16 %v3321
      %v3524 = vunpack.c.l.b16 %v3322
      %v3525 = vunpack.c.l.b16 %v3323
      %v3526 = vunpack.c.h.b16 %v3323
      %v3527 = vunpack.c.l.b16 %v3324
      %v3528 = vunpack.c.l.b16 %v3325
      %v3529 = vunpack.c.h.b16 %v3325
      %v3530 = vunpack.c.l.b16 %v3326
      %v3531 = vunpack.c.l.b16 %v3327
      %v3532 = vunpack.c.h.b16 %v3327
      %v3533 = vunpack.c.l.b16 %v3328
      %v3534 = vunpack.c.l.b16 %v3329
      %v3535 = vunpack.c.h.b16 %v3329
      %v3536 = vunpack.c.l.b16 %v3330
      %v3537 = vunpack.c.l.b16 %v3331
      %v3538 = vunpack.c.h.b16 %v3331
      %v3539 = vunpack.c.l.b16 %v3332
      %v3540 = vunpack.c.l.b16 %v3333
      %v3541 = vunpack.c.h.b16 %v3333
      %v3542 = vunpack.c.l.b16 %v3334
      %v3543 = vunpack.c.l.b16 %v3335
      %v3544 = vunpack.c.h.b16 %v3335
      %v3545 = vunpack.c.l.b16 %v3336
      %v3546 = vpack.c.b16 %v3453, %v3450
      %v3547 = vpack.c.b16 %v3454, %v3451
      %v3548 = vpack.c.b16 %v3455, %v3452
      %v3549 = vpack.c.b16 %v3459, %v3456
      %v3550 = vpack.c.b16 %v3460, %v3457
      %v3551 = vpack.c.b16 %v3461, %v3458
      %v3552 = vpack.c.b16 %v3465, %v3462
      %v3553 = vpack.c.b16 %v3466, %v3463
      %v3554 = vpack.c.b16 %v3467, %v3464
      %v3555 = vpack.c.b16 %v3471, %v3468
      %v3556 = vpack.c.b16 %v3472, %v3469
      %v3557 = vpack.c.b16 %v3473, %v3470
      %v3558 = vpack.c.b16 %v3477, %v3474
      %v3559 = vpack.c.b16 %v3478, %v3475
      %v3560 = vpack.c.b16 %v3479, %v3476
      %v3561 = vpack.c.b16 %v3483, %v3480
      %v3562 = vpack.c.b16 %v3484, %v3481
      %v3563 = vpack.c.b16 %v3485, %v3482
      %v3564 = vpack.c.b16 %v3489, %v3486
      %v3565 = vpack.c.b16 %v3490, %v3487
      %v3566 = vpack.c.b16 %v3491, %v3488
      %v3567 = vpack.c.b16 %v3495, %v3492
      %v3568 = vpack.c.b16 %v3496, %v3493
      %v3569 = vpack.c.b16 %v3497, %v3494
      %v3570 = vpack.c.b16 %v3501, %v3498
      %v3571 = vpack.c.b16 %v3502, %v3499
      %v3572 = vpack.c.b16 %v3503, %v3500
      %v3573 = vpack.c.b16 %v3507, %v3504
      %v3574 = vpack.c.b16 %v3508, %v3505
      %v3575 = vpack.c.b16 %v3509, %v3506
      %v3576 = vpack.c.b16 %v3513, %v3510
      %v3577 = vpack.c.b16 %v3514, %v3511
      %v3578 = vpack.c.b16 %v3515, %v3512
      %v3579 = vpack.c.b16 %v3519, %v3516
      %v3580 = vpack.c.b16 %v3520, %v3517
      %v3581 = vpack.c.b16 %v3521, %v3518
      %v3582 = vpack.c.b16 %v3525, %v3522
      %v3583 = vpack.c.b16 %v3526, %v3523
      %v3584 = vpack.c.b16 %v3527, %v3524
      %v3585 = vpack.c.b16 %v3531, %v3528
      %v3586 = vpack.c.b16 %v3532, %v3529
      %v3587 = vpack.c.b16 %v3533, %v3530
      %v3588 = vpack.c.b16 %v3537, %v3534
      %v3589 = vpack.c.b16 %v3538, %v3535
      %v3590 = vpack.c.b16 %v3539, %v3536
      %v3591 = vpack.c.b16 %v3543, %v3540
      %v3592 = vpack.c.b16 %v3544, %v3541
      %v3593 = vpack.c.b16 %v3545, %v3542
      %v3690 = vunpack.c.l.b16 %v3338
      %v3691 = vunpack.c.l.b16 %v3339
      %v3692 = vunpack.c.l.b16 %v3340
      %v3693 = vunpack.c.l.b16 %v3341
      %v3694 = vunpack.c.l.b16 %v3342
      %v3695 = vunpack.c.l.b16 %v3343
      %v3696 = vunpack.c.l.b16 %v3344
      %v3697 = vunpack.c.l.b16 %v3345
      %v3698 = vunpack.c.l.b16 %v3346
      %v3699 = vunpack.c.l.b16 %v3347
      %v3700 = vunpack.c.l.b16 %v3348
      %v3701 = vunpack.c.l.b16 %v3349
      %v3702 = vunpack.c.l.b16 %v3350
      %v3703 = vunpack.c.l.b16 %v3351
      %v3704 = vunpack.c.l.b16 %v3352
      %v3705 = vunpack.c.l.b16 %v3353
      %v3706 = vunpack.c.l.b16 %v3354
      %v3707 = vunpack.c.l.b16 %v3355
      %v3708 = vunpack.c.l.b16 %v3356
      %v3709 = vunpack.c.l.b16 %v3357
      %v3710 = vunpack.c.l.b16 %v3358
      %v3711 = vunpack.c.l.b16 %v3359
      %v3712 = vunpack.c.l.b16 %v3360
      %v3713 = vunpack.c.l.b16 %v3361
      %v3714 = vunpack.c.l.b16 %v3362
      %v3715 = vunpack.c.l.b16 %v3363
      %v3716 = vunpack.c.l.b16 %v3364
      %v3717 = vunpack.c.l.b16 %v3365
      %v3718 = vunpack.c.l.b16 %v3366
      %v3719 = vunpack.c.l.b16 %v3367
      %v3720 = vunpack.c.l.b16 %v3368
      %v3721 = vunpack.c.l.b16 %v3369
      %v3722 = vunpack.c.l.b16 %v3370
      %v3723 = vunpack.c.l.b16 %v3371
      %v3724 = vunpack.c.l.b16 %v3372
      %v3725 = vunpack.c.l.b16 %v3373
      %v3726 = vunpack.c.l.b16 %v3374
      %v3727 = vunpack.c.l.b16 %v3375
      %v3728 = vunpack.c.l.b16 %v3376
      %v3729 = vunpack.c.l.b16 %v3377
      %v3730 = vunpack.c.l.b16 %v3378
      %v3731 = vunpack.c.l.b16 %v3379
      %v3732 = vunpack.c.l.b16 %v3380
      %v3733 = vunpack.c.l.b16 %v3381
      %v3734 = vunpack.c.l.b16 %v3382
      %v3735 = vunpack.c.l.b16 %v3383
      %v3736 = vunpack.c.l.b16 %v3384
      %v3737 = vunpack.c.l.b16 %v3385
      %v3738 = vpack.c.b16 %v3691, %v3690
      %v3739 = vpack.c.b16 %v3693, %v3692
      %v3740 = vpack.c.b16 %v3695, %v3694
      %v3741 = vpack.c.b16 %v3697, %v3696
      %v3742 = vpack.c.b16 %v3699, %v3698
      %v3743 = vpack.c.b16 %v3701, %v3700
      %v3744 = vpack.c.b16 %v3703, %v3702
      %v3745 = vpack.c.b16 %v3705, %v3704
      %v3746 = vpack.c.b16 %v3707, %v3706
      %v3747 = vpack.c.b16 %v3709, %v3708
      %v3748 = vpack.c.b16 %v3711, %v3710
      %v3749 = vpack.c.b16 %v3713, %v3712
      %v3750 = vpack.c.b16 %v3715, %v3714
      %v3751 = vpack.c.b16 %v3717, %v3716
      %v3752 = vpack.c.b16 %v3719, %v3718
      %v3753 = vpack.c.b16 %v3721, %v3720
      %v3754 = vpack.c.b16 %v3723, %v3722
      %v3755 = vpack.c.b16 %v3725, %v3724
      %v3756 = vpack.c.b16 %v3727, %v3726
      %v3757 = vpack.c.b16 %v3729, %v3728
      %v3758 = vpack.c.b16 %v3731, %v3730
      %v3759 = vpack.c.b16 %v3733, %v3732
      %v3760 = vpack.c.b16 %v3735, %v3734
      %v3761 = vpack.c.b16 %v3737, %v3736
      %3786 = vmatpush.bf16.msra.mxu0 %v3745
      %3787 = vmatpush.bf16.msra.mxu0 %v3744
      %3788 = vmatpush.bf16.msra.mxu0 %v3743
      %3789 = vmatpush.bf16.msra.mxu0 %v3742
      %3790 = vmatpush.bf16.msra.mxu0 %v3741
      %3791 = vmatpush.bf16.msra.mxu0 %v3740
      %3792 = vmatpush.bf16.msra.mxu0 %v3739
      %3793 = vmatpush.bf16.msra.mxu0 %v3738
      %3794 = vmatmul.bf16.gmra.mxu0 %v3546
      %v3795 = vpop.f32.mrf.mxu0
      %v3796 = vadd.f32 0.0, %v3795
      %v3797 = vpop.f32.mrf.mxu0
      %v3798 = vadd.f32 0.0, %v3797
      %3799 = vmatmul.bf16.gmra.mxu0 %v3549
      %v3800 = vpop.f32.mrf.mxu0
      %v3801 = vadd.f32 0.0, %v3800
      %v3802 = vpop.f32.mrf.mxu0
      %v3803 = vadd.f32 0.0, %v3802
      %3804 = vmatmul.bf16.gmra.mxu0 %v3552
      %v3805 = vpop.f32.mrf.mxu0
      %v3806 = vadd.f32 0.0, %v3805
      %v3807 = vpop.f32.mrf.mxu0
      %v3808 = vadd.f32 0.0, %v3807
      %3809 = vmatmul.bf16.gmra.mxu0 %v3555
      %v3810 = vpop.f32.mrf.mxu0
      %v3811 = vadd.f32 0.0, %v3810
      %v3812 = vpop.f32.mrf.mxu0
      %v3813 = vadd.f32 0.0, %v3812
      %3814 = vmatmul.bf16.gmra.mxu0 %v3558
      %v3815 = vpop.f32.mrf.mxu0
      %v3816 = vadd.f32 0.0, %v3815
      %v3817 = vpop.f32.mrf.mxu0
      %v3818 = vadd.f32 0.0, %v3817
      %3819 = vmatmul.bf16.gmra.mxu0 %v3561
      %v3820 = vpop.f32.mrf.mxu0
      %v3821 = vadd.f32 0.0, %v3820
      %v3822 = vpop.f32.mrf.mxu0
      %v3823 = vadd.f32 0.0, %v3822
      %3824 = vmatmul.bf16.gmra.mxu0 %v3564
      %v3825 = vpop.f32.mrf.mxu0
      %v3826 = vadd.f32 0.0, %v3825
      %v3827 = vpop.f32.mrf.mxu0
      %v3828 = vadd.f32 0.0, %v3827
      %3829 = vmatmul.bf16.gmra.mxu0 %v3567
      %v3830 = vpop.f32.mrf.mxu0
      %v3831 = vadd.f32 0.0, %v3830
      %v3832 = vpop.f32.mrf.mxu0
      %v3833 = vadd.f32 0.0, %v3832
      %3834 = vmatmul.bf16.gmra.mxu0 %v3570
      %v3835 = vpop.f32.mrf.mxu0
      %v3836 = vadd.f32 0.0, %v3835
      %v3837 = vpop.f32.mrf.mxu0
      %v3838 = vadd.f32 0.0, %v3837
      %3839 = vmatmul.bf16.gmra.mxu0 %v3573
      %v3840 = vpop.f32.mrf.mxu0
      %v3841 = vadd.f32 0.0, %v3840
      %v3842 = vpop.f32.mrf.mxu0
      %v3843 = vadd.f32 0.0, %v3842
      %3844 = vmatmul.bf16.gmra.mxu0 %v3576
      %v3845 = vpop.f32.mrf.mxu0
      %v3846 = vadd.f32 0.0, %v3845
      %v3847 = vpop.f32.mrf.mxu0
      %v3848 = vadd.f32 0.0, %v3847
      %3849 = vmatmul.bf16.gmra.mxu0 %v3579
      %v3850 = vpop.f32.mrf.mxu0
      %v3851 = vadd.f32 0.0, %v3850
      %v3852 = vpop.f32.mrf.mxu0
      %v3853 = vadd.f32 0.0, %v3852
      %3854 = vmatmul.bf16.gmra.mxu0 %v3582
      %v3855 = vpop.f32.mrf.mxu0
      %v3856 = vadd.f32 0.0, %v3855
      %v3857 = vpop.f32.mrf.mxu0
      %v3858 = vadd.f32 0.0, %v3857
      %3859 = vmatmul.bf16.gmra.mxu0 %v3585
      %v3860 = vpop.f32.mrf.mxu0
      %v3861 = vadd.f32 0.0, %v3860
      %v3862 = vpop.f32.mrf.mxu0
      %v3863 = vadd.f32 0.0, %v3862
      %3864 = vmatmul.bf16.gmra.mxu0 %v3588
      %v3865 = vpop.f32.mrf.mxu0
      %v3866 = vadd.f32 0.0, %v3865
      %v3867 = vpop.f32.mrf.mxu0
      %v3868 = vadd.f32 0.0, %v3867
      %3869 = vmatmul.bf16.gmra.mxu0 %v3591
      %v3870 = vpop.f32.mrf.mxu0
      %v3871 = vadd.f32 0.0, %v3870
      %v3872 = vpop.f32.mrf.mxu0
      %v3873 = vadd.f32 0.0, %v3872
      %3874 = vdwg.mxu0
      %3875 = vmatpush.bf16.msra.mxu0 %v3753
      %3876 = vmatpush.bf16.msra.mxu0 %v3752
      %3877 = vmatpush.bf16.msra.mxu0 %v3751
      %3878 = vmatpush.bf16.msra.mxu0 %v3750
      %3879 = vmatpush.bf16.msra.mxu0 %v3749
      %3880 = vmatpush.bf16.msra.mxu0 %v3748
      %3881 = vmatpush.bf16.msra.mxu0 %v3747
      %3882 = vmatpush.bf16.msra.mxu0 %v3746
      %3883 = vmatmul.bf16.gmra.mxu0 %v3547
      %v3884 = vpop.f32.mrf.mxu0
      %v3885 = vadd.f32 %v3796, %v3884
      %v3886 = vpop.f32.mrf.mxu0
      %v3887 = vadd.f32 %v3798, %v3886
      %3888 = vmatmul.bf16.gmra.mxu0 %v3550
      %v3889 = vpop.f32.mrf.mxu0
      %v3890 = vadd.f32 %v3801, %v3889
      %v3891 = vpop.f32.mrf.mxu0
      %v3892 = vadd.f32 %v3803, %v3891
      %3893 = vmatmul.bf16.gmra.mxu0 %v3553
      %v3894 = vpop.f32.mrf.mxu0
      %v3895 = vadd.f32 %v3806, %v3894
      %v3896 = vpop.f32.mrf.mxu0
      %v3897 = vadd.f32 %v3808, %v3896
      %3898 = vmatmul.bf16.gmra.mxu0 %v3556
      %v3899 = vpop.f32.mrf.mxu0
      %v3900 = vadd.f32 %v3811, %v3899
      %v3901 = vpop.f32.mrf.mxu0
      %v3902 = vadd.f32 %v3813, %v3901
      %3903 = vmatmul.bf16.gmra.mxu0 %v3559
      %v3904 = vpop.f32.mrf.mxu0
      %v3905 = vadd.f32 %v3816, %v3904
      %v3906 = vpop.f32.mrf.mxu0
      %v3907 = vadd.f32 %v3818, %v3906
      %3908 = vmatmul.bf16.gmra.mxu0 %v3562
      %v3909 = vpop.f32.mrf.mxu0
      %v3910 = vadd.f32 %v3821, %v3909
      %v3911 = vpop.f32.mrf.mxu0
      %v3912 = vadd.f32 %v3823, %v3911
      %3913 = vmatmul.bf16.gmra.mxu0 %v3565
      %v3914 = vpop.f32.mrf.mxu0
      %v3915 = vadd.f32 %v3826, %v3914
      %v3916 = vpop.f32.mrf.mxu0
      %v3917 = vadd.f32 %v3828, %v3916
      %3918 = vmatmul.bf16.gmra.mxu0 %v3568
      %v3919 = vpop.f32.mrf.mxu0
      %v3920 = vadd.f32 %v3831, %v3919
      %v3921 = vpop.f32.mrf.mxu0
      %v3922 = vadd.f32 %v3833, %v3921
      %3923 = vmatmul.bf16.gmra.mxu0 %v3571
      %v3924 = vpop.f32.mrf.mxu0
      %v3925 = vadd.f32 %v3836, %v3924
      %v3926 = vpop.f32.mrf.mxu0
      %v3927 = vadd.f32 %v3838, %v3926
      %3928 = vmatmul.bf16.gmra.mxu0 %v3574
      %v3929 = vpop.f32.mrf.mxu0
      %v3930 = vadd.f32 %v3841, %v3929
      %v3931 = vpop.f32.mrf.mxu0
      %v3932 = vadd.f32 %v3843, %v3931
      %3933 = vmatmul.bf16.gmra.mxu0 %v3577
      %v3934 = vpop.f32.mrf.mxu0
      %v3935 = vadd.f32 %v3846, %v3934
      %v3936 = vpop.f32.mrf.mxu0
      %v3937 = vadd.f32 %v3848, %v3936
      %3938 = vmatmul.bf16.gmra.mxu0 %v3580
      %v3939 = vpop.f32.mrf.mxu0
      %v3940 = vadd.f32 %v3851, %v3939
      %v3941 = vpop.f32.mrf.mxu0
      %v3942 = vadd.f32 %v3853, %v3941
      %3943 = vmatmul.bf16.gmra.mxu0 %v3583
      %v3944 = vpop.f32.mrf.mxu0
      %v3945 = vadd.f32 %v3856, %v3944
      %v3946 = vpop.f32.mrf.mxu0
      %v3947 = vadd.f32 %v3858, %v3946
      %3948 = vmatmul.bf16.gmra.mxu0 %v3586
      %v3949 = vpop.f32.mrf.mxu0
      %v3950 = vadd.f32 %v3861, %v3949
      %v3951 = vpop.f32.mrf.mxu0
      %v3952 = vadd.f32 %v3863, %v3951
      %3953 = vmatmul.bf16.gmra.mxu0 %v3589
      %v3954 = vpop.f32.mrf.mxu0
      %v3955 = vadd.f32 %v3866, %v3954
      %v3956 = vpop.f32.mrf.mxu0
      %v3957 = vadd.f32 %v3868, %v3956
      %3958 = vmatmul.bf16.gmra.mxu0 %v3592
      %v3959 = vpop.f32.mrf.mxu0
      %v3960 = vadd.f32 %v3871, %v3959
      %v3961 = vpop.f32.mrf.mxu0
      %v3962 = vadd.f32 %v3873, %v3961
      %3963 = vdwg.mxu0
      %3964 = vmatpush.bf16.msra.mxu0 %v3761
      %3965 = vmatpush.bf16.msra.mxu0 %v3760
      %3966 = vmatpush.bf16.msra.mxu0 %v3759
      %3967 = vmatpush.bf16.msra.mxu0 %v3758
      %3968 = vmatpush.bf16.msra.mxu0 %v3757
      %3969 = vmatpush.bf16.msra.mxu0 %v3756
      %3970 = vmatpush.bf16.msra.mxu0 %v3755
      %3971 = vmatpush.bf16.msra.mxu0 %v3754
      %3972 = vmatmul.bf16.gmra.mxu0 %v3548
      %v3973 = vpop.f32.mrf.mxu0
      %v3974 = vadd.f32 %v3885, %v3973
      %v3975 = vpop.f32.mrf.mxu0
      %v3976 = vadd.f32 %v3887, %v3975
      %3977 = vmatmul.bf16.gmra.mxu0 %v3551
      %v3978 = vpop.f32.mrf.mxu0
      %v3979 = vadd.f32 %v3890, %v3978
      %v3980 = vpop.f32.mrf.mxu0
      %v3981 = vadd.f32 %v3892, %v3980
      %3982 = vmatmul.bf16.gmra.mxu0 %v3554
      %v3983 = vpop.f32.mrf.mxu0
      %v3984 = vadd.f32 %v3895, %v3983
      %v3985 = vpop.f32.mrf.mxu0
      %v3986 = vadd.f32 %v3897, %v3985
      %3987 = vmatmul.bf16.gmra.mxu0 %v3557
      %v3988 = vpop.f32.mrf.mxu0
      %v3989 = vadd.f32 %v3900, %v3988
      %v3990 = vpop.f32.mrf.mxu0
      %v3991 = vadd.f32 %v3902, %v3990
      %3992 = vmatmul.bf16.gmra.mxu0 %v3560
      %v3993 = vpop.f32.mrf.mxu0
      %v3994 = vadd.f32 %v3905, %v3993
      %v3995 = vpop.f32.mrf.mxu0
      %v3996 = vadd.f32 %v3907, %v3995
      %3997 = vmatmul.bf16.gmra.mxu0 %v3563
      %v3998 = vpop.f32.mrf.mxu0
      %v3999 = vadd.f32 %v3910, %v3998
      %v4000 = vpop.f32.mrf.mxu0
      %v4001 = vadd.f32 %v3912, %v4000
      %4002 = vmatmul.bf16.gmra.mxu0 %v3566
      %v4003 = vpop.f32.mrf.mxu0
      %v4004 = vadd.f32 %v3915, %v4003
      %v4005 = vpop.f32.mrf.mxu0
      %v4006 = vadd.f32 %v3917, %v4005
      %4007 = vmatmul.bf16.gmra.mxu0 %v3569
      %v4008 = vpop.f32.mrf.mxu0
      %v4009 = vadd.f32 %v3920, %v4008
      %v4010 = vpop.f32.mrf.mxu0
      %v4011 = vadd.f32 %v3922, %v4010
      %4012 = vmatmul.bf16.gmra.mxu0 %v3572
      %v4013 = vpop.f32.mrf.mxu0
      %v4014 = vadd.f32 %v3925, %v4013
      %v4015 = vpop.f32.mrf.mxu0
      %v4016 = vadd.f32 %v3927, %v4015
      %4017 = vmatmul.bf16.gmra.mxu0 %v3575
      %v4018 = vpop.f32.mrf.mxu0
      %v4019 = vadd.f32 %v3930, %v4018
      %v4020 = vpop.f32.mrf.mxu0
      %v4021 = vadd.f32 %v3932, %v4020
      %4022 = vmatmul.bf16.gmra.mxu0 %v3578
      %v4023 = vpop.f32.mrf.mxu0
      %v4024 = vadd.f32 %v3935, %v4023
      %v4025 = vpop.f32.mrf.mxu0
      %v4026 = vadd.f32 %v3937, %v4025
      %4027 = vmatmul.bf16.gmra.mxu0 %v3581
      %v4028 = vpop.f32.mrf.mxu0
      %v4029 = vadd.f32 %v3940, %v4028
      %v4030 = vpop.f32.mrf.mxu0
      %v4031 = vadd.f32 %v3942, %v4030
      %4032 = vmatmul.bf16.gmra.mxu0 %v3584
      %v4033 = vpop.f32.mrf.mxu0
      %v4034 = vadd.f32 %v3945, %v4033
      %v4035 = vpop.f32.mrf.mxu0
      %v4036 = vadd.f32 %v3947, %v4035
      %4037 = vmatmul.bf16.gmra.mxu0 %v3587
      %v4038 = vpop.f32.mrf.mxu0
      %v4039 = vadd.f32 %v3950, %v4038
      %v4040 = vpop.f32.mrf.mxu0
      %v4041 = vadd.f32 %v3952, %v4040
      %4042 = vmatmul.bf16.gmra.mxu0 %v3590
      %v4043 = vpop.f32.mrf.mxu0
      %v4044 = vadd.f32 %v3955, %v4043
      %v4045 = vpop.f32.mrf.mxu0
      %v4046 = vadd.f32 %v3957, %v4045
      %4047 = vmatmul.bf16.gmra.mxu0 %v3593
      %v4048 = vpop.f32.mrf.mxu0
      %v4049 = vadd.f32 %v3960, %v4048
      %v4050 = vpop.f32.mrf.mxu0
      %v4051 = vadd.f32 %v3962, %v4050
      %4052 = vdwg.mxu0
      %v4053 = vadd.f32 %v3194, %v3974
      %v4054 = vadd.f32 %v3196, %v3976
      %v4055 = vadd.f32 %v3199, %v3979
      %v4056 = vadd.f32 %v3201, %v3981
      %v4057 = vadd.f32 %v3204, %v3984
      %v4058 = vadd.f32 %v3206, %v3986
      %v4059 = vadd.f32 %v3209, %v3989
      %v4060 = vadd.f32 %v3211, %v3991
      %v4061 = vadd.f32 %v3214, %v3994
      %v4062 = vadd.f32 %v3216, %v3996
      %v4063 = vadd.f32 %v3219, %v3999
      %v4064 = vadd.f32 %v3221, %v4001
      %v4065 = vadd.f32 %v3224, %v4004
      %v4066 = vadd.f32 %v3226, %v4006
      %v4067 = vadd.f32 %v3229, %v4009
      %v4068 = vadd.f32 %v3231, %v4011
      %v4069 = vadd.f32 %v3234, %v4014
      %v4070 = vadd.f32 %v3236, %v4016
      %v4071 = vadd.f32 %v3239, %v4019
      %v4072 = vadd.f32 %v3241, %v4021
      %v4073 = vadd.f32 %v3244, %v4024
      %v4074 = vadd.f32 %v3246, %v4026
      %v4075 = vadd.f32 %v3249, %v4029
      %v4076 = vadd.f32 %v3251, %v4031
      %v4077 = vadd.f32 %v3254, %v4034
      %v4078 = vadd.f32 %v3256, %v4036
      %v4079 = vadd.f32 %v3259, %v4039
      %v4080 = vadd.f32 %v3261, %v4041
      %v4081 = vadd.f32 %v3264, %v4044
      %v4082 = vadd.f32 %v3266, %v4046
      %v4083 = vadd.f32 %v3269, %v4049
      %v4084 = vadd.f32 %v3271, %v4051
      %v4085 = vld [vmem:[%s3] sm:$0x1]
      %v4087 = vperm.slane %v4085, 0
      %v4089 = vadd.f32 %v4053, %v4087
      %v4090 = vadd.f32 %v4054, %v4087
      %v4091 = vadd.f32 %v4055, %v4087
      %v4092 = vadd.f32 %v4056, %v4087
      %v4093 = vadd.f32 %v4057, %v4087
      %v4094 = vadd.f32 %v4058, %v4087
      %v4095 = vadd.f32 %v4059, %v4087
      %v4096 = vadd.f32 %v4060, %v4087
      %v4097 = vadd.f32 %v4061, %v4087
      %v4098 = vadd.f32 %v4062, %v4087
      %v4099 = vadd.f32 %v4063, %v4087
      %v4100 = vadd.f32 %v4064, %v4087
      %v4101 = vadd.f32 %v4065, %v4087
      %v4102 = vadd.f32 %v4066, %v4087
      %v4103 = vadd.f32 %v4067, %v4087
      %v4104 = vadd.f32 %v4068, %v4087
      %v4105 = vadd.f32 %v4069, %v4087
      %v4106 = vadd.f32 %v4070, %v4087
      %v4107 = vadd.f32 %v4071, %v4087
      %v4108 = vadd.f32 %v4072, %v4087
      %v4109 = vadd.f32 %v4073, %v4087
      %v4110 = vadd.f32 %v4074, %v4087
      %v4111 = vadd.f32 %v4075, %v4087
      %v4112 = vadd.f32 %v4076, %v4087
      %v4113 = vadd.f32 %v4077, %v4087
      %v4114 = vadd.f32 %v4078, %v4087
      %v4115 = vadd.f32 %v4079, %v4087
      %v4116 = vadd.f32 %v4080, %v4087
      %v4117 = vadd.f32 %v4081, %v4087
      %v4118 = vadd.f32 %v4082, %v4087
      %v4119 = vadd.f32 %v4083, %v4087
      %v4120 = vadd.f32 %v4084, %v4087
      %v4121 = vmax.f32 %v4089, 0.0
      %v4122 = vmax.f32 %v4090, 0.0
      %v4123 = vmax.f32 %v4091, 0.0
      %v4124 = vmax.f32 %v4092, 0.0
      %v4125 = vmax.f32 %v4093, 0.0
      %v4126 = vmax.f32 %v4094, 0.0
      %v4127 = vmax.f32 %v4095, 0.0
      %v4128 = vmax.f32 %v4096, 0.0
      %v4129 = vmax.f32 %v4097, 0.0
      %v4130 = vmax.f32 %v4098, 0.0
      %v4131 = vmax.f32 %v4099, 0.0
      %v4132 = vmax.f32 %v4100, 0.0
      %v4133 = vmax.f32 %v4101, 0.0
      %v4134 = vmax.f32 %v4102, 0.0
      %v4135 = vmax.f32 %v4103, 0.0
      %v4136 = vmax.f32 %v4104, 0.0
      %v4137 = vmax.f32 %v4105, 0.0
      %v4138 = vmax.f32 %v4106, 0.0
      %v4139 = vmax.f32 %v4107, 0.0
      %v4140 = vmax.f32 %v4108, 0.0
      %v4141 = vmax.f32 %v4109, 0.0
      %v4142 = vmax.f32 %v4110, 0.0
      %v4143 = vmax.f32 %v4111, 0.0
      %v4144 = vmax.f32 %v4112, 0.0
      %v4145 = vmax.f32 %v4113, 0.0
      %v4146 = vmax.f32 %v4114, 0.0
      %v4147 = vmax.f32 %v4115, 0.0
      %v4148 = vmax.f32 %v4116, 0.0
      %v4149 = vmax.f32 %v4117, 0.0
      %v4150 = vmax.f32 %v4118, 0.0
      %v4151 = vmax.f32 %v4119, 0.0
      %v4152 = vmax.f32 %v4120, 0.0
      %v4153 = vpack.c.bf16 %v4121, %v4121
      %v4154 = vpack.c.bf16 %v4122, %v4122
      %v4155 = vpack.c.bf16 %v4123, %v4123
      %v4156 = vpack.c.bf16 %v4124, %v4124
      %v4157 = vpack.c.bf16 %v4125, %v4125
      %v4158 = vpack.c.bf16 %v4126, %v4126
      %v4159 = vpack.c.bf16 %v4127, %v4127
      %v4160 = vpack.c.bf16 %v4128, %v4128
      %v4161 = vpack.c.bf16 %v4129, %v4129
      %v4162 = vpack.c.bf16 %v4130, %v4130
      %v4163 = vpack.c.bf16 %v4131, %v4131
      %v4164 = vpack.c.bf16 %v4132, %v4132
      %v4165 = vpack.c.bf16 %v4133, %v4133
      %v4166 = vpack.c.bf16 %v4134, %v4134
      %v4167 = vpack.c.bf16 %v4135, %v4135
      %v4168 = vpack.c.bf16 %v4136, %v4136
      %v4169 = vpack.c.bf16 %v4137, %v4137
      %v4170 = vpack.c.bf16 %v4138, %v4138
      %v4171 = vpack.c.bf16 %v4139, %v4139
      %v4172 = vpack.c.bf16 %v4140, %v4140
      %v4173 = vpack.c.bf16 %v4141, %v4141
      %v4174 = vpack.c.bf16 %v4142, %v4142
      %v4175 = vpack.c.bf16 %v4143, %v4143
      %v4176 = vpack.c.bf16 %v4144, %v4144
      %v4177 = vpack.c.bf16 %v4145, %v4145
      %v4178 = vpack.c.bf16 %v4146, %v4146
      %v4179 = vpack.c.bf16 %v4147, %v4147
      %v4180 = vpack.c.bf16 %v4148, %v4148
      %v4181 = vpack.c.bf16 %v4149, %v4149
      %v4182 = vpack.c.bf16 %v4150, %v4150
      %v4183 = vpack.c.bf16 %v4151, %v4151
      %v4184 = vpack.c.bf16 %v4152, %v4152
      %v4185 = vld [vmem:[#allocation5] sm:$0xff]
      %v4186 = vld [vmem:[#allocation5 + $0x8] sm:$0xff]
      %v4187 = vld [vmem:[#allocation5 + $0x10] sm:$0xff]
      %v4188 = vld [vmem:[#allocation5 + $0x18] sm:$0xff]
      %v4189 = vld [vmem:[#allocation5 + $0x20] sm:$0xff]
      %v4190 = vld [vmem:[#allocation5 + $0x28] sm:$0xff]
      %v4191 = vld [vmem:[#allocation5 + $0x30] sm:$0xff]
      %v4192 = vld [vmem:[#allocation5 + $0x38] sm:$0xff]
      %v4193 = vld [vmem:[#allocation5 + $0x40] sm:$0xff]
      %v4194 = vld [vmem:[#allocation5 + $0x48] sm:$0xff]
      %v4195 = vld [vmem:[#allocation5 + $0x50] sm:$0xff]
      %v4196 = vld [vmem:[#allocation5 + $0x58] sm:$0xff]
      %v4197 = vld [vmem:[#allocation5 + $0x60] sm:$0xff]
      %v4198 = vld [vmem:[#allocation5 + $0x68] sm:$0xff]
      %v4199 = vld [vmem:[#allocation5 + $0x70] sm:$0xff]
      %v4200 = vld [vmem:[#allocation5 + $0x78] sm:$0xff]
      %v4201 = vld [vmem:[#allocation5 + $0x80] sm:$0xff]
      %v4202 = vld [vmem:[#allocation5 + $0x88] sm:$0xff]
      %v4203 = vld [vmem:[#allocation5 + $0x90] sm:$0xff]
      %v4204 = vld [vmem:[#allocation5 + $0x98] sm:$0xff]
      %v4205 = vld [vmem:[#allocation5 + $0xa0] sm:$0xff]
      %v4206 = vld [vmem:[#allocation5 + $0xa8] sm:$0xff]
      %v4207 = vld [vmem:[#allocation5 + $0xb0] sm:$0xff]
      %v4208 = vld [vmem:[#allocation5 + $0xb8] sm:$0xff]
      %v4209 = vld [vmem:[#allocation5 + $0xc0] sm:$0xff]
      %v4210 = vld [vmem:[#allocation5 + $0xc8] sm:$0xff]
      %v4211 = vld [vmem:[#allocation5 + $0xd0] sm:$0xff]
      %v4212 = vld [vmem:[#allocation5 + $0xd8] sm:$0xff]
      %v4213 = vld [vmem:[#allocation5 + $0xe0] sm:$0xff]
      %v4214 = vld [vmem:[#allocation5 + $0xe8] sm:$0xff]
      %v4215 = vld [vmem:[#allocation5 + $0xf0] sm:$0xff]
      %v4216 = vld [vmem:[#allocation5 + $0xf8] sm:$0xff]
      %v4217 = vld [vmem:[%s4] sm:$0xf]
      %v4218 = vld [vmem:[%s4 + $0x4] sm:$0xf]
      %v4219 = vld [vmem:[%s4 + $0x8] sm:$0xf]
      %v4220 = vld [vmem:[%s4 + $0xc] sm:$0xf]
      %v4221 = vld [vmem:[%s4 + $0x10] sm:$0xf]
      %v4222 = vld [vmem:[%s4 + $0x14] sm:$0xf]
      %v4223 = vld [vmem:[%s4 + $0x18] sm:$0xf]
      %v4224 = vld [vmem:[%s4 + $0x1c] sm:$0xf]
      %v4225 = vld [vmem:[%s4 + $0x20] sm:$0xf]
      %v4226 = vld [vmem:[%s4 + $0x24] sm:$0xf]
      %v4227 = vld [vmem:[%s4 + $0x28] sm:$0xf]
      %v4228 = vld [vmem:[%s4 + $0x2c] sm:$0xf]
      %v4229 = vld [vmem:[%s4 + $0x30] sm:$0xf]
      %v4230 = vld [vmem:[%s4 + $0x34] sm:$0xf]
      %v4231 = vld [vmem:[%s4 + $0x38] sm:$0xf]
      %v4232 = vld [vmem:[%s4 + $0x3c] sm:$0xf]
      %v4265 = vunpack.c.l.b16 %v4153
      %v4266 = vunpack.c.l.b16 %v4154
      %v4267 = vunpack.c.l.b16 %v4155
      %v4268 = vunpack.c.l.b16 %v4156
      %v4269 = vunpack.c.l.b16 %v4157
      %v4270 = vunpack.c.l.b16 %v4158
      %v4271 = vunpack.c.l.b16 %v4159
      %v4272 = vunpack.c.l.b16 %v4160
      %v4273 = vunpack.c.l.b16 %v4161
      %v4274 = vunpack.c.l.b16 %v4162
      %v4275 = vunpack.c.l.b16 %v4163
      %v4276 = vunpack.c.l.b16 %v4164
      %v4277 = vunpack.c.l.b16 %v4165
      %v4278 = vunpack.c.l.b16 %v4166
      %v4279 = vunpack.c.l.b16 %v4167
      %v4280 = vunpack.c.l.b16 %v4168
      %v4281 = vunpack.c.l.b16 %v4169
      %v4282 = vunpack.c.l.b16 %v4170
      %v4283 = vunpack.c.l.b16 %v4171
      %v4284 = vunpack.c.l.b16 %v4172
      %v4285 = vunpack.c.l.b16 %v4173
      %v4286 = vunpack.c.l.b16 %v4174
      %v4287 = vunpack.c.l.b16 %v4175
      %v4288 = vunpack.c.l.b16 %v4176
      %v4289 = vunpack.c.l.b16 %v4177
      %v4290 = vunpack.c.l.b16 %v4178
      %v4291 = vunpack.c.l.b16 %v4179
      %v4292 = vunpack.c.l.b16 %v4180
      %v4293 = vunpack.c.l.b16 %v4181
      %v4294 = vunpack.c.l.b16 %v4182
      %v4295 = vunpack.c.l.b16 %v4183
      %v4296 = vunpack.c.l.b16 %v4184
      %v4297 = vpack.c.b16 %v4266, %v4265
      %v4298 = vpack.c.b16 %v4268, %v4267
      %v4299 = vpack.c.b16 %v4270, %v4269
      %v4300 = vpack.c.b16 %v4272, %v4271
      %v4301 = vpack.c.b16 %v4274, %v4273
      %v4302 = vpack.c.b16 %v4276, %v4275
      %v4303 = vpack.c.b16 %v4278, %v4277
      %v4304 = vpack.c.b16 %v4280, %v4279
      %v4305 = vpack.c.b16 %v4282, %v4281
      %v4306 = vpack.c.b16 %v4284, %v4283
      %v4307 = vpack.c.b16 %v4286, %v4285
      %v4308 = vpack.c.b16 %v4288, %v4287
      %v4309 = vpack.c.b16 %v4290, %v4289
      %v4310 = vpack.c.b16 %v4292, %v4291
      %v4311 = vpack.c.b16 %v4294, %v4293
      %v4312 = vpack.c.b16 %v4296, %v4295
      %v4345 = vunpack.c.l.b16 %v4217
      %v4346 = vunpack.c.l.b16 %v4218
      %v4347 = vunpack.c.l.b16 %v4219
      %v4348 = vunpack.c.l.b16 %v4220
      %v4349 = vunpack.c.l.b16 %v4221
      %v4350 = vunpack.c.l.b16 %v4222
      %v4351 = vunpack.c.l.b16 %v4223
      %v4352 = vunpack.c.l.b16 %v4224
      %v4353 = vunpack.c.l.b16 %v4225
      %v4354 = vunpack.c.l.b16 %v4226
      %v4355 = vunpack.c.l.b16 %v4227
      %v4356 = vunpack.c.l.b16 %v4228
      %v4357 = vunpack.c.l.b16 %v4229
      %v4358 = vunpack.c.l.b16 %v4230
      %v4359 = vunpack.c.l.b16 %v4231
      %v4360 = vunpack.c.l.b16 %v4232
      %v4361 = vpack.c.b16 %v4346, %v4345
      %v4362 = vpack.c.b16 %v4348, %v4347
      %v4363 = vpack.c.b16 %v4350, %v4349
      %v4364 = vpack.c.b16 %v4352, %v4351
      %v4365 = vpack.c.b16 %v4354, %v4353
      %v4366 = vpack.c.b16 %v4356, %v4355
      %v4367 = vpack.c.b16 %v4358, %v4357
      %v4368 = vpack.c.b16 %v4360, %v4359
      %4377 = vmatpush.bf16.msra.mxu0 %v4368
      %4378 = vmatpush.bf16.msra.mxu0 %v4367
      %4379 = vmatpush.bf16.msra.mxu0 %v4366
      %4380 = vmatpush.bf16.msra.mxu0 %v4365
      %4381 = vmatpush.bf16.msra.mxu0 %v4364
      %4382 = vmatpush.bf16.msra.mxu0 %v4363
      %4383 = vmatpush.bf16.msra.mxu0 %v4362
      %4384 = vmatpush.bf16.msra.mxu0 %v4361
      %4385 = vmatmul.bf16.gmra.mxu0 %v4297
      %v4386 = vpop.f32.mrf.mxu0
      %v4387 = vadd.f32 0.0, %v4386
      %v4388 = vpop.f32.mrf.mxu0
      %v4389 = vadd.f32 0.0, %v4388
      %4390 = vmatmul.bf16.gmra.mxu0 %v4298
      %v4391 = vpop.f32.mrf.mxu0
      %v4392 = vadd.f32 0.0, %v4391
      %v4393 = vpop.f32.mrf.mxu0
      %v4394 = vadd.f32 0.0, %v4393
      %4395 = vmatmul.bf16.gmra.mxu0 %v4299
      %v4396 = vpop.f32.mrf.mxu0
      %v4397 = vadd.f32 0.0, %v4396
      %v4398 = vpop.f32.mrf.mxu0
      %v4399 = vadd.f32 0.0, %v4398
      %4400 = vmatmul.bf16.gmra.mxu0 %v4300
      %v4401 = vpop.f32.mrf.mxu0
      %v4402 = vadd.f32 0.0, %v4401
      %v4403 = vpop.f32.mrf.mxu0
      %v4404 = vadd.f32 0.0, %v4403
      %4405 = vmatmul.bf16.gmra.mxu0 %v4301
      %v4406 = vpop.f32.mrf.mxu0
      %v4407 = vadd.f32 0.0, %v4406
      %v4408 = vpop.f32.mrf.mxu0
      %v4409 = vadd.f32 0.0, %v4408
      %4410 = vmatmul.bf16.gmra.mxu0 %v4302
      %v4411 = vpop.f32.mrf.mxu0
      %v4412 = vadd.f32 0.0, %v4411
      %v4413 = vpop.f32.mrf.mxu0
      %v4414 = vadd.f32 0.0, %v4413
      %4415 = vmatmul.bf16.gmra.mxu0 %v4303
      %v4416 = vpop.f32.mrf.mxu0
      %v4417 = vadd.f32 0.0, %v4416
      %v4418 = vpop.f32.mrf.mxu0
      %v4419 = vadd.f32 0.0, %v4418
      %4420 = vmatmul.bf16.gmra.mxu0 %v4304
      %v4421 = vpop.f32.mrf.mxu0
      %v4422 = vadd.f32 0.0, %v4421
      %v4423 = vpop.f32.mrf.mxu0
      %v4424 = vadd.f32 0.0, %v4423
      %4425 = vmatmul.bf16.gmra.mxu0 %v4305
      %v4426 = vpop.f32.mrf.mxu0
      %v4427 = vadd.f32 0.0, %v4426
      %v4428 = vpop.f32.mrf.mxu0
      %v4429 = vadd.f32 0.0, %v4428
      %4430 = vmatmul.bf16.gmra.mxu0 %v4306
      %v4431 = vpop.f32.mrf.mxu0
      %v4432 = vadd.f32 0.0, %v4431
      %v4433 = vpop.f32.mrf.mxu0
      %v4434 = vadd.f32 0.0, %v4433
      %4435 = vmatmul.bf16.gmra.mxu0 %v4307
      %v4436 = vpop.f32.mrf.mxu0
      %v4437 = vadd.f32 0.0, %v4436
      %v4438 = vpop.f32.mrf.mxu0
      %v4439 = vadd.f32 0.0, %v4438
      %4440 = vmatmul.bf16.gmra.mxu0 %v4308
      %v4441 = vpop.f32.mrf.mxu0
      %v4442 = vadd.f32 0.0, %v4441
      %v4443 = vpop.f32.mrf.mxu0
      %v4444 = vadd.f32 0.0, %v4443
      %4445 = vmatmul.bf16.gmra.mxu0 %v4309
      %v4446 = vpop.f32.mrf.mxu0
      %v4447 = vadd.f32 0.0, %v4446
      %v4448 = vpop.f32.mrf.mxu0
      %v4449 = vadd.f32 0.0, %v4448
      %4450 = vmatmul.bf16.gmra.mxu0 %v4310
      %v4451 = vpop.f32.mrf.mxu0
      %v4452 = vadd.f32 0.0, %v4451
      %v4453 = vpop.f32.mrf.mxu0
      %v4454 = vadd.f32 0.0, %v4453
      %4455 = vmatmul.bf16.gmra.mxu0 %v4311
      %v4456 = vpop.f32.mrf.mxu0
      %v4457 = vadd.f32 0.0, %v4456
      %v4458 = vpop.f32.mrf.mxu0
      %v4459 = vadd.f32 0.0, %v4458
      %4460 = vmatmul.bf16.gmra.mxu0 %v4312
      %v4461 = vpop.f32.mrf.mxu0
      %v4462 = vadd.f32 0.0, %v4461
      %v4463 = vpop.f32.mrf.mxu0
      %v4464 = vadd.f32 0.0, %v4463
      %4465 = vdwg.mxu0
      %v4466 = vadd.f32 %v4185, %v4387
      %v4467 = vadd.f32 %v4186, %v4389
      %v4468 = vadd.f32 %v4187, %v4392
      %v4469 = vadd.f32 %v4188, %v4394
      %v4470 = vadd.f32 %v4189, %v4397
      %v4471 = vadd.f32 %v4190, %v4399
      %v4472 = vadd.f32 %v4191, %v4402
      %v4473 = vadd.f32 %v4192, %v4404
      %v4474 = vadd.f32 %v4193, %v4407
      %v4475 = vadd.f32 %v4194, %v4409
      %v4476 = vadd.f32 %v4195, %v4412
      %v4477 = vadd.f32 %v4196, %v4414
      %v4478 = vadd.f32 %v4197, %v4417
      %v4479 = vadd.f32 %v4198, %v4419
      %v4480 = vadd.f32 %v4199, %v4422
      %v4481 = vadd.f32 %v4200, %v4424
      %v4482 = vadd.f32 %v4201, %v4427
      %v4483 = vadd.f32 %v4202, %v4429
      %v4484 = vadd.f32 %v4203, %v4432
      %v4485 = vadd.f32 %v4204, %v4434
      %v4486 = vadd.f32 %v4205, %v4437
      %v4487 = vadd.f32 %v4206, %v4439
      %v4488 = vadd.f32 %v4207, %v4442
      %v4489 = vadd.f32 %v4208, %v4444
      %v4490 = vadd.f32 %v4209, %v4447
      %v4491 = vadd.f32 %v4210, %v4449
      %v4492 = vadd.f32 %v4211, %v4452
      %v4493 = vadd.f32 %v4212, %v4454
      %v4494 = vadd.f32 %v4213, %v4457
      %v4495 = vadd.f32 %v4214, %v4459
      %v4496 = vadd.f32 %v4215, %v4462
      %v4497 = vadd.f32 %v4216, %v4464
      %4498 = vst [vmem:[#allocation5] sm:$0xff] %v4466
      %4499 = vst [vmem:[#allocation5 + $0x8] sm:$0xff] %v4467
      %4500 = vst [vmem:[#allocation5 + $0x10] sm:$0xff] %v4468
      %4501 = vst [vmem:[#allocation5 + $0x18] sm:$0xff] %v4469
      %4502 = vst [vmem:[#allocation5 + $0x20] sm:$0xff] %v4470
      %4503 = vst [vmem:[#allocation5 + $0x28] sm:$0xff] %v4471
      %4504 = vst [vmem:[#allocation5 + $0x30] sm:$0xff] %v4472
      %4505 = vst [vmem:[#allocation5 + $0x38] sm:$0xff] %v4473
      %4506 = vst [vmem:[#allocation5 + $0x40] sm:$0xff] %v4474
      %4507 = vst [vmem:[#allocation5 + $0x48] sm:$0xff] %v4475
      %4508 = vst [vmem:[#allocation5 + $0x50] sm:$0xff] %v4476
      %4509 = vst [vmem:[#allocation5 + $0x58] sm:$0xff] %v4477
      %4510 = vst [vmem:[#allocation5 + $0x60] sm:$0xff] %v4478
      %4511 = vst [vmem:[#allocation5 + $0x68] sm:$0xff] %v4479
      %4512 = vst [vmem:[#allocation5 + $0x70] sm:$0xff] %v4480
      %4513 = vst [vmem:[#allocation5 + $0x78] sm:$0xff] %v4481
      %4514 = vst [vmem:[#allocation5 + $0x80] sm:$0xff] %v4482
      %4515 = vst [vmem:[#allocation5 + $0x88] sm:$0xff] %v4483
      %4516 = vst [vmem:[#allocation5 + $0x90] sm:$0xff] %v4484
      %4517 = vst [vmem:[#allocation5 + $0x98] sm:$0xff] %v4485
      %4518 = vst [vmem:[#allocation5 + $0xa0] sm:$0xff] %v4486
      %4519 = vst [vmem:[#allocation5 + $0xa8] sm:$0xff] %v4487
      %4520 = vst [vmem:[#allocation5 + $0xb0] sm:$0xff] %v4488
      %4521 = vst [vmem:[#allocation5 + $0xb8] sm:$0xff] %v4489
      %4522 = vst [vmem:[#allocation5 + $0xc0] sm:$0xff] %v4490
      %4523 = vst [vmem:[#allocation5 + $0xc8] sm:$0xff] %v4491
      %4524 = vst [vmem:[#allocation5 + $0xd0] sm:$0xff] %v4492
      %4525 = vst [vmem:[#allocation5 + $0xd8] sm:$0xff] %v4493
      %4526 = vst [vmem:[#allocation5 + $0xe0] sm:$0xff] %v4494
      %4527 = vst [vmem:[#allocation5 + $0xe8] sm:$0xff] %v4495
      %4528 = vst [vmem:[#allocation5 + $0xf0] sm:$0xff] %v4496
      %4529 = vst [vmem:[#allocation5 + $0xf8] sm:$0xff] %v4497
      %4530 = vst [vmem:[#allocation3] sm:$0xf] 0
      %4531 = vst [vmem:[#allocation3 + $0x4] sm:$0xf] 0
      %4532 = vst [vmem:[#allocation3 + $0x8] sm:$0xf] 0
      %4533 = vst [vmem:[#allocation3 + $0xc] sm:$0xf] 0
      %s4534 = scalar_lea.vmem [#allocation3], 272
      %4535 = vst [vmem:[%s4534] sm:$0xf] 0
      %4536 = vst [vmem:[%s4534 + $0x4] sm:$0xf] 0
      %4537 = vst [vmem:[%s4534 + $0x8] sm:$0xf] 0
      %4538 = vst [vmem:[%s4534 + $0xc] sm:$0xf] 0
      %s4539 = scalar_lea.vmem [#allocation3], 16
      %4540 = vst [vmem:[%s4539] sm:$0xf] 0
      %4541 = vst [vmem:[%s4539 + $0x10] sm:$0xf] 0
      %4542 = vst [vmem:[%s4539 + $0x20] sm:$0xf] 0
      %4543 = vst [vmem:[%s4539 + $0x30] sm:$0xf] 0
      %4544 = vst [vmem:[%s4539 + $0x40] sm:$0xf] 0
      %4545 = vst [vmem:[%s4539 + $0x50] sm:$0xf] 0
      %4546 = vst [vmem:[%s4539 + $0x60] sm:$0xf] 0
      %4547 = vst [vmem:[%s4539 + $0x70] sm:$0xf] 0
      %4548 = vst [vmem:[%s4539 + $0x80] sm:$0xf] 0
      %4549 = vst [vmem:[%s4539 + $0x90] sm:$0xf] 0
      %4550 = vst [vmem:[%s4539 + $0xa0] sm:$0xf] 0
      %4551 = vst [vmem:[%s4539 + $0xb0] sm:$0xf] 0
      %4552 = vst [vmem:[%s4539 + $0xc0] sm:$0xf] 0
      %4553 = vst [vmem:[%s4539 + $0xd0] sm:$0xf] 0
      %4554 = vst [vmem:[%s4539 + $0xe0] sm:$0xf] 0
      %4555 = vst [vmem:[%s4539 + $0xf0] sm:$0xf] 0
      %4556 = vst [vmem:[%s4539 + $0xc] sm:$0xf] 0
      %4557 = vst [vmem:[%s4539 + $0x1c] sm:$0xf] 0
      %4558 = vst [vmem:[%s4539 + $0x2c] sm:$0xf] 0
      %4559 = vst [vmem:[%s4539 + $0x3c] sm:$0xf] 0
      %4560 = vst [vmem:[%s4539 + $0x4c] sm:$0xf] 0
      %4561 = vst [vmem:[%s4539 + $0x5c] sm:$0xf] 0
      %4562 = vst [vmem:[%s4539 + $0x6c] sm:$0xf] 0
      %4563 = vst [vmem:[%s4539 + $0x7c] sm:$0xf] 0
      %4564 = vst [vmem:[%s4539 + $0x8c] sm:$0xf] 0
      %4565 = vst [vmem:[%s4539 + $0x9c] sm:$0xf] 0
      %4566 = vst [vmem:[%s4539 + $0xac] sm:$0xf] 0
      %4567 = vst [vmem:[%s4539 + $0xbc] sm:$0xf] 0
      %4568 = vst [vmem:[%s4539 + $0xcc] sm:$0xf] 0
      %4569 = vst [vmem:[%s4539 + $0xdc] sm:$0xf] 0
      %4570 = vst [vmem:[%s4539 + $0xec] sm:$0xf] 0
      %4571 = vst [vmem:[%s4539 + $0xfc] sm:$0xf] 0
      %4572 = vst [vmem:[%s4539 + $0x4] sm:$0xf] %v4153
      %4573 = vst [vmem:[%s4539 + $0x8] sm:$0xf] %v4154
      %4574 = vst [vmem:[%s4539 + $0x14] sm:$0xf] %v4155
      %4575 = vst [vmem:[%s4539 + $0x18] sm:$0xf] %v4156
      %4576 = vst [vmem:[%s4539 + $0x24] sm:$0xf] %v4157
      %4577 = vst [vmem:[%s4539 + $0x28] sm:$0xf] %v4158
      %4578 = vst [vmem:[%s4539 + $0x34] sm:$0xf] %v4159
      %4579 = vst [vmem:[%s4539 + $0x38] sm:$0xf] %v4160
      %4580 = vst [vmem:[%s4539 + $0x44] sm:$0xf] %v4161
      %4581 = vst [vmem:[%s4539 + $0x48] sm:$0xf] %v4162
      %4582 = vst [vmem:[%s4539 + $0x54] sm:$0xf] %v4163
      %4583 = vst [vmem:[%s4539 + $0x58] sm:$0xf] %v4164
      %4584 = vst [vmem:[%s4539 + $0x64] sm:$0xf] %v4165
      %4585 = vst [vmem:[%s4539 + $0x68] sm:$0xf] %v4166
      %4586 = vst [vmem:[%s4539 + $0x74] sm:$0xf] %v4167
      %4587 = vst [vmem:[%s4539 + $0x78] sm:$0xf] %v4168
      %4588 = vst [vmem:[%s4539 + $0x84] sm:$0xf] %v4169
      %4589 = vst [vmem:[%s4539 + $0x88] sm:$0xf] %v4170
      %4590 = vst [vmem:[%s4539 + $0x94] sm:$0xf] %v4171
      %4591 = vst [vmem:[%s4539 + $0x98] sm:$0xf] %v4172
      %4592 = vst [vmem:[%s4539 + $0xa4] sm:$0xf] %v4173
      %4593 = vst [vmem:[%s4539 + $0xa8] sm:$0xf] %v4174
      %4594 = vst [vmem:[%s4539 + $0xb4] sm:$0xf] %v4175
      %4595 = vst [vmem:[%s4539 + $0xb8] sm:$0xf] %v4176
      %4596 = vst [vmem:[%s4539 + $0xc4] sm:$0xf] %v4177
      %4597 = vst [vmem:[%s4539 + $0xc8] sm:$0xf] %v4178
      %4598 = vst [vmem:[%s4539 + $0xd4] sm:$0xf] %v4179
      %4599 = vst [vmem:[%s4539 + $0xd8] sm:$0xf] %v4180
      %4600 = vst [vmem:[%s4539 + $0xe4] sm:$0xf] %v4181
      %4601 = vst [vmem:[%s4539 + $0xe8] sm:$0xf] %v4182
      %4602 = vst [vmem:[%s4539 + $0xf4] sm:$0xf] %v4183
      %4603 = vst [vmem:[%s4539 + $0xf8] sm:$0xf] %v4184
      %v4604 = vld [vmem:[#allocation3] sm:$0x8]
      %v4605 = vld [vmem:[#allocation3 + $0x4] sm:$0xf]
      %v4606 = vld [vmem:[#allocation3 + $0x8] sm:$0xf]
      %v4607 = vld [vmem:[#allocation3 + $0x10] sm:$0x8]
      %v4608 = vld [vmem:[#allocation3 + $0x14] sm:$0xf]
      %v4609 = vld [vmem:[#allocation3 + $0x18] sm:$0xf]
      %v4610 = vld [vmem:[#allocation3 + $0x20] sm:$0x8]
      %v4611 = vld [vmem:[#allocation3 + $0x24] sm:$0xf]
      %v4612 = vld [vmem:[#allocation3 + $0x28] sm:$0xf]
      %v4613 = vld [vmem:[#allocation3 + $0x30] sm:$0x8]
      %v4614 = vld [vmem:[#allocation3 + $0x34] sm:$0xf]
      %v4615 = vld [vmem:[#allocation3 + $0x38] sm:$0xf]
      %v4616 = vld [vmem:[#allocation3 + $0x40] sm:$0x8]
      %v4617 = vld [vmem:[#allocation3 + $0x44] sm:$0xf]
      %v4618 = vld [vmem:[#allocation3 + $0x48] sm:$0xf]
      %v4619 = vld [vmem:[#allocation3 + $0x50] sm:$0x8]
      %v4620 = vld [vmem:[#allocation3 + $0x54] sm:$0xf]
      %v4621 = vld [vmem:[#allocation3 + $0x58] sm:$0xf]
      %v4622 = vld [vmem:[#allocation3 + $0x60] sm:$0x8]
      %v4623 = vld [vmem:[#allocation3 + $0x64] sm:$0xf]
      %v4624 = vld [vmem:[#allocation3 + $0x68] sm:$0xf]
      %v4625 = vld [vmem:[#allocation3 + $0x70] sm:$0x8]
      %v4626 = vld [vmem:[#allocation3 + $0x74] sm:$0xf]
      %v4627 = vld [vmem:[#allocation3 + $0x78] sm:$0xf]
      %v4628 = vld [vmem:[#allocation3 + $0x80] sm:$0x8]
      %v4629 = vld [vmem:[#allocation3 + $0x84] sm:$0xf]
      %v4630 = vld [vmem:[#allocation3 + $0x88] sm:$0xf]
      %v4631 = vld [vmem:[#allocation3 + $0x90] sm:$0x8]
      %v4632 = vld [vmem:[#allocation3 + $0x94] sm:$0xf]
      %v4633 = vld [vmem:[#allocation3 + $0x98] sm:$0xf]
      %v4634 = vld [vmem:[#allocation3 + $0xa0] sm:$0x8]
      %v4635 = vld [vmem:[#allocation3 + $0xa4] sm:$0xf]
      %v4636 = vld [vmem:[#allocation3 + $0xa8] sm:$0xf]
      %v4637 = vld [vmem:[#allocation3 + $0xb0] sm:$0x8]
      %v4638 = vld [vmem:[#allocation3 + $0xb4] sm:$0xf]
      %v4639 = vld [vmem:[#allocation3 + $0xb8] sm:$0xf]
      %v4640 = vld [vmem:[#allocation3 + $0xc0] sm:$0x8]
      %v4641 = vld [vmem:[#allocation3 + $0xc4] sm:$0xf]
      %v4642 = vld [vmem:[#allocation3 + $0xc8] sm:$0xf]
      %v4643 = vld [vmem:[#allocation3 + $0xd0] sm:$0x8]
      %v4644 = vld [vmem:[#allocation3 + $0xd4] sm:$0xf]
      %v4645 = vld [vmem:[#allocation3 + $0xd8] sm:$0xf]
      %v4646 = vld [vmem:[#allocation3 + $0xe0] sm:$0x8]
      %v4647 = vld [vmem:[#allocation3 + $0xe4] sm:$0xf]
      %v4648 = vld [vmem:[#allocation3 + $0xe8] sm:$0xf]
      %v4649 = vld [vmem:[#allocation3 + $0xf0] sm:$0x8]
      %v4650 = vld [vmem:[#allocation3 + $0xf4] sm:$0xf]
      %v4651 = vld [vmem:[#allocation3 + $0xf8] sm:$0xf]
      %v4652 = vld [vmem:[#allocation3 + $0x100] sm:$0x8]
      %v4653 = vld [vmem:[#allocation3 + $0x104] sm:$0xf]
      %v4654 = vld [vmem:[#allocation3 + $0x108] sm:$0xf]
      %v4655 = vld [vmem:[#allocation3 + $0x110] sm:$0x8]
      %v4656 = vld [vmem:[#allocation3 + $0x114] sm:$0xf]
      %v4657 = vld [vmem:[#allocation3 + $0x118] sm:$0xf]
      %v4659 = vshrl.u32 %v4604, 16
      %v4661 = vrot.slane %v4659, 7
      %v4662 = vrot.slane %v4661, 4
      %v4664 = vshrl.u32 %v4605, 16
      %v4666 = vrot.slane %v4664, 7
      %v4667 = vshll.u32 %v4605, 16
      %v4669 = vor.u32 %v4666, %v4667
      %v4670 = vsel %vm912, %v4662, %v4669
      %v4671 = vrot.slane %v4666, 4
      %v4673 = vshrl.u32 %v4606, 16
      %v4675 = vrot.slane %v4673, 7
      %v4676 = vshll.u32 %v4606, 16
      %v4678 = vor.u32 %v4675, %v4676
      %v4679 = vsel %vm912, %v4671, %v4678
      %v4681 = vshrl.u32 %v4607, 16
      %v4683 = vrot.slane %v4681, 7
      %v4684 = vrot.slane %v4683, 4
      %v4686 = vshrl.u32 %v4608, 16
      %v4688 = vrot.slane %v4686, 7
      %v4689 = vshll.u32 %v4608, 16
      %v4691 = vor.u32 %v4688, %v4689
      %v4692 = vsel %vm912, %v4684, %v4691
      %v4693 = vrot.slane %v4688, 4
      %v4695 = vshrl.u32 %v4609, 16
      %v4697 = vrot.slane %v4695, 7
      %v4698 = vshll.u32 %v4609, 16
      %v4700 = vor.u32 %v4697, %v4698
      %v4701 = vsel %vm912, %v4693, %v4700
      %v4703 = vshrl.u32 %v4610, 16
      %v4705 = vrot.slane %v4703, 7
      %v4706 = vrot.slane %v4705, 4
      %v4708 = vshrl.u32 %v4611, 16
      %v4710 = vrot.slane %v4708, 7
      %v4711 = vshll.u32 %v4611, 16
      %v4713 = vor.u32 %v4710, %v4711
      %v4714 = vsel %vm912, %v4706, %v4713
      %v4715 = vrot.slane %v4710, 4
      %v4717 = vshrl.u32 %v4612, 16
      %v4719 = vrot.slane %v4717, 7
      %v4720 = vshll.u32 %v4612, 16
      %v4722 = vor.u32 %v4719, %v4720
      %v4723 = vsel %vm912, %v4715, %v4722
      %v4725 = vshrl.u32 %v4613, 16
      %v4727 = vrot.slane %v4725, 7
      %v4728 = vrot.slane %v4727, 4
      %v4730 = vshrl.u32 %v4614, 16
      %v4732 = vrot.slane %v4730, 7
      %v4733 = vshll.u32 %v4614, 16
      %v4735 = vor.u32 %v4732, %v4733
      %v4736 = vsel %vm912, %v4728, %v4735
      %v4737 = vrot.slane %v4732, 4
      %v4739 = vshrl.u32 %v4615, 16
      %v4741 = vrot.slane %v4739, 7
      %v4742 = vshll.u32 %v4615, 16
      %v4744 = vor.u32 %v4741, %v4742
      %v4745 = vsel %vm912, %v4737, %v4744
      %v4747 = vshrl.u32 %v4616, 16
      %v4749 = vrot.slane %v4747, 7
      %v4750 = vrot.slane %v4749, 4
      %v4752 = vshrl.u32 %v4617, 16
      %v4754 = vrot.slane %v4752, 7
      %v4755 = vshll.u32 %v4617, 16
      %v4757 = vor.u32 %v4754, %v4755
      %v4758 = vsel %vm912, %v4750, %v4757
      %v4759 = vrot.slane %v4754, 4
      %v4761 = vshrl.u32 %v4618, 16
      %v4763 = vrot.slane %v4761, 7
      %v4764 = vshll.u32 %v4618, 16
      %v4766 = vor.u32 %v4763, %v4764
      %v4767 = vsel %vm912, %v4759, %v4766
      %v4769 = vshrl.u32 %v4619, 16
      %v4771 = vrot.slane %v4769, 7
      %v4772 = vrot.slane %v4771, 4
      %v4774 = vshrl.u32 %v4620, 16
      %v4776 = vrot.slane %v4774, 7
      %v4777 = vshll.u32 %v4620, 16
      %v4779 = vor.u32 %v4776, %v4777
      %v4780 = vsel %vm912, %v4772, %v4779
      %v4781 = vrot.slane %v4776, 4
      %v4783 = vshrl.u32 %v4621, 16
      %v4785 = vrot.slane %v4783, 7
      %v4786 = vshll.u32 %v4621, 16
      %v4788 = vor.u32 %v4785, %v4786
      %v4789 = vsel %vm912, %v4781, %v4788
      %v4791 = vshrl.u32 %v4622, 16
      %v4793 = vrot.slane %v4791, 7
      %v4794 = vrot.slane %v4793, 4
      %v4796 = vshrl.u32 %v4623, 16
      %v4798 = vrot.slane %v4796, 7
      %v4799 = vshll.u32 %v4623, 16
      %v4801 = vor.u32 %v4798, %v4799
      %v4802 = vsel %vm912, %v4794, %v4801
      %v4803 = vrot.slane %v4798, 4
      %v4805 = vshrl.u32 %v4624, 16
      %v4807 = vrot.slane %v4805, 7
      %v4808 = vshll.u32 %v4624, 16
      %v4810 = vor.u32 %v4807, %v4808
      %v4811 = vsel %vm912, %v4803, %v4810
      %v4813 = vshrl.u32 %v4625, 16
      %v4815 = vrot.slane %v4813, 7
      %v4816 = vrot.slane %v4815, 4
      %v4818 = vshrl.u32 %v4626, 16
      %v4820 = vrot.slane %v4818, 7
      %v4821 = vshll.u32 %v4626, 16
      %v4823 = vor.u32 %v4820, %v4821
      %v4824 = vsel %vm912, %v4816, %v4823
      %v4825 = vrot.slane %v4820, 4
      %v4827 = vshrl.u32 %v4627, 16
      %v4829 = vrot.slane %v4827, 7
      %v4830 = vshll.u32 %v4627, 16
      %v4832 = vor.u32 %v4829, %v4830
      %v4833 = vsel %vm912, %v4825, %v4832
      %v4835 = vshrl.u32 %v4628, 16
      %v4837 = vrot.slane %v4835, 7
      %v4838 = vrot.slane %v4837, 4
      %v4840 = vshrl.u32 %v4629, 16
      %v4842 = vrot.slane %v4840, 7
      %v4843 = vshll.u32 %v4629, 16
      %v4845 = vor.u32 %v4842, %v4843
      %v4846 = vsel %vm912, %v4838, %v4845
      %v4847 = vrot.slane %v4842, 4
      %v4849 = vshrl.u32 %v4630, 16
      %v4851 = vrot.slane %v4849, 7
      %v4852 = vshll.u32 %v4630, 16
      %v4854 = vor.u32 %v4851, %v4852
      %v4855 = vsel %vm912, %v4847, %v4854
      %v4857 = vshrl.u32 %v4631, 16
      %v4859 = vrot.slane %v4857, 7
      %v4860 = vrot.slane %v4859, 4
      %v4862 = vshrl.u32 %v4632, 16
      %v4864 = vrot.slane %v4862, 7
      %v4865 = vshll.u32 %v4632, 16
      %v4867 = vor.u32 %v4864, %v4865
      %v4868 = vsel %vm912, %v4860, %v4867
      %v4869 = vrot.slane %v4864, 4
      %v4871 = vshrl.u32 %v4633, 16
      %v4873 = vrot.slane %v4871, 7
      %v4874 = vshll.u32 %v4633, 16
      %v4876 = vor.u32 %v4873, %v4874
      %v4877 = vsel %vm912, %v4869, %v4876
      %v4879 = vshrl.u32 %v4634, 16
      %v4881 = vrot.slane %v4879, 7
      %v4882 = vrot.slane %v4881, 4
      %v4884 = vshrl.u32 %v4635, 16
      %v4886 = vrot.slane %v4884, 7
      %v4887 = vshll.u32 %v4635, 16
      %v4889 = vor.u32 %v4886, %v4887
      %v4890 = vsel %vm912, %v4882, %v4889
      %v4891 = vrot.slane %v4886, 4
      %v4893 = vshrl.u32 %v4636, 16
      %v4895 = vrot.slane %v4893, 7
      %v4896 = vshll.u32 %v4636, 16
      %v4898 = vor.u32 %v4895, %v4896
      %v4899 = vsel %vm912, %v4891, %v4898
      %v4901 = vshrl.u32 %v4637, 16
      %v4903 = vrot.slane %v4901, 7
      %v4904 = vrot.slane %v4903, 4
      %v4906 = vshrl.u32 %v4638, 16
      %v4908 = vrot.slane %v4906, 7
      %v4909 = vshll.u32 %v4638, 16
      %v4911 = vor.u32 %v4908, %v4909
      %v4912 = vsel %vm912, %v4904, %v4911
      %v4913 = vrot.slane %v4908, 4
      %v4915 = vshrl.u32 %v4639, 16
      %v4917 = vrot.slane %v4915, 7
      %v4918 = vshll.u32 %v4639, 16
      %v4920 = vor.u32 %v4917, %v4918
      %v4921 = vsel %vm912, %v4913, %v4920
      %v4923 = vshrl.u32 %v4640, 16
      %v4925 = vrot.slane %v4923, 7
      %v4926 = vrot.slane %v4925, 4
      %v4928 = vshrl.u32 %v4641, 16
      %v4930 = vrot.slane %v4928, 7
      %v4931 = vshll.u32 %v4641, 16
      %v4933 = vor.u32 %v4930, %v4931
      %v4934 = vsel %vm912, %v4926, %v4933
      %v4935 = vrot.slane %v4930, 4
      %v4937 = vshrl.u32 %v4642, 16
      %v4939 = vrot.slane %v4937, 7
      %v4940 = vshll.u32 %v4642, 16
      %v4942 = vor.u32 %v4939, %v4940
      %v4943 = vsel %vm912, %v4935, %v4942
      %v4945 = vshrl.u32 %v4643, 16
      %v4947 = vrot.slane %v4945, 7
      %v4948 = vrot.slane %v4947, 4
      %v4950 = vshrl.u32 %v4644, 16
      %v4952 = vrot.slane %v4950, 7
      %v4953 = vshll.u32 %v4644, 16
      %v4955 = vor.u32 %v4952, %v4953
      %v4956 = vsel %vm912, %v4948, %v4955
      %v4957 = vrot.slane %v4952, 4
      %v4959 = vshrl.u32 %v4645, 16
      %v4961 = vrot.slane %v4959, 7
      %v4962 = vshll.u32 %v4645, 16
      %v4964 = vor.u32 %v4961, %v4962
      %v4965 = vsel %vm912, %v4957, %v4964
      %v4967 = vshrl.u32 %v4646, 16
      %v4969 = vrot.slane %v4967, 7
      %v4970 = vrot.slane %v4969, 4
      %v4972 = vshrl.u32 %v4647, 16
      %v4974 = vrot.slane %v4972, 7
      %v4975 = vshll.u32 %v4647, 16
      %v4977 = vor.u32 %v4974, %v4975
      %v4978 = vsel %vm912, %v4970, %v4977
      %v4979 = vrot.slane %v4974, 4
      %v4981 = vshrl.u32 %v4648, 16
      %v4983 = vrot.slane %v4981, 7
      %v4984 = vshll.u32 %v4648, 16
      %v4986 = vor.u32 %v4983, %v4984
      %v4987 = vsel %vm912, %v4979, %v4986
      %v4989 = vshrl.u32 %v4649, 16
      %v4991 = vrot.slane %v4989, 7
      %v4992 = vrot.slane %v4991, 4
      %v4994 = vshrl.u32 %v4650, 16
      %v4996 = vrot.slane %v4994, 7
      %v4997 = vshll.u32 %v4650, 16
      %v4999 = vor.u32 %v4996, %v4997
      %v5000 = vsel %vm912, %v4992, %v4999
      %v5001 = vrot.slane %v4996, 4
      %v5003 = vshrl.u32 %v4651, 16
      %v5005 = vrot.slane %v5003, 7
      %v5006 = vshll.u32 %v4651, 16
      %v5008 = vor.u32 %v5005, %v5006
      %v5009 = vsel %vm912, %v5001, %v5008
      %v5011 = vshrl.u32 %v4652, 16
      %v5013 = vrot.slane %v5011, 7
      %v5014 = vrot.slane %v5013, 4
      %v5016 = vshrl.u32 %v4653, 16
      %v5018 = vrot.slane %v5016, 7
      %v5019 = vshll.u32 %v4653, 16
      %v5021 = vor.u32 %v5018, %v5019
      %v5022 = vsel %vm912, %v5014, %v5021
      %v5023 = vrot.slane %v5018, 4
      %v5025 = vshrl.u32 %v4654, 16
      %v5027 = vrot.slane %v5025, 7
      %v5028 = vshll.u32 %v4654, 16
      %v5030 = vor.u32 %v5027, %v5028
      %v5031 = vsel %vm912, %v5023, %v5030
      %v5033 = vshrl.u32 %v4655, 16
      %v5035 = vrot.slane %v5033, 7
      %v5036 = vrot.slane %v5035, 4
      %v5038 = vshrl.u32 %v4656, 16
      %v5040 = vrot.slane %v5038, 7
      %v5041 = vshll.u32 %v4656, 16
      %v5043 = vor.u32 %v5040, %v5041
      %v5044 = vsel %vm912, %v5036, %v5043
      %v5045 = vrot.slane %v5040, 4
      %v5047 = vshrl.u32 %v4657, 16
      %v5049 = vrot.slane %v5047, 7
      %v5050 = vshll.u32 %v4657, 16
      %v5052 = vor.u32 %v5049, %v5050
      %v5053 = vsel %vm912, %v5045, %v5052
      %5090 = vst [vmem:[#allocation4] sm:$0xf] %v4670
      %5091 = vst [vmem:[#allocation4 + $0xc] sm:$0xf] %v4679
      %5092 = vst [vmem:[#allocation4 + $0x18] sm:$0xf] %v4692
      %5093 = vst [vmem:[#allocation4 + $0x24] sm:$0xf] %v4701
      %5094 = vst [vmem:[#allocation4 + $0x30] sm:$0xf] %v4714
      %5095 = vst [vmem:[#allocation4 + $0x3c] sm:$0xf] %v4723
      %5096 = vst [vmem:[#allocation4 + $0x48] sm:$0xf] %v4736
      %5097 = vst [vmem:[#allocation4 + $0x54] sm:$0xf] %v4745
      %5098 = vst [vmem:[#allocation4 + $0x60] sm:$0xf] %v4758
      %5099 = vst [vmem:[#allocation4 + $0x6c] sm:$0xf] %v4767
      %5100 = vst [vmem:[#allocation4 + $0x78] sm:$0xf] %v4780
      %5101 = vst [vmem:[#allocation4 + $0x84] sm:$0xf] %v4789
      %5102 = vst [vmem:[#allocation4 + $0x90] sm:$0xf] %v4802
      %5103 = vst [vmem:[#allocation4 + $0x9c] sm:$0xf] %v4811
      %5104 = vst [vmem:[#allocation4 + $0xa8] sm:$0xf] %v4824
      %5105 = vst [vmem:[#allocation4 + $0xb4] sm:$0xf] %v4833
      %5106 = vst [vmem:[#allocation4 + $0xc0] sm:$0xf] %v4846
      %5107 = vst [vmem:[#allocation4 + $0xcc] sm:$0xf] %v4855
      %5108 = vst [vmem:[#allocation4 + $0xd8] sm:$0xf] %v4868
      %5109 = vst [vmem:[#allocation4 + $0xe4] sm:$0xf] %v4877
      %5110 = vst [vmem:[#allocation4 + $0xf0] sm:$0xf] %v4890
      %5111 = vst [vmem:[#allocation4 + $0xfc] sm:$0xf] %v4899
      %5112 = vst [vmem:[#allocation4 + $0x108] sm:$0xf] %v4912
      %5113 = vst [vmem:[#allocation4 + $0x114] sm:$0xf] %v4921
      %5114 = vst [vmem:[#allocation4 + $0x120] sm:$0xf] %v4934
      %5115 = vst [vmem:[#allocation4 + $0x12c] sm:$0xf] %v4943
      %5116 = vst [vmem:[#allocation4 + $0x138] sm:$0xf] %v4956
      %5117 = vst [vmem:[#allocation4 + $0x144] sm:$0xf] %v4965
      %5118 = vst [vmem:[#allocation4 + $0x150] sm:$0xf] %v4978
      %5119 = vst [vmem:[#allocation4 + $0x15c] sm:$0xf] %v4987
      %5120 = vst [vmem:[#allocation4 + $0x168] sm:$0xf] %v5000
      %5121 = vst [vmem:[#allocation4 + $0x174] sm:$0xf] %v5009
      %5122 = vst [vmem:[#allocation4 + $0x180] sm:$0xf] %v5022
      %5123 = vst [vmem:[#allocation4 + $0x18c] sm:$0xf] %v5031
      %5124 = vst [vmem:[#allocation4 + $0x198] sm:$0xf] %v5044
      %5125 = vst [vmem:[#allocation4 + $0x1a4] sm:$0xf] %v5053
      %v5126 = vld [vmem:[#allocation3 + $0x4] sm:$0xf]
      %v5127 = vld [vmem:[#allocation3 + $0x8] sm:$0xf]
      %v5128 = vld [vmem:[#allocation3 + $0x14] sm:$0xf]
      %v5129 = vld [vmem:[#allocation3 + $0x18] sm:$0xf]
      %v5130 = vld [vmem:[#allocation3 + $0x24] sm:$0xf]
      %v5131 = vld [vmem:[#allocation3 + $0x28] sm:$0xf]
      %v5132 = vld [vmem:[#allocation3 + $0x34] sm:$0xf]
      %v5133 = vld [vmem:[#allocation3 + $0x38] sm:$0xf]
      %v5134 = vld [vmem:[#allocation3 + $0x44] sm:$0xf]
      %v5135 = vld [vmem:[#allocation3 + $0x48] sm:$0xf]
      %v5136 = vld [vmem:[#allocation3 + $0x54] sm:$0xf]
      %v5137 = vld [vmem:[#allocation3 + $0x58] sm:$0xf]
      %v5138 = vld [vmem:[#allocation3 + $0x64] sm:$0xf]
      %v5139 = vld [vmem:[#allocation3 + $0x68] sm:$0xf]
      %v5140 = vld [vmem:[#allocation3 + $0x74] sm:$0xf]
      %v5141 = vld [vmem:[#allocation3 + $0x78] sm:$0xf]
      %v5142 = vld [vmem:[#allocation3 + $0x84] sm:$0xf]
      %v5143 = vld [vmem:[#allocation3 + $0x88] sm:$0xf]
      %v5144 = vld [vmem:[#allocation3 + $0x94] sm:$0xf]
      %v5145 = vld [vmem:[#allocation3 + $0x98] sm:$0xf]
      %v5146 = vld [vmem:[#allocation3 + $0xa4] sm:$0xf]
      %v5147 = vld [vmem:[#allocation3 + $0xa8] sm:$0xf]
      %v5148 = vld [vmem:[#allocation3 + $0xb4] sm:$0xf]
      %v5149 = vld [vmem:[#allocation3 + $0xb8] sm:$0xf]
      %v5150 = vld [vmem:[#allocation3 + $0xc4] sm:$0xf]
      %v5151 = vld [vmem:[#allocation3 + $0xc8] sm:$0xf]
      %v5152 = vld [vmem:[#allocation3 + $0xd4] sm:$0xf]
      %v5153 = vld [vmem:[#allocation3 + $0xd8] sm:$0xf]
      %v5154 = vld [vmem:[#allocation3 + $0xe4] sm:$0xf]
      %v5155 = vld [vmem:[#allocation3 + $0xe8] sm:$0xf]
      %v5156 = vld [vmem:[#allocation3 + $0xf4] sm:$0xf]
      %v5157 = vld [vmem:[#allocation3 + $0xf8] sm:$0xf]
      %v5158 = vld [vmem:[#allocation3 + $0x104] sm:$0xf]
      %v5159 = vld [vmem:[#allocation3 + $0x108] sm:$0xf]
      %v5160 = vld [vmem:[#allocation3 + $0x114] sm:$0xf]
      %v5161 = vld [vmem:[#allocation3 + $0x118] sm:$0xf]
      %5162 = vst [vmem:[#allocation4 + $0x4] sm:$0xf] %v5126
      %5163 = vst [vmem:[#allocation4 + $0x10] sm:$0xf] %v5127
      %5164 = vst [vmem:[#allocation4 + $0x1c] sm:$0xf] %v5128
      %5165 = vst [vmem:[#allocation4 + $0x28] sm:$0xf] %v5129
      %5166 = vst [vmem:[#allocation4 + $0x34] sm:$0xf] %v5130
      %5167 = vst [vmem:[#allocation4 + $0x40] sm:$0xf] %v5131
      %5168 = vst [vmem:[#allocation4 + $0x4c] sm:$0xf] %v5132
      %5169 = vst [vmem:[#allocation4 + $0x58] sm:$0xf] %v5133
      %5170 = vst [vmem:[#allocation4 + $0x64] sm:$0xf] %v5134
      %5171 = vst [vmem:[#allocation4 + $0x70] sm:$0xf] %v5135
      %5172 = vst [vmem:[#allocation4 + $0x7c] sm:$0xf] %v5136
      %5173 = vst [vmem:[#allocation4 + $0x88] sm:$0xf] %v5137
      %5174 = vst [vmem:[#allocation4 + $0x94] sm:$0xf] %v5138
      %5175 = vst [vmem:[#allocation4 + $0xa0] sm:$0xf] %v5139
      %5176 = vst [vmem:[#allocation4 + $0xac] sm:$0xf] %v5140
      %5177 = vst [vmem:[#allocation4 + $0xb8] sm:$0xf] %v5141
      %5178 = vst [vmem:[#allocation4 + $0xc4] sm:$0xf] %v5142
      %5179 = vst [vmem:[#allocation4 + $0xd0] sm:$0xf] %v5143
      %5180 = vst [vmem:[#allocation4 + $0xdc] sm:$0xf] %v5144
      %5181 = vst [vmem:[#allocation4 + $0xe8] sm:$0xf] %v5145
      %5182 = vst [vmem:[#allocation4 + $0xf4] sm:$0xf] %v5146
      %5183 = vst [vmem:[#allocation4 + $0x100] sm:$0xf] %v5147
      %5184 = vst [vmem:[#allocation4 + $0x10c] sm:$0xf] %v5148
      %5185 = vst [vmem:[#allocation4 + $0x118] sm:$0xf] %v5149
      %5186 = vst [vmem:[#allocation4 + $0x124] sm:$0xf] %v5150
      %5187 = vst [vmem:[#allocation4 + $0x130] sm:$0xf] %v5151
      %5188 = vst [vmem:[#allocation4 + $0x13c] sm:$0xf] %v5152
      %5189 = vst [vmem:[#allocation4 + $0x148] sm:$0xf] %v5153
      %5190 = vst [vmem:[#allocation4 + $0x154] sm:$0xf] %v5154
      %5191 = vst [vmem:[#allocation4 + $0x160] sm:$0xf] %v5155
      %5192 = vst [vmem:[#allocation4 + $0x16c] sm:$0xf] %v5156
      %5193 = vst [vmem:[#allocation4 + $0x178] sm:$0xf] %v5157
      %5194 = vst [vmem:[#allocation4 + $0x184] sm:$0xf] %v5158
      %5195 = vst [vmem:[#allocation4 + $0x190] sm:$0xf] %v5159
      %5196 = vst [vmem:[#allocation4 + $0x19c] sm:$0xf] %v5160
      %5197 = vst [vmem:[#allocation4 + $0x1a8] sm:$0xf] %v5161
      %v5198 = vld [vmem:[#allocation3 + $0x4] sm:$0xf]
      %v5199 = vld [vmem:[#allocation3 + $0x8] sm:$0xf]
      %v5200 = vld [vmem:[#allocation3 + $0xc] sm:$0x1]
      %v5201 = vld [vmem:[#allocation3 + $0x14] sm:$0xf]
      %v5202 = vld [vmem:[#allocation3 + $0x18] sm:$0xf]
      %v5203 = vld [vmem:[#allocation3 + $0x1c] sm:$0x1]
      %v5204 = vld [vmem:[#allocation3 + $0x24] sm:$0xf]
      %v5205 = vld [vmem:[#allocation3 + $0x28] sm:$0xf]
      %v5206 = vld [vmem:[#allocation3 + $0x2c] sm:$0x1]
      %v5207 = vld [vmem:[#allocation3 + $0x34] sm:$0xf]
      %v5208 = vld [vmem:[#allocation3 + $0x38] sm:$0xf]
      %v5209 = vld [vmem:[#allocation3 + $0x3c] sm:$0x1]
      %v5210 = vld [vmem:[#allocation3 + $0x44] sm:$0xf]
      %v5211 = vld [vmem:[#allocation3 + $0x48] sm:$0xf]
      %v5212 = vld [vmem:[#allocation3 + $0x4c] sm:$0x1]
      %v5213 = vld [vmem:[#allocation3 + $0x54] sm:$0xf]
      %v5214 = vld [vmem:[#allocation3 + $0x58] sm:$0xf]
      %v5215 = vld [vmem:[#allocation3 + $0x5c] sm:$0x1]
      %v5216 = vld [vmem:[#allocation3 + $0x64] sm:$0xf]
      %v5217 = vld [vmem:[#allocation3 + $0x68] sm:$0xf]
      %v5218 = vld [vmem:[#allocation3 + $0x6c] sm:$0x1]
      %v5219 = vld [vmem:[#allocation3 + $0x74] sm:$0xf]
      %v5220 = vld [vmem:[#allocation3 + $0x78] sm:$0xf]
      %v5221 = vld [vmem:[#allocation3 + $0x7c] sm:$0x1]
      %v5222 = vld [vmem:[#allocation3 + $0x84] sm:$0xf]
      %v5223 = vld [vmem:[#allocation3 + $0x88] sm:$0xf]
      %v5224 = vld [vmem:[#allocation3 + $0x8c] sm:$0x1]
      %v5225 = vld [vmem:[#allocation3 + $0x94] sm:$0xf]
      %v5226 = vld [vmem:[#allocation3 + $0x98] sm:$0xf]
      %v5227 = vld [vmem:[#allocation3 + $0x9c] sm:$0x1]
      %v5228 = vld [vmem:[#allocation3 + $0xa4] sm:$0xf]
      %v5229 = vld [vmem:[#allocation3 + $0xa8] sm:$0xf]
      %v5230 = vld [vmem:[#allocation3 + $0xac] sm:$0x1]
      %v5231 = vld [vmem:[#allocation3 + $0xb4] sm:$0xf]
      %v5232 = vld [vmem:[#allocation3 + $0xb8] sm:$0xf]
      %v5233 = vld [vmem:[#allocation3 + $0xbc] sm:$0x1]
      %v5234 = vld [vmem:[#allocation3 + $0xc4] sm:$0xf]
      %v5235 = vld [vmem:[#allocation3 + $0xc8] sm:$0xf]
      %v5236 = vld [vmem:[#allocation3 + $0xcc] sm:$0x1]
      %v5237 = vld [vmem:[#allocation3 + $0xd4] sm:$0xf]
      %v5238 = vld [vmem:[#allocation3 + $0xd8] sm:$0xf]
      %v5239 = vld [vmem:[#allocation3 + $0xdc] sm:$0x1]
      %v5240 = vld [vmem:[#allocation3 + $0xe4] sm:$0xf]
      %v5241 = vld [vmem:[#allocation3 + $0xe8] sm:$0xf]
      %v5242 = vld [vmem:[#allocation3 + $0xec] sm:$0x1]
      %v5243 = vld [vmem:[#allocation3 + $0xf4] sm:$0xf]
      %v5244 = vld [vmem:[#allocation3 + $0xf8] sm:$0xf]
      %v5245 = vld [vmem:[#allocation3 + $0xfc] sm:$0x1]
      %v5246 = vld [vmem:[#allocation3 + $0x104] sm:$0xf]
      %v5247 = vld [vmem:[#allocation3 + $0x108] sm:$0xf]
      %v5248 = vld [vmem:[#allocation3 + $0x10c] sm:$0x1]
      %v5249 = vld [vmem:[#allocation3 + $0x114] sm:$0xf]
      %v5250 = vld [vmem:[#allocation3 + $0x118] sm:$0xf]
      %v5251 = vld [vmem:[#allocation3 + $0x11c] sm:$0x1]
      %v5253 = vshrl.u32 %v5198, 16
      %v5255 = vrot.slane %v5253, 4
      %v5256 = vshll.u32 %v5198, 16
      %v5258 = vrot.slane %v5256, 5
      %v5259 = vor.u32 %v5255, %v5258
      %v5260 = vrot.slane %v5259, 4
      %v5262 = vshll.u32 %v5199, 16
      %v5264 = vrot.slane %v5262, 5
      %v5265 = vsel %vm1509, %v5260, %v5264
      %v5266 = vshrl.u32 %v5199, 16
      %v5268 = vrot.slane %v5266, 4
      %v5269 = vor.u32 %v5268, %v5264
      %v5270 = vrot.slane %v5269, 4
      %v5272 = vshll.u32 %v5200, 16
      %v5274 = vrot.slane %v5272, 5
      %v5275 = vsel %vm1509, %v5270, %v5274
      %v5277 = vshrl.u32 %v5201, 16
      %v5279 = vrot.slane %v5277, 4
      %v5280 = vshll.u32 %v5201, 16
      %v5282 = vrot.slane %v5280, 5
      %v5283 = vor.u32 %v5279, %v5282
      %v5284 = vrot.slane %v5283, 4
      %v5286 = vshll.u32 %v5202, 16
      %v5288 = vrot.slane %v5286, 5
      %v5289 = vsel %vm1509, %v5284, %v5288
      %v5290 = vshrl.u32 %v5202, 16
      %v5292 = vrot.slane %v5290, 4
      %v5293 = vor.u32 %v5292, %v5288
      %v5294 = vrot.slane %v5293, 4
      %v5296 = vshll.u32 %v5203, 16
      %v5298 = vrot.slane %v5296, 5
      %v5299 = vsel %vm1509, %v5294, %v5298
      %v5301 = vshrl.u32 %v5204, 16
      %v5303 = vrot.slane %v5301, 4
      %v5304 = vshll.u32 %v5204, 16
      %v5306 = vrot.slane %v5304, 5
      %v5307 = vor.u32 %v5303, %v5306
      %v5308 = vrot.slane %v5307, 4
      %v5310 = vshll.u32 %v5205, 16
      %v5312 = vrot.slane %v5310, 5
      %v5313 = vsel %vm1509, %v5308, %v5312
      %v5314 = vshrl.u32 %v5205, 16
      %v5316 = vrot.slane %v5314, 4
      %v5317 = vor.u32 %v5316, %v5312
      %v5318 = vrot.slane %v5317, 4
      %v5320 = vshll.u32 %v5206, 16
      %v5322 = vrot.slane %v5320, 5
      %v5323 = vsel %vm1509, %v5318, %v5322
      %v5325 = vshrl.u32 %v5207, 16
      %v5327 = vrot.slane %v5325, 4
      %v5328 = vshll.u32 %v5207, 16
      %v5330 = vrot.slane %v5328, 5
      %v5331 = vor.u32 %v5327, %v5330
      %v5332 = vrot.slane %v5331, 4
      %v5334 = vshll.u32 %v5208, 16
      %v5336 = vrot.slane %v5334, 5
      %v5337 = vsel %vm1509, %v5332, %v5336
      %v5338 = vshrl.u32 %v5208, 16
      %v5340 = vrot.slane %v5338, 4
      %v5341 = vor.u32 %v5340, %v5336
      %v5342 = vrot.slane %v5341, 4
      %v5344 = vshll.u32 %v5209, 16
      %v5346 = vrot.slane %v5344, 5
      %v5347 = vsel %vm1509, %v5342, %v5346
      %v5349 = vshrl.u32 %v5210, 16
      %v5351 = vrot.slane %v5349, 4
      %v5352 = vshll.u32 %v5210, 16
      %v5354 = vrot.slane %v5352, 5
      %v5355 = vor.u32 %v5351, %v5354
      %v5356 = vrot.slane %v5355, 4
      %v5358 = vshll.u32 %v5211, 16
      %v5360 = vrot.slane %v5358, 5
      %v5361 = vsel %vm1509, %v5356, %v5360
      %v5362 = vshrl.u32 %v5211, 16
      %v5364 = vrot.slane %v5362, 4
      %v5365 = vor.u32 %v5364, %v5360
      %v5366 = vrot.slane %v5365, 4
      %v5368 = vshll.u32 %v5212, 16
      %v5370 = vrot.slane %v5368, 5
      %v5371 = vsel %vm1509, %v5366, %v5370
      %v5373 = vshrl.u32 %v5213, 16
      %v5375 = vrot.slane %v5373, 4
      %v5376 = vshll.u32 %v5213, 16
      %v5378 = vrot.slane %v5376, 5
      %v5379 = vor.u32 %v5375, %v5378
      %v5380 = vrot.slane %v5379, 4
      %v5382 = vshll.u32 %v5214, 16
      %v5384 = vrot.slane %v5382, 5
      %v5385 = vsel %vm1509, %v5380, %v5384
      %v5386 = vshrl.u32 %v5214, 16
      %v5388 = vrot.slane %v5386, 4
      %v5389 = vor.u32 %v5388, %v5384
      %v5390 = vrot.slane %v5389, 4
      %v5392 = vshll.u32 %v5215, 16
      %v5394 = vrot.slane %v5392, 5
      %v5395 = vsel %vm1509, %v5390, %v5394
      %v5397 = vshrl.u32 %v5216, 16
      %v5399 = vrot.slane %v5397, 4
      %v5400 = vshll.u32 %v5216, 16
      %v5402 = vrot.slane %v5400, 5
      %v5403 = vor.u32 %v5399, %v5402
      %v5404 = vrot.slane %v5403, 4
      %v5406 = vshll.u32 %v5217, 16
      %v5408 = vrot.slane %v5406, 5
      %v5409 = vsel %vm1509, %v5404, %v5408
      %v5410 = vshrl.u32 %v5217, 16
      %v5412 = vrot.slane %v5410, 4
      %v5413 = vor.u32 %v5412, %v5408
      %v5414 = vrot.slane %v5413, 4
      %v5416 = vshll.u32 %v5218, 16
      %v5418 = vrot.slane %v5416, 5
      %v5419 = vsel %vm1509, %v5414, %v5418
      %v5421 = vshrl.u32 %v5219, 16
      %v5423 = vrot.slane %v5421, 4
      %v5424 = vshll.u32 %v5219, 16
      %v5426 = vrot.slane %v5424, 5
      %v5427 = vor.u32 %v5423, %v5426
      %v5428 = vrot.slane %v5427, 4
      %v5430 = vshll.u32 %v5220, 16
      %v5432 = vrot.slane %v5430, 5
      %v5433 = vsel %vm1509, %v5428, %v5432
      %v5434 = vshrl.u32 %v5220, 16
      %v5436 = vrot.slane %v5434, 4
      %v5437 = vor.u32 %v5436, %v5432
      %v5438 = vrot.slane %v5437, 4
      %v5440 = vshll.u32 %v5221, 16
      %v5442 = vrot.slane %v5440, 5
      %v5443 = vsel %vm1509, %v5438, %v5442
      %v5445 = vshrl.u32 %v5222, 16
      %v5447 = vrot.slane %v5445, 4
      %v5448 = vshll.u32 %v5222, 16
      %v5450 = vrot.slane %v5448, 5
      %v5451 = vor.u32 %v5447, %v5450
      %v5452 = vrot.slane %v5451, 4
      %v5454 = vshll.u32 %v5223, 16
      %v5456 = vrot.slane %v5454, 5
      %v5457 = vsel %vm1509, %v5452, %v5456
      %v5458 = vshrl.u32 %v5223, 16
      %v5460 = vrot.slane %v5458, 4
      %v5461 = vor.u32 %v5460, %v5456
      %v5462 = vrot.slane %v5461, 4
      %v5464 = vshll.u32 %v5224, 16
      %v5466 = vrot.slane %v5464, 5
      %v5467 = vsel %vm1509, %v5462, %v5466
      %v5469 = vshrl.u32 %v5225, 16
      %v5471 = vrot.slane %v5469, 4
      %v5472 = vshll.u32 %v5225, 16
      %v5474 = vrot.slane %v5472, 5
      %v5475 = vor.u32 %v5471, %v5474
      %v5476 = vrot.slane %v5475, 4
      %v5478 = vshll.u32 %v5226, 16
      %v5480 = vrot.slane %v5478, 5
      %v5481 = vsel %vm1509, %v5476, %v5480
      %v5482 = vshrl.u32 %v5226, 16
      %v5484 = vrot.slane %v5482, 4
      %v5485 = vor.u32 %v5484, %v5480
      %v5486 = vrot.slane %v5485, 4
      %v5488 = vshll.u32 %v5227, 16
      %v5490 = vrot.slane %v5488, 5
      %v5491 = vsel %vm1509, %v5486, %v5490
      %v5493 = vshrl.u32 %v5228, 16
      %v5495 = vrot.slane %v5493, 4
      %v5496 = vshll.u32 %v5228, 16
      %v5498 = vrot.slane %v5496, 5
      %v5499 = vor.u32 %v5495, %v5498
      %v5500 = vrot.slane %v5499, 4
      %v5502 = vshll.u32 %v5229, 16
      %v5504 = vrot.slane %v5502, 5
      %v5505 = vsel %vm1509, %v5500, %v5504
      %v5506 = vshrl.u32 %v5229, 16
      %v5508 = vrot.slane %v5506, 4
      %v5509 = vor.u32 %v5508, %v5504
      %v5510 = vrot.slane %v5509, 4
      %v5512 = vshll.u32 %v5230, 16
      %v5514 = vrot.slane %v5512, 5
      %v5515 = vsel %vm1509, %v5510, %v5514
      %v5517 = vshrl.u32 %v5231, 16
      %v5519 = vrot.slane %v5517, 4
      %v5520 = vshll.u32 %v5231, 16
      %v5522 = vrot.slane %v5520, 5
      %v5523 = vor.u32 %v5519, %v5522
      %v5524 = vrot.slane %v5523, 4
      %v5526 = vshll.u32 %v5232, 16
      %v5528 = vrot.slane %v5526, 5
      %v5529 = vsel %vm1509, %v5524, %v5528
      %v5530 = vshrl.u32 %v5232, 16
      %v5532 = vrot.slane %v5530, 4
      %v5533 = vor.u32 %v5532, %v5528
      %v5534 = vrot.slane %v5533, 4
      %v5536 = vshll.u32 %v5233, 16
      %v5538 = vrot.slane %v5536, 5
      %v5539 = vsel %vm1509, %v5534, %v5538
      %v5541 = vshrl.u32 %v5234, 16
      %v5543 = vrot.slane %v5541, 4
      %v5544 = vshll.u32 %v5234, 16
      %v5546 = vrot.slane %v5544, 5
      %v5547 = vor.u32 %v5543, %v5546
      %v5548 = vrot.slane %v5547, 4
      %v5550 = vshll.u32 %v5235, 16
      %v5552 = vrot.slane %v5550, 5
      %v5553 = vsel %vm1509, %v5548, %v5552
      %v5554 = vshrl.u32 %v5235, 16
      %v5556 = vrot.slane %v5554, 4
      %v5557 = vor.u32 %v5556, %v5552
      %v5558 = vrot.slane %v5557, 4
      %v5560 = vshll.u32 %v5236, 16
      %v5562 = vrot.slane %v5560, 5
      %v5563 = vsel %vm1509, %v5558, %v5562
      %v5565 = vshrl.u32 %v5237, 16
      %v5567 = vrot.slane %v5565, 4
      %v5568 = vshll.u32 %v5237, 16
      %v5570 = vrot.slane %v5568, 5
      %v5571 = vor.u32 %v5567, %v5570
      %v5572 = vrot.slane %v5571, 4
      %v5574 = vshll.u32 %v5238, 16
      %v5576 = vrot.slane %v5574, 5
      %v5577 = vsel %vm1509, %v5572, %v5576
      %v5578 = vshrl.u32 %v5238, 16
      %v5580 = vrot.slane %v5578, 4
      %v5581 = vor.u32 %v5580, %v5576
      %v5582 = vrot.slane %v5581, 4
      %v5584 = vshll.u32 %v5239, 16
      %v5586 = vrot.slane %v5584, 5
      %v5587 = vsel %vm1509, %v5582, %v5586
      %v5589 = vshrl.u32 %v5240, 16
      %v5591 = vrot.slane %v5589, 4
      %v5592 = vshll.u32 %v5240, 16
      %v5594 = vrot.slane %v5592, 5
      %v5595 = vor.u32 %v5591, %v5594
      %v5596 = vrot.slane %v5595, 4
      %v5598 = vshll.u32 %v5241, 16
      %v5600 = vrot.slane %v5598, 5
      %v5601 = vsel %vm1509, %v5596, %v5600
      %v5602 = vshrl.u32 %v5241, 16
      %v5604 = vrot.slane %v5602, 4
      %v5605 = vor.u32 %v5604, %v5600
      %v5606 = vrot.slane %v5605, 4
      %v5608 = vshll.u32 %v5242, 16
      %v5610 = vrot.slane %v5608, 5
      %v5611 = vsel %vm1509, %v5606, %v5610
      %v5613 = vshrl.u32 %v5243, 16
      %v5615 = vrot.slane %v5613, 4
      %v5616 = vshll.u32 %v5243, 16
      %v5618 = vrot.slane %v5616, 5
      %v5619 = vor.u32 %v5615, %v5618
      %v5620 = vrot.slane %v5619, 4
      %v5622 = vshll.u32 %v5244, 16
      %v5624 = vrot.slane %v5622, 5
      %v5625 = vsel %vm1509, %v5620, %v5624
      %v5626 = vshrl.u32 %v5244, 16
      %v5628 = vrot.slane %v5626, 4
      %v5629 = vor.u32 %v5628, %v5624
      %v5630 = vrot.slane %v5629, 4
      %v5632 = vshll.u32 %v5245, 16
      %v5634 = vrot.slane %v5632, 5
      %v5635 = vsel %vm1509, %v5630, %v5634
      %v5637 = vshrl.u32 %v5246, 16
      %v5639 = vrot.slane %v5637, 4
      %v5640 = vshll.u32 %v5246, 16
      %v5642 = vrot.slane %v5640, 5
      %v5643 = vor.u32 %v5639, %v5642
      %v5644 = vrot.slane %v5643, 4
      %v5646 = vshll.u32 %v5247, 16
      %v5648 = vrot.slane %v5646, 5
      %v5649 = vsel %vm1509, %v5644, %v5648
      %v5650 = vshrl.u32 %v5247, 16
      %v5652 = vrot.slane %v5650, 4
      %v5653 = vor.u32 %v5652, %v5648
      %v5654 = vrot.slane %v5653, 4
      %v5656 = vshll.u32 %v5248, 16
      %v5658 = vrot.slane %v5656, 5
      %v5659 = vsel %vm1509, %v5654, %v5658
      %v5661 = vshrl.u32 %v5249, 16
      %v5663 = vrot.slane %v5661, 4
      %v5664 = vshll.u32 %v5249, 16
      %v5666 = vrot.slane %v5664, 5
      %v5667 = vor.u32 %v5663, %v5666
      %v5668 = vrot.slane %v5667, 4
      %v5670 = vshll.u32 %v5250, 16
      %v5672 = vrot.slane %v5670, 5
      %v5673 = vsel %vm1509, %v5668, %v5672
      %v5674 = vshrl.u32 %v5250, 16
      %v5676 = vrot.slane %v5674, 4
      %v5677 = vor.u32 %v5676, %v5672
      %v5678 = vrot.slane %v5677, 4
      %v5680 = vshll.u32 %v5251, 16
      %v5682 = vrot.slane %v5680, 5
      %v5683 = vsel %vm1509, %v5678, %v5682
      %5720 = vst [vmem:[#allocation4 + $0x8] sm:$0xf] %v5265
      %5721 = vst [vmem:[#allocation4 + $0x14] sm:$0xf] %v5275
      %5722 = vst [vmem:[#allocation4 + $0x20] sm:$0xf] %v5289
      %5723 = vst [vmem:[#allocation4 + $0x2c] sm:$0xf] %v5299
      %5724 = vst [vmem:[#allocation4 + $0x38] sm:$0xf] %v5313
      %5725 = vst [vmem:[#allocation4 + $0x44] sm:$0xf] %v5323
      %5726 = vst [vmem:[#allocation4 + $0x50] sm:$0xf] %v5337
      %5727 = vst [vmem:[#allocation4 + $0x5c] sm:$0xf] %v5347
      %5728 = vst [vmem:[#allocation4 + $0x68] sm:$0xf] %v5361
      %5729 = vst [vmem:[#allocation4 + $0x74] sm:$0xf] %v5371
      %5730 = vst [vmem:[#allocation4 + $0x80] sm:$0xf] %v5385
      %5731 = vst [vmem:[#allocation4 + $0x8c] sm:$0xf] %v5395
      %5732 = vst [vmem:[#allocation4 + $0x98] sm:$0xf] %v5409
      %5733 = vst [vmem:[#allocation4 + $0xa4] sm:$0xf] %v5419
      %5734 = vst [vmem:[#allocation4 + $0xb0] sm:$0xf] %v5433
      %5735 = vst [vmem:[#allocation4 + $0xbc] sm:$0xf] %v5443
      %5736 = vst [vmem:[#allocation4 + $0xc8] sm:$0xf] %v5457
      %5737 = vst [vmem:[#allocation4 + $0xd4] sm:$0xf] %v5467
      %5738 = vst [vmem:[#allocation4 + $0xe0] sm:$0xf] %v5481
      %5739 = vst [vmem:[#allocation4 + $0xec] sm:$0xf] %v5491
      %5740 = vst [vmem:[#allocation4 + $0xf8] sm:$0xf] %v5505
      %5741 = vst [vmem:[#allocation4 + $0x104] sm:$0xf] %v5515
      %5742 = vst [vmem:[#allocation4 + $0x110] sm:$0xf] %v5529
      %5743 = vst [vmem:[#allocation4 + $0x11c] sm:$0xf] %v5539
      %5744 = vst [vmem:[#allocation4 + $0x128] sm:$0xf] %v5553
      %5745 = vst [vmem:[#allocation4 + $0x134] sm:$0xf] %v5563
      %5746 = vst [vmem:[#allocation4 + $0x140] sm:$0xf] %v5577
      %5747 = vst [vmem:[#allocation4 + $0x14c] sm:$0xf] %v5587
      %5748 = vst [vmem:[#allocation4 + $0x158] sm:$0xf] %v5601
      %5749 = vst [vmem:[#allocation4 + $0x164] sm:$0xf] %v5611
      %5750 = vst [vmem:[#allocation4 + $0x170] sm:$0xf] %v5625
      %5751 = vst [vmem:[#allocation4 + $0x17c] sm:$0xf] %v5635
      %5752 = vst [vmem:[#allocation4 + $0x188] sm:$0xf] %v5649
      %5753 = vst [vmem:[#allocation4 + $0x194] sm:$0xf] %v5659
      %5754 = vst [vmem:[#allocation4 + $0x1a0] sm:$0xf] %v5673
      %5755 = vst [vmem:[#allocation4 + $0x1ac] sm:$0xf] %v5683
      %v5756 = vld [vmem:[#allocation4] sm:$0xff]
      %v5757 = vld [vmem:[#allocation4 + $0x8] sm:$0xf]
      %v5758 = vld [vmem:[#allocation4 + $0xc] sm:$0xff]
      %v5759 = vld [vmem:[#allocation4 + $0x14] sm:$0xf]
      %v5760 = vld [vmem:[#allocation4 + $0x18] sm:$0xff]
      %v5761 = vld [vmem:[#allocation4 + $0x20] sm:$0xf]
      %v5762 = vld [vmem:[#allocation4 + $0x24] sm:$0xff]
      %v5763 = vld [vmem:[#allocation4 + $0x2c] sm:$0xf]
      %v5764 = vld [vmem:[#allocation4 + $0x30] sm:$0xff]
      %v5765 = vld [vmem:[#allocation4 + $0x38] sm:$0xf]
      %v5766 = vld [vmem:[#allocation4 + $0x3c] sm:$0xff]
      %v5767 = vld [vmem:[#allocation4 + $0x44] sm:$0xf]
      %v5768 = vld [vmem:[#allocation4 + $0x48] sm:$0xff]
      %v5769 = vld [vmem:[#allocation4 + $0x50] sm:$0xf]
      %v5770 = vld [vmem:[#allocation4 + $0x54] sm:$0xff]
      %v5771 = vld [vmem:[#allocation4 + $0x5c] sm:$0xf]
      %v5772 = vld [vmem:[#allocation4 + $0x60] sm:$0xff]
      %v5773 = vld [vmem:[#allocation4 + $0x68] sm:$0xf]
      %v5774 = vld [vmem:[#allocation4 + $0x6c] sm:$0xff]
      %v5775 = vld [vmem:[#allocation4 + $0x74] sm:$0xf]
      %v5776 = vld [vmem:[#allocation4 + $0x78] sm:$0xff]
      %v5777 = vld [vmem:[#allocation4 + $0x80] sm:$0xf]
      %v5778 = vld [vmem:[#allocation4 + $0x84] sm:$0xff]
      %v5779 = vld [vmem:[#allocation4 + $0x8c] sm:$0xf]
      %v5780 = vld [vmem:[#allocation4 + $0x90] sm:$0xff]
      %v5781 = vld [vmem:[#allocation4 + $0x98] sm:$0xf]
      %v5782 = vld [vmem:[#allocation4 + $0x9c] sm:$0xff]
      %v5783 = vld [vmem:[#allocation4 + $0xa4] sm:$0xf]
      %v5784 = vld [vmem:[#allocation4 + $0xa8] sm:$0xff]
      %v5785 = vld [vmem:[#allocation4 + $0xb0] sm:$0xf]
      %v5786 = vld [vmem:[#allocation4 + $0xb4] sm:$0xff]
      %v5787 = vld [vmem:[#allocation4 + $0xbc] sm:$0xf]
      %v5788 = vld [vmem:[#allocation4 + $0xc0] sm:$0xff]
      %v5789 = vld [vmem:[#allocation4 + $0xc8] sm:$0xf]
      %v5790 = vld [vmem:[#allocation4 + $0xcc] sm:$0xff]
      %v5791 = vld [vmem:[#allocation4 + $0xd4] sm:$0xf]
      %v5792 = vld [vmem:[#allocation4 + $0xd8] sm:$0xff]
      %v5793 = vld [vmem:[#allocation4 + $0xe0] sm:$0xf]
      %v5794 = vld [vmem:[#allocation4 + $0xe4] sm:$0xff]
      %v5795 = vld [vmem:[#allocation4 + $0xec] sm:$0xf]
      %v5796 = vld [vmem:[#allocation4 + $0xf0] sm:$0xff]
      %v5797 = vld [vmem:[#allocation4 + $0xf8] sm:$0xf]
      %v5798 = vld [vmem:[#allocation4 + $0xfc] sm:$0xff]
      %v5799 = vld [vmem:[#allocation4 + $0x104] sm:$0xf]
      %v5800 = vld [vmem:[#allocation4 + $0x108] sm:$0xff]
      %v5801 = vld [vmem:[#allocation4 + $0x110] sm:$0xf]
      %v5802 = vld [vmem:[#allocation4 + $0x114] sm:$0xff]
      %v5803 = vld [vmem:[#allocation4 + $0x11c] sm:$0xf]
      %v5804 = vld [vmem:[#allocation4 + $0x120] sm:$0xff]
      %v5805 = vld [vmem:[#allocation4 + $0x128] sm:$0xf]
      %v5806 = vld [vmem:[#allocation4 + $0x12c] sm:$0xff]
      %v5807 = vld [vmem:[#allocation4 + $0x134] sm:$0xf]
      %v5808 = vld [vmem:[#allocation4 + $0x138] sm:$0xff]
      %v5809 = vld [vmem:[#allocation4 + $0x140] sm:$0xf]
      %v5810 = vld [vmem:[#allocation4 + $0x144] sm:$0xff]
      %v5811 = vld [vmem:[#allocation4 + $0x14c] sm:$0xf]
      %v5812 = vld [vmem:[#allocation4 + $0x150] sm:$0xff]
      %v5813 = vld [vmem:[#allocation4 + $0x158] sm:$0xf]
      %v5814 = vld [vmem:[#allocation4 + $0x15c] sm:$0xff]
      %v5815 = vld [vmem:[#allocation4 + $0x164] sm:$0xf]
      %v5816 = vld [vmem:[#allocation4 + $0x168] sm:$0xff]
      %v5817 = vld [vmem:[#allocation4 + $0x170] sm:$0xf]
      %v5818 = vld [vmem:[#allocation4 + $0x174] sm:$0xff]
      %v5819 = vld [vmem:[#allocation4 + $0x17c] sm:$0xf]
      %v5820 = vld [vmem:[%s5] sm:$0xf]
      %v5821 = vld [vmem:[%s5 + $0x4] sm:$0xf]
      %v5822 = vld [vmem:[%s5 + $0x8] sm:$0xf]
      %v5823 = vld [vmem:[%s5 + $0xc] sm:$0xf]
      %v5824 = vld [vmem:[%s5 + $0x10] sm:$0xf]
      %v5825 = vld [vmem:[%s5 + $0x14] sm:$0xf]
      %v5826 = vld [vmem:[%s5 + $0x18] sm:$0xf]
      %v5827 = vld [vmem:[%s5 + $0x1c] sm:$0xf]
      %v5828 = vld [vmem:[%s5 + $0x20] sm:$0xf]
      %v5829 = vld [vmem:[%s5 + $0x24] sm:$0xf]
      %v5830 = vld [vmem:[%s5 + $0x28] sm:$0xf]
      %v5831 = vld [vmem:[%s5 + $0x2c] sm:$0xf]
      %v5832 = vld [vmem:[%s5 + $0x30] sm:$0xf]
      %v5833 = vld [vmem:[%s5 + $0x34] sm:$0xf]
      %v5834 = vld [vmem:[%s5 + $0x38] sm:$0xf]
      %v5835 = vld [vmem:[%s5 + $0x3c] sm:$0xf]
      %v5836 = vld [vmem:[%s5 + $0x40] sm:$0xf]
      %v5837 = vld [vmem:[%s5 + $0x44] sm:$0xf]
      %v5838 = vld [vmem:[%s5 + $0x48] sm:$0xf]
      %v5839 = vld [vmem:[%s5 + $0x4c] sm:$0xf]
      %v5840 = vld [vmem:[%s5 + $0x50] sm:$0xf]
      %v5841 = vld [vmem:[%s5 + $0x54] sm:$0xf]
      %v5842 = vld [vmem:[%s5 + $0x58] sm:$0xf]
      %v5843 = vld [vmem:[%s5 + $0x5c] sm:$0xf]
      %v5844 = vld [vmem:[%s5 + $0x60] sm:$0xf]
      %v5845 = vld [vmem:[%s5 + $0x64] sm:$0xf]
      %v5846 = vld [vmem:[%s5 + $0x68] sm:$0xf]
      %v5847 = vld [vmem:[%s5 + $0x6c] sm:$0xf]
      %v5848 = vld [vmem:[%s5 + $0x70] sm:$0xf]
      %v5849 = vld [vmem:[%s5 + $0x74] sm:$0xf]
      %v5850 = vld [vmem:[%s5 + $0x78] sm:$0xf]
      %v5851 = vld [vmem:[%s5 + $0x7c] sm:$0xf]
      %v5852 = vld [vmem:[%s5 + $0x80] sm:$0xf]
      %v5853 = vld [vmem:[%s5 + $0x84] sm:$0xf]
      %v5854 = vld [vmem:[%s5 + $0x88] sm:$0xf]
      %v5855 = vld [vmem:[%s5 + $0x8c] sm:$0xf]
      %v5856 = vld [vmem:[%s5 + $0x90] sm:$0xf]
      %v5857 = vld [vmem:[%s5 + $0x94] sm:$0xf]
      %v5858 = vld [vmem:[%s5 + $0x98] sm:$0xf]
      %v5859 = vld [vmem:[%s5 + $0x9c] sm:$0xf]
      %v5860 = vld [vmem:[%s5 + $0xa0] sm:$0xf]
      %v5861 = vld [vmem:[%s5 + $0xa4] sm:$0xf]
      %v5862 = vld [vmem:[%s5 + $0xa8] sm:$0xf]
      %v5863 = vld [vmem:[%s5 + $0xac] sm:$0xf]
      %v5864 = vld [vmem:[%s5 + $0xb0] sm:$0xf]
      %v5865 = vld [vmem:[%s5 + $0xb4] sm:$0xf]
      %v5866 = vld [vmem:[%s5 + $0xb8] sm:$0xf]
      %v5867 = vld [vmem:[%s5 + $0xbc] sm:$0xf]
      %v5868 = vld [vmem:[#allocation4 + $0x180] sm:$0xff]
      %v5869 = vld [vmem:[#allocation4 + $0x188] sm:$0xf]
      %v5870 = vld [vmem:[#allocation4 + $0x18c] sm:$0xff]
      %v5871 = vld [vmem:[#allocation4 + $0x194] sm:$0xf]
      %s5872 = scalar_lea.vmem %s5, 192
      %v5873 = vld [vmem:[%s5872] sm:$0xf]
      %v5874 = vld [vmem:[%s5872 + $0x4] sm:$0xf]
      %v5875 = vld [vmem:[%s5872 + $0x8] sm:$0xf]
      %v5876 = vld [vmem:[%s5872 + $0xc] sm:$0xf]
      %v5877 = vld [vmem:[%s5872 + $0x10] sm:$0xf]
      %v5878 = vld [vmem:[%s5872 + $0x14] sm:$0xf]
      %v5879 = vld [vmem:[%s5872 + $0x18] sm:$0xf]
      %v5880 = vld [vmem:[%s5872 + $0x1c] sm:$0xf]
      %v5881 = vld [vmem:[%s5872 + $0x20] sm:$0xf]
      %v5882 = vld [vmem:[%s5872 + $0x24] sm:$0xf]
      %v5883 = vld [vmem:[%s5872 + $0x28] sm:$0xf]
      %v5884 = vld [vmem:[%s5872 + $0x2c] sm:$0xf]
      %v5885 = vld [vmem:[%s5872 + $0x30] sm:$0xf]
      %v5886 = vld [vmem:[%s5872 + $0x34] sm:$0xf]
      %v5887 = vld [vmem:[%s5872 + $0x38] sm:$0xf]
      %v5888 = vld [vmem:[%s5872 + $0x3c] sm:$0xf]
      %v5889 = vld [vmem:[%s5872 + $0x40] sm:$0xf]
      %v5890 = vld [vmem:[%s5872 + $0x44] sm:$0xf]
      %v5891 = vld [vmem:[%s5872 + $0x48] sm:$0xf]
      %v5892 = vld [vmem:[%s5872 + $0x4c] sm:$0xf]
      %v5893 = vld [vmem:[%s5872 + $0x50] sm:$0xf]
      %v5894 = vld [vmem:[%s5872 + $0x54] sm:$0xf]
      %v5895 = vld [vmem:[%s5872 + $0x58] sm:$0xf]
      %v5896 = vld [vmem:[%s5872 + $0x5c] sm:$0xf]
      %v5897 = vld [vmem:[%s5872 + $0x60] sm:$0xf]
      %v5898 = vld [vmem:[%s5872 + $0x64] sm:$0xf]
      %v5899 = vld [vmem:[%s5872 + $0x68] sm:$0xf]
      %v5900 = vld [vmem:[%s5872 + $0x6c] sm:$0xf]
      %v5901 = vld [vmem:[%s5872 + $0x70] sm:$0xf]
      %v5902 = vld [vmem:[%s5872 + $0x74] sm:$0xf]
      %v5903 = vld [vmem:[%s5872 + $0x78] sm:$0xf]
      %v5904 = vld [vmem:[%s5872 + $0x7c] sm:$0xf]
      %v5905 = vld [vmem:[%s5872 + $0x80] sm:$0xf]
      %v5906 = vld [vmem:[%s5872 + $0x84] sm:$0xf]
      %v5907 = vld [vmem:[%s5872 + $0x88] sm:$0xf]
      %v5908 = vld [vmem:[%s5872 + $0x8c] sm:$0xf]
      %v5909 = vld [vmem:[%s5872 + $0x90] sm:$0xf]
      %v5910 = vld [vmem:[%s5872 + $0x94] sm:$0xf]
      %v5911 = vld [vmem:[%s5872 + $0x98] sm:$0xf]
      %v5912 = vld [vmem:[%s5872 + $0x9c] sm:$0xf]
      %v5913 = vld [vmem:[%s5872 + $0xa0] sm:$0xf]
      %v5914 = vld [vmem:[%s5872 + $0xa4] sm:$0xf]
      %v5915 = vld [vmem:[%s5872 + $0xa8] sm:$0xf]
      %v5916 = vld [vmem:[%s5872 + $0xac] sm:$0xf]
      %v5917 = vld [vmem:[%s5872 + $0xb0] sm:$0xf]
      %v5918 = vld [vmem:[%s5872 + $0xb4] sm:$0xf]
      %v5919 = vld [vmem:[%s5872 + $0xb8] sm:$0xf]
      %v5920 = vld [vmem:[%s5872 + $0xbc] sm:$0xf]
      %v5985 = vunpack.c.l.b16 %v5760
      %v5986 = vunpack.c.h.b16 %v5760
      %v5987 = vunpack.c.l.b16 %v5761
      %v5988 = vunpack.c.l.b16 %v5762
      %v5989 = vunpack.c.h.b16 %v5762
      %v5990 = vunpack.c.l.b16 %v5763
      %v5991 = vunpack.c.l.b16 %v5764
      %v5992 = vunpack.c.h.b16 %v5764
      %v5993 = vunpack.c.l.b16 %v5765
      %v5994 = vunpack.c.l.b16 %v5766
      %v5995 = vunpack.c.h.b16 %v5766
      %v5996 = vunpack.c.l.b16 %v5767
      %v5997 = vunpack.c.l.b16 %v5768
      %v5998 = vunpack.c.h.b16 %v5768
      %v5999 = vunpack.c.l.b16 %v5769
      %v6000 = vunpack.c.l.b16 %v5770
      %v6001 = vunpack.c.h.b16 %v5770
      %v6002 = vunpack.c.l.b16 %v5771
      %v6003 = vunpack.c.l.b16 %v5772
      %v6004 = vunpack.c.h.b16 %v5772
      %v6005 = vunpack.c.l.b16 %v5773
      %v6006 = vunpack.c.l.b16 %v5774
      %v6007 = vunpack.c.h.b16 %v5774
      %v6008 = vunpack.c.l.b16 %v5775
      %v6009 = vunpack.c.l.b16 %v5776
      %v6010 = vunpack.c.h.b16 %v5776
      %v6011 = vunpack.c.l.b16 %v5777
      %v6012 = vunpack.c.l.b16 %v5778
      %v6013 = vunpack.c.h.b16 %v5778
      %v6014 = vunpack.c.l.b16 %v5779
      %v6015 = vunpack.c.l.b16 %v5780
      %v6016 = vunpack.c.h.b16 %v5780
      %v6017 = vunpack.c.l.b16 %v5781
      %v6018 = vunpack.c.l.b16 %v5782
      %v6019 = vunpack.c.h.b16 %v5782
      %v6020 = vunpack.c.l.b16 %v5783
      %v6021 = vunpack.c.l.b16 %v5784
      %v6022 = vunpack.c.h.b16 %v5784
      %v6023 = vunpack.c.l.b16 %v5785
      %v6024 = vunpack.c.l.b16 %v5786
      %v6025 = vunpack.c.h.b16 %v5786
      %v6026 = vunpack.c.l.b16 %v5787
      %v6027 = vunpack.c.l.b16 %v5788
      %v6028 = vunpack.c.h.b16 %v5788
      %v6029 = vunpack.c.l.b16 %v5789
      %v6030 = vunpack.c.l.b16 %v5790
      %v6031 = vunpack.c.h.b16 %v5790
      %v6032 = vunpack.c.l.b16 %v5791
      %v6033 = vunpack.c.l.b16 %v5792
      %v6034 = vunpack.c.h.b16 %v5792
      %v6035 = vunpack.c.l.b16 %v5793
      %v6036 = vunpack.c.l.b16 %v5794
      %v6037 = vunpack.c.h.b16 %v5794
      %v6038 = vunpack.c.l.b16 %v5795
      %v6039 = vunpack.c.l.b16 %v5796
      %v6040 = vunpack.c.h.b16 %v5796
      %v6041 = vunpack.c.l.b16 %v5797
      %v6042 = vunpack.c.l.b16 %v5798
      %v6043 = vunpack.c.h.b16 %v5798
      %v6044 = vunpack.c.l.b16 %v5799
      %v6045 = vunpack.c.l.b16 %v5800
      %v6046 = vunpack.c.h.b16 %v5800
      %v6047 = vunpack.c.l.b16 %v5801
      %v6048 = vunpack.c.l.b16 %v5802
      %v6049 = vunpack.c.h.b16 %v5802
      %v6050 = vunpack.c.l.b16 %v5803
      %v6051 = vunpack.c.l.b16 %v5804
      %v6052 = vunpack.c.h.b16 %v5804
      %v6053 = vunpack.c.l.b16 %v5805
      %v6054 = vunpack.c.l.b16 %v5806
      %v6055 = vunpack.c.h.b16 %v5806
      %v6056 = vunpack.c.l.b16 %v5807
      %v6057 = vunpack.c.l.b16 %v5808
      %v6058 = vunpack.c.h.b16 %v5808
      %v6059 = vunpack.c.l.b16 %v5809
      %v6060 = vunpack.c.l.b16 %v5810
      %v6061 = vunpack.c.h.b16 %v5810
      %v6062 = vunpack.c.l.b16 %v5811
      %v6063 = vunpack.c.l.b16 %v5812
      %v6064 = vunpack.c.h.b16 %v5812
      %v6065 = vunpack.c.l.b16 %v5813
      %v6066 = vunpack.c.l.b16 %v5814
      %v6067 = vunpack.c.h.b16 %v5814
      %v6068 = vunpack.c.l.b16 %v5815
      %v6069 = vunpack.c.l.b16 %v5816
      %v6070 = vunpack.c.h.b16 %v5816
      %v6071 = vunpack.c.l.b16 %v5817
      %v6072 = vunpack.c.l.b16 %v5818
      %v6073 = vunpack.c.h.b16 %v5818
      %v6074 = vunpack.c.l.b16 %v5819
      %v6075 = vunpack.c.l.b16 %v5868
      %v6076 = vunpack.c.h.b16 %v5868
      %v6077 = vunpack.c.l.b16 %v5869
      %v6078 = vunpack.c.l.b16 %v5870
      %v6079 = vunpack.c.h.b16 %v5870
      %v6080 = vunpack.c.l.b16 %v5871
      %v6081 = vpack.c.b16 %v5988, %v5985
      %v6082 = vpack.c.b16 %v5989, %v5986
      %v6083 = vpack.c.b16 %v5990, %v5987
      %v6084 = vpack.c.b16 %v5994, %v5991
      %v6085 = vpack.c.b16 %v5995, %v5992
      %v6086 = vpack.c.b16 %v5996, %v5993
      %v6087 = vpack.c.b16 %v6000, %v5997
      %v6088 = vpack.c.b16 %v6001, %v5998
      %v6089 = vpack.c.b16 %v6002, %v5999
      %v6090 = vpack.c.b16 %v6006, %v6003
      %v6091 = vpack.c.b16 %v6007, %v6004
      %v6092 = vpack.c.b16 %v6008, %v6005
      %v6093 = vpack.c.b16 %v6012, %v6009
      %v6094 = vpack.c.b16 %v6013, %v6010
      %v6095 = vpack.c.b16 %v6014, %v6011
      %v6096 = vpack.c.b16 %v6018, %v6015
      %v6097 = vpack.c.b16 %v6019, %v6016
      %v6098 = vpack.c.b16 %v6020, %v6017
      %v6099 = vpack.c.b16 %v6024, %v6021
      %v6100 = vpack.c.b16 %v6025, %v6022
      %v6101 = vpack.c.b16 %v6026, %v6023
      %v6102 = vpack.c.b16 %v6030, %v6027
      %v6103 = vpack.c.b16 %v6031, %v6028
      %v6104 = vpack.c.b16 %v6032, %v6029
      %v6105 = vpack.c.b16 %v6036, %v6033
      %v6106 = vpack.c.b16 %v6037, %v6034
      %v6107 = vpack.c.b16 %v6038, %v6035
      %v6108 = vpack.c.b16 %v6042, %v6039
      %v6109 = vpack.c.b16 %v6043, %v6040
      %v6110 = vpack.c.b16 %v6044, %v6041
      %v6111 = vpack.c.b16 %v6048, %v6045
      %v6112 = vpack.c.b16 %v6049, %v6046
      %v6113 = vpack.c.b16 %v6050, %v6047
      %v6114 = vpack.c.b16 %v6054, %v6051
      %v6115 = vpack.c.b16 %v6055, %v6052
      %v6116 = vpack.c.b16 %v6056, %v6053
      %v6117 = vpack.c.b16 %v6060, %v6057
      %v6118 = vpack.c.b16 %v6061, %v6058
      %v6119 = vpack.c.b16 %v6062, %v6059
      %v6120 = vpack.c.b16 %v6066, %v6063
      %v6121 = vpack.c.b16 %v6067, %v6064
      %v6122 = vpack.c.b16 %v6068, %v6065
      %v6123 = vpack.c.b16 %v6072, %v6069
      %v6124 = vpack.c.b16 %v6073, %v6070
      %v6125 = vpack.c.b16 %v6074, %v6071
      %v6126 = vpack.c.b16 %v6078, %v6075
      %v6127 = vpack.c.b16 %v6079, %v6076
      %v6128 = vpack.c.b16 %v6080, %v6077
      %v6225 = vunpack.c.l.b16 %v5873
      %v6226 = vunpack.c.l.b16 %v5874
      %v6227 = vunpack.c.l.b16 %v5875
      %v6228 = vunpack.c.l.b16 %v5876
      %v6229 = vunpack.c.l.b16 %v5877
      %v6230 = vunpack.c.l.b16 %v5878
      %v6231 = vunpack.c.l.b16 %v5879
      %v6232 = vunpack.c.l.b16 %v5880
      %v6233 = vunpack.c.l.b16 %v5881
      %v6234 = vunpack.c.l.b16 %v5882
      %v6235 = vunpack.c.l.b16 %v5883
      %v6236 = vunpack.c.l.b16 %v5884
      %v6237 = vunpack.c.l.b16 %v5885
      %v6238 = vunpack.c.l.b16 %v5886
      %v6239 = vunpack.c.l.b16 %v5887
      %v6240 = vunpack.c.l.b16 %v5888
      %v6241 = vunpack.c.l.b16 %v5889
      %v6242 = vunpack.c.l.b16 %v5890
      %v6243 = vunpack.c.l.b16 %v5891
      %v6244 = vunpack.c.l.b16 %v5892
      %v6245 = vunpack.c.l.b16 %v5893
      %v6246 = vunpack.c.l.b16 %v5894
      %v6247 = vunpack.c.l.b16 %v5895
      %v6248 = vunpack.c.l.b16 %v5896
      %v6249 = vunpack.c.l.b16 %v5897
      %v6250 = vunpack.c.l.b16 %v5898
      %v6251 = vunpack.c.l.b16 %v5899
      %v6252 = vunpack.c.l.b16 %v5900
      %v6253 = vunpack.c.l.b16 %v5901
      %v6254 = vunpack.c.l.b16 %v5902
      %v6255 = vunpack.c.l.b16 %v5903
      %v6256 = vunpack.c.l.b16 %v5904
      %v6257 = vunpack.c.l.b16 %v5905
      %v6258 = vunpack.c.l.b16 %v5906
      %v6259 = vunpack.c.l.b16 %v5907
      %v6260 = vunpack.c.l.b16 %v5908
      %v6261 = vunpack.c.l.b16 %v5909
      %v6262 = vunpack.c.l.b16 %v5910
      %v6263 = vunpack.c.l.b16 %v5911
      %v6264 = vunpack.c.l.b16 %v5912
      %v6265 = vunpack.c.l.b16 %v5913
      %v6266 = vunpack.c.l.b16 %v5914
      %v6267 = vunpack.c.l.b16 %v5915
      %v6268 = vunpack.c.l.b16 %v5916
      %v6269 = vunpack.c.l.b16 %v5917
      %v6270 = vunpack.c.l.b16 %v5918
      %v6271 = vunpack.c.l.b16 %v5919
      %v6272 = vunpack.c.l.b16 %v5920
      %v6273 = vpack.c.b16 %v6226, %v6225
      %v6274 = vpack.c.b16 %v6228, %v6227
      %v6275 = vpack.c.b16 %v6230, %v6229
      %v6276 = vpack.c.b16 %v6232, %v6231
      %v6277 = vpack.c.b16 %v6234, %v6233
      %v6278 = vpack.c.b16 %v6236, %v6235
      %v6279 = vpack.c.b16 %v6238, %v6237
      %v6280 = vpack.c.b16 %v6240, %v6239
      %v6281 = vpack.c.b16 %v6242, %v6241
      %v6282 = vpack.c.b16 %v6244, %v6243
      %v6283 = vpack.c.b16 %v6246, %v6245
      %v6284 = vpack.c.b16 %v6248, %v6247
      %v6285 = vpack.c.b16 %v6250, %v6249
      %v6286 = vpack.c.b16 %v6252, %v6251
      %v6287 = vpack.c.b16 %v6254, %v6253
      %v6288 = vpack.c.b16 %v6256, %v6255
      %v6289 = vpack.c.b16 %v6258, %v6257
      %v6290 = vpack.c.b16 %v6260, %v6259
      %v6291 = vpack.c.b16 %v6262, %v6261
      %v6292 = vpack.c.b16 %v6264, %v6263
      %v6293 = vpack.c.b16 %v6266, %v6265
      %v6294 = vpack.c.b16 %v6268, %v6267
      %v6295 = vpack.c.b16 %v6270, %v6269
      %v6296 = vpack.c.b16 %v6272, %v6271
      %6321 = vmatpush.bf16.msra.mxu0 %v6280
      %6322 = vmatpush.bf16.msra.mxu0 %v6279
      %6323 = vmatpush.bf16.msra.mxu0 %v6278
      %6324 = vmatpush.bf16.msra.mxu0 %v6277
      %6325 = vmatpush.bf16.msra.mxu0 %v6276
      %6326 = vmatpush.bf16.msra.mxu0 %v6275
      %6327 = vmatpush.bf16.msra.mxu0 %v6274
      %6328 = vmatpush.bf16.msra.mxu0 %v6273
      %6329 = vmatmul.bf16.gmra.mxu0 %v6081
      %v6330 = vpop.f32.mrf.mxu0
      %v6331 = vadd.f32 0.0, %v6330
      %v6332 = vpop.f32.mrf.mxu0
      %v6333 = vadd.f32 0.0, %v6332
      %6334 = vmatmul.bf16.gmra.mxu0 %v6084
      %v6335 = vpop.f32.mrf.mxu0
      %v6336 = vadd.f32 0.0, %v6335
      %v6337 = vpop.f32.mrf.mxu0
      %v6338 = vadd.f32 0.0, %v6337
      %6339 = vmatmul.bf16.gmra.mxu0 %v6087
      %v6340 = vpop.f32.mrf.mxu0
      %v6341 = vadd.f32 0.0, %v6340
      %v6342 = vpop.f32.mrf.mxu0
      %v6343 = vadd.f32 0.0, %v6342
      %6344 = vmatmul.bf16.gmra.mxu0 %v6090
      %v6345 = vpop.f32.mrf.mxu0
      %v6346 = vadd.f32 0.0, %v6345
      %v6347 = vpop.f32.mrf.mxu0
      %v6348 = vadd.f32 0.0, %v6347
      %6349 = vmatmul.bf16.gmra.mxu0 %v6093
      %v6350 = vpop.f32.mrf.mxu0
      %v6351 = vadd.f32 0.0, %v6350
      %v6352 = vpop.f32.mrf.mxu0
      %v6353 = vadd.f32 0.0, %v6352
      %6354 = vmatmul.bf16.gmra.mxu0 %v6096
      %v6355 = vpop.f32.mrf.mxu0
      %v6356 = vadd.f32 0.0, %v6355
      %v6357 = vpop.f32.mrf.mxu0
      %v6358 = vadd.f32 0.0, %v6357
      %6359 = vmatmul.bf16.gmra.mxu0 %v6099
      %v6360 = vpop.f32.mrf.mxu0
      %v6361 = vadd.f32 0.0, %v6360
      %v6362 = vpop.f32.mrf.mxu0
      %v6363 = vadd.f32 0.0, %v6362
      %6364 = vmatmul.bf16.gmra.mxu0 %v6102
      %v6365 = vpop.f32.mrf.mxu0
      %v6366 = vadd.f32 0.0, %v6365
      %v6367 = vpop.f32.mrf.mxu0
      %v6368 = vadd.f32 0.0, %v6367
      %6369 = vmatmul.bf16.gmra.mxu0 %v6105
      %v6370 = vpop.f32.mrf.mxu0
      %v6371 = vadd.f32 0.0, %v6370
      %v6372 = vpop.f32.mrf.mxu0
      %v6373 = vadd.f32 0.0, %v6372
      %6374 = vmatmul.bf16.gmra.mxu0 %v6108
      %v6375 = vpop.f32.mrf.mxu0
      %v6376 = vadd.f32 0.0, %v6375
      %v6377 = vpop.f32.mrf.mxu0
      %v6378 = vadd.f32 0.0, %v6377
      %6379 = vmatmul.bf16.gmra.mxu0 %v6111
      %v6380 = vpop.f32.mrf.mxu0
      %v6381 = vadd.f32 0.0, %v6380
      %v6382 = vpop.f32.mrf.mxu0
      %v6383 = vadd.f32 0.0, %v6382
      %6384 = vmatmul.bf16.gmra.mxu0 %v6114
      %v6385 = vpop.f32.mrf.mxu0
      %v6386 = vadd.f32 0.0, %v6385
      %v6387 = vpop.f32.mrf.mxu0
      %v6388 = vadd.f32 0.0, %v6387
      %6389 = vmatmul.bf16.gmra.mxu0 %v6117
      %v6390 = vpop.f32.mrf.mxu0
      %v6391 = vadd.f32 0.0, %v6390
      %v6392 = vpop.f32.mrf.mxu0
      %v6393 = vadd.f32 0.0, %v6392
      %6394 = vmatmul.bf16.gmra.mxu0 %v6120
      %v6395 = vpop.f32.mrf.mxu0
      %v6396 = vadd.f32 0.0, %v6395
      %v6397 = vpop.f32.mrf.mxu0
      %v6398 = vadd.f32 0.0, %v6397
      %6399 = vmatmul.bf16.gmra.mxu0 %v6123
      %v6400 = vpop.f32.mrf.mxu0
      %v6401 = vadd.f32 0.0, %v6400
      %v6402 = vpop.f32.mrf.mxu0
      %v6403 = vadd.f32 0.0, %v6402
      %6404 = vmatmul.bf16.gmra.mxu0 %v6126
      %v6405 = vpop.f32.mrf.mxu0
      %v6406 = vadd.f32 0.0, %v6405
      %v6407 = vpop.f32.mrf.mxu0
      %v6408 = vadd.f32 0.0, %v6407
      %6409 = vdwg.mxu0
      %6410 = vmatpush.bf16.msra.mxu0 %v6288
      %6411 = vmatpush.bf16.msra.mxu0 %v6287
      %6412 = vmatpush.bf16.msra.mxu0 %v6286
      %6413 = vmatpush.bf16.msra.mxu0 %v6285
      %6414 = vmatpush.bf16.msra.mxu0 %v6284
      %6415 = vmatpush.bf16.msra.mxu0 %v6283
      %6416 = vmatpush.bf16.msra.mxu0 %v6282
      %6417 = vmatpush.bf16.msra.mxu0 %v6281
      %6418 = vmatmul.bf16.gmra.mxu0 %v6082
      %v6419 = vpop.f32.mrf.mxu0
      %v6420 = vadd.f32 %v6331, %v6419
      %v6421 = vpop.f32.mrf.mxu0
      %v6422 = vadd.f32 %v6333, %v6421
      %6423 = vmatmul.bf16.gmra.mxu0 %v6085
      %v6424 = vpop.f32.mrf.mxu0
      %v6425 = vadd.f32 %v6336, %v6424
      %v6426 = vpop.f32.mrf.mxu0
      %v6427 = vadd.f32 %v6338, %v6426
      %6428 = vmatmul.bf16.gmra.mxu0 %v6088
      %v6429 = vpop.f32.mrf.mxu0
      %v6430 = vadd.f32 %v6341, %v6429
      %v6431 = vpop.f32.mrf.mxu0
      %v6432 = vadd.f32 %v6343, %v6431
      %6433 = vmatmul.bf16.gmra.mxu0 %v6091
      %v6434 = vpop.f32.mrf.mxu0
      %v6435 = vadd.f32 %v6346, %v6434
      %v6436 = vpop.f32.mrf.mxu0
      %v6437 = vadd.f32 %v6348, %v6436
      %6438 = vmatmul.bf16.gmra.mxu0 %v6094
      %v6439 = vpop.f32.mrf.mxu0
      %v6440 = vadd.f32 %v6351, %v6439
      %v6441 = vpop.f32.mrf.mxu0
      %v6442 = vadd.f32 %v6353, %v6441
      %6443 = vmatmul.bf16.gmra.mxu0 %v6097
      %v6444 = vpop.f32.mrf.mxu0
      %v6445 = vadd.f32 %v6356, %v6444
      %v6446 = vpop.f32.mrf.mxu0
      %v6447 = vadd.f32 %v6358, %v6446
      %6448 = vmatmul.bf16.gmra.mxu0 %v6100
      %v6449 = vpop.f32.mrf.mxu0
      %v6450 = vadd.f32 %v6361, %v6449
      %v6451 = vpop.f32.mrf.mxu0
      %v6452 = vadd.f32 %v6363, %v6451
      %6453 = vmatmul.bf16.gmra.mxu0 %v6103
      %v6454 = vpop.f32.mrf.mxu0
      %v6455 = vadd.f32 %v6366, %v6454
      %v6456 = vpop.f32.mrf.mxu0
      %v6457 = vadd.f32 %v6368, %v6456
      %6458 = vmatmul.bf16.gmra.mxu0 %v6106
      %v6459 = vpop.f32.mrf.mxu0
      %v6460 = vadd.f32 %v6371, %v6459
      %v6461 = vpop.f32.mrf.mxu0
      %v6462 = vadd.f32 %v6373, %v6461
      %6463 = vmatmul.bf16.gmra.mxu0 %v6109
      %v6464 = vpop.f32.mrf.mxu0
      %v6465 = vadd.f32 %v6376, %v6464
      %v6466 = vpop.f32.mrf.mxu0
      %v6467 = vadd.f32 %v6378, %v6466
      %6468 = vmatmul.bf16.gmra.mxu0 %v6112
      %v6469 = vpop.f32.mrf.mxu0
      %v6470 = vadd.f32 %v6381, %v6469
      %v6471 = vpop.f32.mrf.mxu0
      %v6472 = vadd.f32 %v6383, %v6471
      %6473 = vmatmul.bf16.gmra.mxu0 %v6115
      %v6474 = vpop.f32.mrf.mxu0
      %v6475 = vadd.f32 %v6386, %v6474
      %v6476 = vpop.f32.mrf.mxu0
      %v6477 = vadd.f32 %v6388, %v6476
      %6478 = vmatmul.bf16.gmra.mxu0 %v6118
      %v6479 = vpop.f32.mrf.mxu0
      %v6480 = vadd.f32 %v6391, %v6479
      %v6481 = vpop.f32.mrf.mxu0
      %v6482 = vadd.f32 %v6393, %v6481
      %6483 = vmatmul.bf16.gmra.mxu0 %v6121
      %v6484 = vpop.f32.mrf.mxu0
      %v6485 = vadd.f32 %v6396, %v6484
      %v6486 = vpop.f32.mrf.mxu0
      %v6487 = vadd.f32 %v6398, %v6486
      %6488 = vmatmul.bf16.gmra.mxu0 %v6124
      %v6489 = vpop.f32.mrf.mxu0
      %v6490 = vadd.f32 %v6401, %v6489
      %v6491 = vpop.f32.mrf.mxu0
      %v6492 = vadd.f32 %v6403, %v6491
      %6493 = vmatmul.bf16.gmra.mxu0 %v6127
      %v6494 = vpop.f32.mrf.mxu0
      %v6495 = vadd.f32 %v6406, %v6494
      %v6496 = vpop.f32.mrf.mxu0
      %v6497 = vadd.f32 %v6408, %v6496
      %6498 = vdwg.mxu0
      %6499 = vmatpush.bf16.msra.mxu0 %v6296
      %6500 = vmatpush.bf16.msra.mxu0 %v6295
      %6501 = vmatpush.bf16.msra.mxu0 %v6294
      %6502 = vmatpush.bf16.msra.mxu0 %v6293
      %6503 = vmatpush.bf16.msra.mxu0 %v6292
      %6504 = vmatpush.bf16.msra.mxu0 %v6291
      %6505 = vmatpush.bf16.msra.mxu0 %v6290
      %6506 = vmatpush.bf16.msra.mxu0 %v6289
      %6507 = vmatmul.bf16.gmra.mxu0 %v6083
      %v6508 = vpop.f32.mrf.mxu0
      %v6509 = vadd.f32 %v6420, %v6508
      %v6510 = vpop.f32.mrf.mxu0
      %v6511 = vadd.f32 %v6422, %v6510
      %6512 = vmatmul.bf16.gmra.mxu0 %v6086
      %v6513 = vpop.f32.mrf.mxu0
      %v6514 = vadd.f32 %v6425, %v6513
      %v6515 = vpop.f32.mrf.mxu0
      %v6516 = vadd.f32 %v6427, %v6515
      %6517 = vmatmul.bf16.gmra.mxu0 %v6089
      %v6518 = vpop.f32.mrf.mxu0
      %v6519 = vadd.f32 %v6430, %v6518
      %v6520 = vpop.f32.mrf.mxu0
      %v6521 = vadd.f32 %v6432, %v6520
      %6522 = vmatmul.bf16.gmra.mxu0 %v6092
      %v6523 = vpop.f32.mrf.mxu0
      %v6524 = vadd.f32 %v6435, %v6523
      %v6525 = vpop.f32.mrf.mxu0
      %v6526 = vadd.f32 %v6437, %v6525
      %6527 = vmatmul.bf16.gmra.mxu0 %v6095
      %v6528 = vpop.f32.mrf.mxu0
      %v6529 = vadd.f32 %v6440, %v6528
      %v6530 = vpop.f32.mrf.mxu0
      %v6531 = vadd.f32 %v6442, %v6530
      %6532 = vmatmul.bf16.gmra.mxu0 %v6098
      %v6533 = vpop.f32.mrf.mxu0
      %v6534 = vadd.f32 %v6445, %v6533
      %v6535 = vpop.f32.mrf.mxu0
      %v6536 = vadd.f32 %v6447, %v6535
      %6537 = vmatmul.bf16.gmra.mxu0 %v6101
      %v6538 = vpop.f32.mrf.mxu0
      %v6539 = vadd.f32 %v6450, %v6538
      %v6540 = vpop.f32.mrf.mxu0
      %v6541 = vadd.f32 %v6452, %v6540
      %6542 = vmatmul.bf16.gmra.mxu0 %v6104
      %v6543 = vpop.f32.mrf.mxu0
      %v6544 = vadd.f32 %v6455, %v6543
      %v6545 = vpop.f32.mrf.mxu0
      %v6546 = vadd.f32 %v6457, %v6545
      %6547 = vmatmul.bf16.gmra.mxu0 %v6107
      %v6548 = vpop.f32.mrf.mxu0
      %v6549 = vadd.f32 %v6460, %v6548
      %v6550 = vpop.f32.mrf.mxu0
      %v6551 = vadd.f32 %v6462, %v6550
      %6552 = vmatmul.bf16.gmra.mxu0 %v6110
      %v6553 = vpop.f32.mrf.mxu0
      %v6554 = vadd.f32 %v6465, %v6553
      %v6555 = vpop.f32.mrf.mxu0
      %v6556 = vadd.f32 %v6467, %v6555
      %6557 = vmatmul.bf16.gmra.mxu0 %v6113
      %v6558 = vpop.f32.mrf.mxu0
      %v6559 = vadd.f32 %v6470, %v6558
      %v6560 = vpop.f32.mrf.mxu0
      %v6561 = vadd.f32 %v6472, %v6560
      %6562 = vmatmul.bf16.gmra.mxu0 %v6116
      %v6563 = vpop.f32.mrf.mxu0
      %v6564 = vadd.f32 %v6475, %v6563
      %v6565 = vpop.f32.mrf.mxu0
      %v6566 = vadd.f32 %v6477, %v6565
      %6567 = vmatmul.bf16.gmra.mxu0 %v6119
      %v6568 = vpop.f32.mrf.mxu0
      %v6569 = vadd.f32 %v6480, %v6568
      %v6570 = vpop.f32.mrf.mxu0
      %v6571 = vadd.f32 %v6482, %v6570
      %6572 = vmatmul.bf16.gmra.mxu0 %v6122
      %v6573 = vpop.f32.mrf.mxu0
      %v6574 = vadd.f32 %v6485, %v6573
      %v6575 = vpop.f32.mrf.mxu0
      %v6576 = vadd.f32 %v6487, %v6575
      %6577 = vmatmul.bf16.gmra.mxu0 %v6125
      %v6578 = vpop.f32.mrf.mxu0
      %v6579 = vadd.f32 %v6490, %v6578
      %v6580 = vpop.f32.mrf.mxu0
      %v6581 = vadd.f32 %v6492, %v6580
      %6582 = vmatmul.bf16.gmra.mxu0 %v6128
      %v6583 = vpop.f32.mrf.mxu0
      %v6584 = vadd.f32 %v6495, %v6583
      %v6585 = vpop.f32.mrf.mxu0
      %v6586 = vadd.f32 %v6497, %v6585
      %6587 = vdwg.mxu0
      %v6592 = vunpack.c.l.b16 %v5756
      %v6593 = vunpack.c.h.b16 %v5756
      %v6594 = vunpack.c.l.b16 %v5757
      %v6595 = vunpack.c.l.b16 %v5758
      %v6596 = vunpack.c.h.b16 %v5758
      %v6597 = vunpack.c.l.b16 %v5759
      %v6598 = vpack.c.b16 %v6595, %v6592
      %v6599 = vpack.c.b16 %v6596, %v6593
      %v6600 = vpack.c.b16 %v6597, %v6594
      %v6652 = vunpack.c.l.b16 %v5820
      %v6653 = vunpack.c.l.b16 %v5821
      %v6654 = vunpack.c.l.b16 %v5822
      %v6655 = vunpack.c.l.b16 %v5823
      %v6656 = vunpack.c.l.b16 %v5824
      %v6657 = vunpack.c.l.b16 %v5825
      %v6658 = vunpack.c.l.b16 %v5826
      %v6659 = vunpack.c.l.b16 %v5827
      %v6660 = vunpack.c.l.b16 %v5828
      %v6661 = vunpack.c.l.b16 %v5829
      %v6662 = vunpack.c.l.b16 %v5830
      %v6663 = vunpack.c.l.b16 %v5831
      %v6664 = vunpack.c.l.b16 %v5832
      %v6665 = vunpack.c.l.b16 %v5833
      %v6666 = vunpack.c.l.b16 %v5834
      %v6667 = vunpack.c.l.b16 %v5835
      %v6668 = vunpack.c.l.b16 %v5836
      %v6669 = vunpack.c.l.b16 %v5837
      %v6670 = vunpack.c.l.b16 %v5838
      %v6671 = vunpack.c.l.b16 %v5839
      %v6672 = vunpack.c.l.b16 %v5840
      %v6673 = vunpack.c.l.b16 %v5841
      %v6674 = vunpack.c.l.b16 %v5842
      %v6675 = vunpack.c.l.b16 %v5843
      %v6676 = vunpack.c.l.b16 %v5844
      %v6677 = vunpack.c.l.b16 %v5845
      %v6678 = vunpack.c.l.b16 %v5846
      %v6679 = vunpack.c.l.b16 %v5847
      %v6680 = vunpack.c.l.b16 %v5848
      %v6681 = vunpack.c.l.b16 %v5849
      %v6682 = vunpack.c.l.b16 %v5850
      %v6683 = vunpack.c.l.b16 %v5851
      %v6684 = vunpack.c.l.b16 %v5852
      %v6685 = vunpack.c.l.b16 %v5853
      %v6686 = vunpack.c.l.b16 %v5854
      %v6687 = vunpack.c.l.b16 %v5855
      %v6688 = vunpack.c.l.b16 %v5856
      %v6689 = vunpack.c.l.b16 %v5857
      %v6690 = vunpack.c.l.b16 %v5858
      %v6691 = vunpack.c.l.b16 %v5859
      %v6692 = vunpack.c.l.b16 %v5860
      %v6693 = vunpack.c.l.b16 %v5861
      %v6694 = vunpack.c.l.b16 %v5862
      %v6695 = vunpack.c.l.b16 %v5863
      %v6696 = vunpack.c.l.b16 %v5864
      %v6697 = vunpack.c.l.b16 %v5865
      %v6698 = vunpack.c.l.b16 %v5866
      %v6699 = vunpack.c.l.b16 %v5867
      %v6700 = vpack.c.b16 %v6653, %v6652
      %v6701 = vpack.c.b16 %v6655, %v6654
      %v6702 = vpack.c.b16 %v6657, %v6656
      %v6703 = vpack.c.b16 %v6659, %v6658
      %v6704 = vpack.c.b16 %v6661, %v6660
      %v6705 = vpack.c.b16 %v6663, %v6662
      %v6706 = vpack.c.b16 %v6665, %v6664
      %v6707 = vpack.c.b16 %v6667, %v6666
      %v6708 = vpack.c.b16 %v6669, %v6668
      %v6709 = vpack.c.b16 %v6671, %v6670
      %v6710 = vpack.c.b16 %v6673, %v6672
      %v6711 = vpack.c.b16 %v6675, %v6674
      %v6712 = vpack.c.b16 %v6677, %v6676
      %v6713 = vpack.c.b16 %v6679, %v6678
      %v6714 = vpack.c.b16 %v6681, %v6680
      %v6715 = vpack.c.b16 %v6683, %v6682
      %v6716 = vpack.c.b16 %v6685, %v6684
      %v6717 = vpack.c.b16 %v6687, %v6686
      %v6718 = vpack.c.b16 %v6689, %v6688
      %v6719 = vpack.c.b16 %v6691, %v6690
      %v6720 = vpack.c.b16 %v6693, %v6692
      %v6721 = vpack.c.b16 %v6695, %v6694
      %v6722 = vpack.c.b16 %v6697, %v6696
      %v6723 = vpack.c.b16 %v6699, %v6698
      %6748 = vmatpush.bf16.msra.mxu0 %v6707
      %6749 = vmatpush.bf16.msra.mxu0 %v6706
      %6750 = vmatpush.bf16.msra.mxu0 %v6705
      %6751 = vmatpush.bf16.msra.mxu0 %v6704
      %6752 = vmatpush.bf16.msra.mxu0 %v6703
      %6753 = vmatpush.bf16.msra.mxu0 %v6702
      %6754 = vmatpush.bf16.msra.mxu0 %v6701
      %6755 = vmatpush.bf16.msra.mxu0 %v6700
      %6756 = vmatmul.bf16.gmra.mxu0 %v6598
      %v6757 = vpop.f32.mrf.mxu0
      %v6758 = vadd.f32 %v6509, %v6757
      %v6759 = vpop.f32.mrf.mxu0
      %v6760 = vadd.f32 %v6511, %v6759
      %6761 = vmatmul.bf16.gmra.mxu0 %v6081
      %v6762 = vpop.f32.mrf.mxu0
      %v6763 = vadd.f32 %v6514, %v6762
      %v6764 = vpop.f32.mrf.mxu0
      %v6765 = vadd.f32 %v6516, %v6764
      %6766 = vmatmul.bf16.gmra.mxu0 %v6084
      %v6767 = vpop.f32.mrf.mxu0
      %v6768 = vadd.f32 %v6519, %v6767
      %v6769 = vpop.f32.mrf.mxu0
      %v6770 = vadd.f32 %v6521, %v6769
      %6771 = vmatmul.bf16.gmra.mxu0 %v6087
      %v6772 = vpop.f32.mrf.mxu0
      %v6773 = vadd.f32 %v6524, %v6772
      %v6774 = vpop.f32.mrf.mxu0
      %v6775 = vadd.f32 %v6526, %v6774
      %6776 = vmatmul.bf16.gmra.mxu0 %v6090
      %v6777 = vpop.f32.mrf.mxu0
      %v6778 = vadd.f32 %v6529, %v6777
      %v6779 = vpop.f32.mrf.mxu0
      %v6780 = vadd.f32 %v6531, %v6779
      %6781 = vmatmul.bf16.gmra.mxu0 %v6093
      %v6782 = vpop.f32.mrf.mxu0
      %v6783 = vadd.f32 %v6534, %v6782
      %v6784 = vpop.f32.mrf.mxu0
      %v6785 = vadd.f32 %v6536, %v6784
      %6786 = vmatmul.bf16.gmra.mxu0 %v6096
      %v6787 = vpop.f32.mrf.mxu0
      %v6788 = vadd.f32 %v6539, %v6787
      %v6789 = vpop.f32.mrf.mxu0
      %v6790 = vadd.f32 %v6541, %v6789
      %6791 = vmatmul.bf16.gmra.mxu0 %v6099
      %v6792 = vpop.f32.mrf.mxu0
      %v6793 = vadd.f32 %v6544, %v6792
      %v6794 = vpop.f32.mrf.mxu0
      %v6795 = vadd.f32 %v6546, %v6794
      %6796 = vmatmul.bf16.gmra.mxu0 %v6102
      %v6797 = vpop.f32.mrf.mxu0
      %v6798 = vadd.f32 %v6549, %v6797
      %v6799 = vpop.f32.mrf.mxu0
      %v6800 = vadd.f32 %v6551, %v6799
      %6801 = vmatmul.bf16.gmra.mxu0 %v6105
      %v6802 = vpop.f32.mrf.mxu0
      %v6803 = vadd.f32 %v6554, %v6802
      %v6804 = vpop.f32.mrf.mxu0
      %v6805 = vadd.f32 %v6556, %v6804
      %6806 = vmatmul.bf16.gmra.mxu0 %v6108
      %v6807 = vpop.f32.mrf.mxu0
      %v6808 = vadd.f32 %v6559, %v6807
      %v6809 = vpop.f32.mrf.mxu0
      %v6810 = vadd.f32 %v6561, %v6809
      %6811 = vmatmul.bf16.gmra.mxu0 %v6111
      %v6812 = vpop.f32.mrf.mxu0
      %v6813 = vadd.f32 %v6564, %v6812
      %v6814 = vpop.f32.mrf.mxu0
      %v6815 = vadd.f32 %v6566, %v6814
      %6816 = vmatmul.bf16.gmra.mxu0 %v6114
      %v6817 = vpop.f32.mrf.mxu0
      %v6818 = vadd.f32 %v6569, %v6817
      %v6819 = vpop.f32.mrf.mxu0
      %v6820 = vadd.f32 %v6571, %v6819
      %6821 = vmatmul.bf16.gmra.mxu0 %v6117
      %v6822 = vpop.f32.mrf.mxu0
      %v6823 = vadd.f32 %v6574, %v6822
      %v6824 = vpop.f32.mrf.mxu0
      %v6825 = vadd.f32 %v6576, %v6824
      %6826 = vmatmul.bf16.gmra.mxu0 %v6120
      %v6827 = vpop.f32.mrf.mxu0
      %v6828 = vadd.f32 %v6579, %v6827
      %v6829 = vpop.f32.mrf.mxu0
      %v6830 = vadd.f32 %v6581, %v6829
      %6831 = vmatmul.bf16.gmra.mxu0 %v6123
      %v6832 = vpop.f32.mrf.mxu0
      %v6833 = vadd.f32 %v6584, %v6832
      %v6834 = vpop.f32.mrf.mxu0
      %v6835 = vadd.f32 %v6586, %v6834
      %6836 = vdwg.mxu0
      %6837 = vmatpush.bf16.msra.mxu0 %v6715
      %6838 = vmatpush.bf16.msra.mxu0 %v6714
      %6839 = vmatpush.bf16.msra.mxu0 %v6713
      %6840 = vmatpush.bf16.msra.mxu0 %v6712
      %6841 = vmatpush.bf16.msra.mxu0 %v6711
      %6842 = vmatpush.bf16.msra.mxu0 %v6710
      %6843 = vmatpush.bf16.msra.mxu0 %v6709
      %6844 = vmatpush.bf16.msra.mxu0 %v6708
      %6845 = vmatmul.bf16.gmra.mxu0 %v6599
      %v6846 = vpop.f32.mrf.mxu0
      %v6847 = vadd.f32 %v6758, %v6846
      %v6848 = vpop.f32.mrf.mxu0
      %v6849 = vadd.f32 %v6760, %v6848
      %6850 = vmatmul.bf16.gmra.mxu0 %v6082
      %v6851 = vpop.f32.mrf.mxu0
      %v6852 = vadd.f32 %v6763, %v6851
      %v6853 = vpop.f32.mrf.mxu0
      %v6854 = vadd.f32 %v6765, %v6853
      %6855 = vmatmul.bf16.gmra.mxu0 %v6085
      %v6856 = vpop.f32.mrf.mxu0
      %v6857 = vadd.f32 %v6768, %v6856
      %v6858 = vpop.f32.mrf.mxu0
      %v6859 = vadd.f32 %v6770, %v6858
      %6860 = vmatmul.bf16.gmra.mxu0 %v6088
      %v6861 = vpop.f32.mrf.mxu0
      %v6862 = vadd.f32 %v6773, %v6861
      %v6863 = vpop.f32.mrf.mxu0
      %v6864 = vadd.f32 %v6775, %v6863
      %6865 = vmatmul.bf16.gmra.mxu0 %v6091
      %v6866 = vpop.f32.mrf.mxu0
      %v6867 = vadd.f32 %v6778, %v6866
      %v6868 = vpop.f32.mrf.mxu0
      %v6869 = vadd.f32 %v6780, %v6868
      %6870 = vmatmul.bf16.gmra.mxu0 %v6094
      %v6871 = vpop.f32.mrf.mxu0
      %v6872 = vadd.f32 %v6783, %v6871
      %v6873 = vpop.f32.mrf.mxu0
      %v6874 = vadd.f32 %v6785, %v6873
      %6875 = vmatmul.bf16.gmra.mxu0 %v6097
      %v6876 = vpop.f32.mrf.mxu0
      %v6877 = vadd.f32 %v6788, %v6876
      %v6878 = vpop.f32.mrf.mxu0
      %v6879 = vadd.f32 %v6790, %v6878
      %6880 = vmatmul.bf16.gmra.mxu0 %v6100
      %v6881 = vpop.f32.mrf.mxu0
      %v6882 = vadd.f32 %v6793, %v6881
      %v6883 = vpop.f32.mrf.mxu0
      %v6884 = vadd.f32 %v6795, %v6883
      %6885 = vmatmul.bf16.gmra.mxu0 %v6103
      %v6886 = vpop.f32.mrf.mxu0
      %v6887 = vadd.f32 %v6798, %v6886
      %v6888 = vpop.f32.mrf.mxu0
      %v6889 = vadd.f32 %v6800, %v6888
      %6890 = vmatmul.bf16.gmra.mxu0 %v6106
      %v6891 = vpop.f32.mrf.mxu0
      %v6892 = vadd.f32 %v6803, %v6891
      %v6893 = vpop.f32.mrf.mxu0
      %v6894 = vadd.f32 %v6805, %v6893
      %6895 = vmatmul.bf16.gmra.mxu0 %v6109
      %v6896 = vpop.f32.mrf.mxu0
      %v6897 = vadd.f32 %v6808, %v6896
      %v6898 = vpop.f32.mrf.mxu0
      %v6899 = vadd.f32 %v6810, %v6898
      %6900 = vmatmul.bf16.gmra.mxu0 %v6112
      %v6901 = vpop.f32.mrf.mxu0
      %v6902 = vadd.f32 %v6813, %v6901
      %v6903 = vpop.f32.mrf.mxu0
      %v6904 = vadd.f32 %v6815, %v6903
      %6905 = vmatmul.bf16.gmra.mxu0 %v6115
      %v6906 = vpop.f32.mrf.mxu0
      %v6907 = vadd.f32 %v6818, %v6906
      %v6908 = vpop.f32.mrf.mxu0
      %v6909 = vadd.f32 %v6820, %v6908
      %6910 = vmatmul.bf16.gmra.mxu0 %v6118
      %v6911 = vpop.f32.mrf.mxu0
      %v6912 = vadd.f32 %v6823, %v6911
      %v6913 = vpop.f32.mrf.mxu0
      %v6914 = vadd.f32 %v6825, %v6913
      %6915 = vmatmul.bf16.gmra.mxu0 %v6121
      %v6916 = vpop.f32.mrf.mxu0
      %v6917 = vadd.f32 %v6828, %v6916
      %v6918 = vpop.f32.mrf.mxu0
      %v6919 = vadd.f32 %v6830, %v6918
      %6920 = vmatmul.bf16.gmra.mxu0 %v6124
      %v6921 = vpop.f32.mrf.mxu0
      %v6922 = vadd.f32 %v6833, %v6921
      %v6923 = vpop.f32.mrf.mxu0
      %v6924 = vadd.f32 %v6835, %v6923
      %6925 = vdwg.mxu0
      %6926 = vmatpush.bf16.msra.mxu0 %v6723
      %6927 = vmatpush.bf16.msra.mxu0 %v6722
      %6928 = vmatpush.bf16.msra.mxu0 %v6721
      %6929 = vmatpush.bf16.msra.mxu0 %v6720
      %6930 = vmatpush.bf16.msra.mxu0 %v6719
      %6931 = vmatpush.bf16.msra.mxu0 %v6718
      %6932 = vmatpush.bf16.msra.mxu0 %v6717
      %6933 = vmatpush.bf16.msra.mxu0 %v6716
      %6934 = vmatmul.bf16.gmra.mxu0 %v6600
      %v6935 = vpop.f32.mrf.mxu0
      %v6936 = vadd.f32 %v6847, %v6935
      %v6937 = vpop.f32.mrf.mxu0
      %v6938 = vadd.f32 %v6849, %v6937
      %6939 = vmatmul.bf16.gmra.mxu0 %v6083
      %v6940 = vpop.f32.mrf.mxu0
      %v6941 = vadd.f32 %v6852, %v6940
      %v6942 = vpop.f32.mrf.mxu0
      %v6943 = vadd.f32 %v6854, %v6942
      %6944 = vmatmul.bf16.gmra.mxu0 %v6086
      %v6945 = vpop.f32.mrf.mxu0
      %v6946 = vadd.f32 %v6857, %v6945
      %v6947 = vpop.f32.mrf.mxu0
      %v6948 = vadd.f32 %v6859, %v6947
      %6949 = vmatmul.bf16.gmra.mxu0 %v6089
      %v6950 = vpop.f32.mrf.mxu0
      %v6951 = vadd.f32 %v6862, %v6950
      %v6952 = vpop.f32.mrf.mxu0
      %v6953 = vadd.f32 %v6864, %v6952
      %6954 = vmatmul.bf16.gmra.mxu0 %v6092
      %v6955 = vpop.f32.mrf.mxu0
      %v6956 = vadd.f32 %v6867, %v6955
      %v6957 = vpop.f32.mrf.mxu0
      %v6958 = vadd.f32 %v6869, %v6957
      %6959 = vmatmul.bf16.gmra.mxu0 %v6095
      %v6960 = vpop.f32.mrf.mxu0
      %v6961 = vadd.f32 %v6872, %v6960
      %v6962 = vpop.f32.mrf.mxu0
      %v6963 = vadd.f32 %v6874, %v6962
      %6964 = vmatmul.bf16.gmra.mxu0 %v6098
      %v6965 = vpop.f32.mrf.mxu0
      %v6966 = vadd.f32 %v6877, %v6965
      %v6967 = vpop.f32.mrf.mxu0
      %v6968 = vadd.f32 %v6879, %v6967
      %6969 = vmatmul.bf16.gmra.mxu0 %v6101
      %v6970 = vpop.f32.mrf.mxu0
      %v6971 = vadd.f32 %v6882, %v6970
      %v6972 = vpop.f32.mrf.mxu0
      %v6973 = vadd.f32 %v6884, %v6972
      %6974 = vmatmul.bf16.gmra.mxu0 %v6104
      %v6975 = vpop.f32.mrf.mxu0
      %v6976 = vadd.f32 %v6887, %v6975
      %v6977 = vpop.f32.mrf.mxu0
      %v6978 = vadd.f32 %v6889, %v6977
      %6979 = vmatmul.bf16.gmra.mxu0 %v6107
      %v6980 = vpop.f32.mrf.mxu0
      %v6981 = vadd.f32 %v6892, %v6980
      %v6982 = vpop.f32.mrf.mxu0
      %v6983 = vadd.f32 %v6894, %v6982
      %6984 = vmatmul.bf16.gmra.mxu0 %v6110
      %v6985 = vpop.f32.mrf.mxu0
      %v6986 = vadd.f32 %v6897, %v6985
      %v6987 = vpop.f32.mrf.mxu0
      %v6988 = vadd.f32 %v6899, %v6987
      %6989 = vmatmul.bf16.gmra.mxu0 %v6113
      %v6990 = vpop.f32.mrf.mxu0
      %v6991 = vadd.f32 %v6902, %v6990
      %v6992 = vpop.f32.mrf.mxu0
      %v6993 = vadd.f32 %v6904, %v6992
      %6994 = vmatmul.bf16.gmra.mxu0 %v6116
      %v6995 = vpop.f32.mrf.mxu0
      %v6996 = vadd.f32 %v6907, %v6995
      %v6997 = vpop.f32.mrf.mxu0
      %v6998 = vadd.f32 %v6909, %v6997
      %6999 = vmatmul.bf16.gmra.mxu0 %v6119
      %v7000 = vpop.f32.mrf.mxu0
      %v7001 = vadd.f32 %v6912, %v7000
      %v7002 = vpop.f32.mrf.mxu0
      %v7003 = vadd.f32 %v6914, %v7002
      %7004 = vmatmul.bf16.gmra.mxu0 %v6122
      %v7005 = vpop.f32.mrf.mxu0
      %v7006 = vadd.f32 %v6917, %v7005
      %v7007 = vpop.f32.mrf.mxu0
      %v7008 = vadd.f32 %v6919, %v7007
      %7009 = vmatmul.bf16.gmra.mxu0 %v6125
      %v7010 = vpop.f32.mrf.mxu0
      %v7011 = vadd.f32 %v6922, %v7010
      %v7012 = vpop.f32.mrf.mxu0
      %v7013 = vadd.f32 %v6924, %v7012
      %7014 = vdwg.mxu0
      %v7015 = vld [vmem:[#allocation4 + $0x30] sm:$0xff]
      %v7016 = vld [vmem:[#allocation4 + $0x38] sm:$0xf]
      %v7017 = vld [vmem:[#allocation4 + $0x3c] sm:$0xff]
      %v7018 = vld [vmem:[#allocation4 + $0x44] sm:$0xf]
      %v7019 = vld [vmem:[#allocation4 + $0x48] sm:$0xff]
      %v7020 = vld [vmem:[#allocation4 + $0x50] sm:$0xf]
      %v7021 = vld [vmem:[#allocation4 + $0x54] sm:$0xff]
      %v7022 = vld [vmem:[#allocation4 + $0x5c] sm:$0xf]
      %v7023 = vld [vmem:[#allocation4 + $0x60] sm:$0xff]
      %v7024 = vld [vmem:[#allocation4 + $0x68] sm:$0xf]
      %v7025 = vld [vmem:[#allocation4 + $0x6c] sm:$0xff]
      %v7026 = vld [vmem:[#allocation4 + $0x74] sm:$0xf]
      %v7027 = vld [vmem:[#allocation4 + $0x78] sm:$0xff]
      %v7028 = vld [vmem:[#allocation4 + $0x80] sm:$0xf]
      %v7029 = vld [vmem:[#allocation4 + $0x84] sm:$0xff]
      %v7030 = vld [vmem:[#allocation4 + $0x8c] sm:$0xf]
      %v7031 = vld [vmem:[#allocation4 + $0x90] sm:$0xff]
      %v7032 = vld [vmem:[#allocation4 + $0x98] sm:$0xf]
      %v7033 = vld [vmem:[#allocation4 + $0x9c] sm:$0xff]
      %v7034 = vld [vmem:[#allocation4 + $0xa4] sm:$0xf]
      %v7035 = vld [vmem:[#allocation4 + $0xa8] sm:$0xff]
      %v7036 = vld [vmem:[#allocation4 + $0xb0] sm:$0xf]
      %v7037 = vld [vmem:[#allocation4 + $0xb4] sm:$0xff]
      %v7038 = vld [vmem:[#allocation4 + $0xbc] sm:$0xf]
      %v7039 = vld [vmem:[#allocation4 + $0xc0] sm:$0xff]
      %v7040 = vld [vmem:[#allocation4 + $0xc8] sm:$0xf]
      %v7041 = vld [vmem:[#allocation4 + $0xcc] sm:$0xff]
      %v7042 = vld [vmem:[#allocation4 + $0xd4] sm:$0xf]
      %v7043 = vld [vmem:[#allocation4 + $0xd8] sm:$0xff]
      %v7044 = vld [vmem:[#allocation4 + $0xe0] sm:$0xf]
      %v7045 = vld [vmem:[#allocation4 + $0xe4] sm:$0xff]
      %v7046 = vld [vmem:[#allocation4 + $0xec] sm:$0xf]
      %v7047 = vld [vmem:[#allocation4 + $0xf0] sm:$0xff]
      %v7048 = vld [vmem:[#allocation4 + $0xf8] sm:$0xf]
      %v7049 = vld [vmem:[#allocation4 + $0xfc] sm:$0xff]
      %v7050 = vld [vmem:[#allocation4 + $0x104] sm:$0xf]
      %v7051 = vld [vmem:[#allocation4 + $0x108] sm:$0xff]
      %v7052 = vld [vmem:[#allocation4 + $0x110] sm:$0xf]
      %v7053 = vld [vmem:[#allocation4 + $0x114] sm:$0xff]
      %v7054 = vld [vmem:[#allocation4 + $0x11c] sm:$0xf]
      %v7055 = vld [vmem:[#allocation4 + $0x120] sm:$0xff]
      %v7056 = vld [vmem:[#allocation4 + $0x128] sm:$0xf]
      %v7057 = vld [vmem:[#allocation4 + $0x12c] sm:$0xff]
      %v7058 = vld [vmem:[#allocation4 + $0x134] sm:$0xf]
      %v7059 = vld [vmem:[#allocation4 + $0x138] sm:$0xff]
      %v7060 = vld [vmem:[#allocation4 + $0x140] sm:$0xf]
      %v7061 = vld [vmem:[#allocation4 + $0x144] sm:$0xff]
      %v7062 = vld [vmem:[#allocation4 + $0x14c] sm:$0xf]
      %v7063 = vld [vmem:[#allocation4 + $0x150] sm:$0xff]
      %v7064 = vld [vmem:[#allocation4 + $0x158] sm:$0xf]
      %v7065 = vld [vmem:[#allocation4 + $0x15c] sm:$0xff]
      %v7066 = vld [vmem:[#allocation4 + $0x164] sm:$0xf]
      %v7067 = vld [vmem:[#allocation4 + $0x168] sm:$0xff]
      %v7068 = vld [vmem:[#allocation4 + $0x170] sm:$0xf]
      %v7069 = vld [vmem:[#allocation4 + $0x174] sm:$0xff]
      %v7070 = vld [vmem:[#allocation4 + $0x17c] sm:$0xf]
      %v7071 = vld [vmem:[#allocation4 + $0x180] sm:$0xff]
      %v7072 = vld [vmem:[#allocation4 + $0x188] sm:$0xf]
      %v7073 = vld [vmem:[#allocation4 + $0x18c] sm:$0xff]
      %v7074 = vld [vmem:[#allocation4 + $0x194] sm:$0xf]
      %v7075 = vld [vmem:[#allocation4 + $0x198] sm:$0xff]
      %v7076 = vld [vmem:[#allocation4 + $0x1a0] sm:$0xf]
      %v7077 = vld [vmem:[#allocation4 + $0x1a4] sm:$0xff]
      %v7078 = vld [vmem:[#allocation4 + $0x1ac] sm:$0xf]
      %s7079 = scalar_lea.vmem %s5, 384
      %v7080 = vld [vmem:[%s7079] sm:$0xf]
      %v7081 = vld [vmem:[%s7079 + $0x4] sm:$0xf]
      %v7082 = vld [vmem:[%s7079 + $0x8] sm:$0xf]
      %v7083 = vld [vmem:[%s7079 + $0xc] sm:$0xf]
      %v7084 = vld [vmem:[%s7079 + $0x10] sm:$0xf]
      %v7085 = vld [vmem:[%s7079 + $0x14] sm:$0xf]
      %v7086 = vld [vmem:[%s7079 + $0x18] sm:$0xf]
      %v7087 = vld [vmem:[%s7079 + $0x1c] sm:$0xf]
      %v7088 = vld [vmem:[%s7079 + $0x20] sm:$0xf]
      %v7089 = vld [vmem:[%s7079 + $0x24] sm:$0xf]
      %v7090 = vld [vmem:[%s7079 + $0x28] sm:$0xf]
      %v7091 = vld [vmem:[%s7079 + $0x2c] sm:$0xf]
      %v7092 = vld [vmem:[%s7079 + $0x30] sm:$0xf]
      %v7093 = vld [vmem:[%s7079 + $0x34] sm:$0xf]
      %v7094 = vld [vmem:[%s7079 + $0x38] sm:$0xf]
      %v7095 = vld [vmem:[%s7079 + $0x3c] sm:$0xf]
      %v7096 = vld [vmem:[%s7079 + $0x40] sm:$0xf]
      %v7097 = vld [vmem:[%s7079 + $0x44] sm:$0xf]
      %v7098 = vld [vmem:[%s7079 + $0x48] sm:$0xf]
      %v7099 = vld [vmem:[%s7079 + $0x4c] sm:$0xf]
      %v7100 = vld [vmem:[%s7079 + $0x50] sm:$0xf]
      %v7101 = vld [vmem:[%s7079 + $0x54] sm:$0xf]
      %v7102 = vld [vmem:[%s7079 + $0x58] sm:$0xf]
      %v7103 = vld [vmem:[%s7079 + $0x5c] sm:$0xf]
      %v7104 = vld [vmem:[%s7079 + $0x60] sm:$0xf]
      %v7105 = vld [vmem:[%s7079 + $0x64] sm:$0xf]
      %v7106 = vld [vmem:[%s7079 + $0x68] sm:$0xf]
      %v7107 = vld [vmem:[%s7079 + $0x6c] sm:$0xf]
      %v7108 = vld [vmem:[%s7079 + $0x70] sm:$0xf]
      %v7109 = vld [vmem:[%s7079 + $0x74] sm:$0xf]
      %v7110 = vld [vmem:[%s7079 + $0x78] sm:$0xf]
      %v7111 = vld [vmem:[%s7079 + $0x7c] sm:$0xf]
      %v7112 = vld [vmem:[%s7079 + $0x80] sm:$0xf]
      %v7113 = vld [vmem:[%s7079 + $0x84] sm:$0xf]
      %v7114 = vld [vmem:[%s7079 + $0x88] sm:$0xf]
      %v7115 = vld [vmem:[%s7079 + $0x8c] sm:$0xf]
      %v7116 = vld [vmem:[%s7079 + $0x90] sm:$0xf]
      %v7117 = vld [vmem:[%s7079 + $0x94] sm:$0xf]
      %v7118 = vld [vmem:[%s7079 + $0x98] sm:$0xf]
      %v7119 = vld [vmem:[%s7079 + $0x9c] sm:$0xf]
      %v7120 = vld [vmem:[%s7079 + $0xa0] sm:$0xf]
      %v7121 = vld [vmem:[%s7079 + $0xa4] sm:$0xf]
      %v7122 = vld [vmem:[%s7079 + $0xa8] sm:$0xf]
      %v7123 = vld [vmem:[%s7079 + $0xac] sm:$0xf]
      %v7124 = vld [vmem:[%s7079 + $0xb0] sm:$0xf]
      %v7125 = vld [vmem:[%s7079 + $0xb4] sm:$0xf]
      %v7126 = vld [vmem:[%s7079 + $0xb8] sm:$0xf]
      %v7127 = vld [vmem:[%s7079 + $0xbc] sm:$0xf]
      %v7192 = vunpack.c.l.b16 %v7015
      %v7193 = vunpack.c.h.b16 %v7015
      %v7194 = vunpack.c.l.b16 %v7016
      %v7195 = vunpack.c.l.b16 %v7017
      %v7196 = vunpack.c.h.b16 %v7017
      %v7197 = vunpack.c.l.b16 %v7018
      %v7198 = vunpack.c.l.b16 %v7019
      %v7199 = vunpack.c.h.b16 %v7019
      %v7200 = vunpack.c.l.b16 %v7020
      %v7201 = vunpack.c.l.b16 %v7021
      %v7202 = vunpack.c.h.b16 %v7021
      %v7203 = vunpack.c.l.b16 %v7022
      %v7204 = vunpack.c.l.b16 %v7023
      %v7205 = vunpack.c.h.b16 %v7023
      %v7206 = vunpack.c.l.b16 %v7024
      %v7207 = vunpack.c.l.b16 %v7025
      %v7208 = vunpack.c.h.b16 %v7025
      %v7209 = vunpack.c.l.b16 %v7026
      %v7210 = vunpack.c.l.b16 %v7027
      %v7211 = vunpack.c.h.b16 %v7027
      %v7212 = vunpack.c.l.b16 %v7028
      %v7213 = vunpack.c.l.b16 %v7029
      %v7214 = vunpack.c.h.b16 %v7029
      %v7215 = vunpack.c.l.b16 %v7030
      %v7216 = vunpack.c.l.b16 %v7031
      %v7217 = vunpack.c.h.b16 %v7031
      %v7218 = vunpack.c.l.b16 %v7032
      %v7219 = vunpack.c.l.b16 %v7033
      %v7220 = vunpack.c.h.b16 %v7033
      %v7221 = vunpack.c.l.b16 %v7034
      %v7222 = vunpack.c.l.b16 %v7035
      %v7223 = vunpack.c.h.b16 %v7035
      %v7224 = vunpack.c.l.b16 %v7036
      %v7225 = vunpack.c.l.b16 %v7037
      %v7226 = vunpack.c.h.b16 %v7037
      %v7227 = vunpack.c.l.b16 %v7038
      %v7228 = vunpack.c.l.b16 %v7039
      %v7229 = vunpack.c.h.b16 %v7039
      %v7230 = vunpack.c.l.b16 %v7040
      %v7231 = vunpack.c.l.b16 %v7041
      %v7232 = vunpack.c.h.b16 %v7041
      %v7233 = vunpack.c.l.b16 %v7042
      %v7234 = vunpack.c.l.b16 %v7043
      %v7235 = vunpack.c.h.b16 %v7043
      %v7236 = vunpack.c.l.b16 %v7044
      %v7237 = vunpack.c.l.b16 %v7045
      %v7238 = vunpack.c.h.b16 %v7045
      %v7239 = vunpack.c.l.b16 %v7046
      %v7240 = vunpack.c.l.b16 %v7047
      %v7241 = vunpack.c.h.b16 %v7047
      %v7242 = vunpack.c.l.b16 %v7048
      %v7243 = vunpack.c.l.b16 %v7049
      %v7244 = vunpack.c.h.b16 %v7049
      %v7245 = vunpack.c.l.b16 %v7050
      %v7246 = vunpack.c.l.b16 %v7051
      %v7247 = vunpack.c.h.b16 %v7051
      %v7248 = vunpack.c.l.b16 %v7052
      %v7249 = vunpack.c.l.b16 %v7053
      %v7250 = vunpack.c.h.b16 %v7053
      %v7251 = vunpack.c.l.b16 %v7054
      %v7252 = vunpack.c.l.b16 %v7055
      %v7253 = vunpack.c.h.b16 %v7055
      %v7254 = vunpack.c.l.b16 %v7056
      %v7255 = vunpack.c.l.b16 %v7057
      %v7256 = vunpack.c.h.b16 %v7057
      %v7257 = vunpack.c.l.b16 %v7058
      %v7258 = vunpack.c.l.b16 %v7059
      %v7259 = vunpack.c.h.b16 %v7059
      %v7260 = vunpack.c.l.b16 %v7060
      %v7261 = vunpack.c.l.b16 %v7061
      %v7262 = vunpack.c.h.b16 %v7061
      %v7263 = vunpack.c.l.b16 %v7062
      %v7264 = vunpack.c.l.b16 %v7063
      %v7265 = vunpack.c.h.b16 %v7063
      %v7266 = vunpack.c.l.b16 %v7064
      %v7267 = vunpack.c.l.b16 %v7065
      %v7268 = vunpack.c.h.b16 %v7065
      %v7269 = vunpack.c.l.b16 %v7066
      %v7270 = vunpack.c.l.b16 %v7067
      %v7271 = vunpack.c.h.b16 %v7067
      %v7272 = vunpack.c.l.b16 %v7068
      %v7273 = vunpack.c.l.b16 %v7069
      %v7274 = vunpack.c.h.b16 %v7069
      %v7275 = vunpack.c.l.b16 %v7070
      %v7276 = vunpack.c.l.b16 %v7071
      %v7277 = vunpack.c.h.b16 %v7071
      %v7278 = vunpack.c.l.b16 %v7072
      %v7279 = vunpack.c.l.b16 %v7073
      %v7280 = vunpack.c.h.b16 %v7073
      %v7281 = vunpack.c.l.b16 %v7074
      %v7282 = vunpack.c.l.b16 %v7075
      %v7283 = vunpack.c.h.b16 %v7075
      %v7284 = vunpack.c.l.b16 %v7076
      %v7285 = vunpack.c.l.b16 %v7077
      %v7286 = vunpack.c.h.b16 %v7077
      %v7287 = vunpack.c.l.b16 %v7078
      %v7288 = vpack.c.b16 %v7195, %v7192
      %v7289 = vpack.c.b16 %v7196, %v7193
      %v7290 = vpack.c.b16 %v7197, %v7194
      %v7291 = vpack.c.b16 %v7201, %v7198
      %v7292 = vpack.c.b16 %v7202, %v7199
      %v7293 = vpack.c.b16 %v7203, %v7200
      %v7294 = vpack.c.b16 %v7207, %v7204
      %v7295 = vpack.c.b16 %v7208, %v7205
      %v7296 = vpack.c.b16 %v7209, %v7206
      %v7297 = vpack.c.b16 %v7213, %v7210
      %v7298 = vpack.c.b16 %v7214, %v7211
      %v7299 = vpack.c.b16 %v7215, %v7212
      %v7300 = vpack.c.b16 %v7219, %v7216
      %v7301 = vpack.c.b16 %v7220, %v7217
      %v7302 = vpack.c.b16 %v7221, %v7218
      %v7303 = vpack.c.b16 %v7225, %v7222
      %v7304 = vpack.c.b16 %v7226, %v7223
      %v7305 = vpack.c.b16 %v7227, %v7224
      %v7306 = vpack.c.b16 %v7231, %v7228
      %v7307 = vpack.c.b16 %v7232, %v7229
      %v7308 = vpack.c.b16 %v7233, %v7230
      %v7309 = vpack.c.b16 %v7237, %v7234
      %v7310 = vpack.c.b16 %v7238, %v7235
      %v7311 = vpack.c.b16 %v7239, %v7236
      %v7312 = vpack.c.b16 %v7243, %v7240
      %v7313 = vpack.c.b16 %v7244, %v7241
      %v7314 = vpack.c.b16 %v7245, %v7242
      %v7315 = vpack.c.b16 %v7249, %v7246
      %v7316 = vpack.c.b16 %v7250, %v7247
      %v7317 = vpack.c.b16 %v7251, %v7248
      %v7318 = vpack.c.b16 %v7255, %v7252
      %v7319 = vpack.c.b16 %v7256, %v7253
      %v7320 = vpack.c.b16 %v7257, %v7254
      %v7321 = vpack.c.b16 %v7261, %v7258
      %v7322 = vpack.c.b16 %v7262, %v7259
      %v7323 = vpack.c.b16 %v7263, %v7260
      %v7324 = vpack.c.b16 %v7267, %v7264
      %v7325 = vpack.c.b16 %v7268, %v7265
      %v7326 = vpack.c.b16 %v7269, %v7266
      %v7327 = vpack.c.b16 %v7273, %v7270
      %v7328 = vpack.c.b16 %v7274, %v7271
      %v7329 = vpack.c.b16 %v7275, %v7272
      %v7330 = vpack.c.b16 %v7279, %v7276
      %v7331 = vpack.c.b16 %v7280, %v7277
      %v7332 = vpack.c.b16 %v7281, %v7278
      %v7333 = vpack.c.b16 %v7285, %v7282
      %v7334 = vpack.c.b16 %v7286, %v7283
      %v7335 = vpack.c.b16 %v7287, %v7284
      %v7432 = vunpack.c.l.b16 %v7080
      %v7433 = vunpack.c.l.b16 %v7081
      %v7434 = vunpack.c.l.b16 %v7082
      %v7435 = vunpack.c.l.b16 %v7083
      %v7436 = vunpack.c.l.b16 %v7084
      %v7437 = vunpack.c.l.b16 %v7085
      %v7438 = vunpack.c.l.b16 %v7086
      %v7439 = vunpack.c.l.b16 %v7087
      %v7440 = vunpack.c.l.b16 %v7088
      %v7441 = vunpack.c.l.b16 %v7089
      %v7442 = vunpack.c.l.b16 %v7090
      %v7443 = vunpack.c.l.b16 %v7091
      %v7444 = vunpack.c.l.b16 %v7092
      %v7445 = vunpack.c.l.b16 %v7093
      %v7446 = vunpack.c.l.b16 %v7094
      %v7447 = vunpack.c.l.b16 %v7095
      %v7448 = vunpack.c.l.b16 %v7096
      %v7449 = vunpack.c.l.b16 %v7097
      %v7450 = vunpack.c.l.b16 %v7098
      %v7451 = vunpack.c.l.b16 %v7099
      %v7452 = vunpack.c.l.b16 %v7100
      %v7453 = vunpack.c.l.b16 %v7101
      %v7454 = vunpack.c.l.b16 %v7102
      %v7455 = vunpack.c.l.b16 %v7103
      %v7456 = vunpack.c.l.b16 %v7104
      %v7457 = vunpack.c.l.b16 %v7105
      %v7458 = vunpack.c.l.b16 %v7106
      %v7459 = vunpack.c.l.b16 %v7107
      %v7460 = vunpack.c.l.b16 %v7108
      %v7461 = vunpack.c.l.b16 %v7109
      %v7462 = vunpack.c.l.b16 %v7110
      %v7463 = vunpack.c.l.b16 %v7111
      %v7464 = vunpack.c.l.b16 %v7112
      %v7465 = vunpack.c.l.b16 %v7113
      %v7466 = vunpack.c.l.b16 %v7114
      %v7467 = vunpack.c.l.b16 %v7115
      %v7468 = vunpack.c.l.b16 %v7116
      %v7469 = vunpack.c.l.b16 %v7117
      %v7470 = vunpack.c.l.b16 %v7118
      %v7471 = vunpack.c.l.b16 %v7119
      %v7472 = vunpack.c.l.b16 %v7120
      %v7473 = vunpack.c.l.b16 %v7121
      %v7474 = vunpack.c.l.b16 %v7122
      %v7475 = vunpack.c.l.b16 %v7123
      %v7476 = vunpack.c.l.b16 %v7124
      %v7477 = vunpack.c.l.b16 %v7125
      %v7478 = vunpack.c.l.b16 %v7126
      %v7479 = vunpack.c.l.b16 %v7127
      %v7480 = vpack.c.b16 %v7433, %v7432
      %v7481 = vpack.c.b16 %v7435, %v7434
      %v7482 = vpack.c.b16 %v7437, %v7436
      %v7483 = vpack.c.b16 %v7439, %v7438
      %v7484 = vpack.c.b16 %v7441, %v7440
      %v7485 = vpack.c.b16 %v7443, %v7442
      %v7486 = vpack.c.b16 %v7445, %v7444
      %v7487 = vpack.c.b16 %v7447, %v7446
      %v7488 = vpack.c.b16 %v7449, %v7448
      %v7489 = vpack.c.b16 %v7451, %v7450
      %v7490 = vpack.c.b16 %v7453, %v7452
      %v7491 = vpack.c.b16 %v7455, %v7454
      %v7492 = vpack.c.b16 %v7457, %v7456
      %v7493 = vpack.c.b16 %v7459, %v7458
      %v7494 = vpack.c.b16 %v7461, %v7460
      %v7495 = vpack.c.b16 %v7463, %v7462
      %v7496 = vpack.c.b16 %v7465, %v7464
      %v7497 = vpack.c.b16 %v7467, %v7466
      %v7498 = vpack.c.b16 %v7469, %v7468
      %v7499 = vpack.c.b16 %v7471, %v7470
      %v7500 = vpack.c.b16 %v7473, %v7472
      %v7501 = vpack.c.b16 %v7475, %v7474
      %v7502 = vpack.c.b16 %v7477, %v7476
      %v7503 = vpack.c.b16 %v7479, %v7478
      %7528 = vmatpush.bf16.msra.mxu0 %v7487
      %7529 = vmatpush.bf16.msra.mxu0 %v7486
      %7530 = vmatpush.bf16.msra.mxu0 %v7485
      %7531 = vmatpush.bf16.msra.mxu0 %v7484
      %7532 = vmatpush.bf16.msra.mxu0 %v7483
      %7533 = vmatpush.bf16.msra.mxu0 %v7482
      %7534 = vmatpush.bf16.msra.mxu0 %v7481
      %7535 = vmatpush.bf16.msra.mxu0 %v7480
      %7536 = vmatmul.bf16.gmra.mxu0 %v7288
      %v7537 = vpop.f32.mrf.mxu0
      %v7538 = vadd.f32 0.0, %v7537
      %v7539 = vpop.f32.mrf.mxu0
      %v7540 = vadd.f32 0.0, %v7539
      %7541 = vmatmul.bf16.gmra.mxu0 %v7291
      %v7542 = vpop.f32.mrf.mxu0
      %v7543 = vadd.f32 0.0, %v7542
      %v7544 = vpop.f32.mrf.mxu0
      %v7545 = vadd.f32 0.0, %v7544
      %7546 = vmatmul.bf16.gmra.mxu0 %v7294
      %v7547 = vpop.f32.mrf.mxu0
      %v7548 = vadd.f32 0.0, %v7547
      %v7549 = vpop.f32.mrf.mxu0
      %v7550 = vadd.f32 0.0, %v7549
      %7551 = vmatmul.bf16.gmra.mxu0 %v7297
      %v7552 = vpop.f32.mrf.mxu0
      %v7553 = vadd.f32 0.0, %v7552
      %v7554 = vpop.f32.mrf.mxu0
      %v7555 = vadd.f32 0.0, %v7554
      %7556 = vmatmul.bf16.gmra.mxu0 %v7300
      %v7557 = vpop.f32.mrf.mxu0
      %v7558 = vadd.f32 0.0, %v7557
      %v7559 = vpop.f32.mrf.mxu0
      %v7560 = vadd.f32 0.0, %v7559
      %7561 = vmatmul.bf16.gmra.mxu0 %v7303
      %v7562 = vpop.f32.mrf.mxu0
      %v7563 = vadd.f32 0.0, %v7562
      %v7564 = vpop.f32.mrf.mxu0
      %v7565 = vadd.f32 0.0, %v7564
      %7566 = vmatmul.bf16.gmra.mxu0 %v7306
      %v7567 = vpop.f32.mrf.mxu0
      %v7568 = vadd.f32 0.0, %v7567
      %v7569 = vpop.f32.mrf.mxu0
      %v7570 = vadd.f32 0.0, %v7569
      %7571 = vmatmul.bf16.gmra.mxu0 %v7309
      %v7572 = vpop.f32.mrf.mxu0
      %v7573 = vadd.f32 0.0, %v7572
      %v7574 = vpop.f32.mrf.mxu0
      %v7575 = vadd.f32 0.0, %v7574
      %7576 = vmatmul.bf16.gmra.mxu0 %v7312
      %v7577 = vpop.f32.mrf.mxu0
      %v7578 = vadd.f32 0.0, %v7577
      %v7579 = vpop.f32.mrf.mxu0
      %v7580 = vadd.f32 0.0, %v7579
      %7581 = vmatmul.bf16.gmra.mxu0 %v7315
      %v7582 = vpop.f32.mrf.mxu0
      %v7583 = vadd.f32 0.0, %v7582
      %v7584 = vpop.f32.mrf.mxu0
      %v7585 = vadd.f32 0.0, %v7584
      %7586 = vmatmul.bf16.gmra.mxu0 %v7318
      %v7587 = vpop.f32.mrf.mxu0
      %v7588 = vadd.f32 0.0, %v7587
      %v7589 = vpop.f32.mrf.mxu0
      %v7590 = vadd.f32 0.0, %v7589
      %7591 = vmatmul.bf16.gmra.mxu0 %v7321
      %v7592 = vpop.f32.mrf.mxu0
      %v7593 = vadd.f32 0.0, %v7592
      %v7594 = vpop.f32.mrf.mxu0
      %v7595 = vadd.f32 0.0, %v7594
      %7596 = vmatmul.bf16.gmra.mxu0 %v7324
      %v7597 = vpop.f32.mrf.mxu0
      %v7598 = vadd.f32 0.0, %v7597
      %v7599 = vpop.f32.mrf.mxu0
      %v7600 = vadd.f32 0.0, %v7599
      %7601 = vmatmul.bf16.gmra.mxu0 %v7327
      %v7602 = vpop.f32.mrf.mxu0
      %v7603 = vadd.f32 0.0, %v7602
      %v7604 = vpop.f32.mrf.mxu0
      %v7605 = vadd.f32 0.0, %v7604
      %7606 = vmatmul.bf16.gmra.mxu0 %v7330
      %v7607 = vpop.f32.mrf.mxu0
      %v7608 = vadd.f32 0.0, %v7607
      %v7609 = vpop.f32.mrf.mxu0
      %v7610 = vadd.f32 0.0, %v7609
      %7611 = vmatmul.bf16.gmra.mxu0 %v7333
      %v7612 = vpop.f32.mrf.mxu0
      %v7613 = vadd.f32 0.0, %v7612
      %v7614 = vpop.f32.mrf.mxu0
      %v7615 = vadd.f32 0.0, %v7614
      %7616 = vdwg.mxu0
      %7617 = vmatpush.bf16.msra.mxu0 %v7495
      %7618 = vmatpush.bf16.msra.mxu0 %v7494
      %7619 = vmatpush.bf16.msra.mxu0 %v7493
      %7620 = vmatpush.bf16.msra.mxu0 %v7492
      %7621 = vmatpush.bf16.msra.mxu0 %v7491
      %7622 = vmatpush.bf16.msra.mxu0 %v7490
      %7623 = vmatpush.bf16.msra.mxu0 %v7489
      %7624 = vmatpush.bf16.msra.mxu0 %v7488
      %7625 = vmatmul.bf16.gmra.mxu0 %v7289
      %v7626 = vpop.f32.mrf.mxu0
      %v7627 = vadd.f32 %v7538, %v7626
      %v7628 = vpop.f32.mrf.mxu0
      %v7629 = vadd.f32 %v7540, %v7628
      %7630 = vmatmul.bf16.gmra.mxu0 %v7292
      %v7631 = vpop.f32.mrf.mxu0
      %v7632 = vadd.f32 %v7543, %v7631
      %v7633 = vpop.f32.mrf.mxu0
      %v7634 = vadd.f32 %v7545, %v7633
      %7635 = vmatmul.bf16.gmra.mxu0 %v7295
      %v7636 = vpop.f32.mrf.mxu0
      %v7637 = vadd.f32 %v7548, %v7636
      %v7638 = vpop.f32.mrf.mxu0
      %v7639 = vadd.f32 %v7550, %v7638
      %7640 = vmatmul.bf16.gmra.mxu0 %v7298
      %v7641 = vpop.f32.mrf.mxu0
      %v7642 = vadd.f32 %v7553, %v7641
      %v7643 = vpop.f32.mrf.mxu0
      %v7644 = vadd.f32 %v7555, %v7643
      %7645 = vmatmul.bf16.gmra.mxu0 %v7301
      %v7646 = vpop.f32.mrf.mxu0
      %v7647 = vadd.f32 %v7558, %v7646
      %v7648 = vpop.f32.mrf.mxu0
      %v7649 = vadd.f32 %v7560, %v7648
      %7650 = vmatmul.bf16.gmra.mxu0 %v7304
      %v7651 = vpop.f32.mrf.mxu0
      %v7652 = vadd.f32 %v7563, %v7651
      %v7653 = vpop.f32.mrf.mxu0
      %v7654 = vadd.f32 %v7565, %v7653
      %7655 = vmatmul.bf16.gmra.mxu0 %v7307
      %v7656 = vpop.f32.mrf.mxu0
      %v7657 = vadd.f32 %v7568, %v7656
      %v7658 = vpop.f32.mrf.mxu0
      %v7659 = vadd.f32 %v7570, %v7658
      %7660 = vmatmul.bf16.gmra.mxu0 %v7310
      %v7661 = vpop.f32.mrf.mxu0
      %v7662 = vadd.f32 %v7573, %v7661
      %v7663 = vpop.f32.mrf.mxu0
      %v7664 = vadd.f32 %v7575, %v7663
      %7665 = vmatmul.bf16.gmra.mxu0 %v7313
      %v7666 = vpop.f32.mrf.mxu0
      %v7667 = vadd.f32 %v7578, %v7666
      %v7668 = vpop.f32.mrf.mxu0
      %v7669 = vadd.f32 %v7580, %v7668
      %7670 = vmatmul.bf16.gmra.mxu0 %v7316
      %v7671 = vpop.f32.mrf.mxu0
      %v7672 = vadd.f32 %v7583, %v7671
      %v7673 = vpop.f32.mrf.mxu0
      %v7674 = vadd.f32 %v7585, %v7673
      %7675 = vmatmul.bf16.gmra.mxu0 %v7319
      %v7676 = vpop.f32.mrf.mxu0
      %v7677 = vadd.f32 %v7588, %v7676
      %v7678 = vpop.f32.mrf.mxu0
      %v7679 = vadd.f32 %v7590, %v7678
      %7680 = vmatmul.bf16.gmra.mxu0 %v7322
      %v7681 = vpop.f32.mrf.mxu0
      %v7682 = vadd.f32 %v7593, %v7681
      %v7683 = vpop.f32.mrf.mxu0
      %v7684 = vadd.f32 %v7595, %v7683
      %7685 = vmatmul.bf16.gmra.mxu0 %v7325
      %v7686 = vpop.f32.mrf.mxu0
      %v7687 = vadd.f32 %v7598, %v7686
      %v7688 = vpop.f32.mrf.mxu0
      %v7689 = vadd.f32 %v7600, %v7688
      %7690 = vmatmul.bf16.gmra.mxu0 %v7328
      %v7691 = vpop.f32.mrf.mxu0
      %v7692 = vadd.f32 %v7603, %v7691
      %v7693 = vpop.f32.mrf.mxu0
      %v7694 = vadd.f32 %v7605, %v7693
      %7695 = vmatmul.bf16.gmra.mxu0 %v7331
      %v7696 = vpop.f32.mrf.mxu0
      %v7697 = vadd.f32 %v7608, %v7696
      %v7698 = vpop.f32.mrf.mxu0
      %v7699 = vadd.f32 %v7610, %v7698
      %7700 = vmatmul.bf16.gmra.mxu0 %v7334
      %v7701 = vpop.f32.mrf.mxu0
      %v7702 = vadd.f32 %v7613, %v7701
      %v7703 = vpop.f32.mrf.mxu0
      %v7704 = vadd.f32 %v7615, %v7703
      %7705 = vdwg.mxu0
      %7706 = vmatpush.bf16.msra.mxu0 %v7503
      %7707 = vmatpush.bf16.msra.mxu0 %v7502
      %7708 = vmatpush.bf16.msra.mxu0 %v7501
      %7709 = vmatpush.bf16.msra.mxu0 %v7500
      %7710 = vmatpush.bf16.msra.mxu0 %v7499
      %7711 = vmatpush.bf16.msra.mxu0 %v7498
      %7712 = vmatpush.bf16.msra.mxu0 %v7497
      %7713 = vmatpush.bf16.msra.mxu0 %v7496
      %7714 = vmatmul.bf16.gmra.mxu0 %v7290
      %v7715 = vpop.f32.mrf.mxu0
      %v7716 = vadd.f32 %v7627, %v7715
      %v7717 = vpop.f32.mrf.mxu0
      %v7718 = vadd.f32 %v7629, %v7717
      %7719 = vmatmul.bf16.gmra.mxu0 %v7293
      %v7720 = vpop.f32.mrf.mxu0
      %v7721 = vadd.f32 %v7632, %v7720
      %v7722 = vpop.f32.mrf.mxu0
      %v7723 = vadd.f32 %v7634, %v7722
      %7724 = vmatmul.bf16.gmra.mxu0 %v7296
      %v7725 = vpop.f32.mrf.mxu0
      %v7726 = vadd.f32 %v7637, %v7725
      %v7727 = vpop.f32.mrf.mxu0
      %v7728 = vadd.f32 %v7639, %v7727
      %7729 = vmatmul.bf16.gmra.mxu0 %v7299
      %v7730 = vpop.f32.mrf.mxu0
      %v7731 = vadd.f32 %v7642, %v7730
      %v7732 = vpop.f32.mrf.mxu0
      %v7733 = vadd.f32 %v7644, %v7732
      %7734 = vmatmul.bf16.gmra.mxu0 %v7302
      %v7735 = vpop.f32.mrf.mxu0
      %v7736 = vadd.f32 %v7647, %v7735
      %v7737 = vpop.f32.mrf.mxu0
      %v7738 = vadd.f32 %v7649, %v7737
      %7739 = vmatmul.bf16.gmra.mxu0 %v7305
      %v7740 = vpop.f32.mrf.mxu0
      %v7741 = vadd.f32 %v7652, %v7740
      %v7742 = vpop.f32.mrf.mxu0
      %v7743 = vadd.f32 %v7654, %v7742
      %7744 = vmatmul.bf16.gmra.mxu0 %v7308
      %v7745 = vpop.f32.mrf.mxu0
      %v7746 = vadd.f32 %v7657, %v7745
      %v7747 = vpop.f32.mrf.mxu0
      %v7748 = vadd.f32 %v7659, %v7747
      %7749 = vmatmul.bf16.gmra.mxu0 %v7311
      %v7750 = vpop.f32.mrf.mxu0
      %v7751 = vadd.f32 %v7662, %v7750
      %v7752 = vpop.f32.mrf.mxu0
      %v7753 = vadd.f32 %v7664, %v7752
      %7754 = vmatmul.bf16.gmra.mxu0 %v7314
      %v7755 = vpop.f32.mrf.mxu0
      %v7756 = vadd.f32 %v7667, %v7755
      %v7757 = vpop.f32.mrf.mxu0
      %v7758 = vadd.f32 %v7669, %v7757
      %7759 = vmatmul.bf16.gmra.mxu0 %v7317
      %v7760 = vpop.f32.mrf.mxu0
      %v7761 = vadd.f32 %v7672, %v7760
      %v7762 = vpop.f32.mrf.mxu0
      %v7763 = vadd.f32 %v7674, %v7762
      %7764 = vmatmul.bf16.gmra.mxu0 %v7320
      %v7765 = vpop.f32.mrf.mxu0
      %v7766 = vadd.f32 %v7677, %v7765
      %v7767 = vpop.f32.mrf.mxu0
      %v7768 = vadd.f32 %v7679, %v7767
      %7769 = vmatmul.bf16.gmra.mxu0 %v7323
      %v7770 = vpop.f32.mrf.mxu0
      %v7771 = vadd.f32 %v7682, %v7770
      %v7772 = vpop.f32.mrf.mxu0
      %v7773 = vadd.f32 %v7684, %v7772
      %7774 = vmatmul.bf16.gmra.mxu0 %v7326
      %v7775 = vpop.f32.mrf.mxu0
      %v7776 = vadd.f32 %v7687, %v7775
      %v7777 = vpop.f32.mrf.mxu0
      %v7778 = vadd.f32 %v7689, %v7777
      %7779 = vmatmul.bf16.gmra.mxu0 %v7329
      %v7780 = vpop.f32.mrf.mxu0
      %v7781 = vadd.f32 %v7692, %v7780
      %v7782 = vpop.f32.mrf.mxu0
      %v7783 = vadd.f32 %v7694, %v7782
      %7784 = vmatmul.bf16.gmra.mxu0 %v7332
      %v7785 = vpop.f32.mrf.mxu0
      %v7786 = vadd.f32 %v7697, %v7785
      %v7787 = vpop.f32.mrf.mxu0
      %v7788 = vadd.f32 %v7699, %v7787
      %7789 = vmatmul.bf16.gmra.mxu0 %v7335
      %v7790 = vpop.f32.mrf.mxu0
      %v7791 = vadd.f32 %v7702, %v7790
      %v7792 = vpop.f32.mrf.mxu0
      %v7793 = vadd.f32 %v7704, %v7792
      %7794 = vdwg.mxu0
      %v7795 = vadd.f32 %v6936, %v7716
      %v7796 = vadd.f32 %v6938, %v7718
      %v7797 = vadd.f32 %v6941, %v7721
      %v7798 = vadd.f32 %v6943, %v7723
      %v7799 = vadd.f32 %v6946, %v7726
      %v7800 = vadd.f32 %v6948, %v7728
      %v7801 = vadd.f32 %v6951, %v7731
      %v7802 = vadd.f32 %v6953, %v7733
      %v7803 = vadd.f32 %v6956, %v7736
      %v7804 = vadd.f32 %v6958, %v7738
      %v7805 = vadd.f32 %v6961, %v7741
      %v7806 = vadd.f32 %v6963, %v7743
      %v7807 = vadd.f32 %v6966, %v7746
      %v7808 = vadd.f32 %v6968, %v7748
      %v7809 = vadd.f32 %v6971, %v7751
      %v7810 = vadd.f32 %v6973, %v7753
      %v7811 = vadd.f32 %v6976, %v7756
      %v7812 = vadd.f32 %v6978, %v7758
      %v7813 = vadd.f32 %v6981, %v7761
      %v7814 = vadd.f32 %v6983, %v7763
      %v7815 = vadd.f32 %v6986, %v7766
      %v7816 = vadd.f32 %v6988, %v7768
      %v7817 = vadd.f32 %v6991, %v7771
      %v7818 = vadd.f32 %v6993, %v7773
      %v7819 = vadd.f32 %v6996, %v7776
      %v7820 = vadd.f32 %v6998, %v7778
      %v7821 = vadd.f32 %v7001, %v7781
      %v7822 = vadd.f32 %v7003, %v7783
      %v7823 = vadd.f32 %v7006, %v7786
      %v7824 = vadd.f32 %v7008, %v7788
      %v7825 = vadd.f32 %v7011, %v7791
      %v7826 = vadd.f32 %v7013, %v7793
      %v7827 = vld [vmem:[%s6] sm:$0x1]
      %v7829 = vperm.slane %v7827, 0
      %v7831 = vadd.f32 %v7795, %v7829
      %v7832 = vadd.f32 %v7796, %v7829
      %v7833 = vadd.f32 %v7797, %v7829
      %v7834 = vadd.f32 %v7798, %v7829
      %v7835 = vadd.f32 %v7799, %v7829
      %v7836 = vadd.f32 %v7800, %v7829
      %v7837 = vadd.f32 %v7801, %v7829
      %v7838 = vadd.f32 %v7802, %v7829
      %v7839 = vadd.f32 %v7803, %v7829
      %v7840 = vadd.f32 %v7804, %v7829
      %v7841 = vadd.f32 %v7805, %v7829
      %v7842 = vadd.f32 %v7806, %v7829
      %v7843 = vadd.f32 %v7807, %v7829
      %v7844 = vadd.f32 %v7808, %v7829
      %v7845 = vadd.f32 %v7809, %v7829
      %v7846 = vadd.f32 %v7810, %v7829
      %v7847 = vadd.f32 %v7811, %v7829
      %v7848 = vadd.f32 %v7812, %v7829
      %v7849 = vadd.f32 %v7813, %v7829
      %v7850 = vadd.f32 %v7814, %v7829
      %v7851 = vadd.f32 %v7815, %v7829
      %v7852 = vadd.f32 %v7816, %v7829
      %v7853 = vadd.f32 %v7817, %v7829
      %v7854 = vadd.f32 %v7818, %v7829
      %v7855 = vadd.f32 %v7819, %v7829
      %v7856 = vadd.f32 %v7820, %v7829
      %v7857 = vadd.f32 %v7821, %v7829
      %v7858 = vadd.f32 %v7822, %v7829
      %v7859 = vadd.f32 %v7823, %v7829
      %v7860 = vadd.f32 %v7824, %v7829
      %v7861 = vadd.f32 %v7825, %v7829
      %v7862 = vadd.f32 %v7826, %v7829
      %v7863 = vmax.f32 %v7831, 0.0
      %v7864 = vmax.f32 %v7832, 0.0
      %v7865 = vmax.f32 %v7833, 0.0
      %v7866 = vmax.f32 %v7834, 0.0
      %v7867 = vmax.f32 %v7835, 0.0
      %v7868 = vmax.f32 %v7836, 0.0
      %v7869 = vmax.f32 %v7837, 0.0
      %v7870 = vmax.f32 %v7838, 0.0
      %v7871 = vmax.f32 %v7839, 0.0
      %v7872 = vmax.f32 %v7840, 0.0
      %v7873 = vmax.f32 %v7841, 0.0
      %v7874 = vmax.f32 %v7842, 0.0
      %v7875 = vmax.f32 %v7843, 0.0
      %v7876 = vmax.f32 %v7844, 0.0
      %v7877 = vmax.f32 %v7845, 0.0
      %v7878 = vmax.f32 %v7846, 0.0
      %v7879 = vmax.f32 %v7847, 0.0
      %v7880 = vmax.f32 %v7848, 0.0
      %v7881 = vmax.f32 %v7849, 0.0
      %v7882 = vmax.f32 %v7850, 0.0
      %v7883 = vmax.f32 %v7851, 0.0
      %v7884 = vmax.f32 %v7852, 0.0
      %v7885 = vmax.f32 %v7853, 0.0
      %v7886 = vmax.f32 %v7854, 0.0
      %v7887 = vmax.f32 %v7855, 0.0
      %v7888 = vmax.f32 %v7856, 0.0
      %v7889 = vmax.f32 %v7857, 0.0
      %v7890 = vmax.f32 %v7858, 0.0
      %v7891 = vmax.f32 %v7859, 0.0
      %v7892 = vmax.f32 %v7860, 0.0
      %v7893 = vmax.f32 %v7861, 0.0
      %v7894 = vmax.f32 %v7862, 0.0
      %v7895 = vpack.c.bf16 %v7863, %v7863
      %v7896 = vpack.c.bf16 %v7864, %v7864
      %v7897 = vpack.c.bf16 %v7865, %v7865
      %v7898 = vpack.c.bf16 %v7866, %v7866
      %v7899 = vpack.c.bf16 %v7867, %v7867
      %v7900 = vpack.c.bf16 %v7868, %v7868
      %v7901 = vpack.c.bf16 %v7869, %v7869
      %v7902 = vpack.c.bf16 %v7870, %v7870
      %v7903 = vpack.c.bf16 %v7871, %v7871
      %v7904 = vpack.c.bf16 %v7872, %v7872
      %v7905 = vpack.c.bf16 %v7873, %v7873
      %v7906 = vpack.c.bf16 %v7874, %v7874
      %v7907 = vpack.c.bf16 %v7875, %v7875
      %v7908 = vpack.c.bf16 %v7876, %v7876
      %v7909 = vpack.c.bf16 %v7877, %v7877
      %v7910 = vpack.c.bf16 %v7878, %v7878
      %v7911 = vpack.c.bf16 %v7879, %v7879
      %v7912 = vpack.c.bf16 %v7880, %v7880
      %v7913 = vpack.c.bf16 %v7881, %v7881
      %v7914 = vpack.c.bf16 %v7882, %v7882
      %v7915 = vpack.c.bf16 %v7883, %v7883
      %v7916 = vpack.c.bf16 %v7884, %v7884
      %v7917 = vpack.c.bf16 %v7885, %v7885
      %v7918 = vpack.c.bf16 %v7886, %v7886
      %v7919 = vpack.c.bf16 %v7887, %v7887
      %v7920 = vpack.c.bf16 %v7888, %v7888
      %v7921 = vpack.c.bf16 %v7889, %v7889
      %v7922 = vpack.c.bf16 %v7890, %v7890
      %v7923 = vpack.c.bf16 %v7891, %v7891
      %v7924 = vpack.c.bf16 %v7892, %v7892
      %v7925 = vpack.c.bf16 %v7893, %v7893
      %v7926 = vpack.c.bf16 %v7894, %v7894
      %v7927 = vld [vmem:[#allocation5] sm:$0xff]
      %v7928 = vld [vmem:[#allocation5 + $0x8] sm:$0xff]
      %v7929 = vld [vmem:[#allocation5 + $0x10] sm:$0xff]
      %v7930 = vld [vmem:[#allocation5 + $0x18] sm:$0xff]
      %v7931 = vld [vmem:[#allocation5 + $0x20] sm:$0xff]
      %v7932 = vld [vmem:[#allocation5 + $0x28] sm:$0xff]
      %v7933 = vld [vmem:[#allocation5 + $0x30] sm:$0xff]
      %v7934 = vld [vmem:[#allocation5 + $0x38] sm:$0xff]
      %v7935 = vld [vmem:[#allocation5 + $0x40] sm:$0xff]
      %v7936 = vld [vmem:[#allocation5 + $0x48] sm:$0xff]
      %v7937 = vld [vmem:[#allocation5 + $0x50] sm:$0xff]
      %v7938 = vld [vmem:[#allocation5 + $0x58] sm:$0xff]
      %v7939 = vld [vmem:[#allocation5 + $0x60] sm:$0xff]
      %v7940 = vld [vmem:[#allocation5 + $0x68] sm:$0xff]
      %v7941 = vld [vmem:[#allocation5 + $0x70] sm:$0xff]
      %v7942 = vld [vmem:[#allocation5 + $0x78] sm:$0xff]
      %v7943 = vld [vmem:[#allocation5 + $0x80] sm:$0xff]
      %v7944 = vld [vmem:[#allocation5 + $0x88] sm:$0xff]
      %v7945 = vld [vmem:[#allocation5 + $0x90] sm:$0xff]
      %v7946 = vld [vmem:[#allocation5 + $0x98] sm:$0xff]
      %v7947 = vld [vmem:[#allocation5 + $0xa0] sm:$0xff]
      %v7948 = vld [vmem:[#allocation5 + $0xa8] sm:$0xff]
      %v7949 = vld [vmem:[#allocation5 + $0xb0] sm:$0xff]
      %v7950 = vld [vmem:[#allocation5 + $0xb8] sm:$0xff]
      %v7951 = vld [vmem:[#allocation5 + $0xc0] sm:$0xff]
      %v7952 = vld [vmem:[#allocation5 + $0xc8] sm:$0xff]
      %v7953 = vld [vmem:[#allocation5 + $0xd0] sm:$0xff]
      %v7954 = vld [vmem:[#allocation5 + $0xd8] sm:$0xff]
      %v7955 = vld [vmem:[#allocation5 + $0xe0] sm:$0xff]
      %v7956 = vld [vmem:[#allocation5 + $0xe8] sm:$0xff]
      %v7957 = vld [vmem:[#allocation5 + $0xf0] sm:$0xff]
      %v7958 = vld [vmem:[#allocation5 + $0xf8] sm:$0xff]
      %v7959 = vld [vmem:[%s7] sm:$0xf]
      %v7960 = vld [vmem:[%s7 + $0x4] sm:$0xf]
      %v7961 = vld [vmem:[%s7 + $0x8] sm:$0xf]
      %v7962 = vld [vmem:[%s7 + $0xc] sm:$0xf]
      %v7963 = vld [vmem:[%s7 + $0x10] sm:$0xf]
      %v7964 = vld [vmem:[%s7 + $0x14] sm:$0xf]
      %v7965 = vld [vmem:[%s7 + $0x18] sm:$0xf]
      %v7966 = vld [vmem:[%s7 + $0x1c] sm:$0xf]
      %v7967 = vld [vmem:[%s7 + $0x20] sm:$0xf]
      %v7968 = vld [vmem:[%s7 + $0x24] sm:$0xf]
      %v7969 = vld [vmem:[%s7 + $0x28] sm:$0xf]
      %v7970 = vld [vmem:[%s7 + $0x2c] sm:$0xf]
      %v7971 = vld [vmem:[%s7 + $0x30] sm:$0xf]
      %v7972 = vld [vmem:[%s7 + $0x34] sm:$0xf]
      %v7973 = vld [vmem:[%s7 + $0x38] sm:$0xf]
      %v7974 = vld [vmem:[%s7 + $0x3c] sm:$0xf]
      %v8007 = vunpack.c.l.b16 %v7895
      %v8008 = vunpack.c.l.b16 %v7896
      %v8009 = vunpack.c.l.b16 %v7897
      %v8010 = vunpack.c.l.b16 %v7898
      %v8011 = vunpack.c.l.b16 %v7899
      %v8012 = vunpack.c.l.b16 %v7900
      %v8013 = vunpack.c.l.b16 %v7901
      %v8014 = vunpack.c.l.b16 %v7902
      %v8015 = vunpack.c.l.b16 %v7903
      %v8016 = vunpack.c.l.b16 %v7904
      %v8017 = vunpack.c.l.b16 %v7905
      %v8018 = vunpack.c.l.b16 %v7906
      %v8019 = vunpack.c.l.b16 %v7907
      %v8020 = vunpack.c.l.b16 %v7908
      %v8021 = vunpack.c.l.b16 %v7909
      %v8022 = vunpack.c.l.b16 %v7910
      %v8023 = vunpack.c.l.b16 %v7911
      %v8024 = vunpack.c.l.b16 %v7912
      %v8025 = vunpack.c.l.b16 %v7913
      %v8026 = vunpack.c.l.b16 %v7914
      %v8027 = vunpack.c.l.b16 %v7915
      %v8028 = vunpack.c.l.b16 %v7916
      %v8029 = vunpack.c.l.b16 %v7917
      %v8030 = vunpack.c.l.b16 %v7918
      %v8031 = vunpack.c.l.b16 %v7919
      %v8032 = vunpack.c.l.b16 %v7920
      %v8033 = vunpack.c.l.b16 %v7921
      %v8034 = vunpack.c.l.b16 %v7922
      %v8035 = vunpack.c.l.b16 %v7923
      %v8036 = vunpack.c.l.b16 %v7924
      %v8037 = vunpack.c.l.b16 %v7925
      %v8038 = vunpack.c.l.b16 %v7926
      %v8039 = vpack.c.b16 %v8008, %v8007
      %v8040 = vpack.c.b16 %v8010, %v8009
      %v8041 = vpack.c.b16 %v8012, %v8011
      %v8042 = vpack.c.b16 %v8014, %v8013
      %v8043 = vpack.c.b16 %v8016, %v8015
      %v8044 = vpack.c.b16 %v8018, %v8017
      %v8045 = vpack.c.b16 %v8020, %v8019
      %v8046 = vpack.c.b16 %v8022, %v8021
      %v8047 = vpack.c.b16 %v8024, %v8023
      %v8048 = vpack.c.b16 %v8026, %v8025
      %v8049 = vpack.c.b16 %v8028, %v8027
      %v8050 = vpack.c.b16 %v8030, %v8029
      %v8051 = vpack.c.b16 %v8032, %v8031
      %v8052 = vpack.c.b16 %v8034, %v8033
      %v8053 = vpack.c.b16 %v8036, %v8035
      %v8054 = vpack.c.b16 %v8038, %v8037
      %v8087 = vunpack.c.l.b16 %v7959
      %v8088 = vunpack.c.l.b16 %v7960
      %v8089 = vunpack.c.l.b16 %v7961
      %v8090 = vunpack.c.l.b16 %v7962
      %v8091 = vunpack.c.l.b16 %v7963
      %v8092 = vunpack.c.l.b16 %v7964
      %v8093 = vunpack.c.l.b16 %v7965
      %v8094 = vunpack.c.l.b16 %v7966
      %v8095 = vunpack.c.l.b16 %v7967
      %v8096 = vunpack.c.l.b16 %v7968
      %v8097 = vunpack.c.l.b16 %v7969
      %v8098 = vunpack.c.l.b16 %v7970
      %v8099 = vunpack.c.l.b16 %v7971
      %v8100 = vunpack.c.l.b16 %v7972
      %v8101 = vunpack.c.l.b16 %v7973
      %v8102 = vunpack.c.l.b16 %v7974
      %v8103 = vpack.c.b16 %v8088, %v8087
      %v8104 = vpack.c.b16 %v8090, %v8089
      %v8105 = vpack.c.b16 %v8092, %v8091
      %v8106 = vpack.c.b16 %v8094, %v8093
      %v8107 = vpack.c.b16 %v8096, %v8095
      %v8108 = vpack.c.b16 %v8098, %v8097
      %v8109 = vpack.c.b16 %v8100, %v8099
      %v8110 = vpack.c.b16 %v8102, %v8101
      %8119 = vmatpush.bf16.msra.mxu0 %v8110
      %8120 = vmatpush.bf16.msra.mxu0 %v8109
      %8121 = vmatpush.bf16.msra.mxu0 %v8108
      %8122 = vmatpush.bf16.msra.mxu0 %v8107
      %8123 = vmatpush.bf16.msra.mxu0 %v8106
      %8124 = vmatpush.bf16.msra.mxu0 %v8105
      %8125 = vmatpush.bf16.msra.mxu0 %v8104
      %8126 = vmatpush.bf16.msra.mxu0 %v8103
      %8127 = vmatmul.bf16.gmra.mxu0 %v8039
      %v8128 = vpop.f32.mrf.mxu0
      %v8129 = vadd.f32 0.0, %v8128
      %v8130 = vpop.f32.mrf.mxu0
      %v8131 = vadd.f32 0.0, %v8130
      %8132 = vmatmul.bf16.gmra.mxu0 %v8040
      %v8133 = vpop.f32.mrf.mxu0
      %v8134 = vadd.f32 0.0, %v8133
      %v8135 = vpop.f32.mrf.mxu0
      %v8136 = vadd.f32 0.0, %v8135
      %8137 = vmatmul.bf16.gmra.mxu0 %v8041
      %v8138 = vpop.f32.mrf.mxu0
      %v8139 = vadd.f32 0.0, %v8138
      %v8140 = vpop.f32.mrf.mxu0
      %v8141 = vadd.f32 0.0, %v8140
      %8142 = vmatmul.bf16.gmra.mxu0 %v8042
      %v8143 = vpop.f32.mrf.mxu0
      %v8144 = vadd.f32 0.0, %v8143
      %v8145 = vpop.f32.mrf.mxu0
      %v8146 = vadd.f32 0.0, %v8145
      %8147 = vmatmul.bf16.gmra.mxu0 %v8043
      %v8148 = vpop.f32.mrf.mxu0
      %v8149 = vadd.f32 0.0, %v8148
      %v8150 = vpop.f32.mrf.mxu0
      %v8151 = vadd.f32 0.0, %v8150
      %8152 = vmatmul.bf16.gmra.mxu0 %v8044
      %v8153 = vpop.f32.mrf.mxu0
      %v8154 = vadd.f32 0.0, %v8153
      %v8155 = vpop.f32.mrf.mxu0
      %v8156 = vadd.f32 0.0, %v8155
      %8157 = vmatmul.bf16.gmra.mxu0 %v8045
      %v8158 = vpop.f32.mrf.mxu0
      %v8159 = vadd.f32 0.0, %v8158
      %v8160 = vpop.f32.mrf.mxu0
      %v8161 = vadd.f32 0.0, %v8160
      %8162 = vmatmul.bf16.gmra.mxu0 %v8046
      %v8163 = vpop.f32.mrf.mxu0
      %v8164 = vadd.f32 0.0, %v8163
      %v8165 = vpop.f32.mrf.mxu0
      %v8166 = vadd.f32 0.0, %v8165
      %8167 = vmatmul.bf16.gmra.mxu0 %v8047
      %v8168 = vpop.f32.mrf.mxu0
      %v8169 = vadd.f32 0.0, %v8168
      %v8170 = vpop.f32.mrf.mxu0
      %v8171 = vadd.f32 0.0, %v8170
      %8172 = vmatmul.bf16.gmra.mxu0 %v8048
      %v8173 = vpop.f32.mrf.mxu0
      %v8174 = vadd.f32 0.0, %v8173
      %v8175 = vpop.f32.mrf.mxu0
      %v8176 = vadd.f32 0.0, %v8175
      %8177 = vmatmul.bf16.gmra.mxu0 %v8049
      %v8178 = vpop.f32.mrf.mxu0
      %v8179 = vadd.f32 0.0, %v8178
      %v8180 = vpop.f32.mrf.mxu0
      %v8181 = vadd.f32 0.0, %v8180
      %8182 = vmatmul.bf16.gmra.mxu0 %v8050
      %v8183 = vpop.f32.mrf.mxu0
      %v8184 = vadd.f32 0.0, %v8183
      %v8185 = vpop.f32.mrf.mxu0
      %v8186 = vadd.f32 0.0, %v8185
      %8187 = vmatmul.bf16.gmra.mxu0 %v8051
      %v8188 = vpop.f32.mrf.mxu0
      %v8189 = vadd.f32 0.0, %v8188
      %v8190 = vpop.f32.mrf.mxu0
      %v8191 = vadd.f32 0.0, %v8190
      %8192 = vmatmul.bf16.gmra.mxu0 %v8052
      %v8193 = vpop.f32.mrf.mxu0
      %v8194 = vadd.f32 0.0, %v8193
      %v8195 = vpop.f32.mrf.mxu0
      %v8196 = vadd.f32 0.0, %v8195
      %8197 = vmatmul.bf16.gmra.mxu0 %v8053
      %v8198 = vpop.f32.mrf.mxu0
      %v8199 = vadd.f32 0.0, %v8198
      %v8200 = vpop.f32.mrf.mxu0
      %v8201 = vadd.f32 0.0, %v8200
      %8202 = vmatmul.bf16.gmra.mxu0 %v8054
      %v8203 = vpop.f32.mrf.mxu0
      %v8204 = vadd.f32 0.0, %v8203
      %v8205 = vpop.f32.mrf.mxu0
      %v8206 = vadd.f32 0.0, %v8205
      %8207 = vdwg.mxu0
      %v8208 = vadd.f32 %v7927, %v8129
      %v8209 = vadd.f32 %v7928, %v8131
      %v8210 = vadd.f32 %v7929, %v8134
      %v8211 = vadd.f32 %v7930, %v8136
      %v8212 = vadd.f32 %v7931, %v8139
      %v8213 = vadd.f32 %v7932, %v8141
      %v8214 = vadd.f32 %v7933, %v8144
      %v8215 = vadd.f32 %v7934, %v8146
      %v8216 = vadd.f32 %v7935, %v8149
      %v8217 = vadd.f32 %v7936, %v8151
      %v8218 = vadd.f32 %v7937, %v8154
      %v8219 = vadd.f32 %v7938, %v8156
      %v8220 = vadd.f32 %v7939, %v8159
      %v8221 = vadd.f32 %v7940, %v8161
      %v8222 = vadd.f32 %v7941, %v8164
      %v8223 = vadd.f32 %v7942, %v8166
      %v8224 = vadd.f32 %v7943, %v8169
      %v8225 = vadd.f32 %v7944, %v8171
      %v8226 = vadd.f32 %v7945, %v8174
      %v8227 = vadd.f32 %v7946, %v8176
      %v8228 = vadd.f32 %v7947, %v8179
      %v8229 = vadd.f32 %v7948, %v8181
      %v8230 = vadd.f32 %v7949, %v8184
      %v8231 = vadd.f32 %v7950, %v8186
      %v8232 = vadd.f32 %v7951, %v8189
      %v8233 = vadd.f32 %v7952, %v8191
      %v8234 = vadd.f32 %v7953, %v8194
      %v8235 = vadd.f32 %v7954, %v8196
      %v8236 = vadd.f32 %v7955, %v8199
      %v8237 = vadd.f32 %v7956, %v8201
      %v8238 = vadd.f32 %v7957, %v8204
      %v8239 = vadd.f32 %v7958, %v8206
      %8240 = vst [vmem:[#allocation5] sm:$0xff] %v8208
      %8241 = vst [vmem:[#allocation5 + $0x8] sm:$0xff] %v8209
      %8242 = vst [vmem:[#allocation5 + $0x10] sm:$0xff] %v8210
      %8243 = vst [vmem:[#allocation5 + $0x18] sm:$0xff] %v8211
      %8244 = vst [vmem:[#allocation5 + $0x20] sm:$0xff] %v8212
      %8245 = vst [vmem:[#allocation5 + $0x28] sm:$0xff] %v8213
      %8246 = vst [vmem:[#allocation5 + $0x30] sm:$0xff] %v8214
      %8247 = vst [vmem:[#allocation5 + $0x38] sm:$0xff] %v8215
      %8248 = vst [vmem:[#allocation5 + $0x40] sm:$0xff] %v8216
      %8249 = vst [vmem:[#allocation5 + $0x48] sm:$0xff] %v8217
      %8250 = vst [vmem:[#allocation5 + $0x50] sm:$0xff] %v8218
      %8251 = vst [vmem:[#allocation5 + $0x58] sm:$0xff] %v8219
      %8252 = vst [vmem:[#allocation5 + $0x60] sm:$0xff] %v8220
      %8253 = vst [vmem:[#allocation5 + $0x68] sm:$0xff] %v8221
      %8254 = vst [vmem:[#allocation5 + $0x70] sm:$0xff] %v8222
      %8255 = vst [vmem:[#allocation5 + $0x78] sm:$0xff] %v8223
      %8256 = vst [vmem:[#allocation5 + $0x80] sm:$0xff] %v8224
      %8257 = vst [vmem:[#allocation5 + $0x88] sm:$0xff] %v8225
      %8258 = vst [vmem:[#allocation5 + $0x90] sm:$0xff] %v8226
      %8259 = vst [vmem:[#allocation5 + $0x98] sm:$0xff] %v8227
      %8260 = vst [vmem:[#allocation5 + $0xa0] sm:$0xff] %v8228
      %8261 = vst [vmem:[#allocation5 + $0xa8] sm:$0xff] %v8229
      %8262 = vst [vmem:[#allocation5 + $0xb0] sm:$0xff] %v8230
      %8263 = vst [vmem:[#allocation5 + $0xb8] sm:$0xff] %v8231
      %8264 = vst [vmem:[#allocation5 + $0xc0] sm:$0xff] %v8232
      %8265 = vst [vmem:[#allocation5 + $0xc8] sm:$0xff] %v8233
      %8266 = vst [vmem:[#allocation5 + $0xd0] sm:$0xff] %v8234
      %8267 = vst [vmem:[#allocation5 + $0xd8] sm:$0xff] %v8235
      %8268 = vst [vmem:[#allocation5 + $0xe0] sm:$0xff] %v8236
      %8269 = vst [vmem:[#allocation5 + $0xe8] sm:$0xff] %v8237
      %8270 = vst [vmem:[#allocation5 + $0xf0] sm:$0xff] %v8238
      %8271 = vst [vmem:[#allocation5 + $0xf8] sm:$0xff] %v8239
      %8272 = vst [vmem:[%s4539 + $0x4] sm:$0xf] %v7895
      %8273 = vst [vmem:[%s4539 + $0x8] sm:$0xf] %v7896
      %8274 = vst [vmem:[%s4539 + $0x14] sm:$0xf] %v7897
      %8275 = vst [vmem:[%s4539 + $0x18] sm:$0xf] %v7898
      %8276 = vst [vmem:[%s4539 + $0x24] sm:$0xf] %v7899
      %8277 = vst [vmem:[%s4539 + $0x28] sm:$0xf] %v7900
      %8278 = vst [vmem:[%s4539 + $0x34] sm:$0xf] %v7901
      %8279 = vst [vmem:[%s4539 + $0x38] sm:$0xf] %v7902
      %8280 = vst [vmem:[%s4539 + $0x44] sm:$0xf] %v7903
      %8281 = vst [vmem:[%s4539 + $0x48] sm:$0xf] %v7904
      %8282 = vst [vmem:[%s4539 + $0x54] sm:$0xf] %v7905
      %8283 = vst [vmem:[%s4539 + $0x58] sm:$0xf] %v7906
      %8284 = vst [vmem:[%s4539 + $0x64] sm:$0xf] %v7907
      %8285 = vst [vmem:[%s4539 + $0x68] sm:$0xf] %v7908
      %8286 = vst [vmem:[%s4539 + $0x74] sm:$0xf] %v7909
      %8287 = vst [vmem:[%s4539 + $0x78] sm:$0xf] %v7910
      %8288 = vst [vmem:[%s4539 + $0x84] sm:$0xf] %v7911
      %8289 = vst [vmem:[%s4539 + $0x88] sm:$0xf] %v7912
      %8290 = vst [vmem:[%s4539 + $0x94] sm:$0xf] %v7913
      %8291 = vst [vmem:[%s4539 + $0x98] sm:$0xf] %v7914
      %8292 = vst [vmem:[%s4539 + $0xa4] sm:$0xf] %v7915
      %8293 = vst [vmem:[%s4539 + $0xa8] sm:$0xf] %v7916
      %8294 = vst [vmem:[%s4539 + $0xb4] sm:$0xf] %v7917
      %8295 = vst [vmem:[%s4539 + $0xb8] sm:$0xf] %v7918
      %8296 = vst [vmem:[%s4539 + $0xc4] sm:$0xf] %v7919
      %8297 = vst [vmem:[%s4539 + $0xc8] sm:$0xf] %v7920
      %8298 = vst [vmem:[%s4539 + $0xd4] sm:$0xf] %v7921
      %8299 = vst [vmem:[%s4539 + $0xd8] sm:$0xf] %v7922
      %8300 = vst [vmem:[%s4539 + $0xe4] sm:$0xf] %v7923
      %8301 = vst [vmem:[%s4539 + $0xe8] sm:$0xf] %v7924
      %8302 = vst [vmem:[%s4539 + $0xf4] sm:$0xf] %v7925
      %8303 = vst [vmem:[%s4539 + $0xf8] sm:$0xf] %v7926
      %v8304 = vld [vmem:[#allocation3] sm:$0x8]
      %v8305 = vld [vmem:[#allocation3 + $0x4] sm:$0xf]
      %v8306 = vld [vmem:[#allocation3 + $0x8] sm:$0xf]
      %v8307 = vld [vmem:[#allocation3 + $0x10] sm:$0x8]
      %v8308 = vld [vmem:[#allocation3 + $0x14] sm:$0xf]
      %v8309 = vld [vmem:[#allocation3 + $0x18] sm:$0xf]
      %v8310 = vld [vmem:[#allocation3 + $0x20] sm:$0x8]
      %v8311 = vld [vmem:[#allocation3 + $0x24] sm:$0xf]
      %v8312 = vld [vmem:[#allocation3 + $0x28] sm:$0xf]
      %v8313 = vld [vmem:[#allocation3 + $0x30] sm:$0x8]
      %v8314 = vld [vmem:[#allocation3 + $0x34] sm:$0xf]
      %v8315 = vld [vmem:[#allocation3 + $0x38] sm:$0xf]
      %v8316 = vld [vmem:[#allocation3 + $0x40] sm:$0x8]
      %v8317 = vld [vmem:[#allocation3 + $0x44] sm:$0xf]
      %v8318 = vld [vmem:[#allocation3 + $0x48] sm:$0xf]
      %v8319 = vld [vmem:[#allocation3 + $0x50] sm:$0x8]
      %v8320 = vld [vmem:[#allocation3 + $0x54] sm:$0xf]
      %v8321 = vld [vmem:[#allocation3 + $0x58] sm:$0xf]
      %v8322 = vld [vmem:[#allocation3 + $0x60] sm:$0x8]
      %v8323 = vld [vmem:[#allocation3 + $0x64] sm:$0xf]
      %v8324 = vld [vmem:[#allocation3 + $0x68] sm:$0xf]
      %v8325 = vld [vmem:[#allocation3 + $0x70] sm:$0x8]
      %v8326 = vld [vmem:[#allocation3 + $0x74] sm:$0xf]
      %v8327 = vld [vmem:[#allocation3 + $0x78] sm:$0xf]
      %v8328 = vld [vmem:[#allocation3 + $0x80] sm:$0x8]
      %v8329 = vld [vmem:[#allocation3 + $0x84] sm:$0xf]
      %v8330 = vld [vmem:[#allocation3 + $0x88] sm:$0xf]
      %v8331 = vld [vmem:[#allocation3 + $0x90] sm:$0x8]
      %v8332 = vld [vmem:[#allocation3 + $0x94] sm:$0xf]
      %v8333 = vld [vmem:[#allocation3 + $0x98] sm:$0xf]
      %v8334 = vld [vmem:[#allocation3 + $0xa0] sm:$0x8]
      %v8335 = vld [vmem:[#allocation3 + $0xa4] sm:$0xf]
      %v8336 = vld [vmem:[#allocation3 + $0xa8] sm:$0xf]
      %v8337 = vld [vmem:[#allocation3 + $0xb0] sm:$0x8]
      %v8338 = vld [vmem:[#allocation3 + $0xb4] sm:$0xf]
      %v8339 = vld [vmem:[#allocation3 + $0xb8] sm:$0xf]
      %v8340 = vld [vmem:[#allocation3 + $0xc0] sm:$0x8]
      %v8341 = vld [vmem:[#allocation3 + $0xc4] sm:$0xf]
      %v8342 = vld [vmem:[#allocation3 + $0xc8] sm:$0xf]
      %v8343 = vld [vmem:[#allocation3 + $0xd0] sm:$0x8]
      %v8344 = vld [vmem:[#allocation3 + $0xd4] sm:$0xf]
      %v8345 = vld [vmem:[#allocation3 + $0xd8] sm:$0xf]
      %v8346 = vld [vmem:[#allocation3 + $0xe0] sm:$0x8]
      %v8347 = vld [vmem:[#allocation3 + $0xe4] sm:$0xf]
      %v8348 = vld [vmem:[#allocation3 + $0xe8] sm:$0xf]
      %v8349 = vld [vmem:[#allocation3 + $0xf0] sm:$0x8]
      %v8350 = vld [vmem:[#allocation3 + $0xf4] sm:$0xf]
      %v8351 = vld [vmem:[#allocation3 + $0xf8] sm:$0xf]
      %v8352 = vld [vmem:[#allocation3 + $0x100] sm:$0x8]
      %v8353 = vld [vmem:[#allocation3 + $0x104] sm:$0xf]
      %v8354 = vld [vmem:[#allocation3 + $0x108] sm:$0xf]
      %v8355 = vld [vmem:[#allocation3 + $0x110] sm:$0x8]
      %v8356 = vld [vmem:[#allocation3 + $0x114] sm:$0xf]
      %v8357 = vld [vmem:[#allocation3 + $0x118] sm:$0xf]
      %v8359 = vshrl.u32 %v8304, 16
      %v8361 = vrot.slane %v8359, 7
      %v8362 = vrot.slane %v8361, 4
      %v8364 = vshrl.u32 %v8305, 16
      %v8366 = vrot.slane %v8364, 7
      %v8367 = vshll.u32 %v8305, 16
      %v8369 = vor.u32 %v8366, %v8367
      %v8370 = vsel %vm912, %v8362, %v8369
      %v8371 = vrot.slane %v8366, 4
      %v8373 = vshrl.u32 %v8306, 16
      %v8375 = vrot.slane %v8373, 7
      %v8376 = vshll.u32 %v8306, 16
      %v8378 = vor.u32 %v8375, %v8376
      %v8379 = vsel %vm912, %v8371, %v8378
      %v8381 = vshrl.u32 %v8307, 16
      %v8383 = vrot.slane %v8381, 7
      %v8384 = vrot.slane %v8383, 4
      %v8386 = vshrl.u32 %v8308, 16
      %v8388 = vrot.slane %v8386, 7
      %v8389 = vshll.u32 %v8308, 16
      %v8391 = vor.u32 %v8388, %v8389
      %v8392 = vsel %vm912, %v8384, %v8391
      %v8393 = vrot.slane %v8388, 4
      %v8395 = vshrl.u32 %v8309, 16
      %v8397 = vrot.slane %v8395, 7
      %v8398 = vshll.u32 %v8309, 16
      %v8400 = vor.u32 %v8397, %v8398
      %v8401 = vsel %vm912, %v8393, %v8400
      %v8403 = vshrl.u32 %v8310, 16
      %v8405 = vrot.slane %v8403, 7
      %v8406 = vrot.slane %v8405, 4
      %v8408 = vshrl.u32 %v8311, 16
      %v8410 = vrot.slane %v8408, 7
      %v8411 = vshll.u32 %v8311, 16
      %v8413 = vor.u32 %v8410, %v8411
      %v8414 = vsel %vm912, %v8406, %v8413
      %v8415 = vrot.slane %v8410, 4
      %v8417 = vshrl.u32 %v8312, 16
      %v8419 = vrot.slane %v8417, 7
      %v8420 = vshll.u32 %v8312, 16
      %v8422 = vor.u32 %v8419, %v8420
      %v8423 = vsel %vm912, %v8415, %v8422
      %v8425 = vshrl.u32 %v8313, 16
      %v8427 = vrot.slane %v8425, 7
      %v8428 = vrot.slane %v8427, 4
      %v8430 = vshrl.u32 %v8314, 16
      %v8432 = vrot.slane %v8430, 7
      %v8433 = vshll.u32 %v8314, 16
      %v8435 = vor.u32 %v8432, %v8433
      %v8436 = vsel %vm912, %v8428, %v8435
      %v8437 = vrot.slane %v8432, 4
      %v8439 = vshrl.u32 %v8315, 16
      %v8441 = vrot.slane %v8439, 7
      %v8442 = vshll.u32 %v8315, 16
      %v8444 = vor.u32 %v8441, %v8442
      %v8445 = vsel %vm912, %v8437, %v8444
      %v8447 = vshrl.u32 %v8316, 16
      %v8449 = vrot.slane %v8447, 7
      %v8450 = vrot.slane %v8449, 4
      %v8452 = vshrl.u32 %v8317, 16
      %v8454 = vrot.slane %v8452, 7
      %v8455 = vshll.u32 %v8317, 16
      %v8457 = vor.u32 %v8454, %v8455
      %v8458 = vsel %vm912, %v8450, %v8457
      %v8459 = vrot.slane %v8454, 4
      %v8461 = vshrl.u32 %v8318, 16
      %v8463 = vrot.slane %v8461, 7
      %v8464 = vshll.u32 %v8318, 16
      %v8466 = vor.u32 %v8463, %v8464
      %v8467 = vsel %vm912, %v8459, %v8466
      %v8469 = vshrl.u32 %v8319, 16
      %v8471 = vrot.slane %v8469, 7
      %v8472 = vrot.slane %v8471, 4
      %v8474 = vshrl.u32 %v8320, 16
      %v8476 = vrot.slane %v8474, 7
      %v8477 = vshll.u32 %v8320, 16
      %v8479 = vor.u32 %v8476, %v8477
      %v8480 = vsel %vm912, %v8472, %v8479
      %v8481 = vrot.slane %v8476, 4
      %v8483 = vshrl.u32 %v8321, 16
      %v8485 = vrot.slane %v8483, 7
      %v8486 = vshll.u32 %v8321, 16
      %v8488 = vor.u32 %v8485, %v8486
      %v8489 = vsel %vm912, %v8481, %v8488
      %v8491 = vshrl.u32 %v8322, 16
      %v8493 = vrot.slane %v8491, 7
      %v8494 = vrot.slane %v8493, 4
      %v8496 = vshrl.u32 %v8323, 16
      %v8498 = vrot.slane %v8496, 7
      %v8499 = vshll.u32 %v8323, 16
      %v8501 = vor.u32 %v8498, %v8499
      %v8502 = vsel %vm912, %v8494, %v8501
      %v8503 = vrot.slane %v8498, 4
      %v8505 = vshrl.u32 %v8324, 16
      %v8507 = vrot.slane %v8505, 7
      %v8508 = vshll.u32 %v8324, 16
      %v8510 = vor.u32 %v8507, %v8508
      %v8511 = vsel %vm912, %v8503, %v8510
      %v8513 = vshrl.u32 %v8325, 16
      %v8515 = vrot.slane %v8513, 7
      %v8516 = vrot.slane %v8515, 4
      %v8518 = vshrl.u32 %v8326, 16
      %v8520 = vrot.slane %v8518, 7
      %v8521 = vshll.u32 %v8326, 16
      %v8523 = vor.u32 %v8520, %v8521
      %v8524 = vsel %vm912, %v8516, %v8523
      %v8525 = vrot.slane %v8520, 4
      %v8527 = vshrl.u32 %v8327, 16
      %v8529 = vrot.slane %v8527, 7
      %v8530 = vshll.u32 %v8327, 16
      %v8532 = vor.u32 %v8529, %v8530
      %v8533 = vsel %vm912, %v8525, %v8532
      %v8535 = vshrl.u32 %v8328, 16
      %v8537 = vrot.slane %v8535, 7
      %v8538 = vrot.slane %v8537, 4
      %v8540 = vshrl.u32 %v8329, 16
      %v8542 = vrot.slane %v8540, 7
      %v8543 = vshll.u32 %v8329, 16
      %v8545 = vor.u32 %v8542, %v8543
      %v8546 = vsel %vm912, %v8538, %v8545
      %v8547 = vrot.slane %v8542, 4
      %v8549 = vshrl.u32 %v8330, 16
      %v8551 = vrot.slane %v8549, 7
      %v8552 = vshll.u32 %v8330, 16
      %v8554 = vor.u32 %v8551, %v8552
      %v8555 = vsel %vm912, %v8547, %v8554
      %v8557 = vshrl.u32 %v8331, 16
      %v8559 = vrot.slane %v8557, 7
      %v8560 = vrot.slane %v8559, 4
      %v8562 = vshrl.u32 %v8332, 16
      %v8564 = vrot.slane %v8562, 7
      %v8565 = vshll.u32 %v8332, 16
      %v8567 = vor.u32 %v8564, %v8565
      %v8568 = vsel %vm912, %v8560, %v8567
      %v8569 = vrot.slane %v8564, 4
      %v8571 = vshrl.u32 %v8333, 16
      %v8573 = vrot.slane %v8571, 7
      %v8574 = vshll.u32 %v8333, 16
      %v8576 = vor.u32 %v8573, %v8574
      %v8577 = vsel %vm912, %v8569, %v8576
      %v8579 = vshrl.u32 %v8334, 16
      %v8581 = vrot.slane %v8579, 7
      %v8582 = vrot.slane %v8581, 4
      %v8584 = vshrl.u32 %v8335, 16
      %v8586 = vrot.slane %v8584, 7
      %v8587 = vshll.u32 %v8335, 16
      %v8589 = vor.u32 %v8586, %v8587
      %v8590 = vsel %vm912, %v8582, %v8589
      %v8591 = vrot.slane %v8586, 4
      %v8593 = vshrl.u32 %v8336, 16
      %v8595 = vrot.slane %v8593, 7
      %v8596 = vshll.u32 %v8336, 16
      %v8598 = vor.u32 %v8595, %v8596
      %v8599 = vsel %vm912, %v8591, %v8598
      %v8601 = vshrl.u32 %v8337, 16
      %v8603 = vrot.slane %v8601, 7
      %v8604 = vrot.slane %v8603, 4
      %v8606 = vshrl.u32 %v8338, 16
      %v8608 = vrot.slane %v8606, 7
      %v8609 = vshll.u32 %v8338, 16
      %v8611 = vor.u32 %v8608, %v8609
      %v8612 = vsel %vm912, %v8604, %v8611
      %v8613 = vrot.slane %v8608, 4
      %v8615 = vshrl.u32 %v8339, 16
      %v8617 = vrot.slane %v8615, 7
      %v8618 = vshll.u32 %v8339, 16
      %v8620 = vor.u32 %v8617, %v8618
      %v8621 = vsel %vm912, %v8613, %v8620
      %v8623 = vshrl.u32 %v8340, 16
      %v8625 = vrot.slane %v8623, 7
      %v8626 = vrot.slane %v8625, 4
      %v8628 = vshrl.u32 %v8341, 16
      %v8630 = vrot.slane %v8628, 7
      %v8631 = vshll.u32 %v8341, 16
      %v8633 = vor.u32 %v8630, %v8631
      %v8634 = vsel %vm912, %v8626, %v8633
      %v8635 = vrot.slane %v8630, 4
      %v8637 = vshrl.u32 %v8342, 16
      %v8639 = vrot.slane %v8637, 7
      %v8640 = vshll.u32 %v8342, 16
      %v8642 = vor.u32 %v8639, %v8640
      %v8643 = vsel %vm912, %v8635, %v8642
      %v8645 = vshrl.u32 %v8343, 16
      %v8647 = vrot.slane %v8645, 7
      %v8648 = vrot.slane %v8647, 4
      %v8650 = vshrl.u32 %v8344, 16
      %v8652 = vrot.slane %v8650, 7
      %v8653 = vshll.u32 %v8344, 16
      %v8655 = vor.u32 %v8652, %v8653
      %v8656 = vsel %vm912, %v8648, %v8655
      %v8657 = vrot.slane %v8652, 4
      %v8659 = vshrl.u32 %v8345, 16
      %v8661 = vrot.slane %v8659, 7
      %v8662 = vshll.u32 %v8345, 16
      %v8664 = vor.u32 %v8661, %v8662
      %v8665 = vsel %vm912, %v8657, %v8664
      %v8667 = vshrl.u32 %v8346, 16
      %v8669 = vrot.slane %v8667, 7
      %v8670 = vrot.slane %v8669, 4
      %v8672 = vshrl.u32 %v8347, 16
      %v8674 = vrot.slane %v8672, 7
      %v8675 = vshll.u32 %v8347, 16
      %v8677 = vor.u32 %v8674, %v8675
      %v8678 = vsel %vm912, %v8670, %v8677
      %v8679 = vrot.slane %v8674, 4
      %v8681 = vshrl.u32 %v8348, 16
      %v8683 = vrot.slane %v8681, 7
      %v8684 = vshll.u32 %v8348, 16
      %v8686 = vor.u32 %v8683, %v8684
      %v8687 = vsel %vm912, %v8679, %v8686
      %v8689 = vshrl.u32 %v8349, 16
      %v8691 = vrot.slane %v8689, 7
      %v8692 = vrot.slane %v8691, 4
      %v8694 = vshrl.u32 %v8350, 16
      %v8696 = vrot.slane %v8694, 7
      %v8697 = vshll.u32 %v8350, 16
      %v8699 = vor.u32 %v8696, %v8697
      %v8700 = vsel %vm912, %v8692, %v8699
      %v8701 = vrot.slane %v8696, 4
      %v8703 = vshrl.u32 %v8351, 16
      %v8705 = vrot.slane %v8703, 7
      %v8706 = vshll.u32 %v8351, 16
      %v8708 = vor.u32 %v8705, %v8706
      %v8709 = vsel %vm912, %v8701, %v8708
      %v8711 = vshrl.u32 %v8352, 16
      %v8713 = vrot.slane %v8711, 7
      %v8714 = vrot.slane %v8713, 4
      %v8716 = vshrl.u32 %v8353, 16
      %v8718 = vrot.slane %v8716, 7
      %v8719 = vshll.u32 %v8353, 16
      %v8721 = vor.u32 %v8718, %v8719
      %v8722 = vsel %vm912, %v8714, %v8721
      %v8723 = vrot.slane %v8718, 4
      %v8725 = vshrl.u32 %v8354, 16
      %v8727 = vrot.slane %v8725, 7
      %v8728 = vshll.u32 %v8354, 16
      %v8730 = vor.u32 %v8727, %v8728
      %v8731 = vsel %vm912, %v8723, %v8730
      %v8733 = vshrl.u32 %v8355, 16
      %v8735 = vrot.slane %v8733, 7
      %v8736 = vrot.slane %v8735, 4
      %v8738 = vshrl.u32 %v8356, 16
      %v8740 = vrot.slane %v8738, 7
      %v8741 = vshll.u32 %v8356, 16
      %v8743 = vor.u32 %v8740, %v8741
      %v8744 = vsel %vm912, %v8736, %v8743
      %v8745 = vrot.slane %v8740, 4
      %v8747 = vshrl.u32 %v8357, 16
      %v8749 = vrot.slane %v8747, 7
      %v8750 = vshll.u32 %v8357, 16
      %v8752 = vor.u32 %v8749, %v8750
      %v8753 = vsel %vm912, %v8745, %v8752
      %8790 = vst [vmem:[#allocation4] sm:$0xf] %v8370
      %8791 = vst [vmem:[#allocation4 + $0xc] sm:$0xf] %v8379
      %8792 = vst [vmem:[#allocation4 + $0x18] sm:$0xf] %v8392
      %8793 = vst [vmem:[#allocation4 + $0x24] sm:$0xf] %v8401
      %8794 = vst [vmem:[#allocation4 + $0x30] sm:$0xf] %v8414
      %8795 = vst [vmem:[#allocation4 + $0x3c] sm:$0xf] %v8423
      %8796 = vst [vmem:[#allocation4 + $0x48] sm:$0xf] %v8436
      %8797 = vst [vmem:[#allocation4 + $0x54] sm:$0xf] %v8445
      %8798 = vst [vmem:[#allocation4 + $0x60] sm:$0xf] %v8458
      %8799 = vst [vmem:[#allocation4 + $0x6c] sm:$0xf] %v8467
      %8800 = vst [vmem:[#allocation4 + $0x78] sm:$0xf] %v8480
      %8801 = vst [vmem:[#allocation4 + $0x84] sm:$0xf] %v8489
      %8802 = vst [vmem:[#allocation4 + $0x90] sm:$0xf] %v8502
      %8803 = vst [vmem:[#allocation4 + $0x9c] sm:$0xf] %v8511
      %8804 = vst [vmem:[#allocation4 + $0xa8] sm:$0xf] %v8524
      %8805 = vst [vmem:[#allocation4 + $0xb4] sm:$0xf] %v8533
      %8806 = vst [vmem:[#allocation4 + $0xc0] sm:$0xf] %v8546
      %8807 = vst [vmem:[#allocation4 + $0xcc] sm:$0xf] %v8555
      %8808 = vst [vmem:[#allocation4 + $0xd8] sm:$0xf] %v8568
      %8809 = vst [vmem:[#allocation4 + $0xe4] sm:$0xf] %v8577
      %8810 = vst [vmem:[#allocation4 + $0xf0] sm:$0xf] %v8590
      %8811 = vst [vmem:[#allocation4 + $0xfc] sm:$0xf] %v8599
      %8812 = vst [vmem:[#allocation4 + $0x108] sm:$0xf] %v8612
      %8813 = vst [vmem:[#allocation4 + $0x114] sm:$0xf] %v8621
      %8814 = vst [vmem:[#allocation4 + $0x120] sm:$0xf] %v8634
      %8815 = vst [vmem:[#allocation4 + $0x12c] sm:$0xf] %v8643
      %8816 = vst [vmem:[#allocation4 + $0x138] sm:$0xf] %v8656
      %8817 = vst [vmem:[#allocation4 + $0x144] sm:$0xf] %v8665
      %8818 = vst [vmem:[#allocation4 + $0x150] sm:$0xf] %v8678
      %8819 = vst [vmem:[#allocation4 + $0x15c] sm:$0xf] %v8687
      %8820 = vst [vmem:[#allocation4 + $0x168] sm:$0xf] %v8700
      %8821 = vst [vmem:[#allocation4 + $0x174] sm:$0xf] %v8709
      %8822 = vst [vmem:[#allocation4 + $0x180] sm:$0xf] %v8722
      %8823 = vst [vmem:[#allocation4 + $0x18c] sm:$0xf] %v8731
      %8824 = vst [vmem:[#allocation4 + $0x198] sm:$0xf] %v8744
      %8825 = vst [vmem:[#allocation4 + $0x1a4] sm:$0xf] %v8753
      %v8826 = vld [vmem:[#allocation3 + $0x4] sm:$0xf]
      %v8827 = vld [vmem:[#allocation3 + $0x8] sm:$0xf]
      %v8828 = vld [vmem:[#allocation3 + $0x14] sm:$0xf]
      %v8829 = vld [vmem:[#allocation3 + $0x18] sm:$0xf]
      %v8830 = vld [vmem:[#allocation3 + $0x24] sm:$0xf]
      %v8831 = vld [vmem:[#allocation3 + $0x28] sm:$0xf]
      %v8832 = vld [vmem:[#allocation3 + $0x34] sm:$0xf]
      %v8833 = vld [vmem:[#allocation3 + $0x38] sm:$0xf]
      %v8834 = vld [vmem:[#allocation3 + $0x44] sm:$0xf]
      %v8835 = vld [vmem:[#allocation3 + $0x48] sm:$0xf]
      %v8836 = vld [vmem:[#allocation3 + $0x54] sm:$0xf]
      %v8837 = vld [vmem:[#allocation3 + $0x58] sm:$0xf]
      %v8838 = vld [vmem:[#allocation3 + $0x64] sm:$0xf]
      %v8839 = vld [vmem:[#allocation3 + $0x68] sm:$0xf]
      %v8840 = vld [vmem:[#allocation3 + $0x74] sm:$0xf]
      %v8841 = vld [vmem:[#allocation3 + $0x78] sm:$0xf]
      %v8842 = vld [vmem:[#allocation3 + $0x84] sm:$0xf]
      %v8843 = vld [vmem:[#allocation3 + $0x88] sm:$0xf]
      %v8844 = vld [vmem:[#allocation3 + $0x94] sm:$0xf]
      %v8845 = vld [vmem:[#allocation3 + $0x98] sm:$0xf]
      %v8846 = vld [vmem:[#allocation3 + $0xa4] sm:$0xf]
      %v8847 = vld [vmem:[#allocation3 + $0xa8] sm:$0xf]
      %v8848 = vld [vmem:[#allocation3 + $0xb4] sm:$0xf]
      %v8849 = vld [vmem:[#allocation3 + $0xb8] sm:$0xf]
      %v8850 = vld [vmem:[#allocation3 + $0xc4] sm:$0xf]
      %v8851 = vld [vmem:[#allocation3 + $0xc8] sm:$0xf]
      %v8852 = vld [vmem:[#allocation3 + $0xd4] sm:$0xf]
      %v8853 = vld [vmem:[#allocation3 + $0xd8] sm:$0xf]
      %v8854 = vld [vmem:[#allocation3 + $0xe4] sm:$0xf]
      %v8855 = vld [vmem:[#allocation3 + $0xe8] sm:$0xf]
      %v8856 = vld [vmem:[#allocation3 + $0xf4] sm:$0xf]
      %v8857 = vld [vmem:[#allocation3 + $0xf8] sm:$0xf]
      %v8858 = vld [vmem:[#allocation3 + $0x104] sm:$0xf]
      %v8859 = vld [vmem:[#allocation3 + $0x108] sm:$0xf]
      %v8860 = vld [vmem:[#allocation3 + $0x114] sm:$0xf]
      %v8861 = vld [vmem:[#allocation3 + $0x118] sm:$0xf]
      %8862 = vst [vmem:[#allocation4 + $0x4] sm:$0xf] %v8826
      %8863 = vst [vmem:[#allocation4 + $0x10] sm:$0xf] %v8827
      %8864 = vst [vmem:[#allocation4 + $0x1c] sm:$0xf] %v8828
      %8865 = vst [vmem:[#allocation4 + $0x28] sm:$0xf] %v8829
      %8866 = vst [vmem:[#allocation4 + $0x34] sm:$0xf] %v8830
      %8867 = vst [vmem:[#allocation4 + $0x40] sm:$0xf] %v8831
      %8868 = vst [vmem:[#allocation4 + $0x4c] sm:$0xf] %v8832
      %8869 = vst [vmem:[#allocation4 + $0x58] sm:$0xf] %v8833
      %8870 = vst [vmem:[#allocation4 + $0x64] sm:$0xf] %v8834
      %8871 = vst [vmem:[#allocation4 + $0x70] sm:$0xf] %v8835
      %8872 = vst [vmem:[#allocation4 + $0x7c] sm:$0xf] %v8836
      %8873 = vst [vmem:[#allocation4 + $0x88] sm:$0xf] %v8837
      %8874 = vst [vmem:[#allocation4 + $0x94] sm:$0xf] %v8838
      %8875 = vst [vmem:[#allocation4 + $0xa0] sm:$0xf] %v8839
      %8876 = vst [vmem:[#allocation4 + $0xac] sm:$0xf] %v8840
      %8877 = vst [vmem:[#allocation4 + $0xb8] sm:$0xf] %v8841
      %8878 = vst [vmem:[#allocation4 + $0xc4] sm:$0xf] %v8842
      %8879 = vst [vmem:[#allocation4 + $0xd0] sm:$0xf] %v8843
      %8880 = vst [vmem:[#allocation4 + $0xdc] sm:$0xf] %v8844
      %8881 = vst [vmem:[#allocation4 + $0xe8] sm:$0xf] %v8845
      %8882 = vst [vmem:[#allocation4 + $0xf4] sm:$0xf] %v8846
      %8883 = vst [vmem:[#allocation4 + $0x100] sm:$0xf] %v8847
      %8884 = vst [vmem:[#allocation4 + $0x10c] sm:$0xf] %v8848
      %8885 = vst [vmem:[#allocation4 + $0x118] sm:$0xf] %v8849
      %8886 = vst [vmem:[#allocation4 + $0x124] sm:$0xf] %v8850
      %8887 = vst [vmem:[#allocation4 + $0x130] sm:$0xf] %v8851
      %8888 = vst [vmem:[#allocation4 + $0x13c] sm:$0xf] %v8852
      %8889 = vst [vmem:[#allocation4 + $0x148] sm:$0xf] %v8853
      %8890 = vst [vmem:[#allocation4 + $0x154] sm:$0xf] %v8854
      %8891 = vst [vmem:[#allocation4 + $0x160] sm:$0xf] %v8855
      %8892 = vst [vmem:[#allocation4 + $0x16c] sm:$0xf] %v8856
      %8893 = vst [vmem:[#allocation4 + $0x178] sm:$0xf] %v8857
      %8894 = vst [vmem:[#allocation4 + $0x184] sm:$0xf] %v8858
      %8895 = vst [vmem:[#allocation4 + $0x190] sm:$0xf] %v8859
      %8896 = vst [vmem:[#allocation4 + $0x19c] sm:$0xf] %v8860
      %8897 = vst [vmem:[#allocation4 + $0x1a8] sm:$0xf] %v8861
      %v8898 = vld [vmem:[#allocation3 + $0x4] sm:$0xf]
      %v8899 = vld [vmem:[#allocation3 + $0x8] sm:$0xf]
      %v8900 = vld [vmem:[#allocation3 + $0xc] sm:$0x1]
      %v8901 = vld [vmem:[#allocation3 + $0x14] sm:$0xf]
      %v8902 = vld [vmem:[#allocation3 + $0x18] sm:$0xf]
      %v8903 = vld [vmem:[#allocation3 + $0x1c] sm:$0x1]
      %v8904 = vld [vmem:[#allocation3 + $0x24] sm:$0xf]
      %v8905 = vld [vmem:[#allocation3 + $0x28] sm:$0xf]
      %v8906 = vld [vmem:[#allocation3 + $0x2c] sm:$0x1]
      %v8907 = vld [vmem:[#allocation3 + $0x34] sm:$0xf]
      %v8908 = vld [vmem:[#allocation3 + $0x38] sm:$0xf]
      %v8909 = vld [vmem:[#allocation3 + $0x3c] sm:$0x1]
      %v8910 = vld [vmem:[#allocation3 + $0x44] sm:$0xf]
      %v8911 = vld [vmem:[#allocation3 + $0x48] sm:$0xf]
      %v8912 = vld [vmem:[#allocation3 + $0x4c] sm:$0x1]
      %v8913 = vld [vmem:[#allocation3 + $0x54] sm:$0xf]
      %v8914 = vld [vmem:[#allocation3 + $0x58] sm:$0xf]
      %v8915 = vld [vmem:[#allocation3 + $0x5c] sm:$0x1]
      %v8916 = vld [vmem:[#allocation3 + $0x64] sm:$0xf]
      %v8917 = vld [vmem:[#allocation3 + $0x68] sm:$0xf]
      %v8918 = vld [vmem:[#allocation3 + $0x6c] sm:$0x1]
      %v8919 = vld [vmem:[#allocation3 + $0x74] sm:$0xf]
      %v8920 = vld [vmem:[#allocation3 + $0x78] sm:$0xf]
      %v8921 = vld [vmem:[#allocation3 + $0x7c] sm:$0x1]
      %v8922 = vld [vmem:[#allocation3 + $0x84] sm:$0xf]
      %v8923 = vld [vmem:[#allocation3 + $0x88] sm:$0xf]
      %v8924 = vld [vmem:[#allocation3 + $0x8c] sm:$0x1]
      %v8925 = vld [vmem:[#allocation3 + $0x94] sm:$0xf]
      %v8926 = vld [vmem:[#allocation3 + $0x98] sm:$0xf]
      %v8927 = vld [vmem:[#allocation3 + $0x9c] sm:$0x1]
      %v8928 = vld [vmem:[#allocation3 + $0xa4] sm:$0xf]
      %v8929 = vld [vmem:[#allocation3 + $0xa8] sm:$0xf]
      %v8930 = vld [vmem:[#allocation3 + $0xac] sm:$0x1]
      %v8931 = vld [vmem:[#allocation3 + $0xb4] sm:$0xf]
      %v8932 = vld [vmem:[#allocation3 + $0xb8] sm:$0xf]
      %v8933 = vld [vmem:[#allocation3 + $0xbc] sm:$0x1]
      %v8934 = vld [vmem:[#allocation3 + $0xc4] sm:$0xf]
      %v8935 = vld [vmem:[#allocation3 + $0xc8] sm:$0xf]
      %v8936 = vld [vmem:[#allocation3 + $0xcc] sm:$0x1]
      %v8937 = vld [vmem:[#allocation3 + $0xd4] sm:$0xf]
      %v8938 = vld [vmem:[#allocation3 + $0xd8] sm:$0xf]
      %v8939 = vld [vmem:[#allocation3 + $0xdc] sm:$0x1]
      %v8940 = vld [vmem:[#allocation3 + $0xe4] sm:$0xf]
      %v8941 = vld [vmem:[#allocation3 + $0xe8] sm:$0xf]
      %v8942 = vld [vmem:[#allocation3 + $0xec] sm:$0x1]
      %v8943 = vld [vmem:[#allocation3 + $0xf4] sm:$0xf]
      %v8944 = vld [vmem:[#allocation3 + $0xf8] sm:$0xf]
      %v8945 = vld [vmem:[#allocation3 + $0xfc] sm:$0x1]
      %v8946 = vld [vmem:[#allocation3 + $0x104] sm:$0xf]
      %v8947 = vld [vmem:[#allocation3 + $0x108] sm:$0xf]
      %v8948 = vld [vmem:[#allocation3 + $0x10c] sm:$0x1]
      %v8949 = vld [vmem:[#allocation3 + $0x114] sm:$0xf]
      %v8950 = vld [vmem:[#allocation3 + $0x118] sm:$0xf]
      %v8951 = vld [vmem:[#allocation3 + $0x11c] sm:$0x1]
      %v8953 = vshrl.u32 %v8898, 16
      %v8955 = vrot.slane %v8953, 4
      %v8956 = vshll.u32 %v8898, 16
      %v8958 = vrot.slane %v8956, 5
      %v8959 = vor.u32 %v8955, %v8958
      %v8960 = vrot.slane %v8959, 4
      %v8962 = vshll.u32 %v8899, 16
      %v8964 = vrot.slane %v8962, 5
      %v8965 = vsel %vm1509, %v8960, %v8964
      %v8966 = vshrl.u32 %v8899, 16
      %v8968 = vrot.slane %v8966, 4
      %v8969 = vor.u32 %v8968, %v8964
      %v8970 = vrot.slane %v8969, 4
      %v8972 = vshll.u32 %v8900, 16
      %v8974 = vrot.slane %v8972, 5
      %v8975 = vsel %vm1509, %v8970, %v8974
      %v8977 = vshrl.u32 %v8901, 16
      %v8979 = vrot.slane %v8977, 4
      %v8980 = vshll.u32 %v8901, 16
      %v8982 = vrot.slane %v8980, 5
      %v8983 = vor.u32 %v8979, %v8982
      %v8984 = vrot.slane %v8983, 4
      %v8986 = vshll.u32 %v8902, 16
      %v8988 = vrot.slane %v8986, 5
      %v8989 = vsel %vm1509, %v8984, %v8988
      %v8990 = vshrl.u32 %v8902, 16
      %v8992 = vrot.slane %v8990, 4
      %v8993 = vor.u32 %v8992, %v8988
      %v8994 = vrot.slane %v8993, 4
      %v8996 = vshll.u32 %v8903, 16
      %v8998 = vrot.slane %v8996, 5
      %v8999 = vsel %vm1509, %v8994, %v8998
      %v9001 = vshrl.u32 %v8904, 16
      %v9003 = vrot.slane %v9001, 4
      %v9004 = vshll.u32 %v8904, 16
      %v9006 = vrot.slane %v9004, 5
      %v9007 = vor.u32 %v9003, %v9006
      %v9008 = vrot.slane %v9007, 4
      %v9010 = vshll.u32 %v8905, 16
      %v9012 = vrot.slane %v9010, 5
      %v9013 = vsel %vm1509, %v9008, %v9012
      %v9014 = vshrl.u32 %v8905, 16
      %v9016 = vrot.slane %v9014, 4
      %v9017 = vor.u32 %v9016, %v9012
      %v9018 = vrot.slane %v9017, 4
      %v9020 = vshll.u32 %v8906, 16
      %v9022 = vrot.slane %v9020, 5
      %v9023 = vsel %vm1509, %v9018, %v9022
      %v9025 = vshrl.u32 %v8907, 16
      %v9027 = vrot.slane %v9025, 4
      %v9028 = vshll.u32 %v8907, 16
      %v9030 = vrot.slane %v9028, 5
      %v9031 = vor.u32 %v9027, %v9030
      %v9032 = vrot.slane %v9031, 4
      %v9034 = vshll.u32 %v8908, 16
      %v9036 = vrot.slane %v9034, 5
      %v9037 = vsel %vm1509, %v9032, %v9036
      %v9038 = vshrl.u32 %v8908, 16
      %v9040 = vrot.slane %v9038, 4
      %v9041 = vor.u32 %v9040, %v9036
      %v9042 = vrot.slane %v9041, 4
      %v9044 = vshll.u32 %v8909, 16
      %v9046 = vrot.slane %v9044, 5
      %v9047 = vsel %vm1509, %v9042, %v9046
      %v9049 = vshrl.u32 %v8910, 16
      %v9051 = vrot.slane %v9049, 4
      %v9052 = vshll.u32 %v8910, 16
      %v9054 = vrot.slane %v9052, 5
      %v9055 = vor.u32 %v9051, %v9054
      %v9056 = vrot.slane %v9055, 4
      %v9058 = vshll.u32 %v8911, 16
      %v9060 = vrot.slane %v9058, 5
      %v9061 = vsel %vm1509, %v9056, %v9060
      %v9062 = vshrl.u32 %v8911, 16
      %v9064 = vrot.slane %v9062, 4
      %v9065 = vor.u32 %v9064, %v9060
      %v9066 = vrot.slane %v9065, 4
      %v9068 = vshll.u32 %v8912, 16
      %v9070 = vrot.slane %v9068, 5
      %v9071 = vsel %vm1509, %v9066, %v9070
      %v9073 = vshrl.u32 %v8913, 16
      %v9075 = vrot.slane %v9073, 4
      %v9076 = vshll.u32 %v8913, 16
      %v9078 = vrot.slane %v9076, 5
      %v9079 = vor.u32 %v9075, %v9078
      %v9080 = vrot.slane %v9079, 4
      %v9082 = vshll.u32 %v8914, 16
      %v9084 = vrot.slane %v9082, 5
      %v9085 = vsel %vm1509, %v9080, %v9084
      %v9086 = vshrl.u32 %v8914, 16
      %v9088 = vrot.slane %v9086, 4
      %v9089 = vor.u32 %v9088, %v9084
      %v9090 = vrot.slane %v9089, 4
      %v9092 = vshll.u32 %v8915, 16
      %v9094 = vrot.slane %v9092, 5
      %v9095 = vsel %vm1509, %v9090, %v9094
      %v9097 = vshrl.u32 %v8916, 16
      %v9099 = vrot.slane %v9097, 4
      %v9100 = vshll.u32 %v8916, 16
      %v9102 = vrot.slane %v9100, 5
      %v9103 = vor.u32 %v9099, %v9102
      %v9104 = vrot.slane %v9103, 4
      %v9106 = vshll.u32 %v8917, 16
      %v9108 = vrot.slane %v9106, 5
      %v9109 = vsel %vm1509, %v9104, %v9108
      %v9110 = vshrl.u32 %v8917, 16
      %v9112 = vrot.slane %v9110, 4
      %v9113 = vor.u32 %v9112, %v9108
      %v9114 = vrot.slane %v9113, 4
      %v9116 = vshll.u32 %v8918, 16
      %v9118 = vrot.slane %v9116, 5
      %v9119 = vsel %vm1509, %v9114, %v9118
      %v9121 = vshrl.u32 %v8919, 16
      %v9123 = vrot.slane %v9121, 4
      %v9124 = vshll.u32 %v8919, 16
      %v9126 = vrot.slane %v9124, 5
      %v9127 = vor.u32 %v9123, %v9126
      %v9128 = vrot.slane %v9127, 4
      %v9130 = vshll.u32 %v8920, 16
      %v9132 = vrot.slane %v9130, 5
      %v9133 = vsel %vm1509, %v9128, %v9132
      %v9134 = vshrl.u32 %v8920, 16
      %v9136 = vrot.slane %v9134, 4
      %v9137 = vor.u32 %v9136, %v9132
      %v9138 = vrot.slane %v9137, 4
      %v9140 = vshll.u32 %v8921, 16
      %v9142 = vrot.slane %v9140, 5
      %v9143 = vsel %vm1509, %v9138, %v9142
      %v9145 = vshrl.u32 %v8922, 16
      %v9147 = vrot.slane %v9145, 4
      %v9148 = vshll.u32 %v8922, 16
      %v9150 = vrot.slane %v9148, 5
      %v9151 = vor.u32 %v9147, %v9150
      %v9152 = vrot.slane %v9151, 4
      %v9154 = vshll.u32 %v8923, 16
      %v9156 = vrot.slane %v9154, 5
      %v9157 = vsel %vm1509, %v9152, %v9156
      %v9158 = vshrl.u32 %v8923, 16
      %v9160 = vrot.slane %v9158, 4
      %v9161 = vor.u32 %v9160, %v9156
      %v9162 = vrot.slane %v9161, 4
      %v9164 = vshll.u32 %v8924, 16
      %v9166 = vrot.slane %v9164, 5
      %v9167 = vsel %vm1509, %v9162, %v9166
      %v9169 = vshrl.u32 %v8925, 16
      %v9171 = vrot.slane %v9169, 4
      %v9172 = vshll.u32 %v8925, 16
      %v9174 = vrot.slane %v9172, 5
      %v9175 = vor.u32 %v9171, %v9174
      %v9176 = vrot.slane %v9175, 4
      %v9178 = vshll.u32 %v8926, 16
      %v9180 = vrot.slane %v9178, 5
      %v9181 = vsel %vm1509, %v9176, %v9180
      %v9182 = vshrl.u32 %v8926, 16
      %v9184 = vrot.slane %v9182, 4
      %v9185 = vor.u32 %v9184, %v9180
      %v9186 = vrot.slane %v9185, 4
      %v9188 = vshll.u32 %v8927, 16
      %v9190 = vrot.slane %v9188, 5
      %v9191 = vsel %vm1509, %v9186, %v9190
      %v9193 = vshrl.u32 %v8928, 16
      %v9195 = vrot.slane %v9193, 4
      %v9196 = vshll.u32 %v8928, 16
      %v9198 = vrot.slane %v9196, 5
      %v9199 = vor.u32 %v9195, %v9198
      %v9200 = vrot.slane %v9199, 4
      %v9202 = vshll.u32 %v8929, 16
      %v9204 = vrot.slane %v9202, 5
      %v9205 = vsel %vm1509, %v9200, %v9204
      %v9206 = vshrl.u32 %v8929, 16
      %v9208 = vrot.slane %v9206, 4
      %v9209 = vor.u32 %v9208, %v9204
      %v9210 = vrot.slane %v9209, 4
      %v9212 = vshll.u32 %v8930, 16
      %v9214 = vrot.slane %v9212, 5
      %v9215 = vsel %vm1509, %v9210, %v9214
      %v9217 = vshrl.u32 %v8931, 16
      %v9219 = vrot.slane %v9217, 4
      %v9220 = vshll.u32 %v8931, 16
      %v9222 = vrot.slane %v9220, 5
      %v9223 = vor.u32 %v9219, %v9222
      %v9224 = vrot.slane %v9223, 4
      %v9226 = vshll.u32 %v8932, 16
      %v9228 = vrot.slane %v9226, 5
      %v9229 = vsel %vm1509, %v9224, %v9228
      %v9230 = vshrl.u32 %v8932, 16
      %v9232 = vrot.slane %v9230, 4
      %v9233 = vor.u32 %v9232, %v9228
      %v9234 = vrot.slane %v9233, 4
      %v9236 = vshll.u32 %v8933, 16
      %v9238 = vrot.slane %v9236, 5
      %v9239 = vsel %vm1509, %v9234, %v9238
      %v9241 = vshrl.u32 %v8934, 16
      %v9243 = vrot.slane %v9241, 4
      %v9244 = vshll.u32 %v8934, 16
      %v9246 = vrot.slane %v9244, 5
      %v9247 = vor.u32 %v9243, %v9246
      %v9248 = vrot.slane %v9247, 4
      %v9250 = vshll.u32 %v8935, 16
      %v9252 = vrot.slane %v9250, 5
      %v9253 = vsel %vm1509, %v9248, %v9252
      %v9254 = vshrl.u32 %v8935, 16
      %v9256 = vrot.slane %v9254, 4
      %v9257 = vor.u32 %v9256, %v9252
      %v9258 = vrot.slane %v9257, 4
      %v9260 = vshll.u32 %v8936, 16
      %v9262 = vrot.slane %v9260, 5
      %v9263 = vsel %vm1509, %v9258, %v9262
      %v9265 = vshrl.u32 %v8937, 16
      %v9267 = vrot.slane %v9265, 4
      %v9268 = vshll.u32 %v8937, 16
      %v9270 = vrot.slane %v9268, 5
      %v9271 = vor.u32 %v9267, %v9270
      %v9272 = vrot.slane %v9271, 4
      %v9274 = vshll.u32 %v8938, 16
      %v9276 = vrot.slane %v9274, 5
      %v9277 = vsel %vm1509, %v9272, %v9276
      %v9278 = vshrl.u32 %v8938, 16
      %v9280 = vrot.slane %v9278, 4
      %v9281 = vor.u32 %v9280, %v9276
      %v9282 = vrot.slane %v9281, 4
      %v9284 = vshll.u32 %v8939, 16
      %v9286 = vrot.slane %v9284, 5
      %v9287 = vsel %vm1509, %v9282, %v9286
      %v9289 = vshrl.u32 %v8940, 16
      %v9291 = vrot.slane %v9289, 4
      %v9292 = vshll.u32 %v8940, 16
      %v9294 = vrot.slane %v9292, 5
      %v9295 = vor.u32 %v9291, %v9294
      %v9296 = vrot.slane %v9295, 4
      %v9298 = vshll.u32 %v8941, 16
      %v9300 = vrot.slane %v9298, 5
      %v9301 = vsel %vm1509, %v9296, %v9300
      %v9302 = vshrl.u32 %v8941, 16
      %v9304 = vrot.slane %v9302, 4
      %v9305 = vor.u32 %v9304, %v9300
      %v9306 = vrot.slane %v9305, 4
      %v9308 = vshll.u32 %v8942, 16
      %v9310 = vrot.slane %v9308, 5
      %v9311 = vsel %vm1509, %v9306, %v9310
      %v9313 = vshrl.u32 %v8943, 16
      %v9315 = vrot.slane %v9313, 4
      %v9316 = vshll.u32 %v8943, 16
      %v9318 = vrot.slane %v9316, 5
      %v9319 = vor.u32 %v9315, %v9318
      %v9320 = vrot.slane %v9319, 4
      %v9322 = vshll.u32 %v8944, 16
      %v9324 = vrot.slane %v9322, 5
      %v9325 = vsel %vm1509, %v9320, %v9324
      %v9326 = vshrl.u32 %v8944, 16
      %v9328 = vrot.slane %v9326, 4
      %v9329 = vor.u32 %v9328, %v9324
      %v9330 = vrot.slane %v9329, 4
      %v9332 = vshll.u32 %v8945, 16
      %v9334 = vrot.slane %v9332, 5
      %v9335 = vsel %vm1509, %v9330, %v9334
      %v9337 = vshrl.u32 %v8946, 16
      %v9339 = vrot.slane %v9337, 4
      %v9340 = vshll.u32 %v8946, 16
      %v9342 = vrot.slane %v9340, 5
      %v9343 = vor.u32 %v9339, %v9342
      %v9344 = vrot.slane %v9343, 4
      %v9346 = vshll.u32 %v8947, 16
      %v9348 = vrot.slane %v9346, 5
      %v9349 = vsel %vm1509, %v9344, %v9348
      %v9350 = vshrl.u32 %v8947, 16
      %v9352 = vrot.slane %v9350, 4
      %v9353 = vor.u32 %v9352, %v9348
      %v9354 = vrot.slane %v9353, 4
      %v9356 = vshll.u32 %v8948, 16
      %v9358 = vrot.slane %v9356, 5
      %v9359 = vsel %vm1509, %v9354, %v9358
      %v9361 = vshrl.u32 %v8949, 16
      %v9363 = vrot.slane %v9361, 4
      %v9364 = vshll.u32 %v8949, 16
      %v9366 = vrot.slane %v9364, 5
      %v9367 = vor.u32 %v9363, %v9366
      %v9368 = vrot.slane %v9367, 4
      %v9370 = vshll.u32 %v8950, 16
      %v9372 = vrot.slane %v9370, 5
      %v9373 = vsel %vm1509, %v9368, %v9372
      %v9374 = vshrl.u32 %v8950, 16
      %v9376 = vrot.slane %v9374, 4
      %v9377 = vor.u32 %v9376, %v9372
      %v9378 = vrot.slane %v9377, 4
      %v9380 = vshll.u32 %v8951, 16
      %v9382 = vrot.slane %v9380, 5
      %v9383 = vsel %vm1509, %v9378, %v9382
      %9420 = vst [vmem:[#allocation4 + $0x8] sm:$0xf] %v8965
      %9421 = vst [vmem:[#allocation4 + $0x14] sm:$0xf] %v8975
      %9422 = vst [vmem:[#allocation4 + $0x20] sm:$0xf] %v8989
      %9423 = vst [vmem:[#allocation4 + $0x2c] sm:$0xf] %v8999
      %9424 = vst [vmem:[#allocation4 + $0x38] sm:$0xf] %v9013
      %9425 = vst [vmem:[#allocation4 + $0x44] sm:$0xf] %v9023
      %9426 = vst [vmem:[#allocation4 + $0x50] sm:$0xf] %v9037
      %9427 = vst [vmem:[#allocation4 + $0x5c] sm:$0xf] %v9047
      %9428 = vst [vmem:[#allocation4 + $0x68] sm:$0xf] %v9061
      %9429 = vst [vmem:[#allocation4 + $0x74] sm:$0xf] %v9071
      %9430 = vst [vmem:[#allocation4 + $0x80] sm:$0xf] %v9085
      %9431 = vst [vmem:[#allocation4 + $0x8c] sm:$0xf] %v9095
      %9432 = vst [vmem:[#allocation4 + $0x98] sm:$0xf] %v9109
      %9433 = vst [vmem:[#allocation4 + $0xa4] sm:$0xf] %v9119
      %9434 = vst [vmem:[#allocation4 + $0xb0] sm:$0xf] %v9133
      %9435 = vst [vmem:[#allocation4 + $0xbc] sm:$0xf] %v9143
      %9436 = vst [vmem:[#allocation4 + $0xc8] sm:$0xf] %v9157
      %9437 = vst [vmem:[#allocation4 + $0xd4] sm:$0xf] %v9167
      %9438 = vst [vmem:[#allocation4 + $0xe0] sm:$0xf] %v9181
      %9439 = vst [vmem:[#allocation4 + $0xec] sm:$0xf] %v9191
      %9440 = vst [vmem:[#allocation4 + $0xf8] sm:$0xf] %v9205
      %9441 = vst [vmem:[#allocation4 + $0x104] sm:$0xf] %v9215
      %9442 = vst [vmem:[#allocation4 + $0x110] sm:$0xf] %v9229
      %9443 = vst [vmem:[#allocation4 + $0x11c] sm:$0xf] %v9239
      %9444 = vst [vmem:[#allocation4 + $0x128] sm:$0xf] %v9253
      %9445 = vst [vmem:[#allocation4 + $0x134] sm:$0xf] %v9263
      %9446 = vst [vmem:[#allocation4 + $0x140] sm:$0xf] %v9277
      %9447 = vst [vmem:[#allocation4 + $0x14c] sm:$0xf] %v9287
      %9448 = vst [vmem:[#allocation4 + $0x158] sm:$0xf] %v9301
      %9449 = vst [vmem:[#allocation4 + $0x164] sm:$0xf] %v9311
      %9450 = vst [vmem:[#allocation4 + $0x170] sm:$0xf] %v9325
      %9451 = vst [vmem:[#allocation4 + $0x17c] sm:$0xf] %v9335
      %9452 = vst [vmem:[#allocation4 + $0x188] sm:$0xf] %v9349
      %9453 = vst [vmem:[#allocation4 + $0x194] sm:$0xf] %v9359
      %9454 = vst [vmem:[#allocation4 + $0x1a0] sm:$0xf] %v9373
      %9455 = vst [vmem:[#allocation4 + $0x1ac] sm:$0xf] %v9383
      %v9456 = vld [vmem:[#allocation4] sm:$0xff]
      %v9457 = vld [vmem:[#allocation4 + $0x8] sm:$0xf]
      %v9458 = vld [vmem:[#allocation4 + $0xc] sm:$0xff]
      %v9459 = vld [vmem:[#allocation4 + $0x14] sm:$0xf]
      %v9460 = vld [vmem:[#allocation4 + $0x18] sm:$0xff]
      %v9461 = vld [vmem:[#allocation4 + $0x20] sm:$0xf]
      %v9462 = vld [vmem:[#allocation4 + $0x24] sm:$0xff]
      %v9463 = vld [vmem:[#allocation4 + $0x2c] sm:$0xf]
      %v9464 = vld [vmem:[#allocation4 + $0x30] sm:$0xff]
      %v9465 = vld [vmem:[#allocation4 + $0x38] sm:$0xf]
      %v9466 = vld [vmem:[#allocation4 + $0x3c] sm:$0xff]
      %v9467 = vld [vmem:[#allocation4 + $0x44] sm:$0xf]
      %v9468 = vld [vmem:[#allocation4 + $0x48] sm:$0xff]
      %v9469 = vld [vmem:[#allocation4 + $0x50] sm:$0xf]
      %v9470 = vld [vmem:[#allocation4 + $0x54] sm:$0xff]
      %v9471 = vld [vmem:[#allocation4 + $0x5c] sm:$0xf]
      %v9472 = vld [vmem:[#allocation4 + $0x60] sm:$0xff]
      %v9473 = vld [vmem:[#allocation4 + $0x68] sm:$0xf]
      %v9474 = vld [vmem:[#allocation4 + $0x6c] sm:$0xff]
      %v9475 = vld [vmem:[#allocation4 + $0x74] sm:$0xf]
      %v9476 = vld [vmem:[#allocation4 + $0x78] sm:$0xff]
      %v9477 = vld [vmem:[#allocation4 + $0x80] sm:$0xf]
      %v9478 = vld [vmem:[#allocation4 + $0x84] sm:$0xff]
      %v9479 = vld [vmem:[#allocation4 + $0x8c] sm:$0xf]
      %v9480 = vld [vmem:[#allocation4 + $0x90] sm:$0xff]
      %v9481 = vld [vmem:[#allocation4 + $0x98] sm:$0xf]
      %v9482 = vld [vmem:[#allocation4 + $0x9c] sm:$0xff]
      %v9483 = vld [vmem:[#allocation4 + $0xa4] sm:$0xf]
      %v9484 = vld [vmem:[#allocation4 + $0xa8] sm:$0xff]
      %v9485 = vld [vmem:[#allocation4 + $0xb0] sm:$0xf]
      %v9486 = vld [vmem:[#allocation4 + $0xb4] sm:$0xff]
      %v9487 = vld [vmem:[#allocation4 + $0xbc] sm:$0xf]
      %v9488 = vld [vmem:[#allocation4 + $0xc0] sm:$0xff]
      %v9489 = vld [vmem:[#allocation4 + $0xc8] sm:$0xf]
      %v9490 = vld [vmem:[#allocation4 + $0xcc] sm:$0xff]
      %v9491 = vld [vmem:[#allocation4 + $0xd4] sm:$0xf]
      %v9492 = vld [vmem:[#allocation4 + $0xd8] sm:$0xff]
      %v9493 = vld [vmem:[#allocation4 + $0xe0] sm:$0xf]
      %v9494 = vld [vmem:[#allocation4 + $0xe4] sm:$0xff]
      %v9495 = vld [vmem:[#allocation4 + $0xec] sm:$0xf]
      %v9496 = vld [vmem:[#allocation4 + $0xf0] sm:$0xff]
      %v9497 = vld [vmem:[#allocation4 + $0xf8] sm:$0xf]
      %v9498 = vld [vmem:[#allocation4 + $0xfc] sm:$0xff]
      %v9499 = vld [vmem:[#allocation4 + $0x104] sm:$0xf]
      %v9500 = vld [vmem:[#allocation4 + $0x108] sm:$0xff]
      %v9501 = vld [vmem:[#allocation4 + $0x110] sm:$0xf]
      %v9502 = vld [vmem:[#allocation4 + $0x114] sm:$0xff]
      %v9503 = vld [vmem:[#allocation4 + $0x11c] sm:$0xf]
      %v9504 = vld [vmem:[#allocation4 + $0x120] sm:$0xff]
      %v9505 = vld [vmem:[#allocation4 + $0x128] sm:$0xf]
      %v9506 = vld [vmem:[#allocation4 + $0x12c] sm:$0xff]
      %v9507 = vld [vmem:[#allocation4 + $0x134] sm:$0xf]
      %v9508 = vld [vmem:[#allocation4 + $0x138] sm:$0xff]
      %v9509 = vld [vmem:[#allocation4 + $0x140] sm:$0xf]
      %v9510 = vld [vmem:[#allocation4 + $0x144] sm:$0xff]
      %v9511 = vld [vmem:[#allocation4 + $0x14c] sm:$0xf]
      %v9512 = vld [vmem:[#allocation4 + $0x150] sm:$0xff]
      %v9513 = vld [vmem:[#allocation4 + $0x158] sm:$0xf]
      %v9514 = vld [vmem:[#allocation4 + $0x15c] sm:$0xff]
      %v9515 = vld [vmem:[#allocation4 + $0x164] sm:$0xf]
      %v9516 = vld [vmem:[#allocation4 + $0x168] sm:$0xff]
      %v9517 = vld [vmem:[#allocation4 + $0x170] sm:$0xf]
      %v9518 = vld [vmem:[#allocation4 + $0x174] sm:$0xff]
      %v9519 = vld [vmem:[#allocation4 + $0x17c] sm:$0xf]
      %v9520 = vld [vmem:[%s8] sm:$0xf]
      %v9521 = vld [vmem:[%s8 + $0x4] sm:$0xf]
      %v9522 = vld [vmem:[%s8 + $0x8] sm:$0xf]
      %v9523 = vld [vmem:[%s8 + $0xc] sm:$0xf]
      %v9524 = vld [vmem:[%s8 + $0x10] sm:$0xf]
      %v9525 = vld [vmem:[%s8 + $0x14] sm:$0xf]
      %v9526 = vld [vmem:[%s8 + $0x18] sm:$0xf]
      %v9527 = vld [vmem:[%s8 + $0x1c] sm:$0xf]
      %v9528 = vld [vmem:[%s8 + $0x20] sm:$0xf]
      %v9529 = vld [vmem:[%s8 + $0x24] sm:$0xf]
      %v9530 = vld [vmem:[%s8 + $0x28] sm:$0xf]
      %v9531 = vld [vmem:[%s8 + $0x2c] sm:$0xf]
      %v9532 = vld [vmem:[%s8 + $0x30] sm:$0xf]
      %v9533 = vld [vmem:[%s8 + $0x34] sm:$0xf]
      %v9534 = vld [vmem:[%s8 + $0x38] sm:$0xf]
      %v9535 = vld [vmem:[%s8 + $0x3c] sm:$0xf]
      %v9536 = vld [vmem:[%s8 + $0x40] sm:$0xf]
      %v9537 = vld [vmem:[%s8 + $0x44] sm:$0xf]
      %v9538 = vld [vmem:[%s8 + $0x48] sm:$0xf]
      %v9539 = vld [vmem:[%s8 + $0x4c] sm:$0xf]
      %v9540 = vld [vmem:[%s8 + $0x50] sm:$0xf]
      %v9541 = vld [vmem:[%s8 + $0x54] sm:$0xf]
      %v9542 = vld [vmem:[%s8 + $0x58] sm:$0xf]
      %v9543 = vld [vmem:[%s8 + $0x5c] sm:$0xf]
      %v9544 = vld [vmem:[%s8 + $0x60] sm:$0xf]
      %v9545 = vld [vmem:[%s8 + $0x64] sm:$0xf]
      %v9546 = vld [vmem:[%s8 + $0x68] sm:$0xf]
      %v9547 = vld [vmem:[%s8 + $0x6c] sm:$0xf]
      %v9548 = vld [vmem:[%s8 + $0x70] sm:$0xf]
      %v9549 = vld [vmem:[%s8 + $0x74] sm:$0xf]
      %v9550 = vld [vmem:[%s8 + $0x78] sm:$0xf]
      %v9551 = vld [vmem:[%s8 + $0x7c] sm:$0xf]
      %v9552 = vld [vmem:[%s8 + $0x80] sm:$0xf]
      %v9553 = vld [vmem:[%s8 + $0x84] sm:$0xf]
      %v9554 = vld [vmem:[%s8 + $0x88] sm:$0xf]
      %v9555 = vld [vmem:[%s8 + $0x8c] sm:$0xf]
      %v9556 = vld [vmem:[%s8 + $0x90] sm:$0xf]
      %v9557 = vld [vmem:[%s8 + $0x94] sm:$0xf]
      %v9558 = vld [vmem:[%s8 + $0x98] sm:$0xf]
      %v9559 = vld [vmem:[%s8 + $0x9c] sm:$0xf]
      %v9560 = vld [vmem:[%s8 + $0xa0] sm:$0xf]
      %v9561 = vld [vmem:[%s8 + $0xa4] sm:$0xf]
      %v9562 = vld [vmem:[%s8 + $0xa8] sm:$0xf]
      %v9563 = vld [vmem:[%s8 + $0xac] sm:$0xf]
      %v9564 = vld [vmem:[%s8 + $0xb0] sm:$0xf]
      %v9565 = vld [vmem:[%s8 + $0xb4] sm:$0xf]
      %v9566 = vld [vmem:[%s8 + $0xb8] sm:$0xf]
      %v9567 = vld [vmem:[%s8 + $0xbc] sm:$0xf]
      %v9568 = vld [vmem:[#allocation4 + $0x180] sm:$0xff]
      %v9569 = vld [vmem:[#allocation4 + $0x188] sm:$0xf]
      %v9570 = vld [vmem:[#allocation4 + $0x18c] sm:$0xff]
      %v9571 = vld [vmem:[#allocation4 + $0x194] sm:$0xf]
      %s9572 = scalar_lea.vmem %s8, 192
      %v9573 = vld [vmem:[%s9572] sm:$0xf]
      %v9574 = vld [vmem:[%s9572 + $0x4] sm:$0xf]
      %v9575 = vld [vmem:[%s9572 + $0x8] sm:$0xf]
      %v9576 = vld [vmem:[%s9572 + $0xc] sm:$0xf]
      %v9577 = vld [vmem:[%s9572 + $0x10] sm:$0xf]
      %v9578 = vld [vmem:[%s9572 + $0x14] sm:$0xf]
      %v9579 = vld [vmem:[%s9572 + $0x18] sm:$0xf]
      %v9580 = vld [vmem:[%s9572 + $0x1c] sm:$0xf]
      %v9581 = vld [vmem:[%s9572 + $0x20] sm:$0xf]
      %v9582 = vld [vmem:[%s9572 + $0x24] sm:$0xf]
      %v9583 = vld [vmem:[%s9572 + $0x28] sm:$0xf]
      %v9584 = vld [vmem:[%s9572 + $0x2c] sm:$0xf]
      %v9585 = vld [vmem:[%s9572 + $0x30] sm:$0xf]
      %v9586 = vld [vmem:[%s9572 + $0x34] sm:$0xf]
      %v9587 = vld [vmem:[%s9572 + $0x38] sm:$0xf]
      %v9588 = vld [vmem:[%s9572 + $0x3c] sm:$0xf]
      %v9589 = vld [vmem:[%s9572 + $0x40] sm:$0xf]
      %v9590 = vld [vmem:[%s9572 + $0x44] sm:$0xf]
      %v9591 = vld [vmem:[%s9572 + $0x48] sm:$0xf]
      %v9592 = vld [vmem:[%s9572 + $0x4c] sm:$0xf]
      %v9593 = vld [vmem:[%s9572 + $0x50] sm:$0xf]
      %v9594 = vld [vmem:[%s9572 + $0x54] sm:$0xf]
      %v9595 = vld [vmem:[%s9572 + $0x58] sm:$0xf]
      %v9596 = vld [vmem:[%s9572 + $0x5c] sm:$0xf]
      %v9597 = vld [vmem:[%s9572 + $0x60] sm:$0xf]
      %v9598 = vld [vmem:[%s9572 + $0x64] sm:$0xf]
      %v9599 = vld [vmem:[%s9572 + $0x68] sm:$0xf]
      %v9600 = vld [vmem:[%s9572 + $0x6c] sm:$0xf]
      %v9601 = vld [vmem:[%s9572 + $0x70] sm:$0xf]
      %v9602 = vld [vmem:[%s9572 + $0x74] sm:$0xf]
      %v9603 = vld [vmem:[%s9572 + $0x78] sm:$0xf]
      %v9604 = vld [vmem:[%s9572 + $0x7c] sm:$0xf]
      %v9605 = vld [vmem:[%s9572 + $0x80] sm:$0xf]
      %v9606 = vld [vmem:[%s9572 + $0x84] sm:$0xf]
      %v9607 = vld [vmem:[%s9572 + $0x88] sm:$0xf]
      %v9608 = vld [vmem:[%s9572 + $0x8c] sm:$0xf]
      %v9609 = vld [vmem:[%s9572 + $0x90] sm:$0xf]
      %v9610 = vld [vmem:[%s9572 + $0x94] sm:$0xf]
      %v9611 = vld [vmem:[%s9572 + $0x98] sm:$0xf]
      %v9612 = vld [vmem:[%s9572 + $0x9c] sm:$0xf]
      %v9613 = vld [vmem:[%s9572 + $0xa0] sm:$0xf]
      %v9614 = vld [vmem:[%s9572 + $0xa4] sm:$0xf]
      %v9615 = vld [vmem:[%s9572 + $0xa8] sm:$0xf]
      %v9616 = vld [vmem:[%s9572 + $0xac] sm:$0xf]
      %v9617 = vld [vmem:[%s9572 + $0xb0] sm:$0xf]
      %v9618 = vld [vmem:[%s9572 + $0xb4] sm:$0xf]
      %v9619 = vld [vmem:[%s9572 + $0xb8] sm:$0xf]
      %v9620 = vld [vmem:[%s9572 + $0xbc] sm:$0xf]
      %v9685 = vunpack.c.l.b16 %v9460
      %v9686 = vunpack.c.h.b16 %v9460
      %v9687 = vunpack.c.l.b16 %v9461
      %v9688 = vunpack.c.l.b16 %v9462
      %v9689 = vunpack.c.h.b16 %v9462
      %v9690 = vunpack.c.l.b16 %v9463
      %v9691 = vunpack.c.l.b16 %v9464
      %v9692 = vunpack.c.h.b16 %v9464
      %v9693 = vunpack.c.l.b16 %v9465
      %v9694 = vunpack.c.l.b16 %v9466
      %v9695 = vunpack.c.h.b16 %v9466
      %v9696 = vunpack.c.l.b16 %v9467
      %v9697 = vunpack.c.l.b16 %v9468
      %v9698 = vunpack.c.h.b16 %v9468
      %v9699 = vunpack.c.l.b16 %v9469
      %v9700 = vunpack.c.l.b16 %v9470
      %v9701 = vunpack.c.h.b16 %v9470
      %v9702 = vunpack.c.l.b16 %v9471
      %v9703 = vunpack.c.l.b16 %v9472
      %v9704 = vunpack.c.h.b16 %v9472
      %v9705 = vunpack.c.l.b16 %v9473
      %v9706 = vunpack.c.l.b16 %v9474
      %v9707 = vunpack.c.h.b16 %v9474
      %v9708 = vunpack.c.l.b16 %v9475
      %v9709 = vunpack.c.l.b16 %v9476
      %v9710 = vunpack.c.h.b16 %v9476
      %v9711 = vunpack.c.l.b16 %v9477
      %v9712 = vunpack.c.l.b16 %v9478
      %v9713 = vunpack.c.h.b16 %v9478
      %v9714 = vunpack.c.l.b16 %v9479
      %v9715 = vunpack.c.l.b16 %v9480
      %v9716 = vunpack.c.h.b16 %v9480
      %v9717 = vunpack.c.l.b16 %v9481
      %v9718 = vunpack.c.l.b16 %v9482
      %v9719 = vunpack.c.h.b16 %v9482
      %v9720 = vunpack.c.l.b16 %v9483
      %v9721 = vunpack.c.l.b16 %v9484
      %v9722 = vunpack.c.h.b16 %v9484
      %v9723 = vunpack.c.l.b16 %v9485
      %v9724 = vunpack.c.l.b16 %v9486
      %v9725 = vunpack.c.h.b16 %v9486
      %v9726 = vunpack.c.l.b16 %v9487
      %v9727 = vunpack.c.l.b16 %v9488
      %v9728 = vunpack.c.h.b16 %v9488
      %v9729 = vunpack.c.l.b16 %v9489
      %v9730 = vunpack.c.l.b16 %v9490
      %v9731 = vunpack.c.h.b16 %v9490
      %v9732 = vunpack.c.l.b16 %v9491
      %v9733 = vunpack.c.l.b16 %v9492
      %v9734 = vunpack.c.h.b16 %v9492
      %v9735 = vunpack.c.l.b16 %v9493
      %v9736 = vunpack.c.l.b16 %v9494
      %v9737 = vunpack.c.h.b16 %v9494
      %v9738 = vunpack.c.l.b16 %v9495
      %v9739 = vunpack.c.l.b16 %v9496
      %v9740 = vunpack.c.h.b16 %v9496
      %v9741 = vunpack.c.l.b16 %v9497
      %v9742 = vunpack.c.l.b16 %v9498
      %v9743 = vunpack.c.h.b16 %v9498
      %v9744 = vunpack.c.l.b16 %v9499
      %v9745 = vunpack.c.l.b16 %v9500
      %v9746 = vunpack.c.h.b16 %v9500
      %v9747 = vunpack.c.l.b16 %v9501
      %v9748 = vunpack.c.l.b16 %v9502
      %v9749 = vunpack.c.h.b16 %v9502
      %v9750 = vunpack.c.l.b16 %v9503
      %v9751 = vunpack.c.l.b16 %v9504
      %v9752 = vunpack.c.h.b16 %v9504
      %v9753 = vunpack.c.l.b16 %v9505
      %v9754 = vunpack.c.l.b16 %v9506
      %v9755 = vunpack.c.h.b16 %v9506
      %v9756 = vunpack.c.l.b16 %v9507
      %v9757 = vunpack.c.l.b16 %v9508
      %v9758 = vunpack.c.h.b16 %v9508
      %v9759 = vunpack.c.l.b16 %v9509
      %v9760 = vunpack.c.l.b16 %v9510
      %v9761 = vunpack.c.h.b16 %v9510
      %v9762 = vunpack.c.l.b16 %v9511
      %v9763 = vunpack.c.l.b16 %v9512
      %v9764 = vunpack.c.h.b16 %v9512
      %v9765 = vunpack.c.l.b16 %v9513
      %v9766 = vunpack.c.l.b16 %v9514
      %v9767 = vunpack.c.h.b16 %v9514
      %v9768 = vunpack.c.l.b16 %v9515
      %v9769 = vunpack.c.l.b16 %v9516
      %v9770 = vunpack.c.h.b16 %v9516
      %v9771 = vunpack.c.l.b16 %v9517
      %v9772 = vunpack.c.l.b16 %v9518
      %v9773 = vunpack.c.h.b16 %v9518
      %v9774 = vunpack.c.l.b16 %v9519
      %v9775 = vunpack.c.l.b16 %v9568
      %v9776 = vunpack.c.h.b16 %v9568
      %v9777 = vunpack.c.l.b16 %v9569
      %v9778 = vunpack.c.l.b16 %v9570
      %v9779 = vunpack.c.h.b16 %v9570
      %v9780 = vunpack.c.l.b16 %v9571
      %v9781 = vpack.c.b16 %v9688, %v9685
      %v9782 = vpack.c.b16 %v9689, %v9686
      %v9783 = vpack.c.b16 %v9690, %v9687
      %v9784 = vpack.c.b16 %v9694, %v9691
      %v9785 = vpack.c.b16 %v9695, %v9692
      %v9786 = vpack.c.b16 %v9696, %v9693
      %v9787 = vpack.c.b16 %v9700, %v9697
      %v9788 = vpack.c.b16 %v9701, %v9698
      %v9789 = vpack.c.b16 %v9702, %v9699
      %v9790 = vpack.c.b16 %v9706, %v9703
      %v9791 = vpack.c.b16 %v9707, %v9704
      %v9792 = vpack.c.b16 %v9708, %v9705
      %v9793 = vpack.c.b16 %v9712, %v9709
      %v9794 = vpack.c.b16 %v9713, %v9710
      %v9795 = vpack.c.b16 %v9714, %v9711
      %v9796 = vpack.c.b16 %v9718, %v9715
      %v9797 = vpack.c.b16 %v9719, %v9716
      %v9798 = vpack.c.b16 %v9720, %v9717
      %v9799 = vpack.c.b16 %v9724, %v9721
      %v9800 = vpack.c.b16 %v9725, %v9722
      %v9801 = vpack.c.b16 %v9726, %v9723
      %v9802 = vpack.c.b16 %v9730, %v9727
      %v9803 = vpack.c.b16 %v9731, %v9728
      %v9804 = vpack.c.b16 %v9732, %v9729
      %v9805 = vpack.c.b16 %v9736, %v9733
      %v9806 = vpack.c.b16 %v9737, %v9734
      %v9807 = vpack.c.b16 %v9738, %v9735
      %v9808 = vpack.c.b16 %v9742, %v9739
      %v9809 = vpack.c.b16 %v9743, %v9740
      %v9810 = vpack.c.b16 %v9744, %v9741
      %v9811 = vpack.c.b16 %v9748, %v9745
      %v9812 = vpack.c.b16 %v9749, %v9746
      %v9813 = vpack.c.b16 %v9750, %v9747
      %v9814 = vpack.c.b16 %v9754, %v9751
      %v9815 = vpack.c.b16 %v9755, %v9752
      %v9816 = vpack.c.b16 %v9756, %v9753
      %v9817 = vpack.c.b16 %v9760, %v9757
      %v9818 = vpack.c.b16 %v9761, %v9758
      %v9819 = vpack.c.b16 %v9762, %v9759
      %v9820 = vpack.c.b16 %v9766, %v9763
      %v9821 = vpack.c.b16 %v9767, %v9764
      %v9822 = vpack.c.b16 %v9768, %v9765
      %v9823 = vpack.c.b16 %v9772, %v9769
      %v9824 = vpack.c.b16 %v9773, %v9770
      %v9825 = vpack.c.b16 %v9774, %v9771
      %v9826 = vpack.c.b16 %v9778, %v9775
      %v9827 = vpack.c.b16 %v9779, %v9776
      %v9828 = vpack.c.b16 %v9780, %v9777
      %v9925 = vunpack.c.l.b16 %v9573
      %v9926 = vunpack.c.l.b16 %v9574
      %v9927 = vunpack.c.l.b16 %v9575
      %v9928 = vunpack.c.l.b16 %v9576
      %v9929 = vunpack.c.l.b16 %v9577
      %v9930 = vunpack.c.l.b16 %v9578
      %v9931 = vunpack.c.l.b16 %v9579
      %v9932 = vunpack.c.l.b16 %v9580
      %v9933 = vunpack.c.l.b16 %v9581
      %v9934 = vunpack.c.l.b16 %v9582
      %v9935 = vunpack.c.l.b16 %v9583
      %v9936 = vunpack.c.l.b16 %v9584
      %v9937 = vunpack.c.l.b16 %v9585
      %v9938 = vunpack.c.l.b16 %v9586
      %v9939 = vunpack.c.l.b16 %v9587
      %v9940 = vunpack.c.l.b16 %v9588
      %v9941 = vunpack.c.l.b16 %v9589
      %v9942 = vunpack.c.l.b16 %v9590
      %v9943 = vunpack.c.l.b16 %v9591
      %v9944 = vunpack.c.l.b16 %v9592
      %v9945 = vunpack.c.l.b16 %v9593
      %v9946 = vunpack.c.l.b16 %v9594
      %v9947 = vunpack.c.l.b16 %v9595
      %v9948 = vunpack.c.l.b16 %v9596
      %v9949 = vunpack.c.l.b16 %v9597
      %v9950 = vunpack.c.l.b16 %v9598
      %v9951 = vunpack.c.l.b16 %v9599
      %v9952 = vunpack.c.l.b16 %v9600
      %v9953 = vunpack.c.l.b16 %v9601
      %v9954 = vunpack.c.l.b16 %v9602
      %v9955 = vunpack.c.l.b16 %v9603
      %v9956 = vunpack.c.l.b16 %v9604
      %v9957 = vunpack.c.l.b16 %v9605
      %v9958 = vunpack.c.l.b16 %v9606
      %v9959 = vunpack.c.l.b16 %v9607
      %v9960 = vunpack.c.l.b16 %v9608
      %v9961 = vunpack.c.l.b16 %v9609
      %v9962 = vunpack.c.l.b16 %v9610
      %v9963 = vunpack.c.l.b16 %v9611
      %v9964 = vunpack.c.l.b16 %v9612
      %v9965 = vunpack.c.l.b16 %v9613
      %v9966 = vunpack.c.l.b16 %v9614
      %v9967 = vunpack.c.l.b16 %v9615
      %v9968 = vunpack.c.l.b16 %v9616
      %v9969 = vunpack.c.l.b16 %v9617
      %v9970 = vunpack.c.l.b16 %v9618
      %v9971 = vunpack.c.l.b16 %v9619
      %v9972 = vunpack.c.l.b16 %v9620
      %v9973 = vpack.c.b16 %v9926, %v9925
      %v9974 = vpack.c.b16 %v9928, %v9927
      %v9975 = vpack.c.b16 %v9930, %v9929
      %v9976 = vpack.c.b16 %v9932, %v9931
      %v9977 = vpack.c.b16 %v9934, %v9933
      %v9978 = vpack.c.b16 %v9936, %v9935
      %v9979 = vpack.c.b16 %v9938, %v9937
      %v9980 = vpack.c.b16 %v9940, %v9939
      %v9981 = vpack.c.b16 %v9942, %v9941
      %v9982 = vpack.c.b16 %v9944, %v9943
      %v9983 = vpack.c.b16 %v9946, %v9945
      %v9984 = vpack.c.b16 %v9948, %v9947
      %v9985 = vpack.c.b16 %v9950, %v9949
      %v9986 = vpack.c.b16 %v9952, %v9951
      %v9987 = vpack.c.b16 %v9954, %v9953
      %v9988 = vpack.c.b16 %v9956, %v9955
      %v9989 = vpack.c.b16 %v9958, %v9957
      %v9990 = vpack.c.b16 %v9960, %v9959
      %v9991 = vpack.c.b16 %v9962, %v9961
      %v9992 = vpack.c.b16 %v9964, %v9963
      %v9993 = vpack.c.b16 %v9966, %v9965
      %v9994 = vpack.c.b16 %v9968, %v9967
      %v9995 = vpack.c.b16 %v9970, %v9969
      %v9996 = vpack.c.b16 %v9972, %v9971
      %10021 = vmatpush.bf16.msra.mxu0 %v9980
      %10022 = vmatpush.bf16.msra.mxu0 %v9979
      %10023 = vmatpush.bf16.msra.mxu0 %v9978
      %10024 = vmatpush.bf16.msra.mxu0 %v9977
      %10025 = vmatpush.bf16.msra.mxu0 %v9976
      %10026 = vmatpush.bf16.msra.mxu0 %v9975
      %10027 = vmatpush.bf16.msra.mxu0 %v9974
      %10028 = vmatpush.bf16.msra.mxu0 %v9973
      %10029 = vmatmul.bf16.gmra.mxu0 %v9781
      %v10030 = vpop.f32.mrf.mxu0
      %v10031 = vadd.f32 0.0, %v10030
      %v10032 = vpop.f32.mrf.mxu0
      %v10033 = vadd.f32 0.0, %v10032
      %10034 = vmatmul.bf16.gmra.mxu0 %v9784
      %v10035 = vpop.f32.mrf.mxu0
      %v10036 = vadd.f32 0.0, %v10035
      %v10037 = vpop.f32.mrf.mxu0
      %v10038 = vadd.f32 0.0, %v10037
      %10039 = vmatmul.bf16.gmra.mxu0 %v9787
      %v10040 = vpop.f32.mrf.mxu0
      %v10041 = vadd.f32 0.0, %v10040
      %v10042 = vpop.f32.mrf.mxu0
      %v10043 = vadd.f32 0.0, %v10042
      %10044 = vmatmul.bf16.gmra.mxu0 %v9790
      %v10045 = vpop.f32.mrf.mxu0
      %v10046 = vadd.f32 0.0, %v10045
      %v10047 = vpop.f32.mrf.mxu0
      %v10048 = vadd.f32 0.0, %v10047
      %10049 = vmatmul.bf16.gmra.mxu0 %v9793
      %v10050 = vpop.f32.mrf.mxu0
      %v10051 = vadd.f32 0.0, %v10050
      %v10052 = vpop.f32.mrf.mxu0
      %v10053 = vadd.f32 0.0, %v10052
      %10054 = vmatmul.bf16.gmra.mxu0 %v9796
      %v10055 = vpop.f32.mrf.mxu0
      %v10056 = vadd.f32 0.0, %v10055
      %v10057 = vpop.f32.mrf.mxu0
      %v10058 = vadd.f32 0.0, %v10057
      %10059 = vmatmul.bf16.gmra.mxu0 %v9799
      %v10060 = vpop.f32.mrf.mxu0
      %v10061 = vadd.f32 0.0, %v10060
      %v10062 = vpop.f32.mrf.mxu0
      %v10063 = vadd.f32 0.0, %v10062
      %10064 = vmatmul.bf16.gmra.mxu0 %v9802
      %v10065 = vpop.f32.mrf.mxu0
      %v10066 = vadd.f32 0.0, %v10065
      %v10067 = vpop.f32.mrf.mxu0
      %v10068 = vadd.f32 0.0, %v10067
      %10069 = vmatmul.bf16.gmra.mxu0 %v9805
      %v10070 = vpop.f32.mrf.mxu0
      %v10071 = vadd.f32 0.0, %v10070
      %v10072 = vpop.f32.mrf.mxu0
      %v10073 = vadd.f32 0.0, %v10072
      %10074 = vmatmul.bf16.gmra.mxu0 %v9808
      %v10075 = vpop.f32.mrf.mxu0
      %v10076 = vadd.f32 0.0, %v10075
      %v10077 = vpop.f32.mrf.mxu0
      %v10078 = vadd.f32 0.0, %v10077
      %10079 = vmatmul.bf16.gmra.mxu0 %v9811
      %v10080 = vpop.f32.mrf.mxu0
      %v10081 = vadd.f32 0.0, %v10080
      %v10082 = vpop.f32.mrf.mxu0
      %v10083 = vadd.f32 0.0, %v10082
      %10084 = vmatmul.bf16.gmra.mxu0 %v9814
      %v10085 = vpop.f32.mrf.mxu0
      %v10086 = vadd.f32 0.0, %v10085
      %v10087 = vpop.f32.mrf.mxu0
      %v10088 = vadd.f32 0.0, %v10087
      %10089 = vmatmul.bf16.gmra.mxu0 %v9817
      %v10090 = vpop.f32.mrf.mxu0
      %v10091 = vadd.f32 0.0, %v10090
      %v10092 = vpop.f32.mrf.mxu0
      %v10093 = vadd.f32 0.0, %v10092
      %10094 = vmatmul.bf16.gmra.mxu0 %v9820
      %v10095 = vpop.f32.mrf.mxu0
      %v10096 = vadd.f32 0.0, %v10095
      %v10097 = vpop.f32.mrf.mxu0
      %v10098 = vadd.f32 0.0, %v10097
      %10099 = vmatmul.bf16.gmra.mxu0 %v9823
      %v10100 = vpop.f32.mrf.mxu0
      %v10101 = vadd.f32 0.0, %v10100
      %v10102 = vpop.f32.mrf.mxu0
      %v10103 = vadd.f32 0.0, %v10102
      %10104 = vmatmul.bf16.gmra.mxu0 %v9826
      %v10105 = vpop.f32.mrf.mxu0
      %v10106 = vadd.f32 0.0, %v10105
      %v10107 = vpop.f32.mrf.mxu0
      %v10108 = vadd.f32 0.0, %v10107
      %10109 = vdwg.mxu0
      %10110 = vmatpush.bf16.msra.mxu0 %v9988
      %10111 = vmatpush.bf16.msra.mxu0 %v9987
      %10112 = vmatpush.bf16.msra.mxu0 %v9986
      %10113 = vmatpush.bf16.msra.mxu0 %v9985
      %10114 = vmatpush.bf16.msra.mxu0 %v9984
      %10115 = vmatpush.bf16.msra.mxu0 %v9983
      %10116 = vmatpush.bf16.msra.mxu0 %v9982
      %10117 = vmatpush.bf16.msra.mxu0 %v9981
      %10118 = vmatmul.bf16.gmra.mxu0 %v9782
      %v10119 = vpop.f32.mrf.mxu0
      %v10120 = vadd.f32 %v10031, %v10119
      %v10121 = vpop.f32.mrf.mxu0
      %v10122 = vadd.f32 %v10033, %v10121
      %10123 = vmatmul.bf16.gmra.mxu0 %v9785
      %v10124 = vpop.f32.mrf.mxu0
      %v10125 = vadd.f32 %v10036, %v10124
      %v10126 = vpop.f32.mrf.mxu0
      %v10127 = vadd.f32 %v10038, %v10126
      %10128 = vmatmul.bf16.gmra.mxu0 %v9788
      %v10129 = vpop.f32.mrf.mxu0
      %v10130 = vadd.f32 %v10041, %v10129
      %v10131 = vpop.f32.mrf.mxu0
      %v10132 = vadd.f32 %v10043, %v10131
      %10133 = vmatmul.bf16.gmra.mxu0 %v9791
      %v10134 = vpop.f32.mrf.mxu0
      %v10135 = vadd.f32 %v10046, %v10134
      %v10136 = vpop.f32.mrf.mxu0
      %v10137 = vadd.f32 %v10048, %v10136
      %10138 = vmatmul.bf16.gmra.mxu0 %v9794
      %v10139 = vpop.f32.mrf.mxu0
      %v10140 = vadd.f32 %v10051, %v10139
      %v10141 = vpop.f32.mrf.mxu0
      %v10142 = vadd.f32 %v10053, %v10141
      %10143 = vmatmul.bf16.gmra.mxu0 %v9797
      %v10144 = vpop.f32.mrf.mxu0
      %v10145 = vadd.f32 %v10056, %v10144
      %v10146 = vpop.f32.mrf.mxu0
      %v10147 = vadd.f32 %v10058, %v10146
      %10148 = vmatmul.bf16.gmra.mxu0 %v9800
      %v10149 = vpop.f32.mrf.mxu0
      %v10150 = vadd.f32 %v10061, %v10149
      %v10151 = vpop.f32.mrf.mxu0
      %v10152 = vadd.f32 %v10063, %v10151
      %10153 = vmatmul.bf16.gmra.mxu0 %v9803
      %v10154 = vpop.f32.mrf.mxu0
      %v10155 = vadd.f32 %v10066, %v10154
      %v10156 = vpop.f32.mrf.mxu0
      %v10157 = vadd.f32 %v10068, %v10156
      %10158 = vmatmul.bf16.gmra.mxu0 %v9806
      %v10159 = vpop.f32.mrf.mxu0
      %v10160 = vadd.f32 %v10071, %v10159
      %v10161 = vpop.f32.mrf.mxu0
      %v10162 = vadd.f32 %v10073, %v10161
      %10163 = vmatmul.bf16.gmra.mxu0 %v9809
      %v10164 = vpop.f32.mrf.mxu0
      %v10165 = vadd.f32 %v10076, %v10164
      %v10166 = vpop.f32.mrf.mxu0
      %v10167 = vadd.f32 %v10078, %v10166
      %10168 = vmatmul.bf16.gmra.mxu0 %v9812
      %v10169 = vpop.f32.mrf.mxu0
      %v10170 = vadd.f32 %v10081, %v10169
      %v10171 = vpop.f32.mrf.mxu0
      %v10172 = vadd.f32 %v10083, %v10171
      %10173 = vmatmul.bf16.gmra.mxu0 %v9815
      %v10174 = vpop.f32.mrf.mxu0
      %v10175 = vadd.f32 %v10086, %v10174
      %v10176 = vpop.f32.mrf.mxu0
      %v10177 = vadd.f32 %v10088, %v10176
      %10178 = vmatmul.bf16.gmra.mxu0 %v9818
      %v10179 = vpop.f32.mrf.mxu0
      %v10180 = vadd.f32 %v10091, %v10179
      %v10181 = vpop.f32.mrf.mxu0
      %v10182 = vadd.f32 %v10093, %v10181
      %10183 = vmatmul.bf16.gmra.mxu0 %v9821
      %v10184 = vpop.f32.mrf.mxu0
      %v10185 = vadd.f32 %v10096, %v10184
      %v10186 = vpop.f32.mrf.mxu0
      %v10187 = vadd.f32 %v10098, %v10186
      %10188 = vmatmul.bf16.gmra.mxu0 %v9824
      %v10189 = vpop.f32.mrf.mxu0
      %v10190 = vadd.f32 %v10101, %v10189
      %v10191 = vpop.f32.mrf.mxu0
      %v10192 = vadd.f32 %v10103, %v10191
      %10193 = vmatmul.bf16.gmra.mxu0 %v9827
      %v10194 = vpop.f32.mrf.mxu0
      %v10195 = vadd.f32 %v10106, %v10194
      %v10196 = vpop.f32.mrf.mxu0
      %v10197 = vadd.f32 %v10108, %v10196
      %10198 = vdwg.mxu0
      %10199 = vmatpush.bf16.msra.mxu0 %v9996
      %10200 = vmatpush.bf16.msra.mxu0 %v9995
      %10201 = vmatpush.bf16.msra.mxu0 %v9994
      %10202 = vmatpush.bf16.msra.mxu0 %v9993
      %10203 = vmatpush.bf16.msra.mxu0 %v9992
      %10204 = vmatpush.bf16.msra.mxu0 %v9991
      %10205 = vmatpush.bf16.msra.mxu0 %v9990
      %10206 = vmatpush.bf16.msra.mxu0 %v9989
      %10207 = vmatmul.bf16.gmra.mxu0 %v9783
      %v10208 = vpop.f32.mrf.mxu0
      %v10209 = vadd.f32 %v10120, %v10208
      %v10210 = vpop.f32.mrf.mxu0
      %v10211 = vadd.f32 %v10122, %v10210
      %10212 = vmatmul.bf16.gmra.mxu0 %v9786
      %v10213 = vpop.f32.mrf.mxu0
      %v10214 = vadd.f32 %v10125, %v10213
      %v10215 = vpop.f32.mrf.mxu0
      %v10216 = vadd.f32 %v10127, %v10215
      %10217 = vmatmul.bf16.gmra.mxu0 %v9789
      %v10218 = vpop.f32.mrf.mxu0
      %v10219 = vadd.f32 %v10130, %v10218
      %v10220 = vpop.f32.mrf.mxu0
      %v10221 = vadd.f32 %v10132, %v10220
      %10222 = vmatmul.bf16.gmra.mxu0 %v9792
      %v10223 = vpop.f32.mrf.mxu0
      %v10224 = vadd.f32 %v10135, %v10223
      %v10225 = vpop.f32.mrf.mxu0
      %v10226 = vadd.f32 %v10137, %v10225
      %10227 = vmatmul.bf16.gmra.mxu0 %v9795
      %v10228 = vpop.f32.mrf.mxu0
      %v10229 = vadd.f32 %v10140, %v10228
      %v10230 = vpop.f32.mrf.mxu0
      %v10231 = vadd.f32 %v10142, %v10230
      %10232 = vmatmul.bf16.gmra.mxu0 %v9798
      %v10233 = vpop.f32.mrf.mxu0
      %v10234 = vadd.f32 %v10145, %v10233
      %v10235 = vpop.f32.mrf.mxu0
      %v10236 = vadd.f32 %v10147, %v10235
      %10237 = vmatmul.bf16.gmra.mxu0 %v9801
      %v10238 = vpop.f32.mrf.mxu0
      %v10239 = vadd.f32 %v10150, %v10238
      %v10240 = vpop.f32.mrf.mxu0
      %v10241 = vadd.f32 %v10152, %v10240
      %10242 = vmatmul.bf16.gmra.mxu0 %v9804
      %v10243 = vpop.f32.mrf.mxu0
      %v10244 = vadd.f32 %v10155, %v10243
      %v10245 = vpop.f32.mrf.mxu0
      %v10246 = vadd.f32 %v10157, %v10245
      %10247 = vmatmul.bf16.gmra.mxu0 %v9807
      %v10248 = vpop.f32.mrf.mxu0
      %v10249 = vadd.f32 %v10160, %v10248
      %v10250 = vpop.f32.mrf.mxu0
      %v10251 = vadd.f32 %v10162, %v10250
      %10252 = vmatmul.bf16.gmra.mxu0 %v9810
      %v10253 = vpop.f32.mrf.mxu0
      %v10254 = vadd.f32 %v10165, %v10253
      %v10255 = vpop.f32.mrf.mxu0
      %v10256 = vadd.f32 %v10167, %v10255
      %10257 = vmatmul.bf16.gmra.mxu0 %v9813
      %v10258 = vpop.f32.mrf.mxu0
      %v10259 = vadd.f32 %v10170, %v10258
      %v10260 = vpop.f32.mrf.mxu0
      %v10261 = vadd.f32 %v10172, %v10260
      %10262 = vmatmul.bf16.gmra.mxu0 %v9816
      %v10263 = vpop.f32.mrf.mxu0
      %v10264 = vadd.f32 %v10175, %v10263
      %v10265 = vpop.f32.mrf.mxu0
      %v10266 = vadd.f32 %v10177, %v10265
      %10267 = vmatmul.bf16.gmra.mxu0 %v9819
      %v10268 = vpop.f32.mrf.mxu0
      %v10269 = vadd.f32 %v10180, %v10268
      %v10270 = vpop.f32.mrf.mxu0
      %v10271 = vadd.f32 %v10182, %v10270
      %10272 = vmatmul.bf16.gmra.mxu0 %v9822
      %v10273 = vpop.f32.mrf.mxu0
      %v10274 = vadd.f32 %v10185, %v10273
      %v10275 = vpop.f32.mrf.mxu0
      %v10276 = vadd.f32 %v10187, %v10275
      %10277 = vmatmul.bf16.gmra.mxu0 %v9825
      %v10278 = vpop.f32.mrf.mxu0
      %v10279 = vadd.f32 %v10190, %v10278
      %v10280 = vpop.f32.mrf.mxu0
      %v10281 = vadd.f32 %v10192, %v10280
      %10282 = vmatmul.bf16.gmra.mxu0 %v9828
      %v10283 = vpop.f32.mrf.mxu0
      %v10284 = vadd.f32 %v10195, %v10283
      %v10285 = vpop.f32.mrf.mxu0
      %v10286 = vadd.f32 %v10197, %v10285
      %10287 = vdwg.mxu0
      %v10292 = vunpack.c.l.b16 %v9456
      %v10293 = vunpack.c.h.b16 %v9456
      %v10294 = vunpack.c.l.b16 %v9457
      %v10295 = vunpack.c.l.b16 %v9458
      %v10296 = vunpack.c.h.b16 %v9458
      %v10297 = vunpack.c.l.b16 %v9459
      %v10298 = vpack.c.b16 %v10295, %v10292
      %v10299 = vpack.c.b16 %v10296, %v10293
      %v10300 = vpack.c.b16 %v10297, %v10294
      %v10352 = vunpack.c.l.b16 %v9520
      %v10353 = vunpack.c.l.b16 %v9521
      %v10354 = vunpack.c.l.b16 %v9522
      %v10355 = vunpack.c.l.b16 %v9523
      %v10356 = vunpack.c.l.b16 %v9524
      %v10357 = vunpack.c.l.b16 %v9525
      %v10358 = vunpack.c.l.b16 %v9526
      %v10359 = vunpack.c.l.b16 %v9527
      %v10360 = vunpack.c.l.b16 %v9528
      %v10361 = vunpack.c.l.b16 %v9529
      %v10362 = vunpack.c.l.b16 %v9530
      %v10363 = vunpack.c.l.b16 %v9531
      %v10364 = vunpack.c.l.b16 %v9532
      %v10365 = vunpack.c.l.b16 %v9533
      %v10366 = vunpack.c.l.b16 %v9534
      %v10367 = vunpack.c.l.b16 %v9535
      %v10368 = vunpack.c.l.b16 %v9536
      %v10369 = vunpack.c.l.b16 %v9537
      %v10370 = vunpack.c.l.b16 %v9538
      %v10371 = vunpack.c.l.b16 %v9539
      %v10372 = vunpack.c.l.b16 %v9540
      %v10373 = vunpack.c.l.b16 %v9541
      %v10374 = vunpack.c.l.b16 %v9542
      %v10375 = vunpack.c.l.b16 %v9543
      %v10376 = vunpack.c.l.b16 %v9544
      %v10377 = vunpack.c.l.b16 %v9545
      %v10378 = vunpack.c.l.b16 %v9546
      %v10379 = vunpack.c.l.b16 %v9547
      %v10380 = vunpack.c.l.b16 %v9548
      %v10381 = vunpack.c.l.b16 %v9549
      %v10382 = vunpack.c.l.b16 %v9550
      %v10383 = vunpack.c.l.b16 %v9551
      %v10384 = vunpack.c.l.b16 %v9552
      %v10385 = vunpack.c.l.b16 %v9553
      %v10386 = vunpack.c.l.b16 %v9554
      %v10387 = vunpack.c.l.b16 %v9555
      %v10388 = vunpack.c.l.b16 %v9556
      %v10389 = vunpack.c.l.b16 %v9557
      %v10390 = vunpack.c.l.b16 %v9558
      %v10391 = vunpack.c.l.b16 %v9559
      %v10392 = vunpack.c.l.b16 %v9560
      %v10393 = vunpack.c.l.b16 %v9561
      %v10394 = vunpack.c.l.b16 %v9562
      %v10395 = vunpack.c.l.b16 %v9563
      %v10396 = vunpack.c.l.b16 %v9564
      %v10397 = vunpack.c.l.b16 %v9565
      %v10398 = vunpack.c.l.b16 %v9566
      %v10399 = vunpack.c.l.b16 %v9567
      %v10400 = vpack.c.b16 %v10353, %v10352
      %v10401 = vpack.c.b16 %v10355, %v10354
      %v10402 = vpack.c.b16 %v10357, %v10356
      %v10403 = vpack.c.b16 %v10359, %v10358
      %v10404 = vpack.c.b16 %v10361, %v10360
      %v10405 = vpack.c.b16 %v10363, %v10362
      %v10406 = vpack.c.b16 %v10365, %v10364
      %v10407 = vpack.c.b16 %v10367, %v10366
      %v10408 = vpack.c.b16 %v10369, %v10368
      %v10409 = vpack.c.b16 %v10371, %v10370
      %v10410 = vpack.c.b16 %v10373, %v10372
      %v10411 = vpack.c.b16 %v10375, %v10374
      %v10412 = vpack.c.b16 %v10377, %v10376
      %v10413 = vpack.c.b16 %v10379, %v10378
      %v10414 = vpack.c.b16 %v10381, %v10380
      %v10415 = vpack.c.b16 %v10383, %v10382
      %v10416 = vpack.c.b16 %v10385, %v10384
      %v10417 = vpack.c.b16 %v10387, %v10386
      %v10418 = vpack.c.b16 %v10389, %v10388
      %v10419 = vpack.c.b16 %v10391, %v10390
      %v10420 = vpack.c.b16 %v10393, %v10392
      %v10421 = vpack.c.b16 %v10395, %v10394
      %v10422 = vpack.c.b16 %v10397, %v10396
      %v10423 = vpack.c.b16 %v10399, %v10398
      %10448 = vmatpush.bf16.msra.mxu0 %v10407
      %10449 = vmatpush.bf16.msra.mxu0 %v10406
      %10450 = vmatpush.bf16.msra.mxu0 %v10405
      %10451 = vmatpush.bf16.msra.mxu0 %v10404
      %10452 = vmatpush.bf16.msra.mxu0 %v10403
      %10453 = vmatpush.bf16.msra.mxu0 %v10402
      %10454 = vmatpush.bf16.msra.mxu0 %v10401
      %10455 = vmatpush.bf16.msra.mxu0 %v10400
      %10456 = vmatmul.bf16.gmra.mxu0 %v10298
      %v10457 = vpop.f32.mrf.mxu0
      %v10458 = vadd.f32 %v10209, %v10457
      %v10459 = vpop.f32.mrf.mxu0
      %v10460 = vadd.f32 %v10211, %v10459
      %10461 = vmatmul.bf16.gmra.mxu0 %v9781
      %v10462 = vpop.f32.mrf.mxu0
      %v10463 = vadd.f32 %v10214, %v10462
      %v10464 = vpop.f32.mrf.mxu0
      %v10465 = vadd.f32 %v10216, %v10464
      %10466 = vmatmul.bf16.gmra.mxu0 %v9784
      %v10467 = vpop.f32.mrf.mxu0
      %v10468 = vadd.f32 %v10219, %v10467
      %v10469 = vpop.f32.mrf.mxu0
      %v10470 = vadd.f32 %v10221, %v10469
      %10471 = vmatmul.bf16.gmra.mxu0 %v9787
      %v10472 = vpop.f32.mrf.mxu0
      %v10473 = vadd.f32 %v10224, %v10472
      %v10474 = vpop.f32.mrf.mxu0
      %v10475 = vadd.f32 %v10226, %v10474
      %10476 = vmatmul.bf16.gmra.mxu0 %v9790
      %v10477 = vpop.f32.mrf.mxu0
      %v10478 = vadd.f32 %v10229, %v10477
      %v10479 = vpop.f32.mrf.mxu0
      %v10480 = vadd.f32 %v10231, %v10479
      %10481 = vmatmul.bf16.gmra.mxu0 %v9793
      %v10482 = vpop.f32.mrf.mxu0
      %v10483 = vadd.f32 %v10234, %v10482
      %v10484 = vpop.f32.mrf.mxu0
      %v10485 = vadd.f32 %v10236, %v10484
      %10486 = vmatmul.bf16.gmra.mxu0 %v9796
      %v10487 = vpop.f32.mrf.mxu0
      %v10488 = vadd.f32 %v10239, %v10487
      %v10489 = vpop.f32.mrf.mxu0
      %v10490 = vadd.f32 %v10241, %v10489
      %10491 = vmatmul.bf16.gmra.mxu0 %v9799
      %v10492 = vpop.f32.mrf.mxu0
      %v10493 = vadd.f32 %v10244, %v10492
      %v10494 = vpop.f32.mrf.mxu0
      %v10495 = vadd.f32 %v10246, %v10494
      %10496 = vmatmul.bf16.gmra.mxu0 %v9802
      %v10497 = vpop.f32.mrf.mxu0
      %v10498 = vadd.f32 %v10249, %v10497
      %v10499 = vpop.f32.mrf.mxu0
      %v10500 = vadd.f32 %v10251, %v10499
      %10501 = vmatmul.bf16.gmra.mxu0 %v9805
      %v10502 = vpop.f32.mrf.mxu0
      %v10503 = vadd.f32 %v10254, %v10502
      %v10504 = vpop.f32.mrf.mxu0
      %v10505 = vadd.f32 %v10256, %v10504
      %10506 = vmatmul.bf16.gmra.mxu0 %v9808
      %v10507 = vpop.f32.mrf.mxu0
      %v10508 = vadd.f32 %v10259, %v10507
      %v10509 = vpop.f32.mrf.mxu0
      %v10510 = vadd.f32 %v10261, %v10509
      %10511 = vmatmul.bf16.gmra.mxu0 %v9811
      %v10512 = vpop.f32.mrf.mxu0
      %v10513 = vadd.f32 %v10264, %v10512
      %v10514 = vpop.f32.mrf.mxu0
      %v10515 = vadd.f32 %v10266, %v10514
      %10516 = vmatmul.bf16.gmra.mxu0 %v9814
      %v10517 = vpop.f32.mrf.mxu0
      %v10518 = vadd.f32 %v10269, %v10517
      %v10519 = vpop.f32.mrf.mxu0
      %v10520 = vadd.f32 %v10271, %v10519
      %10521 = vmatmul.bf16.gmra.mxu0 %v9817
      %v10522 = vpop.f32.mrf.mxu0
      %v10523 = vadd.f32 %v10274, %v10522
      %v10524 = vpop.f32.mrf.mxu0
      %v10525 = vadd.f32 %v10276, %v10524
      %10526 = vmatmul.bf16.gmra.mxu0 %v9820
      %v10527 = vpop.f32.mrf.mxu0
      %v10528 = vadd.f32 %v10279, %v10527
      %v10529 = vpop.f32.mrf.mxu0
      %v10530 = vadd.f32 %v10281, %v10529
      %10531 = vmatmul.bf16.gmra.mxu0 %v9823
      %v10532 = vpop.f32.mrf.mxu0
      %v10533 = vadd.f32 %v10284, %v10532
      %v10534 = vpop.f32.mrf.mxu0
      %v10535 = vadd.f32 %v10286, %v10534
      %10536 = vdwg.mxu0
      %10537 = vmatpush.bf16.msra.mxu0 %v10415
      %10538 = vmatpush.bf16.msra.mxu0 %v10414
      %10539 = vmatpush.bf16.msra.mxu0 %v10413
      %10540 = vmatpush.bf16.msra.mxu0 %v10412
      %10541 = vmatpush.bf16.msra.mxu0 %v10411
      %10542 = vmatpush.bf16.msra.mxu0 %v10410
      %10543 = vmatpush.bf16.msra.mxu0 %v10409
      %10544 = vmatpush.bf16.msra.mxu0 %v10408
      %10545 = vmatmul.bf16.gmra.mxu0 %v10299
      %v10546 = vpop.f32.mrf.mxu0
      %v10547 = vadd.f32 %v10458, %v10546
      %v10548 = vpop.f32.mrf.mxu0
      %v10549 = vadd.f32 %v10460, %v10548
      %10550 = vmatmul.bf16.gmra.mxu0 %v9782
      %v10551 = vpop.f32.mrf.mxu0
      %v10552 = vadd.f32 %v10463, %v10551
      %v10553 = vpop.f32.mrf.mxu0
      %v10554 = vadd.f32 %v10465, %v10553
      %10555 = vmatmul.bf16.gmra.mxu0 %v9785
      %v10556 = vpop.f32.mrf.mxu0
      %v10557 = vadd.f32 %v10468, %v10556
      %v10558 = vpop.f32.mrf.mxu0
      %v10559 = vadd.f32 %v10470, %v10558
      %10560 = vmatmul.bf16.gmra.mxu0 %v9788
      %v10561 = vpop.f32.mrf.mxu0
      %v10562 = vadd.f32 %v10473, %v10561
      %v10563 = vpop.f32.mrf.mxu0
      %v10564 = vadd.f32 %v10475, %v10563
      %10565 = vmatmul.bf16.gmra.mxu0 %v9791
      %v10566 = vpop.f32.mrf.mxu0
      %v10567 = vadd.f32 %v10478, %v10566
      %v10568 = vpop.f32.mrf.mxu0
      %v10569 = vadd.f32 %v10480, %v10568
      %10570 = vmatmul.bf16.gmra.mxu0 %v9794
      %v10571 = vpop.f32.mrf.mxu0
      %v10572 = vadd.f32 %v10483, %v10571
      %v10573 = vpop.f32.mrf.mxu0
      %v10574 = vadd.f32 %v10485, %v10573
      %10575 = vmatmul.bf16.gmra.mxu0 %v9797
      %v10576 = vpop.f32.mrf.mxu0
      %v10577 = vadd.f32 %v10488, %v10576
      %v10578 = vpop.f32.mrf.mxu0
      %v10579 = vadd.f32 %v10490, %v10578
      %10580 = vmatmul.bf16.gmra.mxu0 %v9800
      %v10581 = vpop.f32.mrf.mxu0
      %v10582 = vadd.f32 %v10493, %v10581
      %v10583 = vpop.f32.mrf.mxu0
      %v10584 = vadd.f32 %v10495, %v10583
      %10585 = vmatmul.bf16.gmra.mxu0 %v9803
      %v10586 = vpop.f32.mrf.mxu0
      %v10587 = vadd.f32 %v10498, %v10586
      %v10588 = vpop.f32.mrf.mxu0
      %v10589 = vadd.f32 %v10500, %v10588
      %10590 = vmatmul.bf16.gmra.mxu0 %v9806
      %v10591 = vpop.f32.mrf.mxu0
      %v10592 = vadd.f32 %v10503, %v10591
      %v10593 = vpop.f32.mrf.mxu0
      %v10594 = vadd.f32 %v10505, %v10593
      %10595 = vmatmul.bf16.gmra.mxu0 %v9809
      %v10596 = vpop.f32.mrf.mxu0
      %v10597 = vadd.f32 %v10508, %v10596
      %v10598 = vpop.f32.mrf.mxu0
      %v10599 = vadd.f32 %v10510, %v10598
      %10600 = vmatmul.bf16.gmra.mxu0 %v9812
      %v10601 = vpop.f32.mrf.mxu0
      %v10602 = vadd.f32 %v10513, %v10601
      %v10603 = vpop.f32.mrf.mxu0
      %v10604 = vadd.f32 %v10515, %v10603
      %10605 = vmatmul.bf16.gmra.mxu0 %v9815
      %v10606 = vpop.f32.mrf.mxu0
      %v10607 = vadd.f32 %v10518, %v10606
      %v10608 = vpop.f32.mrf.mxu0
      %v10609 = vadd.f32 %v10520, %v10608
      %10610 = vmatmul.bf16.gmra.mxu0 %v9818
      %v10611 = vpop.f32.mrf.mxu0
      %v10612 = vadd.f32 %v10523, %v10611
      %v10613 = vpop.f32.mrf.mxu0
      %v10614 = vadd.f32 %v10525, %v10613
      %10615 = vmatmul.bf16.gmra.mxu0 %v9821
      %v10616 = vpop.f32.mrf.mxu0
      %v10617 = vadd.f32 %v10528, %v10616
      %v10618 = vpop.f32.mrf.mxu0
      %v10619 = vadd.f32 %v10530, %v10618
      %10620 = vmatmul.bf16.gmra.mxu0 %v9824
      %v10621 = vpop.f32.mrf.mxu0
      %v10622 = vadd.f32 %v10533, %v10621
      %v10623 = vpop.f32.mrf.mxu0
      %v10624 = vadd.f32 %v10535, %v10623
      %10625 = vdwg.mxu0
      %10626 = vmatpush.bf16.msra.mxu0 %v10423
      %10627 = vmatpush.bf16.msra.mxu0 %v10422
      %10628 = vmatpush.bf16.msra.mxu0 %v10421
      %10629 = vmatpush.bf16.msra.mxu0 %v10420
      %10630 = vmatpush.bf16.msra.mxu0 %v10419
      %10631 = vmatpush.bf16.msra.mxu0 %v10418
      %10632 = vmatpush.bf16.msra.mxu0 %v10417
      %10633 = vmatpush.bf16.msra.mxu0 %v10416
      %10634 = vmatmul.bf16.gmra.mxu0 %v10300
      %v10635 = vpop.f32.mrf.mxu0
      %v10636 = vadd.f32 %v10547, %v10635
      %v10637 = vpop.f32.mrf.mxu0
      %v10638 = vadd.f32 %v10549, %v10637
      %10639 = vmatmul.bf16.gmra.mxu0 %v9783
      %v10640 = vpop.f32.mrf.mxu0
      %v10641 = vadd.f32 %v10552, %v10640
      %v10642 = vpop.f32.mrf.mxu0
      %v10643 = vadd.f32 %v10554, %v10642
      %10644 = vmatmul.bf16.gmra.mxu0 %v9786
      %v10645 = vpop.f32.mrf.mxu0
      %v10646 = vadd.f32 %v10557, %v10645
      %v10647 = vpop.f32.mrf.mxu0
      %v10648 = vadd.f32 %v10559, %v10647
      %10649 = vmatmul.bf16.gmra.mxu0 %v9789
      %v10650 = vpop.f32.mrf.mxu0
      %v10651 = vadd.f32 %v10562, %v10650
      %v10652 = vpop.f32.mrf.mxu0
      %v10653 = vadd.f32 %v10564, %v10652
      %10654 = vmatmul.bf16.gmra.mxu0 %v9792
      %v10655 = vpop.f32.mrf.mxu0
      %v10656 = vadd.f32 %v10567, %v10655
      %v10657 = vpop.f32.mrf.mxu0
      %v10658 = vadd.f32 %v10569, %v10657
      %10659 = vmatmul.bf16.gmra.mxu0 %v9795
      %v10660 = vpop.f32.mrf.mxu0
      %v10661 = vadd.f32 %v10572, %v10660
      %v10662 = vpop.f32.mrf.mxu0
      %v10663 = vadd.f32 %v10574, %v10662
      %10664 = vmatmul.bf16.gmra.mxu0 %v9798
      %v10665 = vpop.f32.mrf.mxu0
      %v10666 = vadd.f32 %v10577, %v10665
      %v10667 = vpop.f32.mrf.mxu0
      %v10668 = vadd.f32 %v10579, %v10667
      %10669 = vmatmul.bf16.gmra.mxu0 %v9801
      %v10670 = vpop.f32.mrf.mxu0
      %v10671 = vadd.f32 %v10582, %v10670
      %v10672 = vpop.f32.mrf.mxu0
      %v10673 = vadd.f32 %v10584, %v10672
      %10674 = vmatmul.bf16.gmra.mxu0 %v9804
      %v10675 = vpop.f32.mrf.mxu0
      %v10676 = vadd.f32 %v10587, %v10675
      %v10677 = vpop.f32.mrf.mxu0
      %v10678 = vadd.f32 %v10589, %v10677
      %10679 = vmatmul.bf16.gmra.mxu0 %v9807
      %v10680 = vpop.f32.mrf.mxu0
      %v10681 = vadd.f32 %v10592, %v10680
      %v10682 = vpop.f32.mrf.mxu0
      %v10683 = vadd.f32 %v10594, %v10682
      %10684 = vmatmul.bf16.gmra.mxu0 %v9810
      %v10685 = vpop.f32.mrf.mxu0
      %v10686 = vadd.f32 %v10597, %v10685
      %v10687 = vpop.f32.mrf.mxu0
      %v10688 = vadd.f32 %v10599, %v10687
      %10689 = vmatmul.bf16.gmra.mxu0 %v9813
      %v10690 = vpop.f32.mrf.mxu0
      %v10691 = vadd.f32 %v10602, %v10690
      %v10692 = vpop.f32.mrf.mxu0
      %v10693 = vadd.f32 %v10604, %v10692
      %10694 = vmatmul.bf16.gmra.mxu0 %v9816
      %v10695 = vpop.f32.mrf.mxu0
      %v10696 = vadd.f32 %v10607, %v10695
      %v10697 = vpop.f32.mrf.mxu0
      %v10698 = vadd.f32 %v10609, %v10697
      %10699 = vmatmul.bf16.gmra.mxu0 %v9819
      %v10700 = vpop.f32.mrf.mxu0
      %v10701 = vadd.f32 %v10612, %v10700
      %v10702 = vpop.f32.mrf.mxu0
      %v10703 = vadd.f32 %v10614, %v10702
      %10704 = vmatmul.bf16.gmra.mxu0 %v9822
      %v10705 = vpop.f32.mrf.mxu0
      %v10706 = vadd.f32 %v10617, %v10705
      %v10707 = vpop.f32.mrf.mxu0
      %v10708 = vadd.f32 %v10619, %v10707
      %10709 = vmatmul.bf16.gmra.mxu0 %v9825
      %v10710 = vpop.f32.mrf.mxu0
      %v10711 = vadd.f32 %v10622, %v10710
      %v10712 = vpop.f32.mrf.mxu0
      %v10713 = vadd.f32 %v10624, %v10712
      %10714 = vdwg.mxu0
      %v10715 = vld [vmem:[#allocation4 + $0x30] sm:$0xff]
      %v10716 = vld [vmem:[#allocation4 + $0x38] sm:$0xf]
      %v10717 = vld [vmem:[#allocation4 + $0x3c] sm:$0xff]
      %v10718 = vld [vmem:[#allocation4 + $0x44] sm:$0xf]
      %v10719 = vld [vmem:[#allocation4 + $0x48] sm:$0xff]
      %v10720 = vld [vmem:[#allocation4 + $0x50] sm:$0xf]
      %v10721 = vld [vmem:[#allocation4 + $0x54] sm:$0xff]
      %v10722 = vld [vmem:[#allocation4 + $0x5c] sm:$0xf]
      %v10723 = vld [vmem:[#allocation4 + $0x60] sm:$0xff]
      %v10724 = vld [vmem:[#allocation4 + $0x68] sm:$0xf]
      %v10725 = vld [vmem:[#allocation4 + $0x6c] sm:$0xff]
      %v10726 = vld [vmem:[#allocation4 + $0x74] sm:$0xf]
      %v10727 = vld [vmem:[#allocation4 + $0x78] sm:$0xff]
      %v10728 = vld [vmem:[#allocation4 + $0x80] sm:$0xf]
      %v10729 = vld [vmem:[#allocation4 + $0x84] sm:$0xff]
      %v10730 = vld [vmem:[#allocation4 + $0x8c] sm:$0xf]
      %v10731 = vld [vmem:[#allocation4 + $0x90] sm:$0xff]
      %v10732 = vld [vmem:[#allocation4 + $0x98] sm:$0xf]
      %v10733 = vld [vmem:[#allocation4 + $0x9c] sm:$0xff]
      %v10734 = vld [vmem:[#allocation4 + $0xa4] sm:$0xf]
      %v10735 = vld [vmem:[#allocation4 + $0xa8] sm:$0xff]
      %v10736 = vld [vmem:[#allocation4 + $0xb0] sm:$0xf]
      %v10737 = vld [vmem:[#allocation4 + $0xb4] sm:$0xff]
      %v10738 = vld [vmem:[#allocation4 + $0xbc] sm:$0xf]
      %v10739 = vld [vmem:[#allocation4 + $0xc0] sm:$0xff]
      %v10740 = vld [vmem:[#allocation4 + $0xc8] sm:$0xf]
      %v10741 = vld [vmem:[#allocation4 + $0xcc] sm:$0xff]
      %v10742 = vld [vmem:[#allocation4 + $0xd4] sm:$0xf]
      %v10743 = vld [vmem:[#allocation4 + $0xd8] sm:$0xff]
      %v10744 = vld [vmem:[#allocation4 + $0xe0] sm:$0xf]
      %v10745 = vld [vmem:[#allocation4 + $0xe4] sm:$0xff]
      %v10746 = vld [vmem:[#allocation4 + $0xec] sm:$0xf]
      %v10747 = vld [vmem:[#allocation4 + $0xf0] sm:$0xff]
      %v10748 = vld [vmem:[#allocation4 + $0xf8] sm:$0xf]
      %v10749 = vld [vmem:[#allocation4 + $0xfc] sm:$0xff]
      %v10750 = vld [vmem:[#allocation4 + $0x104] sm:$0xf]
      %v10751 = vld [vmem:[#allocation4 + $0x108] sm:$0xff]
      %v10752 = vld [vmem:[#allocation4 + $0x110] sm:$0xf]
      %v10753 = vld [vmem:[#allocation4 + $0x114] sm:$0xff]
      %v10754 = vld [vmem:[#allocation4 + $0x11c] sm:$0xf]
      %v10755 = vld [vmem:[#allocation4 + $0x120] sm:$0xff]
      %v10756 = vld [vmem:[#allocation4 + $0x128] sm:$0xf]
      %v10757 = vld [vmem:[#allocation4 + $0x12c] sm:$0xff]
      %v10758 = vld [vmem:[#allocation4 + $0x134] sm:$0xf]
      %v10759 = vld [vmem:[#allocation4 + $0x138] sm:$0xff]
      %v10760 = vld [vmem:[#allocation4 + $0x140] sm:$0xf]
      %v10761 = vld [vmem:[#allocation4 + $0x144] sm:$0xff]
      %v10762 = vld [vmem:[#allocation4 + $0x14c] sm:$0xf]
      %v10763 = vld [vmem:[#allocation4 + $0x150] sm:$0xff]
      %v10764 = vld [vmem:[#allocation4 + $0x158] sm:$0xf]
      %v10765 = vld [vmem:[#allocation4 + $0x15c] sm:$0xff]
      %v10766 = vld [vmem:[#allocation4 + $0x164] sm:$0xf]
      %v10767 = vld [vmem:[#allocation4 + $0x168] sm:$0xff]
      %v10768 = vld [vmem:[#allocation4 + $0x170] sm:$0xf]
      %v10769 = vld [vmem:[#allocation4 + $0x174] sm:$0xff]
      %v10770 = vld [vmem:[#allocation4 + $0x17c] sm:$0xf]
      %v10771 = vld [vmem:[#allocation4 + $0x180] sm:$0xff]
      %v10772 = vld [vmem:[#allocation4 + $0x188] sm:$0xf]
      %v10773 = vld [vmem:[#allocation4 + $0x18c] sm:$0xff]
      %v10774 = vld [vmem:[#allocation4 + $0x194] sm:$0xf]
      %v10775 = vld [vmem:[#allocation4 + $0x198] sm:$0xff]
      %v10776 = vld [vmem:[#allocation4 + $0x1a0] sm:$0xf]
      %v10777 = vld [vmem:[#allocation4 + $0x1a4] sm:$0xff]
      %v10778 = vld [vmem:[#allocation4 + $0x1ac] sm:$0xf]
      %s10779 = scalar_lea.vmem %s8, 384
      %v10780 = vld [vmem:[%s10779] sm:$0xf]
      %v10781 = vld [vmem:[%s10779 + $0x4] sm:$0xf]
      %v10782 = vld [vmem:[%s10779 + $0x8] sm:$0xf]
      %v10783 = vld [vmem:[%s10779 + $0xc] sm:$0xf]
      %v10784 = vld [vmem:[%s10779 + $0x10] sm:$0xf]
      %v10785 = vld [vmem:[%s10779 + $0x14] sm:$0xf]
      %v10786 = vld [vmem:[%s10779 + $0x18] sm:$0xf]
      %v10787 = vld [vmem:[%s10779 + $0x1c] sm:$0xf]
      %v10788 = vld [vmem:[%s10779 + $0x20] sm:$0xf]
      %v10789 = vld [vmem:[%s10779 + $0x24] sm:$0xf]
      %v10790 = vld [vmem:[%s10779 + $0x28] sm:$0xf]
      %v10791 = vld [vmem:[%s10779 + $0x2c] sm:$0xf]
      %v10792 = vld [vmem:[%s10779 + $0x30] sm:$0xf]
      %v10793 = vld [vmem:[%s10779 + $0x34] sm:$0xf]
      %v10794 = vld [vmem:[%s10779 + $0x38] sm:$0xf]
      %v10795 = vld [vmem:[%s10779 + $0x3c] sm:$0xf]
      %v10796 = vld [vmem:[%s10779 + $0x40] sm:$0xf]
      %v10797 = vld [vmem:[%s10779 + $0x44] sm:$0xf]
      %v10798 = vld [vmem:[%s10779 + $0x48] sm:$0xf]
      %v10799 = vld [vmem:[%s10779 + $0x4c] sm:$0xf]
      %v10800 = vld [vmem:[%s10779 + $0x50] sm:$0xf]
      %v10801 = vld [vmem:[%s10779 + $0x54] sm:$0xf]
      %v10802 = vld [vmem:[%s10779 + $0x58] sm:$0xf]
      %v10803 = vld [vmem:[%s10779 + $0x5c] sm:$0xf]
      %v10804 = vld [vmem:[%s10779 + $0x60] sm:$0xf]
      %v10805 = vld [vmem:[%s10779 + $0x64] sm:$0xf]
      %v10806 = vld [vmem:[%s10779 + $0x68] sm:$0xf]
      %v10807 = vld [vmem:[%s10779 + $0x6c] sm:$0xf]
      %v10808 = vld [vmem:[%s10779 + $0x70] sm:$0xf]
      %v10809 = vld [vmem:[%s10779 + $0x74] sm:$0xf]
      %v10810 = vld [vmem:[%s10779 + $0x78] sm:$0xf]
      %v10811 = vld [vmem:[%s10779 + $0x7c] sm:$0xf]
      %v10812 = vld [vmem:[%s10779 + $0x80] sm:$0xf]
      %v10813 = vld [vmem:[%s10779 + $0x84] sm:$0xf]
      %v10814 = vld [vmem:[%s10779 + $0x88] sm:$0xf]
      %v10815 = vld [vmem:[%s10779 + $0x8c] sm:$0xf]
      %v10816 = vld [vmem:[%s10779 + $0x90] sm:$0xf]
      %v10817 = vld [vmem:[%s10779 + $0x94] sm:$0xf]
      %v10818 = vld [vmem:[%s10779 + $0x98] sm:$0xf]
      %v10819 = vld [vmem:[%s10779 + $0x9c] sm:$0xf]
      %v10820 = vld [vmem:[%s10779 + $0xa0] sm:$0xf]
      %v10821 = vld [vmem:[%s10779 + $0xa4] sm:$0xf]
      %v10822 = vld [vmem:[%s10779 + $0xa8] sm:$0xf]
      %v10823 = vld [vmem:[%s10779 + $0xac] sm:$0xf]
      %v10824 = vld [vmem:[%s10779 + $0xb0] sm:$0xf]
      %v10825 = vld [vmem:[%s10779 + $0xb4] sm:$0xf]
      %v10826 = vld [vmem:[%s10779 + $0xb8] sm:$0xf]
      %v10827 = vld [vmem:[%s10779 + $0xbc] sm:$0xf]
      %v10892 = vunpack.c.l.b16 %v10715
      %v10893 = vunpack.c.h.b16 %v10715
      %v10894 = vunpack.c.l.b16 %v10716
      %v10895 = vunpack.c.l.b16 %v10717
      %v10896 = vunpack.c.h.b16 %v10717
      %v10897 = vunpack.c.l.b16 %v10718
      %v10898 = vunpack.c.l.b16 %v10719
      %v10899 = vunpack.c.h.b16 %v10719
      %v10900 = vunpack.c.l.b16 %v10720
      %v10901 = vunpack.c.l.b16 %v10721
      %v10902 = vunpack.c.h.b16 %v10721
      %v10903 = vunpack.c.l.b16 %v10722
      %v10904 = vunpack.c.l.b16 %v10723
      %v10905 = vunpack.c.h.b16 %v10723
      %v10906 = vunpack.c.l.b16 %v10724
      %v10907 = vunpack.c.l.b16 %v10725
      %v10908 = vunpack.c.h.b16 %v10725
      %v10909 = vunpack.c.l.b16 %v10726
      %v10910 = vunpack.c.l.b16 %v10727
      %v10911 = vunpack.c.h.b16 %v10727
      %v10912 = vunpack.c.l.b16 %v10728
      %v10913 = vunpack.c.l.b16 %v10729
      %v10914 = vunpack.c.h.b16 %v10729
      %v10915 = vunpack.c.l.b16 %v10730
      %v10916 = vunpack.c.l.b16 %v10731
      %v10917 = vunpack.c.h.b16 %v10731
      %v10918 = vunpack.c.l.b16 %v10732
      %v10919 = vunpack.c.l.b16 %v10733
      %v10920 = vunpack.c.h.b16 %v10733
      %v10921 = vunpack.c.l.b16 %v10734
      %v10922 = vunpack.c.l.b16 %v10735
      %v10923 = vunpack.c.h.b16 %v10735
      %v10924 = vunpack.c.l.b16 %v10736
      %v10925 = vunpack.c.l.b16 %v10737
      %v10926 = vunpack.c.h.b16 %v10737
      %v10927 = vunpack.c.l.b16 %v10738
      %v10928 = vunpack.c.l.b16 %v10739
      %v10929 = vunpack.c.h.b16 %v10739
      %v10930 = vunpack.c.l.b16 %v10740
      %v10931 = vunpack.c.l.b16 %v10741
      %v10932 = vunpack.c.h.b16 %v10741
      %v10933 = vunpack.c.l.b16 %v10742
      %v10934 = vunpack.c.l.b16 %v10743
      %v10935 = vunpack.c.h.b16 %v10743
      %v10936 = vunpack.c.l.b16 %v10744
      %v10937 = vunpack.c.l.b16 %v10745
      %v10938 = vunpack.c.h.b16 %v10745
      %v10939 = vunpack.c.l.b16 %v10746
      %v10940 = vunpack.c.l.b16 %v10747
      %v10941 = vunpack.c.h.b16 %v10747
      %v10942 = vunpack.c.l.b16 %v10748
      %v10943 = vunpack.c.l.b16 %v10749
      %v10944 = vunpack.c.h.b16 %v10749
      %v10945 = vunpack.c.l.b16 %v10750
      %v10946 = vunpack.c.l.b16 %v10751
      %v10947 = vunpack.c.h.b16 %v10751
      %v10948 = vunpack.c.l.b16 %v10752
      %v10949 = vunpack.c.l.b16 %v10753
      %v10950 = vunpack.c.h.b16 %v10753
      %v10951 = vunpack.c.l.b16 %v10754
      %v10952 = vunpack.c.l.b16 %v10755
      %v10953 = vunpack.c.h.b16 %v10755
      %v10954 = vunpack.c.l.b16 %v10756
      %v10955 = vunpack.c.l.b16 %v10757
      %v10956 = vunpack.c.h.b16 %v10757
      %v10957 = vunpack.c.l.b16 %v10758
      %v10958 = vunpack.c.l.b16 %v10759
      %v10959 = vunpack.c.h.b16 %v10759
      %v10960 = vunpack.c.l.b16 %v10760
      %v10961 = vunpack.c.l.b16 %v10761
      %v10962 = vunpack.c.h.b16 %v10761
      %v10963 = vunpack.c.l.b16 %v10762
      %v10964 = vunpack.c.l.b16 %v10763
      %v10965 = vunpack.c.h.b16 %v10763
      %v10966 = vunpack.c.l.b16 %v10764
      %v10967 = vunpack.c.l.b16 %v10765
      %v10968 = vunpack.c.h.b16 %v10765
      %v10969 = vunpack.c.l.b16 %v10766
      %v10970 = vunpack.c.l.b16 %v10767
      %v10971 = vunpack.c.h.b16 %v10767
      %v10972 = vunpack.c.l.b16 %v10768
      %v10973 = vunpack.c.l.b16 %v10769
      %v10974 = vunpack.c.h.b16 %v10769
      %v10975 = vunpack.c.l.b16 %v10770
      %v10976 = vunpack.c.l.b16 %v10771
      %v10977 = vunpack.c.h.b16 %v10771
      %v10978 = vunpack.c.l.b16 %v10772
      %v10979 = vunpack.c.l.b16 %v10773
      %v10980 = vunpack.c.h.b16 %v10773
      %v10981 = vunpack.c.l.b16 %v10774
      %v10982 = vunpack.c.l.b16 %v10775
      %v10983 = vunpack.c.h.b16 %v10775
      %v10984 = vunpack.c.l.b16 %v10776
      %v10985 = vunpack.c.l.b16 %v10777
      %v10986 = vunpack.c.h.b16 %v10777
      %v10987 = vunpack.c.l.b16 %v10778
      %v10988 = vpack.c.b16 %v10895, %v10892
      %v10989 = vpack.c.b16 %v10896, %v10893
      %v10990 = vpack.c.b16 %v10897, %v10894
      %v10991 = vpack.c.b16 %v10901, %v10898
      %v10992 = vpack.c.b16 %v10902, %v10899
      %v10993 = vpack.c.b16 %v10903, %v10900
      %v10994 = vpack.c.b16 %v10907, %v10904
      %v10995 = vpack.c.b16 %v10908, %v10905
      %v10996 = vpack.c.b16 %v10909, %v10906
      %v10997 = vpack.c.b16 %v10913, %v10910
      %v10998 = vpack.c.b16 %v10914, %v10911
      %v10999 = vpack.c.b16 %v10915, %v10912
      %v11000 = vpack.c.b16 %v10919, %v10916
      %v11001 = vpack.c.b16 %v10920, %v10917
      %v11002 = vpack.c.b16 %v10921, %v10918
      %v11003 = vpack.c.b16 %v10925, %v10922
      %v11004 = vpack.c.b16 %v10926, %v10923
      %v11005 = vpack.c.b16 %v10927, %v10924
      %v11006 = vpack.c.b16 %v10931, %v10928
      %v11007 = vpack.c.b16 %v10932, %v10929
      %v11008 = vpack.c.b16 %v10933, %v10930
      %v11009 = vpack.c.b16 %v10937, %v10934
      %v11010 = vpack.c.b16 %v10938, %v10935
      %v11011 = vpack.c.b16 %v10939, %v10936
      %v11012 = vpack.c.b16 %v10943, %v10940
      %v11013 = vpack.c.b16 %v10944, %v10941
      %v11014 = vpack.c.b16 %v10945, %v10942
      %v11015 = vpack.c.b16 %v10949, %v10946
      %v11016 = vpack.c.b16 %v10950, %v10947
      %v11017 = vpack.c.b16 %v10951, %v10948
      %v11018 = vpack.c.b16 %v10955, %v10952
      %v11019 = vpack.c.b16 %v10956, %v10953
      %v11020 = vpack.c.b16 %v10957, %v10954
      %v11021 = vpack.c.b16 %v10961, %v10958
      %v11022 = vpack.c.b16 %v10962, %v10959
      %v11023 = vpack.c.b16 %v10963, %v10960
      %v11024 = vpack.c.b16 %v10967, %v10964
      %v11025 = vpack.c.b16 %v10968, %v10965
      %v11026 = vpack.c.b16 %v10969, %v10966
      %v11027 = vpack.c.b16 %v10973, %v10970
      %v11028 = vpack.c.b16 %v10974, %v10971
      %v11029 = vpack.c.b16 %v10975, %v10972
      %v11030 = vpack.c.b16 %v10979, %v10976
      %v11031 = vpack.c.b16 %v10980, %v10977
      %v11032 = vpack.c.b16 %v10981, %v10978
      %v11033 = vpack.c.b16 %v10985, %v10982
      %v11034 = vpack.c.b16 %v10986, %v10983
      %v11035 = vpack.c.b16 %v10987, %v10984
      %v11132 = vunpack.c.l.b16 %v10780
      %v11133 = vunpack.c.l.b16 %v10781
      %v11134 = vunpack.c.l.b16 %v10782
      %v11135 = vunpack.c.l.b16 %v10783
      %v11136 = vunpack.c.l.b16 %v10784
      %v11137 = vunpack.c.l.b16 %v10785
      %v11138 = vunpack.c.l.b16 %v10786
      %v11139 = vunpack.c.l.b16 %v10787
      %v11140 = vunpack.c.l.b16 %v10788
      %v11141 = vunpack.c.l.b16 %v10789
      %v11142 = vunpack.c.l.b16 %v10790
      %v11143 = vunpack.c.l.b16 %v10791
      %v11144 = vunpack.c.l.b16 %v10792
      %v11145 = vunpack.c.l.b16 %v10793
      %v11146 = vunpack.c.l.b16 %v10794
      %v11147 = vunpack.c.l.b16 %v10795
      %v11148 = vunpack.c.l.b16 %v10796
      %v11149 = vunpack.c.l.b16 %v10797
      %v11150 = vunpack.c.l.b16 %v10798
      %v11151 = vunpack.c.l.b16 %v10799
      %v11152 = vunpack.c.l.b16 %v10800
      %v11153 = vunpack.c.l.b16 %v10801
      %v11154 = vunpack.c.l.b16 %v10802
      %v11155 = vunpack.c.l.b16 %v10803
      %v11156 = vunpack.c.l.b16 %v10804
      %v11157 = vunpack.c.l.b16 %v10805
      %v11158 = vunpack.c.l.b16 %v10806
      %v11159 = vunpack.c.l.b16 %v10807
      %v11160 = vunpack.c.l.b16 %v10808
      %v11161 = vunpack.c.l.b16 %v10809
      %v11162 = vunpack.c.l.b16 %v10810
      %v11163 = vunpack.c.l.b16 %v10811
      %v11164 = vunpack.c.l.b16 %v10812
      %v11165 = vunpack.c.l.b16 %v10813
      %v11166 = vunpack.c.l.b16 %v10814
      %v11167 = vunpack.c.l.b16 %v10815
      %v11168 = vunpack.c.l.b16 %v10816
      %v11169 = vunpack.c.l.b16 %v10817
      %v11170 = vunpack.c.l.b16 %v10818
      %v11171 = vunpack.c.l.b16 %v10819
      %v11172 = vunpack.c.l.b16 %v10820
      %v11173 = vunpack.c.l.b16 %v10821
      %v11174 = vunpack.c.l.b16 %v10822
      %v11175 = vunpack.c.l.b16 %v10823
      %v11176 = vunpack.c.l.b16 %v10824
      %v11177 = vunpack.c.l.b16 %v10825
      %v11178 = vunpack.c.l.b16 %v10826
      %v11179 = vunpack.c.l.b16 %v10827
      %v11180 = vpack.c.b16 %v11133, %v11132
      %v11181 = vpack.c.b16 %v11135, %v11134
      %v11182 = vpack.c.b16 %v11137, %v11136
      %v11183 = vpack.c.b16 %v11139, %v11138
      %v11184 = vpack.c.b16 %v11141, %v11140
      %v11185 = vpack.c.b16 %v11143, %v11142
      %v11186 = vpack.c.b16 %v11145, %v11144
      %v11187 = vpack.c.b16 %v11147, %v11146
      %v11188 = vpack.c.b16 %v11149, %v11148
      %v11189 = vpack.c.b16 %v11151, %v11150
      %v11190 = vpack.c.b16 %v11153, %v11152
      %v11191 = vpack.c.b16 %v11155, %v11154
      %v11192 = vpack.c.b16 %v11157, %v11156
      %v11193 = vpack.c.b16 %v11159, %v11158
      %v11194 = vpack.c.b16 %v11161, %v11160
      %v11195 = vpack.c.b16 %v11163, %v11162
      %v11196 = vpack.c.b16 %v11165, %v11164
      %v11197 = vpack.c.b16 %v11167, %v11166
      %v11198 = vpack.c.b16 %v11169, %v11168
      %v11199 = vpack.c.b16 %v11171, %v11170
      %v11200 = vpack.c.b16 %v11173, %v11172
      %v11201 = vpack.c.b16 %v11175, %v11174
      %v11202 = vpack.c.b16 %v11177, %v11176
      %v11203 = vpack.c.b16 %v11179, %v11178
      %11228 = vmatpush.bf16.msra.mxu0 %v11187
      %11229 = vmatpush.bf16.msra.mxu0 %v11186
      %11230 = vmatpush.bf16.msra.mxu0 %v11185
      %11231 = vmatpush.bf16.msra.mxu0 %v11184
      %11232 = vmatpush.bf16.msra.mxu0 %v11183
      %11233 = vmatpush.bf16.msra.mxu0 %v11182
      %11234 = vmatpush.bf16.msra.mxu0 %v11181
      %11235 = vmatpush.bf16.msra.mxu0 %v11180
      %11236 = vmatmul.bf16.gmra.mxu0 %v10988
      %v11237 = vpop.f32.mrf.mxu0
      %v11238 = vadd.f32 0.0, %v11237
      %v11239 = vpop.f32.mrf.mxu0
      %v11240 = vadd.f32 0.0, %v11239
      %11241 = vmatmul.bf16.gmra.mxu0 %v10991
      %v11242 = vpop.f32.mrf.mxu0
      %v11243 = vadd.f32 0.0, %v11242
      %v11244 = vpop.f32.mrf.mxu0
      %v11245 = vadd.f32 0.0, %v11244
      %11246 = vmatmul.bf16.gmra.mxu0 %v10994
      %v11247 = vpop.f32.mrf.mxu0
      %v11248 = vadd.f32 0.0, %v11247
      %v11249 = vpop.f32.mrf.mxu0
      %v11250 = vadd.f32 0.0, %v11249
      %11251 = vmatmul.bf16.gmra.mxu0 %v10997
      %v11252 = vpop.f32.mrf.mxu0
      %v11253 = vadd.f32 0.0, %v11252
      %v11254 = vpop.f32.mrf.mxu0
      %v11255 = vadd.f32 0.0, %v11254
      %11256 = vmatmul.bf16.gmra.mxu0 %v11000
      %v11257 = vpop.f32.mrf.mxu0
      %v11258 = vadd.f32 0.0, %v11257
      %v11259 = vpop.f32.mrf.mxu0
      %v11260 = vadd.f32 0.0, %v11259
      %11261 = vmatmul.bf16.gmra.mxu0 %v11003
      %v11262 = vpop.f32.mrf.mxu0
      %v11263 = vadd.f32 0.0, %v11262
      %v11264 = vpop.f32.mrf.mxu0
      %v11265 = vadd.f32 0.0, %v11264
      %11266 = vmatmul.bf16.gmra.mxu0 %v11006
      %v11267 = vpop.f32.mrf.mxu0
      %v11268 = vadd.f32 0.0, %v11267
      %v11269 = vpop.f32.mrf.mxu0
      %v11270 = vadd.f32 0.0, %v11269
      %11271 = vmatmul.bf16.gmra.mxu0 %v11009
      %v11272 = vpop.f32.mrf.mxu0
      %v11273 = vadd.f32 0.0, %v11272
      %v11274 = vpop.f32.mrf.mxu0
      %v11275 = vadd.f32 0.0, %v11274
      %11276 = vmatmul.bf16.gmra.mxu0 %v11012
      %v11277 = vpop.f32.mrf.mxu0
      %v11278 = vadd.f32 0.0, %v11277
      %v11279 = vpop.f32.mrf.mxu0
      %v11280 = vadd.f32 0.0, %v11279
      %11281 = vmatmul.bf16.gmra.mxu0 %v11015
      %v11282 = vpop.f32.mrf.mxu0
      %v11283 = vadd.f32 0.0, %v11282
      %v11284 = vpop.f32.mrf.mxu0
      %v11285 = vadd.f32 0.0, %v11284
      %11286 = vmatmul.bf16.gmra.mxu0 %v11018
      %v11287 = vpop.f32.mrf.mxu0
      %v11288 = vadd.f32 0.0, %v11287
      %v11289 = vpop.f32.mrf.mxu0
      %v11290 = vadd.f32 0.0, %v11289
      %11291 = vmatmul.bf16.gmra.mxu0 %v11021
      %v11292 = vpop.f32.mrf.mxu0
      %v11293 = vadd.f32 0.0, %v11292
      %v11294 = vpop.f32.mrf.mxu0
      %v11295 = vadd.f32 0.0, %v11294
      %11296 = vmatmul.bf16.gmra.mxu0 %v11024
      %v11297 = vpop.f32.mrf.mxu0
      %v11298 = vadd.f32 0.0, %v11297
      %v11299 = vpop.f32.mrf.mxu0
      %v11300 = vadd.f32 0.0, %v11299
      %11301 = vmatmul.bf16.gmra.mxu0 %v11027
      %v11302 = vpop.f32.mrf.mxu0
      %v11303 = vadd.f32 0.0, %v11302
      %v11304 = vpop.f32.mrf.mxu0
      %v11305 = vadd.f32 0.0, %v11304
      %11306 = vmatmul.bf16.gmra.mxu0 %v11030
      %v11307 = vpop.f32.mrf.mxu0
      %v11308 = vadd.f32 0.0, %v11307
      %v11309 = vpop.f32.mrf.mxu0
      %v11310 = vadd.f32 0.0, %v11309
      %11311 = vmatmul.bf16.gmra.mxu0 %v11033
      %v11312 = vpop.f32.mrf.mxu0
      %v11313 = vadd.f32 0.0, %v11312
      %v11314 = vpop.f32.mrf.mxu0
      %v11315 = vadd.f32 0.0, %v11314
      %11316 = vdwg.mxu0
      %11317 = vmatpush.bf16.msra.mxu0 %v11195
      %11318 = vmatpush.bf16.msra.mxu0 %v11194
      %11319 = vmatpush.bf16.msra.mxu0 %v11193
      %11320 = vmatpush.bf16.msra.mxu0 %v11192
      %11321 = vmatpush.bf16.msra.mxu0 %v11191
      %11322 = vmatpush.bf16.msra.mxu0 %v11190
      %11323 = vmatpush.bf16.msra.mxu0 %v11189
      %11324 = vmatpush.bf16.msra.mxu0 %v11188
      %11325 = vmatmul.bf16.gmra.mxu0 %v10989
      %v11326 = vpop.f32.mrf.mxu0
      %v11327 = vadd.f32 %v11238, %v11326
      %v11328 = vpop.f32.mrf.mxu0
      %v11329 = vadd.f32 %v11240, %v11328
      %11330 = vmatmul.bf16.gmra.mxu0 %v10992
      %v11331 = vpop.f32.mrf.mxu0
      %v11332 = vadd.f32 %v11243, %v11331
      %v11333 = vpop.f32.mrf.mxu0
      %v11334 = vadd.f32 %v11245, %v11333
      %11335 = vmatmul.bf16.gmra.mxu0 %v10995
      %v11336 = vpop.f32.mrf.mxu0
      %v11337 = vadd.f32 %v11248, %v11336
      %v11338 = vpop.f32.mrf.mxu0
      %v11339 = vadd.f32 %v11250, %v11338
      %11340 = vmatmul.bf16.gmra.mxu0 %v10998
      %v11341 = vpop.f32.mrf.mxu0
      %v11342 = vadd.f32 %v11253, %v11341
      %v11343 = vpop.f32.mrf.mxu0
      %v11344 = vadd.f32 %v11255, %v11343
      %11345 = vmatmul.bf16.gmra.mxu0 %v11001
      %v11346 = vpop.f32.mrf.mxu0
      %v11347 = vadd.f32 %v11258, %v11346
      %v11348 = vpop.f32.mrf.mxu0
      %v11349 = vadd.f32 %v11260, %v11348
      %11350 = vmatmul.bf16.gmra.mxu0 %v11004
      %v11351 = vpop.f32.mrf.mxu0
      %v11352 = vadd.f32 %v11263, %v11351
      %v11353 = vpop.f32.mrf.mxu0
      %v11354 = vadd.f32 %v11265, %v11353
      %11355 = vmatmul.bf16.gmra.mxu0 %v11007
      %v11356 = vpop.f32.mrf.mxu0
      %v11357 = vadd.f32 %v11268, %v11356
      %v11358 = vpop.f32.mrf.mxu0
      %v11359 = vadd.f32 %v11270, %v11358
      %11360 = vmatmul.bf16.gmra.mxu0 %v11010
      %v11361 = vpop.f32.mrf.mxu0
      %v11362 = vadd.f32 %v11273, %v11361
      %v11363 = vpop.f32.mrf.mxu0
      %v11364 = vadd.f32 %v11275, %v11363
      %11365 = vmatmul.bf16.gmra.mxu0 %v11013
      %v11366 = vpop.f32.mrf.mxu0
      %v11367 = vadd.f32 %v11278, %v11366
      %v11368 = vpop.f32.mrf.mxu0
      %v11369 = vadd.f32 %v11280, %v11368
      %11370 = vmatmul.bf16.gmra.mxu0 %v11016
      %v11371 = vpop.f32.mrf.mxu0
      %v11372 = vadd.f32 %v11283, %v11371
      %v11373 = vpop.f32.mrf.mxu0
      %v11374 = vadd.f32 %v11285, %v11373
      %11375 = vmatmul.bf16.gmra.mxu0 %v11019
      %v11376 = vpop.f32.mrf.mxu0
      %v11377 = vadd.f32 %v11288, %v11376
      %v11378 = vpop.f32.mrf.mxu0
      %v11379 = vadd.f32 %v11290, %v11378
      %11380 = vmatmul.bf16.gmra.mxu0 %v11022
      %v11381 = vpop.f32.mrf.mxu0
      %v11382 = vadd.f32 %v11293, %v11381
      %v11383 = vpop.f32.mrf.mxu0
      %v11384 = vadd.f32 %v11295, %v11383
      %11385 = vmatmul.bf16.gmra.mxu0 %v11025
      %v11386 = vpop.f32.mrf.mxu0
      %v11387 = vadd.f32 %v11298, %v11386
      %v11388 = vpop.f32.mrf.mxu0
      %v11389 = vadd.f32 %v11300, %v11388
      %11390 = vmatmul.bf16.gmra.mxu0 %v11028
      %v11391 = vpop.f32.mrf.mxu0
      %v11392 = vadd.f32 %v11303, %v11391
      %v11393 = vpop.f32.mrf.mxu0
      %v11394 = vadd.f32 %v11305, %v11393
      %11395 = vmatmul.bf16.gmra.mxu0 %v11031
      %v11396 = vpop.f32.mrf.mxu0
      %v11397 = vadd.f32 %v11308, %v11396
      %v11398 = vpop.f32.mrf.mxu0
      %v11399 = vadd.f32 %v11310, %v11398
      %11400 = vmatmul.bf16.gmra.mxu0 %v11034
      %v11401 = vpop.f32.mrf.mxu0
      %v11402 = vadd.f32 %v11313, %v11401
      %v11403 = vpop.f32.mrf.mxu0
      %v11404 = vadd.f32 %v11315, %v11403
      %11405 = vdwg.mxu0
      %11406 = vmatpush.bf16.msra.mxu0 %v11203
      %11407 = vmatpush.bf16.msra.mxu0 %v11202
      %11408 = vmatpush.bf16.msra.mxu0 %v11201
      %11409 = vmatpush.bf16.msra.mxu0 %v11200
      %11410 = vmatpush.bf16.msra.mxu0 %v11199
      %11411 = vmatpush.bf16.msra.mxu0 %v11198
      %11412 = vmatpush.bf16.msra.mxu0 %v11197
      %11413 = vmatpush.bf16.msra.mxu0 %v11196
      %11414 = vmatmul.bf16.gmra.mxu0 %v10990
      %v11415 = vpop.f32.mrf.mxu0
      %v11416 = vadd.f32 %v11327, %v11415
      %v11417 = vpop.f32.mrf.mxu0
      %v11418 = vadd.f32 %v11329, %v11417
      %11419 = vmatmul.bf16.gmra.mxu0 %v10993
      %v11420 = vpop.f32.mrf.mxu0
      %v11421 = vadd.f32 %v11332, %v11420
      %v11422 = vpop.f32.mrf.mxu0
      %v11423 = vadd.f32 %v11334, %v11422
      %11424 = vmatmul.bf16.gmra.mxu0 %v10996
      %v11425 = vpop.f32.mrf.mxu0
      %v11426 = vadd.f32 %v11337, %v11425
      %v11427 = vpop.f32.mrf.mxu0
      %v11428 = vadd.f32 %v11339, %v11427
      %11429 = vmatmul.bf16.gmra.mxu0 %v10999
      %v11430 = vpop.f32.mrf.mxu0
      %v11431 = vadd.f32 %v11342, %v11430
      %v11432 = vpop.f32.mrf.mxu0
      %v11433 = vadd.f32 %v11344, %v11432
      %11434 = vmatmul.bf16.gmra.mxu0 %v11002
      %v11435 = vpop.f32.mrf.mxu0
      %v11436 = vadd.f32 %v11347, %v11435
      %v11437 = vpop.f32.mrf.mxu0
      %v11438 = vadd.f32 %v11349, %v11437
      %11439 = vmatmul.bf16.gmra.mxu0 %v11005
      %v11440 = vpop.f32.mrf.mxu0
      %v11441 = vadd.f32 %v11352, %v11440
      %v11442 = vpop.f32.mrf.mxu0
      %v11443 = vadd.f32 %v11354, %v11442
      %11444 = vmatmul.bf16.gmra.mxu0 %v11008
      %v11445 = vpop.f32.mrf.mxu0
      %v11446 = vadd.f32 %v11357, %v11445
      %v11447 = vpop.f32.mrf.mxu0
      %v11448 = vadd.f32 %v11359, %v11447
      %11449 = vmatmul.bf16.gmra.mxu0 %v11011
      %v11450 = vpop.f32.mrf.mxu0
      %v11451 = vadd.f32 %v11362, %v11450
      %v11452 = vpop.f32.mrf.mxu0
      %v11453 = vadd.f32 %v11364, %v11452
      %11454 = vmatmul.bf16.gmra.mxu0 %v11014
      %v11455 = vpop.f32.mrf.mxu0
      %v11456 = vadd.f32 %v11367, %v11455
      %v11457 = vpop.f32.mrf.mxu0
      %v11458 = vadd.f32 %v11369, %v11457
      %11459 = vmatmul.bf16.gmra.mxu0 %v11017
      %v11460 = vpop.f32.mrf.mxu0
      %v11461 = vadd.f32 %v11372, %v11460
      %v11462 = vpop.f32.mrf.mxu0
      %v11463 = vadd.f32 %v11374, %v11462
      %11464 = vmatmul.bf16.gmra.mxu0 %v11020
      %v11465 = vpop.f32.mrf.mxu0
      %v11466 = vadd.f32 %v11377, %v11465
      %v11467 = vpop.f32.mrf.mxu0
      %v11468 = vadd.f32 %v11379, %v11467
      %11469 = vmatmul.bf16.gmra.mxu0 %v11023
      %v11470 = vpop.f32.mrf.mxu0
      %v11471 = vadd.f32 %v11382, %v11470
      %v11472 = vpop.f32.mrf.mxu0
      %v11473 = vadd.f32 %v11384, %v11472
      %11474 = vmatmul.bf16.gmra.mxu0 %v11026
      %v11475 = vpop.f32.mrf.mxu0
      %v11476 = vadd.f32 %v11387, %v11475
      %v11477 = vpop.f32.mrf.mxu0
      %v11478 = vadd.f32 %v11389, %v11477
      %11479 = vmatmul.bf16.gmra.mxu0 %v11029
      %v11480 = vpop.f32.mrf.mxu0
      %v11481 = vadd.f32 %v11392, %v11480
      %v11482 = vpop.f32.mrf.mxu0
      %v11483 = vadd.f32 %v11394, %v11482
      %11484 = vmatmul.bf16.gmra.mxu0 %v11032
      %v11485 = vpop.f32.mrf.mxu0
      %v11486 = vadd.f32 %v11397, %v11485
      %v11487 = vpop.f32.mrf.mxu0
      %v11488 = vadd.f32 %v11399, %v11487
      %11489 = vmatmul.bf16.gmra.mxu0 %v11035
      %v11490 = vpop.f32.mrf.mxu0
      %v11491 = vadd.f32 %v11402, %v11490
      %v11492 = vpop.f32.mrf.mxu0
      %v11493 = vadd.f32 %v11404, %v11492
      %11494 = vdwg.mxu0
      %v11495 = vadd.f32 %v10636, %v11416
      %v11496 = vadd.f32 %v10638, %v11418
      %v11497 = vadd.f32 %v10641, %v11421
      %v11498 = vadd.f32 %v10643, %v11423
      %v11499 = vadd.f32 %v10646, %v11426
      %v11500 = vadd.f32 %v10648, %v11428
      %v11501 = vadd.f32 %v10651, %v11431
      %v11502 = vadd.f32 %v10653, %v11433
      %v11503 = vadd.f32 %v10656, %v11436
      %v11504 = vadd.f32 %v10658, %v11438
      %v11505 = vadd.f32 %v10661, %v11441
      %v11506 = vadd.f32 %v10663, %v11443
      %v11507 = vadd.f32 %v10666, %v11446
      %v11508 = vadd.f32 %v10668, %v11448
      %v11509 = vadd.f32 %v10671, %v11451
      %v11510 = vadd.f32 %v10673, %v11453
      %v11511 = vadd.f32 %v10676, %v11456
      %v11512 = vadd.f32 %v10678, %v11458
      %v11513 = vadd.f32 %v10681, %v11461
      %v11514 = vadd.f32 %v10683, %v11463
      %v11515 = vadd.f32 %v10686, %v11466
      %v11516 = vadd.f32 %v10688, %v11468
      %v11517 = vadd.f32 %v10691, %v11471
      %v11518 = vadd.f32 %v10693, %v11473
      %v11519 = vadd.f32 %v10696, %v11476
      %v11520 = vadd.f32 %v10698, %v11478
      %v11521 = vadd.f32 %v10701, %v11481
      %v11522 = vadd.f32 %v10703, %v11483
      %v11523 = vadd.f32 %v10706, %v11486
      %v11524 = vadd.f32 %v10708, %v11488
      %v11525 = vadd.f32 %v10711, %v11491
      %v11526 = vadd.f32 %v10713, %v11493
      %v11527 = vld [vmem:[%s9] sm:$0x1]
      %v11529 = vperm.slane %v11527, 0
      %v11531 = vadd.f32 %v11495, %v11529
      %v11532 = vadd.f32 %v11496, %v11529
      %v11533 = vadd.f32 %v11497, %v11529
      %v11534 = vadd.f32 %v11498, %v11529
      %v11535 = vadd.f32 %v11499, %v11529
      %v11536 = vadd.f32 %v11500, %v11529
      %v11537 = vadd.f32 %v11501, %v11529
      %v11538 = vadd.f32 %v11502, %v11529
      %v11539 = vadd.f32 %v11503, %v11529
      %v11540 = vadd.f32 %v11504, %v11529
      %v11541 = vadd.f32 %v11505, %v11529
      %v11542 = vadd.f32 %v11506, %v11529
      %v11543 = vadd.f32 %v11507, %v11529
      %v11544 = vadd.f32 %v11508, %v11529
      %v11545 = vadd.f32 %v11509, %v11529
      %v11546 = vadd.f32 %v11510, %v11529
      %v11547 = vadd.f32 %v11511, %v11529
      %v11548 = vadd.f32 %v11512, %v11529
      %v11549 = vadd.f32 %v11513, %v11529
      %v11550 = vadd.f32 %v11514, %v11529
      %v11551 = vadd.f32 %v11515, %v11529
      %v11552 = vadd.f32 %v11516, %v11529
      %v11553 = vadd.f32 %v11517, %v11529
      %v11554 = vadd.f32 %v11518, %v11529
      %v11555 = vadd.f32 %v11519, %v11529
      %v11556 = vadd.f32 %v11520, %v11529
      %v11557 = vadd.f32 %v11521, %v11529
      %v11558 = vadd.f32 %v11522, %v11529
      %v11559 = vadd.f32 %v11523, %v11529
      %v11560 = vadd.f32 %v11524, %v11529
      %v11561 = vadd.f32 %v11525, %v11529
      %v11562 = vadd.f32 %v11526, %v11529
      %v11563 = vmax.f32 %v11531, 0.0
      %v11564 = vmax.f32 %v11532, 0.0
      %v11565 = vmax.f32 %v11533, 0.0
      %v11566 = vmax.f32 %v11534, 0.0
      %v11567 = vmax.f32 %v11535, 0.0
      %v11568 = vmax.f32 %v11536, 0.0
      %v11569 = vmax.f32 %v11537, 0.0
      %v11570 = vmax.f32 %v11538, 0.0
      %v11571 = vmax.f32 %v11539, 0.0
      %v11572 = vmax.f32 %v11540, 0.0
      %v11573 = vmax.f32 %v11541, 0.0
      %v11574 = vmax.f32 %v11542, 0.0
      %v11575 = vmax.f32 %v11543, 0.0
      %v11576 = vmax.f32 %v11544, 0.0
      %v11577 = vmax.f32 %v11545, 0.0
      %v11578 = vmax.f32 %v11546, 0.0
      %v11579 = vmax.f32 %v11547, 0.0
      %v11580 = vmax.f32 %v11548, 0.0
      %v11581 = vmax.f32 %v11549, 0.0
      %v11582 = vmax.f32 %v11550, 0.0
      %v11583 = vmax.f32 %v11551, 0.0
      %v11584 = vmax.f32 %v11552, 0.0
      %v11585 = vmax.f32 %v11553, 0.0
      %v11586 = vmax.f32 %v11554, 0.0
      %v11587 = vmax.f32 %v11555, 0.0
      %v11588 = vmax.f32 %v11556, 0.0
      %v11589 = vmax.f32 %v11557, 0.0
      %v11590 = vmax.f32 %v11558, 0.0
      %v11591 = vmax.f32 %v11559, 0.0
      %v11592 = vmax.f32 %v11560, 0.0
      %v11593 = vmax.f32 %v11561, 0.0
      %v11594 = vmax.f32 %v11562, 0.0
      %v11595 = vpack.c.bf16 %v11564, %v11563
      %v11596 = vpack.c.bf16 %v11566, %v11565
      %v11597 = vpack.c.bf16 %v11568, %v11567
      %v11598 = vpack.c.bf16 %v11570, %v11569
      %v11599 = vpack.c.bf16 %v11572, %v11571
      %v11600 = vpack.c.bf16 %v11574, %v11573
      %v11601 = vpack.c.bf16 %v11576, %v11575
      %v11602 = vpack.c.bf16 %v11578, %v11577
      %v11603 = vpack.c.bf16 %v11580, %v11579
      %v11604 = vpack.c.bf16 %v11582, %v11581
      %v11605 = vpack.c.bf16 %v11584, %v11583
      %v11606 = vpack.c.bf16 %v11586, %v11585
      %v11607 = vpack.c.bf16 %v11588, %v11587
      %v11608 = vpack.c.bf16 %v11590, %v11589
      %v11609 = vpack.c.bf16 %v11592, %v11591
      %v11610 = vpack.c.bf16 %v11594, %v11593
      %v11611 = vld [vmem:[#allocation5] sm:$0xff]
      %v11612 = vld [vmem:[#allocation5 + $0x8] sm:$0xff]
      %v11613 = vld [vmem:[#allocation5 + $0x10] sm:$0xff]
      %v11614 = vld [vmem:[#allocation5 + $0x18] sm:$0xff]
      %v11615 = vld [vmem:[#allocation5 + $0x20] sm:$0xff]
      %v11616 = vld [vmem:[#allocation5 + $0x28] sm:$0xff]
      %v11617 = vld [vmem:[#allocation5 + $0x30] sm:$0xff]
      %v11618 = vld [vmem:[#allocation5 + $0x38] sm:$0xff]
      %v11619 = vld [vmem:[#allocation5 + $0x40] sm:$0xff]
      %v11620 = vld [vmem:[#allocation5 + $0x48] sm:$0xff]
      %v11621 = vld [vmem:[#allocation5 + $0x50] sm:$0xff]
      %v11622 = vld [vmem:[#allocation5 + $0x58] sm:$0xff]
      %v11623 = vld [vmem:[#allocation5 + $0x60] sm:$0xff]
      %v11624 = vld [vmem:[#allocation5 + $0x68] sm:$0xff]
      %v11625 = vld [vmem:[#allocation5 + $0x70] sm:$0xff]
      %v11626 = vld [vmem:[#allocation5 + $0x78] sm:$0xff]
      %v11627 = vld [vmem:[#allocation5 + $0x80] sm:$0xff]
      %v11628 = vld [vmem:[#allocation5 + $0x88] sm:$0xff]
      %v11629 = vld [vmem:[#allocation5 + $0x90] sm:$0xff]
      %v11630 = vld [vmem:[#allocation5 + $0x98] sm:$0xff]
      %v11631 = vld [vmem:[#allocation5 + $0xa0] sm:$0xff]
      %v11632 = vld [vmem:[#allocation5 + $0xa8] sm:$0xff]
      %v11633 = vld [vmem:[#allocation5 + $0xb0] sm:$0xff]
      %v11634 = vld [vmem:[#allocation5 + $0xb8] sm:$0xff]
      %v11635 = vld [vmem:[#allocation5 + $0xc0] sm:$0xff]
      %v11636 = vld [vmem:[#allocation5 + $0xc8] sm:$0xff]
      %v11637 = vld [vmem:[#allocation5 + $0xd0] sm:$0xff]
      %v11638 = vld [vmem:[#allocation5 + $0xd8] sm:$0xff]
      %v11639 = vld [vmem:[#allocation5 + $0xe0] sm:$0xff]
      %v11640 = vld [vmem:[#allocation5 + $0xe8] sm:$0xff]
      %v11641 = vld [vmem:[#allocation5 + $0xf0] sm:$0xff]
      %v11642 = vld [vmem:[#allocation5 + $0xf8] sm:$0xff]
      %v11643 = vld [vmem:[%s10] sm:$0xf]
      %v11644 = vld [vmem:[%s10 + $0x4] sm:$0xf]
      %v11645 = vld [vmem:[%s10 + $0x8] sm:$0xf]
      %v11646 = vld [vmem:[%s10 + $0xc] sm:$0xf]
      %v11647 = vld [vmem:[%s10 + $0x10] sm:$0xf]
      %v11648 = vld [vmem:[%s10 + $0x14] sm:$0xf]
      %v11649 = vld [vmem:[%s10 + $0x18] sm:$0xf]
      %v11650 = vld [vmem:[%s10 + $0x1c] sm:$0xf]
      %v11651 = vld [vmem:[%s10 + $0x20] sm:$0xf]
      %v11652 = vld [vmem:[%s10 + $0x24] sm:$0xf]
      %v11653 = vld [vmem:[%s10 + $0x28] sm:$0xf]
      %v11654 = vld [vmem:[%s10 + $0x2c] sm:$0xf]
      %v11655 = vld [vmem:[%s10 + $0x30] sm:$0xf]
      %v11656 = vld [vmem:[%s10 + $0x34] sm:$0xf]
      %v11657 = vld [vmem:[%s10 + $0x38] sm:$0xf]
      %v11658 = vld [vmem:[%s10 + $0x3c] sm:$0xf]
      %v11675 = vunpack.c.l.b16 %v11643
      %v11676 = vunpack.c.l.b16 %v11644
      %v11677 = vunpack.c.l.b16 %v11645
      %v11678 = vunpack.c.l.b16 %v11646
      %v11679 = vunpack.c.l.b16 %v11647
      %v11680 = vunpack.c.l.b16 %v11648
      %v11681 = vunpack.c.l.b16 %v11649
      %v11682 = vunpack.c.l.b16 %v11650
      %v11683 = vunpack.c.l.b16 %v11651
      %v11684 = vunpack.c.l.b16 %v11652
      %v11685 = vunpack.c.l.b16 %v11653
      %v11686 = vunpack.c.l.b16 %v11654
      %v11687 = vunpack.c.l.b16 %v11655
      %v11688 = vunpack.c.l.b16 %v11656
      %v11689 = vunpack.c.l.b16 %v11657
      %v11690 = vunpack.c.l.b16 %v11658
      %v11691 = vpack.c.b16 %v11676, %v11675
      %v11692 = vpack.c.b16 %v11678, %v11677
      %v11693 = vpack.c.b16 %v11680, %v11679
      %v11694 = vpack.c.b16 %v11682, %v11681
      %v11695 = vpack.c.b16 %v11684, %v11683
      %v11696 = vpack.c.b16 %v11686, %v11685
      %v11697 = vpack.c.b16 %v11688, %v11687
      %v11698 = vpack.c.b16 %v11690, %v11689
      %11707 = vmatpush.bf16.msra.mxu0 %v11698
      %11708 = vmatpush.bf16.msra.mxu0 %v11697
      %11709 = vmatpush.bf16.msra.mxu0 %v11696
      %11710 = vmatpush.bf16.msra.mxu0 %v11695
      %11711 = vmatpush.bf16.msra.mxu0 %v11694
      %11712 = vmatpush.bf16.msra.mxu0 %v11693
      %11713 = vmatpush.bf16.msra.mxu0 %v11692
      %11714 = vmatpush.bf16.msra.mxu0 %v11691
      %11715 = vmatmul.bf16.gmra.mxu0 %v11595
      %v11716 = vpop.f32.mrf.mxu0
      %v11717 = vadd.f32 0.0, %v11716
      %v11718 = vpop.f32.mrf.mxu0
      %v11719 = vadd.f32 0.0, %v11718
      %11720 = vmatmul.bf16.gmra.mxu0 %v11596
      %v11721 = vpop.f32.mrf.mxu0
      %v11722 = vadd.f32 0.0, %v11721
      %v11723 = vpop.f32.mrf.mxu0
      %v11724 = vadd.f32 0.0, %v11723
      %11725 = vmatmul.bf16.gmra.mxu0 %v11597
      %v11726 = vpop.f32.mrf.mxu0
      %v11727 = vadd.f32 0.0, %v11726
      %v11728 = vpop.f32.mrf.mxu0
      %v11729 = vadd.f32 0.0, %v11728
      %11730 = vmatmul.bf16.gmra.mxu0 %v11598
      %v11731 = vpop.f32.mrf.mxu0
      %v11732 = vadd.f32 0.0, %v11731
      %v11733 = vpop.f32.mrf.mxu0
      %v11734 = vadd.f32 0.0, %v11733
      %11735 = vmatmul.bf16.gmra.mxu0 %v11599
      %v11736 = vpop.f32.mrf.mxu0
      %v11737 = vadd.f32 0.0, %v11736
      %v11738 = vpop.f32.mrf.mxu0
      %v11739 = vadd.f32 0.0, %v11738
      %11740 = vmatmul.bf16.gmra.mxu0 %v11600
      %v11741 = vpop.f32.mrf.mxu0
      %v11742 = vadd.f32 0.0, %v11741
      %v11743 = vpop.f32.mrf.mxu0
      %v11744 = vadd.f32 0.0, %v11743
      %11745 = vmatmul.bf16.gmra.mxu0 %v11601
      %v11746 = vpop.f32.mrf.mxu0
      %v11747 = vadd.f32 0.0, %v11746
      %v11748 = vpop.f32.mrf.mxu0
      %v11749 = vadd.f32 0.0, %v11748
      %11750 = vmatmul.bf16.gmra.mxu0 %v11602
      %v11751 = vpop.f32.mrf.mxu0
      %v11752 = vadd.f32 0.0, %v11751
      %v11753 = vpop.f32.mrf.mxu0
      %v11754 = vadd.f32 0.0, %v11753
      %11755 = vmatmul.bf16.gmra.mxu0 %v11603
      %v11756 = vpop.f32.mrf.mxu0
      %v11757 = vadd.f32 0.0, %v11756
      %v11758 = vpop.f32.mrf.mxu0
      %v11759 = vadd.f32 0.0, %v11758
      %11760 = vmatmul.bf16.gmra.mxu0 %v11604
      %v11761 = vpop.f32.mrf.mxu0
      %v11762 = vadd.f32 0.0, %v11761
      %v11763 = vpop.f32.mrf.mxu0
      %v11764 = vadd.f32 0.0, %v11763
      %11765 = vmatmul.bf16.gmra.mxu0 %v11605
      %v11766 = vpop.f32.mrf.mxu0
      %v11767 = vadd.f32 0.0, %v11766
      %v11768 = vpop.f32.mrf.mxu0
      %v11769 = vadd.f32 0.0, %v11768
      %11770 = vmatmul.bf16.gmra.mxu0 %v11606
      %v11771 = vpop.f32.mrf.mxu0
      %v11772 = vadd.f32 0.0, %v11771
      %v11773 = vpop.f32.mrf.mxu0
      %v11774 = vadd.f32 0.0, %v11773
      %11775 = vmatmul.bf16.gmra.mxu0 %v11607
      %v11776 = vpop.f32.mrf.mxu0
      %v11777 = vadd.f32 0.0, %v11776
      %v11778 = vpop.f32.mrf.mxu0
      %v11779 = vadd.f32 0.0, %v11778
      %11780 = vmatmul.bf16.gmra.mxu0 %v11608
      %v11781 = vpop.f32.mrf.mxu0
      %v11782 = vadd.f32 0.0, %v11781
      %v11783 = vpop.f32.mrf.mxu0
      %v11784 = vadd.f32 0.0, %v11783
      %11785 = vmatmul.bf16.gmra.mxu0 %v11609
      %v11786 = vpop.f32.mrf.mxu0
      %v11787 = vadd.f32 0.0, %v11786
      %v11788 = vpop.f32.mrf.mxu0
      %v11789 = vadd.f32 0.0, %v11788
      %11790 = vmatmul.bf16.gmra.mxu0 %v11610
      %v11791 = vpop.f32.mrf.mxu0
      %v11792 = vadd.f32 0.0, %v11791
      %v11793 = vpop.f32.mrf.mxu0
      %v11794 = vadd.f32 0.0, %v11793
      %11795 = vdwg.mxu0
      %v11796 = vadd.f32 %v11611, %v11717
      %v11797 = vadd.f32 %v11612, %v11719
      %v11798 = vadd.f32 %v11613, %v11722
      %v11799 = vadd.f32 %v11614, %v11724
      %v11800 = vadd.f32 %v11615, %v11727
      %v11801 = vadd.f32 %v11616, %v11729
      %v11802 = vadd.f32 %v11617, %v11732
      %v11803 = vadd.f32 %v11618, %v11734
      %v11804 = vadd.f32 %v11619, %v11737
      %v11805 = vadd.f32 %v11620, %v11739
      %v11806 = vadd.f32 %v11621, %v11742
      %v11807 = vadd.f32 %v11622, %v11744
      %v11808 = vadd.f32 %v11623, %v11747
      %v11809 = vadd.f32 %v11624, %v11749
      %v11810 = vadd.f32 %v11625, %v11752
      %v11811 = vadd.f32 %v11626, %v11754
      %v11812 = vadd.f32 %v11627, %v11757
      %v11813 = vadd.f32 %v11628, %v11759
      %v11814 = vadd.f32 %v11629, %v11762
      %v11815 = vadd.f32 %v11630, %v11764
      %v11816 = vadd.f32 %v11631, %v11767
      %v11817 = vadd.f32 %v11632, %v11769
      %v11818 = vadd.f32 %v11633, %v11772
      %v11819 = vadd.f32 %v11634, %v11774
      %v11820 = vadd.f32 %v11635, %v11777
      %v11821 = vadd.f32 %v11636, %v11779
      %v11822 = vadd.f32 %v11637, %v11782
      %v11823 = vadd.f32 %v11638, %v11784
      %v11824 = vadd.f32 %v11639, %v11787
      %v11825 = vadd.f32 %v11640, %v11789
      %v11826 = vadd.f32 %v11641, %v11792
      %v11827 = vadd.f32 %v11642, %v11794
      %11828 = vst [vmem:[#allocation5] sm:$0xff] %v11796
      %11829 = vst [vmem:[#allocation5 + $0x8] sm:$0xff] %v11797
      %11830 = vst [vmem:[#allocation5 + $0x10] sm:$0xff] %v11798
      %11831 = vst [vmem:[#allocation5 + $0x18] sm:$0xff] %v11799
      %11832 = vst [vmem:[#allocation5 + $0x20] sm:$0xff] %v11800
      %11833 = vst [vmem:[#allocation5 + $0x28] sm:$0xff] %v11801
      %11834 = vst [vmem:[#allocation5 + $0x30] sm:$0xff] %v11802
      %11835 = vst [vmem:[#allocation5 + $0x38] sm:$0xff] %v11803
      %11836 = vst [vmem:[#allocation5 + $0x40] sm:$0xff] %v11804
      %11837 = vst [vmem:[#allocation5 + $0x48] sm:$0xff] %v11805
      %11838 = vst [vmem:[#allocation5 + $0x50] sm:$0xff] %v11806
      %11839 = vst [vmem:[#allocation5 + $0x58] sm:$0xff] %v11807
      %11840 = vst [vmem:[#allocation5 + $0x60] sm:$0xff] %v11808
      %11841 = vst [vmem:[#allocation5 + $0x68] sm:$0xff] %v11809
      %11842 = vst [vmem:[#allocation5 + $0x70] sm:$0xff] %v11810
      %11843 = vst [vmem:[#allocation5 + $0x78] sm:$0xff] %v11811
      %11844 = vst [vmem:[#allocation5 + $0x80] sm:$0xff] %v11812
      %11845 = vst [vmem:[#allocation5 + $0x88] sm:$0xff] %v11813
      %11846 = vst [vmem:[#allocation5 + $0x90] sm:$0xff] %v11814
      %11847 = vst [vmem:[#allocation5 + $0x98] sm:$0xff] %v11815
      %11848 = vst [vmem:[#allocation5 + $0xa0] sm:$0xff] %v11816
      %11849 = vst [vmem:[#allocation5 + $0xa8] sm:$0xff] %v11817
      %11850 = vst [vmem:[#allocation5 + $0xb0] sm:$0xff] %v11818
      %11851 = vst [vmem:[#allocation5 + $0xb8] sm:$0xff] %v11819
      %11852 = vst [vmem:[#allocation5 + $0xc0] sm:$0xff] %v11820
      %11853 = vst [vmem:[#allocation5 + $0xc8] sm:$0xff] %v11821
      %11854 = vst [vmem:[#allocation5 + $0xd0] sm:$0xff] %v11822
      %11855 = vst [vmem:[#allocation5 + $0xd8] sm:$0xff] %v11823
      %11856 = vst [vmem:[#allocation5 + $0xe0] sm:$0xff] %v11824
      %11857 = vst [vmem:[#allocation5 + $0xe8] sm:$0xff] %v11825
      %11858 = vst [vmem:[#allocation5 + $0xf0] sm:$0xff] %v11826
      %11859 = vst [vmem:[#allocation5 + $0xf8] sm:$0xff] %v11827
      %v11860 = vld [vmem:[#allocation5] sm:$0xff]
      %v11861 = vld [vmem:[#allocation5 + $0x8] sm:$0xff]
      %v11862 = vld [vmem:[#allocation5 + $0x10] sm:$0xff]
      %v11863 = vld [vmem:[#allocation5 + $0x18] sm:$0xff]
      %v11864 = vld [vmem:[#allocation5 + $0x20] sm:$0xff]
      %v11865 = vld [vmem:[#allocation5 + $0x28] sm:$0xff]
      %v11866 = vld [vmem:[#allocation5 + $0x30] sm:$0xff]
      %v11867 = vld [vmem:[#allocation5 + $0x38] sm:$0xff]
      %v11868 = vld [vmem:[#allocation5 + $0x40] sm:$0xff]
      %v11869 = vld [vmem:[#allocation5 + $0x48] sm:$0xff]
      %v11870 = vld [vmem:[#allocation5 + $0x50] sm:$0xff]
      %v11871 = vld [vmem:[#allocation5 + $0x58] sm:$0xff]
      %v11872 = vld [vmem:[#allocation5 + $0x60] sm:$0xff]
      %v11873 = vld [vmem:[#allocation5 + $0x68] sm:$0xff]
      %v11874 = vld [vmem:[#allocation5 + $0x70] sm:$0xff]
      %v11875 = vld [vmem:[#allocation5 + $0x78] sm:$0xff]
      %v11876 = vld [vmem:[#allocation5 + $0x80] sm:$0xff]
      %v11877 = vld [vmem:[#allocation5 + $0x88] sm:$0xff]
      %v11878 = vld [vmem:[#allocation5 + $0x90] sm:$0xff]
      %v11879 = vld [vmem:[#allocation5 + $0x98] sm:$0xff]
      %v11880 = vld [vmem:[#allocation5 + $0xa0] sm:$0xff]
      %v11881 = vld [vmem:[#allocation5 + $0xa8] sm:$0xff]
      %v11882 = vld [vmem:[#allocation5 + $0xb0] sm:$0xff]
      %v11883 = vld [vmem:[#allocation5 + $0xb8] sm:$0xff]
      %v11884 = vld [vmem:[#allocation5 + $0xc0] sm:$0xff]
      %v11885 = vld [vmem:[#allocation5 + $0xc8] sm:$0xff]
      %v11886 = vld [vmem:[#allocation5 + $0xd0] sm:$0xff]
      %v11887 = vld [vmem:[#allocation5 + $0xd8] sm:$0xff]
      %v11888 = vld [vmem:[#allocation5 + $0xe0] sm:$0xff]
      %v11889 = vld [vmem:[#allocation5 + $0xe8] sm:$0xff]
      %v11890 = vld [vmem:[#allocation5 + $0xf0] sm:$0xff]
      %v11891 = vld [vmem:[#allocation5 + $0xf8] sm:$0xff]
      %v11892 = vld [vmem:[%s11] sm:$0x1]
      %v11894 = vperm.slane %v11892, 0
      %v11896 = vadd.f32 %v11860, %v11894
      %v11897 = vadd.f32 %v11861, %v11894
      %v11898 = vadd.f32 %v11862, %v11894
      %v11899 = vadd.f32 %v11863, %v11894
      %v11900 = vadd.f32 %v11864, %v11894
      %v11901 = vadd.f32 %v11865, %v11894
      %v11902 = vadd.f32 %v11866, %v11894
      %v11903 = vadd.f32 %v11867, %v11894
      %v11904 = vadd.f32 %v11868, %v11894
      %v11905 = vadd.f32 %v11869, %v11894
      %v11906 = vadd.f32 %v11870, %v11894
      %v11907 = vadd.f32 %v11871, %v11894
      %v11908 = vadd.f32 %v11872, %v11894
      %v11909 = vadd.f32 %v11873, %v11894
      %v11910 = vadd.f32 %v11874, %v11894
      %v11911 = vadd.f32 %v11875, %v11894
      %v11912 = vadd.f32 %v11876, %v11894
      %v11913 = vadd.f32 %v11877, %v11894
      %v11914 = vadd.f32 %v11878, %v11894
      %v11915 = vadd.f32 %v11879, %v11894
      %v11916 = vadd.f32 %v11880, %v11894
      %v11917 = vadd.f32 %v11881, %v11894
      %v11918 = vadd.f32 %v11882, %v11894
      %v11919 = vadd.f32 %v11883, %v11894
      %v11920 = vadd.f32 %v11884, %v11894
      %v11921 = vadd.f32 %v11885, %v11894
      %v11922 = vadd.f32 %v11886, %v11894
      %v11923 = vadd.f32 %v11887, %v11894
      %v11924 = vadd.f32 %v11888, %v11894
      %v11925 = vadd.f32 %v11889, %v11894
      %v11926 = vadd.f32 %v11890, %v11894
      %v11927 = vadd.f32 %v11891, %v11894
      %v11928 = vmax.f32 %v11896, 0.0
      %v11929 = vmax.f32 %v11897, 0.0
      %v11930 = vmax.f32 %v11898, 0.0
      %v11931 = vmax.f32 %v11899, 0.0
      %v11932 = vmax.f32 %v11900, 0.0
      %v11933 = vmax.f32 %v11901, 0.0
      %v11934 = vmax.f32 %v11902, 0.0
      %v11935 = vmax.f32 %v11903, 0.0
      %v11936 = vmax.f32 %v11904, 0.0
      %v11937 = vmax.f32 %v11905, 0.0
      %v11938 = vmax.f32 %v11906, 0.0
      %v11939 = vmax.f32 %v11907, 0.0
      %v11940 = vmax.f32 %v11908, 0.0
      %v11941 = vmax.f32 %v11909, 0.0
      %v11942 = vmax.f32 %v11910, 0.0
      %v11943 = vmax.f32 %v11911, 0.0
      %v11944 = vmax.f32 %v11912, 0.0
      %v11945 = vmax.f32 %v11913, 0.0
      %v11946 = vmax.f32 %v11914, 0.0
      %v11947 = vmax.f32 %v11915, 0.0
      %v11948 = vmax.f32 %v11916, 0.0
      %v11949 = vmax.f32 %v11917, 0.0
      %v11950 = vmax.f32 %v11918, 0.0
      %v11951 = vmax.f32 %v11919, 0.0
      %v11952 = vmax.f32 %v11920, 0.0
      %v11953 = vmax.f32 %v11921, 0.0
      %v11954 = vmax.f32 %v11922, 0.0
      %v11955 = vmax.f32 %v11923, 0.0
      %v11956 = vmax.f32 %v11924, 0.0
      %v11957 = vmax.f32 %v11925, 0.0
      %v11958 = vmax.f32 %v11926, 0.0
      %v11959 = vmax.f32 %v11927, 0.0
      %v11960 = vadd.f32 %v11928, %v11929
      %v11961 = vadd.f32 %v11960, %v11930
      %v11962 = vadd.f32 %v11961, %v11931
      %v11963 = vadd.f32 %v11962, %v11932
      %v11964 = vadd.f32 %v11963, %v11933
      %v11965 = vadd.f32 %v11964, %v11934
      %v11966 = vadd.f32 %v11965, %v11935
      %v11967 = vadd.f32 %v11966, %v11936
      %v11968 = vadd.f32 %v11967, %v11937
      %v11969 = vadd.f32 %v11968, %v11938
      %v11970 = vadd.f32 %v11969, %v11939
      %v11971 = vadd.f32 %v11970, %v11940
      %v11972 = vadd.f32 %v11971, %v11941
      %v11973 = vadd.f32 %v11972, %v11942
      %v11974 = vadd.f32 %v11973, %v11943
      %v11975 = vadd.f32 %v11974, %v11944
      %v11976 = vadd.f32 %v11975, %v11945
      %v11977 = vadd.f32 %v11976, %v11946
      %v11978 = vadd.f32 %v11977, %v11947
      %v11979 = vadd.f32 %v11978, %v11948
      %v11980 = vadd.f32 %v11979, %v11949
      %v11981 = vadd.f32 %v11980, %v11950
      %v11982 = vadd.f32 %v11981, %v11951
      %v11983 = vadd.f32 %v11982, %v11952
      %v11984 = vadd.f32 %v11983, %v11953
      %v11985 = vadd.f32 %v11984, %v11954
      %v11986 = vadd.f32 %v11985, %v11955
      %v11987 = vadd.f32 %v11986, %v11956
      %v11988 = vadd.f32 %v11987, %v11957
      %v11989 = vadd.f32 %v11988, %v11958
      %v11990 = vadd.f32 %v11989, %v11959
      %v11991 = vrot.slane %v11990, 4
      %v11992 = vadd.f32 %v11990, %v11991
      %v11993 = vrot.slane %v11992, 2
      %v11994 = vadd.f32 %v11992, %v11993
      %v11995 = vrot.slane %v11994, 1
      %v11996 = vadd.f32 %v11994, %v11995
      %v11997 = vrcp.pop 256.0
      %v11998 = vmul.f32 256.0, %v11997
      %v11999 = vsub.f32 1.0, %v11998
      %v12000 = vmul.f32 %v11997, %v11999
      %v12001 = vadd.f32 %v11997, %v12000
      %vm12002 = vweird.f32 %v11997
      %v12003 = vsel %vm12002, %v11997, %v12001
      %v12004 = vmul.f32 %v11996, %v12003
      %v12005 = vld [vmem:[%s12] sm:$0xff]
      %v12006 = vld [vmem:[%s12 + $0x8] sm:$0xff]
      %v12007 = vld [vmem:[%s12 + $0x10] sm:$0xff]
      %v12008 = vld [vmem:[%s12 + $0x18] sm:$0xff]
      %v12009 = vld [vmem:[%s12 + $0x20] sm:$0xff]
      %v12010 = vld [vmem:[%s12 + $0x28] sm:$0xff]
      %v12011 = vld [vmem:[%s12 + $0x30] sm:$0xff]
      %v12012 = vld [vmem:[%s12 + $0x38] sm:$0xff]
      %v12013 = vld [vmem:[%s12 + $0x40] sm:$0xff]
      %v12014 = vld [vmem:[%s12 + $0x48] sm:$0xff]
      %v12015 = vld [vmem:[%s12 + $0x50] sm:$0xff]
      %v12016 = vld [vmem:[%s12 + $0x58] sm:$0xff]
      %v12017 = vld [vmem:[%s12 + $0x60] sm:$0xff]
      %v12018 = vld [vmem:[%s12 + $0x68] sm:$0xff]
      %v12019 = vld [vmem:[%s12 + $0x70] sm:$0xff]
      %v12020 = vld [vmem:[%s12 + $0x78] sm:$0xff]
      %v12021 = vld [vmem:[%s13] sm:$0x1]
      %12022 = vmatpush.msra.mxu0 %v12020
      %12023 = vmatpush.msra.mxu0 %v12019
      %12024 = vmatpush.msra.mxu0 %v12018
      %12025 = vmatpush.msra.mxu0 %v12017
      %12026 = vmatpush.msra.mxu0 %v12016
      %12027 = vmatpush.msra.mxu0 %v12015
      %12028 = vmatpush.msra.mxu0 %v12014
      %12029 = vmatpush.msra.mxu0 %v12013
      %12030 = vmatpush.msra.mxu0 %v12012
      %12031 = vmatpush.msra.mxu0 %v12011
      %12032 = vmatpush.msra.mxu0 %v12010
      %12033 = vmatpush.msra.mxu0 %v12009
      %12034 = vmatpush.msra.mxu0 %v12008
      %12035 = vmatpush.msra.mxu0 %v12007
      %12036 = vmatpush.msra.mxu0 %v12006
      %12037 = vmatpush.msra.mxu0 %v12005
      %12038 = vmatmul.f32.gmra.mxu0 %v12004
      %v12039 = vpop.f32.mrf.mxu0
      %v12040 = vadd.f32 %v12021, %v12039
      %12041 = vdwg.mxu0
      %v12042 = vadd.f32 %v12040, 3.0
      %v12043 = vmax.f32 %v12042, 0.0
      %v12044 = vmin.f32 %v12043, 6.0
      %v12045 = vmul.f32 %v12044, 0.16666667
      %v12046 = vperm.slane %v12045, 0
      %v12047 = vmul.f32 %v11928, %v12046
      %v12048 = vmul.f32 %v11929, %v12046
      %v12049 = vmul.f32 %v11930, %v12046
      %v12050 = vmul.f32 %v11931, %v12046
      %v12051 = vmul.f32 %v11932, %v12046
      %v12052 = vmul.f32 %v11933, %v12046
      %v12053 = vmul.f32 %v11934, %v12046
      %v12054 = vmul.f32 %v11935, %v12046
      %v12055 = vmul.f32 %v11936, %v12046
      %v12056 = vmul.f32 %v11937, %v12046
      %v12057 = vmul.f32 %v11938, %v12046
      %v12058 = vmul.f32 %v11939, %v12046
      %v12059 = vmul.f32 %v11940, %v12046
      %v12060 = vmul.f32 %v11941, %v12046
      %v12061 = vmul.f32 %v11942, %v12046
      %v12062 = vmul.f32 %v11943, %v12046
      %v12063 = vmul.f32 %v11944, %v12046
      %v12064 = vmul.f32 %v11945, %v12046
      %v12065 = vmul.f32 %v11946, %v12046
      %v12066 = vmul.f32 %v11947, %v12046
      %v12067 = vmul.f32 %v11948, %v12046
      %v12068 = vmul.f32 %v11949, %v12046
      %v12069 = vmul.f32 %v11950, %v12046
      %v12070 = vmul.f32 %v11951, %v12046
      %v12071 = vmul.f32 %v11952, %v12046
      %v12072 = vmul.f32 %v11953, %v12046
      %v12073 = vmul.f32 %v11954, %v12046
      %v12074 = vmul.f32 %v11955, %v12046
      %v12075 = vmul.f32 %v11956, %v12046
      %v12076 = vmul.f32 %v11957, %v12046
      %v12077 = vmul.f32 %v11958, %v12046
      %v12078 = vmul.f32 %v11959, %v12046
      %12079 = vst [vmem:[%s467] sm:$0xff] %v12047
      %12080 = vst [vmem:[%s467 + $0x8] sm:$0xff] %v12048
      %12081 = vst [vmem:[%s467 + $0x10] sm:$0xff] %v12049
      %12082 = vst [vmem:[%s467 + $0x18] sm:$0xff] %v12050
      %12083 = vst [vmem:[%s467 + $0x20] sm:$0xff] %v12051
      %12084 = vst [vmem:[%s467 + $0x28] sm:$0xff] %v12052
      %12085 = vst [vmem:[%s467 + $0x30] sm:$0xff] %v12053
      %12086 = vst [vmem:[%s467 + $0x38] sm:$0xff] %v12054
      %12087 = vst [vmem:[%s467 + $0x40] sm:$0xff] %v12055
      %12088 = vst [vmem:[%s467 + $0x48] sm:$0xff] %v12056
      %12089 = vst [vmem:[%s467 + $0x50] sm:$0xff] %v12057
      %12090 = vst [vmem:[%s467 + $0x58] sm:$0xff] %v12058
      %12091 = vst [vmem:[%s467 + $0x60] sm:$0xff] %v12059
      %12092 = vst [vmem:[%s467 + $0x68] sm:$0xff] %v12060
      %12093 = vst [vmem:[%s467 + $0x70] sm:$0xff] %v12061
      %12094 = vst [vmem:[%s467 + $0x78] sm:$0xff] %v12062
      %12095 = vst [vmem:[%s467 + $0x80] sm:$0xff] %v12063
      %12096 = vst [vmem:[%s467 + $0x88] sm:$0xff] %v12064
      %12097 = vst [vmem:[%s467 + $0x90] sm:$0xff] %v12065
      %12098 = vst [vmem:[%s467 + $0x98] sm:$0xff] %v12066
      %12099 = vst [vmem:[%s467 + $0xa0] sm:$0xff] %v12067
      %12100 = vst [vmem:[%s467 + $0xa8] sm:$0xff] %v12068
      %12101 = vst [vmem:[%s467 + $0xb0] sm:$0xff] %v12069
      %12102 = vst [vmem:[%s467 + $0xb8] sm:$0xff] %v12070
      %12103 = vst [vmem:[%s467 + $0xc0] sm:$0xff] %v12071
      %12104 = vst [vmem:[%s467 + $0xc8] sm:$0xff] %v12072
      %12105 = vst [vmem:[%s467 + $0xd0] sm:$0xff] %v12073
      %12106 = vst [vmem:[%s467 + $0xd8] sm:$0xff] %v12074
      %12107 = vst [vmem:[%s467 + $0xe0] sm:$0xff] %v12075
      %12108 = vst [vmem:[%s467 + $0xe8] sm:$0xff] %v12076
      %12109 = vst [vmem:[%s467 + $0xf0] sm:$0xff] %v12077
      %12110 = vst [vmem:[%s467 + $0xf8] sm:$0xff] %v12078
      %p12111 = scmp.lt.s32.totalorder %s25, 1
      %s12112 = scalar_select %p12111, %s25, 1
      %s12113 = smul.addr %s12112, 32
      %s12114 = smul.addr %s12113, 8
      %s12115 = scalar_lea.vmem %s14, %s12114
      // Predicated region
      $region77: #{osa_forward.1} parent=75 // pred_check
        %p12116 = pneg %p342
      $region78: #{osa_forward.1} parent=75 // pred_check_branch
        %12118 = sbr.rel (%p12116) target = $region80
      $region79: #{osa_forward.1} parent=75 // pred_region
        _
      $region80: #{osa_forward.1} parent=75 // pred_fallthru
        _
    $region76: #{osa_forward.1} parent=5 // pred_fallthru
      _
    %p12119 = scmp.le.s32.totalorder 2, %s20
    // Predicated region
    $region81: #{osa_forward.1} parent=5 // pred_check
      %p12120 = pneg %p12119
    $region82: #{osa_forward.1} parent=5 // pred_check_branch
      %12122 = sbr.rel (%p12120) target = $region84
    $region83: #{osa_forward.1} parent=5 // pred_region
      %s12123 = ssub.s32 %s20, 2
      // Predicated region
      $region85: #{osa_forward.1} parent=83 // pred_check
        %p12124 = pneg %p348
      $region86: #{osa_forward.1} parent=83 // pred_check_branch
        %12126 = sbr.rel (%p12124) target = $region88
      $region87: #{osa_forward.1} parent=83 // pred_region
        %p12127 = scmp.lt.s32.totalorder %s26, 1
        %s12128 = scalar_select %p12127, %s26, 1
        %s12129 = smul.addr %s12128, 32
        %s12130 = smul.addr %s12129, 8
        %s12131 = scalar_lea.vmem %s14, %s12130
      $region88: #{osa_forward.1} parent=83 // pred_fallthru
        _
    $region84: #{osa_forward.1} parent=5 // pred_fallthru
      _
  $region6: #{osa_forward.1} parent=0 // loop_footer
    %s24 = sadd.s32 1, %s20
  $region7: #{osa_forward.1} parent=0 // loop_footer_branch
    %19 = sbr.rel target = $region3
  $region8: #{osa_forward.1} parent=0 // loop_exit
    _

</llo_original>
